<compile_context>
chip_gen: v7x
topology: tpu7x:2x2x1
jax: 0.10.0
libtpu: 0.0.40
codegen_flags: <defaults>
</compile_context>

<pallas_src>
import jax
import jax.numpy as jnp
from jax.experimental import pallas as pl
from jax.experimental.pallas import tpu as pltpu


# ----------------------------------------------------------------------------
# In-kernel building blocks (operate on VMEM-resident values)
# ----------------------------------------------------------------------------

def _conv3x3_bn_act(x, w, s, b, act):
    """3x3 conv (pad=1) + folded BN affine + activation.

    x: (H, W, Cin) bf16 value
    w: (9*Cin, Cout) bf16        (HWIO weights flattened over (dy, dx, cin))
    s, b: (1, Cout) f32          (folded BatchNorm / bias affine)
    returns (H, W, Cout) f32
    """
    H, W, Cin = x.shape
    Cout = w.shape[-1]

    # zero padding done in VMEM (no HBM copy)
    zr = jnp.zeros((1, W, Cin), x.dtype)
    xp = jnp.concatenate([zr, x, zr], axis=0)            # (H+2, W, Cin)
    zc = jnp.zeros((H + 2, 1, Cin), x.dtype)
    xp = jnp.concatenate([zc, xp, zc], axis=1)           # (H+2, W+2, Cin)

    # im2col slab: one MXU matmul with K = 9*Cin
    cols = [xp[dy:dy + H, dx:dx + W, :].reshape(H * W, Cin)
            for dy in range(3) for dx in range(3)]
    slab = jnp.concatenate(cols, axis=-1)                # (H*W, 9*Cin) bf16

    acc = jnp.dot(slab, w, preferred_element_type=jnp.float32)   # (H*W, Cout) f32
    y = acc * s + b                                       # folded BN + conv bias
    if act == "leaky_relu":                               # nn.LeakyReLU(0.01)
        y = jnp.where(y >= 0.0, y, 0.01 * y)
    elif act == "relu":
        y = jnp.maximum(y, 0.0)
    elif act == "sigmoid":
        y = jax.nn.sigmoid(y)
    elif act == "identity":
        pass
    else:
        raise ValueError(act)
    return y.reshape(H, W, Cout)


def _maxpool2x2(y):
    """nn.MaxPool2d(2, 2) on a VMEM-resident (H, W, C) value."""
    H, W, C = y.shape
    Ho, Wo = H // 2, W // 2
    rows = [jnp.maximum(y[2 * i:2 * i + 1], y[2 * i + 1:2 * i + 2])
            for i in range(Ho)]                           # each (1, W, C)
    yh = rows[0] if Ho == 1 else jnp.concatenate(rows, axis=0)     # (Ho, W, C)
    cols = [jnp.maximum(yh[:, 2 * j:2 * j + 1, :], yh[:, 2 * j + 1:2 * j + 2, :])
            for j in range(Wo)]                           # each (Ho, 1, C)
    return cols[0] if Wo == 1 else jnp.concatenate(cols, axis=1)   # (Ho, Wo, C)


def _upsample2x(y):
    """nn.UpsamplingNearest2d(scale_factor=2) on a VMEM-resident (H, W, C) value."""
    H, W, C = y.shape
    cols = []
    for j in range(W):
        c = y[:, j:j + 1, :]
        cols += [c, c]
    yw = jnp.concatenate(cols, axis=1)                    # (H, 2W, C)
    rows = []
    for i in range(H):
        r = yw[i:i + 1]
        rows += [r, r]
    return jnp.concatenate(rows, axis=0)                  # (2H, 2W, C)


def _make_fused_kernel(layer_specs):
    """layer_specs: tuple of (activation, post) with post in {'pool', 'up', None}."""
    n_layers = len(layer_specs)

    def kernel(*refs):
        x_ref = refs[0]
        o_ref = refs[-1]
        pr = refs[1:-1]                                   # 3 refs per layer: w, scale, shift
        x = x_ref[0]                                      # (16, 16, Cin) bf16
        for li, (act, post) in enumerate(layer_specs):
            w = pr[3 * li][...]                           # (9*Cin, Cout) bf16
            s = pr[3 * li + 1][...]                       # (1, Cout) f32
            b = pr[3 * li + 2][...]                       # (1, Cout) f32
            y = _conv3x3_bn_act(x, w, s, b, act)          # (H, W, Cout) f32
            if li != n_layers - 1:
                y = y.astype(jnp.bfloat16)                # bf16 operands for next MXU matmul
            if post == "pool":
                y = _maxpool2x2(y)
            elif post == "up":
                y = _upsample2x(y)
            x = y
        o_ref[0] = x                                       # (16, 16, Cout_final) f32

    return kernel


# ----------------------------------------------------------------------------
# Wrapper: single fused pallas_call over the whole network
# ----------------------------------------------------------------------------

@jax.jit
def cloth_autoencoder_forward(params, x_nchw):
    # NCHW (PyTorch) -> NHWC (kernel layout), bf16 once at the boundary
    x = jnp.transpose(x_nchw, (0, 2, 3, 1)).astype(jnp.bfloat16)
    N, H, W, Cin = x.shape

    layer_params, layer_specs = [], []
    for p in params["encoder"]:
        layer_params.append(p); layer_specs.append(("leaky_relu", "pool"))
    layer_params.append(params["bottleneck"]); layer_specs.append(("relu", None))
    for p in params["decoder"]:
        layer_params.append(p); layer_specs.append(("relu", "up"))
    layer_params.append(params["final"]); layer_specs.append(("sigmoid", None))

    flat_inputs = [x]
    in_specs = [pl.BlockSpec((1, H, W, Cin), lambda n: (n, 0, 0, 0))]

    flops = 0
    h, w_, c = H, W, Cin
    for p, (act, post) in zip(layer_params, layer_specs):
        wk = p["w"]                                        # (3, 3, Cin, Cout) HWIO
        cin, cout = wk.shape[2], wk.shape[3]
        wf = wk.reshape(9 * cin, cout).astype(jnp.bfloat16)
        sc = p["scale"].reshape(1, cout).astype(jnp.float32)
        sh = p["shift"].reshape(1, cout).astype(jnp.float32)
        flat_inputs += [wf, sc, sh]
        in_specs += [pl.BlockSpec(wf.shape, lambda n: (0, 0)),
                     pl.BlockSpec(sc.shape, lambda n: (0, 0)),
                     pl.BlockSpec(sh.shape, lambda n: (0, 0))]
        flops += 2 * h * w_ * 9 * cin * cout
        c = cout
        if post == "pool":
            h, w_ = h // 2, w_ // 2
        elif post == "up":
            h, w_ = 2 * h, 2 * w_
    flops *= N
    transcendentals = N * h * w_ * c                       # final sigmoid
    bytes_accessed = (N * h * w_ * c * 4 +
                      sum(int(a.size) * a.dtype.itemsize for a in flat_inputs))

    kernel = _make_fused_kernel(tuple(layer_specs))
    out = pl.pallas_call(
        kernel,
        grid=(N,),
        in_specs=in_specs,
        out_specs=pl.BlockSpec((1, h, w_, c), lambda n: (n, 0, 0, 0)),
        out_shape=jax.ShapeDtypeStruct((N, h, w_, c), jnp.float32),
        compiler_params=pltpu.CompilerParams(dimension_semantics=("parallel",)),
        cost_estimate=pl.CostEstimate(flops=flops,
                                      transcendentals=transcendentals,
                                      bytes_accessed=bytes_accessed),
    )(*flat_inputs)

    # NHWC -> NCHW
    return jnp.transpose(out, (0, 3, 1, 2))


# ----------------------------------------------------------------------------
# Parameter construction (deterministic, synthetic) — BN folded for inference
# ----------------------------------------------------------------------------

def _conv_params(key, cin, cout, batch_norm):
    ks = jax.random.split(key, 6)
    w = 0.1 * jax.random.normal(ks[0], (3, 3, cin, cout), jnp.float32)   # HWIO
    b = 0.05 * jax.random.normal(ks[1], (cout,), jnp.float32)
    if batch_norm:
        gamma = 1.0 + 0.1 * jax.random.normal(ks[2], (cout,), jnp.float32)
        beta = 0.05 * jax.random.normal(ks[3], (cout,), jnp.float32)
        r_mean = 0.1 * jax.random.normal(ks[4], (cout,), jnp.float32)
        r_var = 1.0 + 0.1 * jnp.abs(jax.random.normal(ks[5], (cout,), jnp.float32))
        scale = gamma / jnp.sqrt(r_var + 1e-5)
        shift = scale * (b - r_mean) + beta       # BN(conv + b) folded: conv*scale + shift
    else:
        scale = jnp.ones((cout,), jnp.float32)
        shift = b
    return {"w": w, "scale": scale, "shift": shift}


def init_params(key, in_channels=3, out_channels=3, features=(8, 16, 32, 64),
                latent_dim_size=128):
    params = {"encoder": [], "decoder": []}
    cin = in_channels
    for feat in features:
        key, sub = jax.random.split(key)
        params["encoder"].append(_conv_params(sub, cin, feat, batch_norm=True))
        cin = feat
    key, sub = jax.random.split(key)
    params["bottleneck"] = _conv_params(sub, cin, latent_dim_size, batch_norm=False)
    cin = latent_dim_size
    for feat in reversed(features):
        key, sub = jax.random.split(key)
        params["decoder"].append(_conv_params(sub, cin, feat, batch_norm=True))
        cin = feat
    key, sub = jax.random.split(key)
    params["final"] = _conv_params(sub, cin, out_channels, batch_norm=True)
    return params


# ----------------------------------------------------------------------------
# Pure-JAX reference (f32) for a numerical sanity check
# ----------------------------------------------------------------------------

def _reference_forward(params, x_nchw):
    x = jnp.transpose(x_nchw, (0, 2, 3, 1)).astype(jnp.float32)

    def conv(x, p, act):
        y = jax.lax.conv_general_dilated(
            x, p["w"].astype(jnp.float32), window_strides=(1, 1), padding="SAME",
            dimension_numbers=("NHWC", "HWIO", "NHWC"))
        y = y * p["scale"][None, None, None, :] + p["shift"][None, None, None, :]
        if act == "leaky_relu":
            return jnp.where(y >= 0, y, 0.01 * y)
        if act == "relu":
            return jnp.maximum(y, 0.0)
        if act == "sigmoid":
            return jax.nn.sigmoid(y)
        return y

    def pool(x):
        return jax.lax.reduce_window(x, -jnp.inf, jax.lax.max,
                                     (1, 2, 2, 1), (1, 2, 2, 1), "VALID")

    def up(x):
        return jnp.repeat(jnp.repeat(x, 2, axis=1), 2, axis=2)

    for p in params["encoder"]:
        x = pool(conv(x, p, "leaky_relu"))
    x = conv(x, params["bottleneck"], "relu")
    for p in params["decoder"]:
        x = up(conv(x, p, "relu"))
    x = conv(x, params["final"], "sigmoid")
    return jnp.transpose(x, (0, 3, 1, 2))


# ----------------------------------------------------------------------------

if __name__ == "__main__":
    key = jax.random.PRNGKey(0)
    key, kp, kx = jax.random.split(key, 3)

    params = init_params(kp, in_channels=3, out_channels=3,
                         features=(8, 16, 32, 64), latent_dim_size=128)

    # small, deterministic input consistent with the module (NCHW like PyTorch)
    x = jax.random.normal(kx, (2, 3, 16, 16), dtype=jnp.float32)

    out = cloth_autoencoder_forward(params, x)
    out = jax.block_until_ready(out)

    assert out.shape == (2, 3, 16, 16), out.shape
    assert bool(jnp.all(jnp.isfinite(out)))

    # correctness check vs pure-JAX f32 reference (kernel compute is bf16/f32 mixed)
    ref = jax.block_until_ready(_reference_forward(params, x))
    max_err = float(jnp.max(jnp.abs(out - ref)))
    assert max_err < 5e-2, max_err

    print("KERNEL_OK")
</pallas_src>

<mosaic_0001>
module attributes {stable_mosaic.version = 11 : i64} {
  func.func @kernel(%arg0: i32, %arg1: memref<1x16x16x3xbf16, #tpu.memory_space<vmem>>, %arg2: memref<27x8xbf16, #tpu.memory_space<vmem>>, %arg3: memref<1x8xf32, #tpu.memory_space<vmem>>, %arg4: memref<1x8xf32, #tpu.memory_space<vmem>>, %arg5: memref<72x16xbf16, #tpu.memory_space<vmem>>, %arg6: memref<1x16xf32, #tpu.memory_space<vmem>>, %arg7: memref<1x16xf32, #tpu.memory_space<vmem>>, %arg8: memref<144x32xbf16, #tpu.memory_space<vmem>>, %arg9: memref<1x32xf32, #tpu.memory_space<vmem>>, %arg10: memref<1x32xf32, #tpu.memory_space<vmem>>, %arg11: memref<288x64xbf16, #tpu.memory_space<vmem>>, %arg12: memref<1x64xf32, #tpu.memory_space<vmem>>, %arg13: memref<1x64xf32, #tpu.memory_space<vmem>>, %arg14: memref<576x128xbf16, #tpu.memory_space<vmem>>, %arg15: memref<1x128xf32, #tpu.memory_space<vmem>>, %arg16: memref<1x128xf32, #tpu.memory_space<vmem>>, %arg17: memref<1152x64xbf16, #tpu.memory_space<vmem>>, %arg18: memref<1x64xf32, #tpu.memory_space<vmem>>, %arg19: memref<1x64xf32, #tpu.memory_space<vmem>>, %arg20: memref<576x32xbf16, #tpu.memory_space<vmem>>, %arg21: memref<1x32xf32, #tpu.memory_space<vmem>>, %arg22: memref<1x32xf32, #tpu.memory_space<vmem>>, %arg23: memref<288x16xbf16, #tpu.memory_space<vmem>>, %arg24: memref<1x16xf32, #tpu.memory_space<vmem>>, %arg25: memref<1x16xf32, #tpu.memory_space<vmem>>, %arg26: memref<144x8xbf16, #tpu.memory_space<vmem>>, %arg27: memref<1x8xf32, #tpu.memory_space<vmem>>, %arg28: memref<1x8xf32, #tpu.memory_space<vmem>>, %arg29: memref<72x3xbf16, #tpu.memory_space<vmem>>, %arg30: memref<1x3xf32, #tpu.memory_space<vmem>>, %arg31: memref<1x3xf32, #tpu.memory_space<vmem>>, %arg32: memref<1x16x16x3xf32, #tpu.memory_space<vmem>>) attributes {dimension_semantics = [#tpu.dimension_semantics<parallel>], iteration_bounds = array<i64: 2>, scalar_prefetch = 0 : i64, scratch_operands = 0 : i64, tpu.core_type = #tpu.core_type<tc>, window_params = [{transform_indices = @transform_0, window_bounds = array<i64: 1, 16, 16, 3>}, {pipeline_mode = #tpu.pipeline_mode<synchronous>, transform_indices = @transform_1, window_bounds = array<i64: 27, 8>}, {pipeline_mode = #tpu.pipeline_mode<synchronous>, transform_indices = @transform_2, window_bounds = array<i64: 1, 8>}, {pipeline_mode = #tpu.pipeline_mode<synchronous>, transform_indices = @transform_3, window_bounds = array<i64: 1, 8>}, {pipeline_mode = #tpu.pipeline_mode<synchronous>, transform_indices = @transform_4, window_bounds = array<i64: 72, 16>}, {pipeline_mode = #tpu.pipeline_mode<synchronous>, transform_indices = @transform_5, window_bounds = array<i64: 1, 16>}, {pipeline_mode = #tpu.pipeline_mode<synchronous>, transform_indices = @transform_6, window_bounds = array<i64: 1, 16>}, {pipeline_mode = #tpu.pipeline_mode<synchronous>, transform_indices = @transform_7, window_bounds = array<i64: 144, 32>}, {pipeline_mode = #tpu.pipeline_mode<synchronous>, transform_indices = @transform_8, window_bounds = array<i64: 1, 32>}, {pipeline_mode = #tpu.pipeline_mode<synchronous>, transform_indices = @transform_9, window_bounds = array<i64: 1, 32>}, {pipeline_mode = #tpu.pipeline_mode<synchronous>, transform_indices = @transform_10, window_bounds = array<i64: 288, 64>}, {pipeline_mode = #tpu.pipeline_mode<synchronous>, transform_indices = @transform_11, window_bounds = array<i64: 1, 64>}, {pipeline_mode = #tpu.pipeline_mode<synchronous>, transform_indices = @transform_12, window_bounds = array<i64: 1, 64>}, {pipeline_mode = #tpu.pipeline_mode<synchronous>, transform_indices = @transform_13, window_bounds = array<i64: 576, 128>}, {pipeline_mode = #tpu.pipeline_mode<synchronous>, transform_indices = @transform_14, window_bounds = array<i64: 1, 128>}, {pipeline_mode = #tpu.pipeline_mode<synchronous>, transform_indices = @transform_15, window_bounds = array<i64: 1, 128>}, {pipeline_mode = #tpu.pipeline_mode<synchronous>, transform_indices = @transform_16, window_bounds = array<i64: 1152, 64>}, {pipeline_mode = #tpu.pipeline_mode<synchronous>, transform_indices = @transform_17, window_bounds = array<i64: 1, 64>}, {pipeline_mode = #tpu.pipeline_mode<synchronous>, transform_indices = @transform_18, window_bounds = array<i64: 1, 64>}, {pipeline_mode = #tpu.pipeline_mode<synchronous>, transform_indices = @transform_19, window_bounds = array<i64: 576, 32>}, {pipeline_mode = #tpu.pipeline_mode<synchronous>, transform_indices = @transform_20, window_bounds = array<i64: 1, 32>}, {pipeline_mode = #tpu.pipeline_mode<synchronous>, transform_indices = @transform_21, window_bounds = array<i64: 1, 32>}, {pipeline_mode = #tpu.pipeline_mode<synchronous>, transform_indices = @transform_22, window_bounds = array<i64: 288, 16>}, {pipeline_mode = #tpu.pipeline_mode<synchronous>, transform_indices = @transform_23, window_bounds = array<i64: 1, 16>}, {pipeline_mode = #tpu.pipeline_mode<synchronous>, transform_indices = @transform_24, window_bounds = array<i64: 1, 16>}, {pipeline_mode = #tpu.pipeline_mode<synchronous>, transform_indices = @transform_25, window_bounds = array<i64: 144, 8>}, {pipeline_mode = #tpu.pipeline_mode<synchronous>, transform_indices = @transform_26, window_bounds = array<i64: 1, 8>}, {pipeline_mode = #tpu.pipeline_mode<synchronous>, transform_indices = @transform_27, window_bounds = array<i64: 1, 8>}, {pipeline_mode = #tpu.pipeline_mode<synchronous>, transform_indices = @transform_28, window_bounds = array<i64: 72, 3>}, {pipeline_mode = #tpu.pipeline_mode<synchronous>, transform_indices = @transform_29, window_bounds = array<i64: 1, 3>}, {pipeline_mode = #tpu.pipeline_mode<synchronous>, transform_indices = @transform_30, window_bounds = array<i64: 1, 3>}, {transform_indices = @transform_31, window_bounds = array<i64: 1, 16, 16, 3>}]} {
    %c0 = arith.constant 0 : index
    %c0_0 = arith.constant 0 : index
    %c0_1 = arith.constant 0 : index
    %c0_2 = arith.constant 0 : index
    %0 = vector.load %arg1[%c0, %c0_0, %c0_1, %c0_2] : memref<1x16x16x3xbf16, #tpu.memory_space<vmem>>, vector<1x16x16x3xbf16>
    %1 = vector.shape_cast %0 : vector<1x16x16x3xbf16> to vector<16x16x3xbf16>
    %c0_3 = arith.constant 0 : index
    %c0_4 = arith.constant 0 : index
    %2 = vector.load %arg2[%c0_3, %c0_4] : memref<27x8xbf16, #tpu.memory_space<vmem>>, vector<27x8xbf16>
    %c0_5 = arith.constant 0 : index
    %c0_6 = arith.constant 0 : index
    %3 = vector.load %arg3[%c0_5, %c0_6] : memref<1x8xf32, #tpu.memory_space<vmem>>, vector<1x8xf32>
    %c0_7 = arith.constant 0 : index
    %c0_8 = arith.constant 0 : index
    %4 = vector.load %arg4[%c0_7, %c0_8] : memref<1x8xf32, #tpu.memory_space<vmem>>, vector<1x8xf32>
    %cst = arith.constant 0.000000e+00 : bf16
    %5 = vector.broadcast %cst : bf16 to vector<1x16x3xbf16>
    %6 = tpu.concatenate %5, %1, %5 in 0 : vector<1x16x3xbf16>, vector<16x16x3xbf16>, vector<1x16x3xbf16> -> vector<18x16x3xbf16>
    %cst_9 = arith.constant 0.000000e+00 : bf16
    %7 = vector.broadcast %cst_9 : bf16 to vector<18x1x3xbf16>
    %8 = tpu.concatenate %7, %6, %7 in 1 : vector<18x1x3xbf16>, vector<18x16x3xbf16>, vector<18x1x3xbf16> -> vector<18x18x3xbf16>
    %9 = vector.extract_strided_slice %8 {offsets = [0, 0, 0], sizes = [16, 16, 3], strides = [1, 1, 1]} : vector<18x18x3xbf16> to vector<16x16x3xbf16>
    %10 = vector.shape_cast %9 : vector<16x16x3xbf16> to vector<256x3xbf16>
    %11 = vector.extract_strided_slice %8 {offsets = [0, 1, 0], sizes = [16, 16, 3], strides = [1, 1, 1]} : vector<18x18x3xbf16> to vector<16x16x3xbf16>
    %12 = vector.shape_cast %11 : vector<16x16x3xbf16> to vector<256x3xbf16>
    %13 = vector.extract_strided_slice %8 {offsets = [0, 2, 0], sizes = [16, 16, 3], strides = [1, 1, 1]} : vector<18x18x3xbf16> to vector<16x16x3xbf16>
    %14 = vector.shape_cast %13 : vector<16x16x3xbf16> to vector<256x3xbf16>
    %15 = vector.extract_strided_slice %8 {offsets = [1, 0, 0], sizes = [16, 16, 3], strides = [1, 1, 1]} : vector<18x18x3xbf16> to vector<16x16x3xbf16>
    %16 = vector.shape_cast %15 : vector<16x16x3xbf16> to vector<256x3xbf16>
    %17 = vector.extract_strided_slice %8 {offsets = [1, 1, 0], sizes = [16, 16, 3], strides = [1, 1, 1]} : vector<18x18x3xbf16> to vector<16x16x3xbf16>
    %18 = vector.shape_cast %17 : vector<16x16x3xbf16> to vector<256x3xbf16>
    %19 = vector.extract_strided_slice %8 {offsets = [1, 2, 0], sizes = [16, 16, 3], strides = [1, 1, 1]} : vector<18x18x3xbf16> to vector<16x16x3xbf16>
    %20 = vector.shape_cast %19 : vector<16x16x3xbf16> to vector<256x3xbf16>
    %21 = vector.extract_strided_slice %8 {offsets = [2, 0, 0], sizes = [16, 16, 3], strides = [1, 1, 1]} : vector<18x18x3xbf16> to vector<16x16x3xbf16>
    %22 = vector.shape_cast %21 : vector<16x16x3xbf16> to vector<256x3xbf16>
    %23 = vector.extract_strided_slice %8 {offsets = [2, 1, 0], sizes = [16, 16, 3], strides = [1, 1, 1]} : vector<18x18x3xbf16> to vector<16x16x3xbf16>
    %24 = vector.shape_cast %23 : vector<16x16x3xbf16> to vector<256x3xbf16>
    %25 = vector.extract_strided_slice %8 {offsets = [2, 2, 0], sizes = [16, 16, 3], strides = [1, 1, 1]} : vector<18x18x3xbf16> to vector<16x16x3xbf16>
    %26 = vector.shape_cast %25 : vector<16x16x3xbf16> to vector<256x3xbf16>
    %27 = tpu.concatenate %10, %12, %14, %16, %18, %20, %22, %24, %26 in 1 : vector<256x3xbf16>, vector<256x3xbf16>, vector<256x3xbf16>, vector<256x3xbf16>, vector<256x3xbf16>, vector<256x3xbf16>, vector<256x3xbf16>, vector<256x3xbf16>, vector<256x3xbf16> -> vector<256x27xbf16>
    %cst_10 = arith.constant dense<0.000000e+00> : vector<256x8xf32>
    %28 = tpu.matmul %27, %2, %cst_10 {dimension_numbers = #tpu.dot_dimension_numbers<[1], [0], [0], [1], [0, 0, 1, 1], [], []>} : vector<256x27xbf16>, vector<27x8xbf16>, vector<256x8xf32> -> vector<256x8xf32>
    %29 = vector.broadcast %3 : vector<1x8xf32> to vector<256x8xf32>
    %30 = arith.mulf %28, %29 : vector<256x8xf32>
    %31 = vector.broadcast %4 : vector<1x8xf32> to vector<256x8xf32>
    %32 = arith.addf %30, %31 : vector<256x8xf32>
    %cst_11 = arith.constant 0.000000e+00 : f32
    %33 = vector.broadcast %cst_11 : f32 to vector<256x8xf32>
    %34 = arith.cmpf oge, %32, %33 : vector<256x8xf32>
    %cst_12 = arith.constant 0.00999999977 : f32
    %35 = vector.broadcast %cst_12 : f32 to vector<256x8xf32>
    %36 = arith.mulf %35, %32 : vector<256x8xf32>
    %37 = arith.select %34, %32, %36 : vector<256x8xi1>, vector<256x8xf32>
    %38 = vector.shape_cast %37 : vector<256x8xf32> to vector<16x16x8xf32>
    %39 = arith.truncf %38 : vector<16x16x8xf32> to vector<16x16x8xbf16>
    %40 = vector.extract_strided_slice %39 {offsets = [0, 0, 0], sizes = [1, 16, 8], strides = [1, 1, 1]} : vector<16x16x8xbf16> to vector<1x16x8xbf16>
    %41 = vector.extract_strided_slice %39 {offsets = [1, 0, 0], sizes = [1, 16, 8], strides = [1, 1, 1]} : vector<16x16x8xbf16> to vector<1x16x8xbf16>
    %42 = arith.maximumf %40, %41 : vector<1x16x8xbf16>
    %43 = vector.extract_strided_slice %39 {offsets = [2, 0, 0], sizes = [1, 16, 8], strides = [1, 1, 1]} : vector<16x16x8xbf16> to vector<1x16x8xbf16>
    %44 = vector.extract_strided_slice %39 {offsets = [3, 0, 0], sizes = [1, 16, 8], strides = [1, 1, 1]} : vector<16x16x8xbf16> to vector<1x16x8xbf16>
    %45 = arith.maximumf %43, %44 : vector<1x16x8xbf16>
    %46 = vector.extract_strided_slice %39 {offsets = [4, 0, 0], sizes = [1, 16, 8], strides = [1, 1, 1]} : vector<16x16x8xbf16> to vector<1x16x8xbf16>
    %47 = vector.extract_strided_slice %39 {offsets = [5, 0, 0], sizes = [1, 16, 8], strides = [1, 1, 1]} : vector<16x16x8xbf16> to vector<1x16x8xbf16>
    %48 = arith.maximumf %46, %47 : vector<1x16x8xbf16>
    %49 = vector.extract_strided_slice %39 {offsets = [6, 0, 0], sizes = [1, 16, 8], strides = [1, 1, 1]} : vector<16x16x8xbf16> to vector<1x16x8xbf16>
    %50 = vector.extract_strided_slice %39 {offsets = [7, 0, 0], sizes = [1, 16, 8], strides = [1, 1, 1]} : vector<16x16x8xbf16> to vector<1x16x8xbf16>
    %51 = arith.maximumf %49, %50 : vector<1x16x8xbf16>
    %52 = vector.extract_strided_slice %39 {offsets = [8, 0, 0], sizes = [1, 16, 8], strides = [1, 1, 1]} : vector<16x16x8xbf16> to vector<1x16x8xbf16>
    %53 = vector.extract_strided_slice %39 {offsets = [9, 0, 0], sizes = [1, 16, 8], strides = [1, 1, 1]} : vector<16x16x8xbf16> to vector<1x16x8xbf16>
    %54 = arith.maximumf %52, %53 : vector<1x16x8xbf16>
    %55 = vector.extract_strided_slice %39 {offsets = [10, 0, 0], sizes = [1, 16, 8], strides = [1, 1, 1]} : vector<16x16x8xbf16> to vector<1x16x8xbf16>
    %56 = vector.extract_strided_slice %39 {offsets = [11, 0, 0], sizes = [1, 16, 8], strides = [1, 1, 1]} : vector<16x16x8xbf16> to vector<1x16x8xbf16>
    %57 = arith.maximumf %55, %56 : vector<1x16x8xbf16>
    %58 = vector.extract_strided_slice %39 {offsets = [12, 0, 0], sizes = [1, 16, 8], strides = [1, 1, 1]} : vector<16x16x8xbf16> to vector<1x16x8xbf16>
    %59 = vector.extract_strided_slice %39 {offsets = [13, 0, 0], sizes = [1, 16, 8], strides = [1, 1, 1]} : vector<16x16x8xbf16> to vector<1x16x8xbf16>
    %60 = arith.maximumf %58, %59 : vector<1x16x8xbf16>
    %61 = vector.extract_strided_slice %39 {offsets = [14, 0, 0], sizes = [1, 16, 8], strides = [1, 1, 1]} : vector<16x16x8xbf16> to vector<1x16x8xbf16>
    %62 = vector.extract_strided_slice %39 {offsets = [15, 0, 0], sizes = [1, 16, 8], strides = [1, 1, 1]} : vector<16x16x8xbf16> to vector<1x16x8xbf16>
    %63 = arith.maximumf %61, %62 : vector<1x16x8xbf16>
    %64 = tpu.concatenate %42, %45, %48, %51, %54, %57, %60, %63 in 0 : vector<1x16x8xbf16>, vector<1x16x8xbf16>, vector<1x16x8xbf16>, vector<1x16x8xbf16>, vector<1x16x8xbf16>, vector<1x16x8xbf16>, vector<1x16x8xbf16>, vector<1x16x8xbf16> -> vector<8x16x8xbf16>
    %65 = vector.extract_strided_slice %64 {offsets = [0, 0, 0], sizes = [8, 1, 8], strides = [1, 1, 1]} : vector<8x16x8xbf16> to vector<8x1x8xbf16>
    %66 = vector.extract_strided_slice %64 {offsets = [0, 1, 0], sizes = [8, 1, 8], strides = [1, 1, 1]} : vector<8x16x8xbf16> to vector<8x1x8xbf16>
    %67 = arith.maximumf %65, %66 : vector<8x1x8xbf16>
    %68 = vector.extract_strided_slice %64 {offsets = [0, 2, 0], sizes = [8, 1, 8], strides = [1, 1, 1]} : vector<8x16x8xbf16> to vector<8x1x8xbf16>
    %69 = vector.extract_strided_slice %64 {offsets = [0, 3, 0], sizes = [8, 1, 8], strides = [1, 1, 1]} : vector<8x16x8xbf16> to vector<8x1x8xbf16>
    %70 = arith.maximumf %68, %69 : vector<8x1x8xbf16>
    %71 = vector.extract_strided_slice %64 {offsets = [0, 4, 0], sizes = [8, 1, 8], strides = [1, 1, 1]} : vector<8x16x8xbf16> to vector<8x1x8xbf16>
    %72 = vector.extract_strided_slice %64 {offsets = [0, 5, 0], sizes = [8, 1, 8], strides = [1, 1, 1]} : vector<8x16x8xbf16> to vector<8x1x8xbf16>
    %73 = arith.maximumf %71, %72 : vector<8x1x8xbf16>
    %74 = vector.extract_strided_slice %64 {offsets = [0, 6, 0], sizes = [8, 1, 8], strides = [1, 1, 1]} : vector<8x16x8xbf16> to vector<8x1x8xbf16>
    %75 = vector.extract_strided_slice %64 {offsets = [0, 7, 0], sizes = [8, 1, 8], strides = [1, 1, 1]} : vector<8x16x8xbf16> to vector<8x1x8xbf16>
    %76 = arith.maximumf %74, %75 : vector<8x1x8xbf16>
    %77 = vector.extract_strided_slice %64 {offsets = [0, 8, 0], sizes = [8, 1, 8], strides = [1, 1, 1]} : vector<8x16x8xbf16> to vector<8x1x8xbf16>
    %78 = vector.extract_strided_slice %64 {offsets = [0, 9, 0], sizes = [8, 1, 8], strides = [1, 1, 1]} : vector<8x16x8xbf16> to vector<8x1x8xbf16>
    %79 = arith.maximumf %77, %78 : vector<8x1x8xbf16>
    %80 = vector.extract_strided_slice %64 {offsets = [0, 10, 0], sizes = [8, 1, 8], strides = [1, 1, 1]} : vector<8x16x8xbf16> to vector<8x1x8xbf16>
    %81 = vector.extract_strided_slice %64 {offsets = [0, 11, 0], sizes = [8, 1, 8], strides = [1, 1, 1]} : vector<8x16x8xbf16> to vector<8x1x8xbf16>
    %82 = arith.maximumf %80, %81 : vector<8x1x8xbf16>
    %83 = vector.extract_strided_slice %64 {offsets = [0, 12, 0], sizes = [8, 1, 8], strides = [1, 1, 1]} : vector<8x16x8xbf16> to vector<8x1x8xbf16>
    %84 = vector.extract_strided_slice %64 {offsets = [0, 13, 0], sizes = [8, 1, 8], strides = [1, 1, 1]} : vector<8x16x8xbf16> to vector<8x1x8xbf16>
    %85 = arith.maximumf %83, %84 : vector<8x1x8xbf16>
    %86 = vector.extract_strided_slice %64 {offsets = [0, 14, 0], sizes = [8, 1, 8], strides = [1, 1, 1]} : vector<8x16x8xbf16> to vector<8x1x8xbf16>
    %87 = vector.extract_strided_slice %64 {offsets = [0, 15, 0], sizes = [8, 1, 8], strides = [1, 1, 1]} : vector<8x16x8xbf16> to vector<8x1x8xbf16>
    %88 = arith.maximumf %86, %87 : vector<8x1x8xbf16>
    %89 = tpu.concatenate %67, %70, %73, %76, %79, %82, %85, %88 in 1 : vector<8x1x8xbf16>, vector<8x1x8xbf16>, vector<8x1x8xbf16>, vector<8x1x8xbf16>, vector<8x1x8xbf16>, vector<8x1x8xbf16>, vector<8x1x8xbf16>, vector<8x1x8xbf16> -> vector<8x8x8xbf16>
    %c0_13 = arith.constant 0 : index
    %c0_14 = arith.constant 0 : index
    %90 = vector.load %arg5[%c0_13, %c0_14] : memref<72x16xbf16, #tpu.memory_space<vmem>>, vector<72x16xbf16>
    %c0_15 = arith.constant 0 : index
    %c0_16 = arith.constant 0 : index
    %91 = vector.load %arg6[%c0_15, %c0_16] : memref<1x16xf32, #tpu.memory_space<vmem>>, vector<1x16xf32>
    %c0_17 = arith.constant 0 : index
    %c0_18 = arith.constant 0 : index
    %92 = vector.load %arg7[%c0_17, %c0_18] : memref<1x16xf32, #tpu.memory_space<vmem>>, vector<1x16xf32>
    %cst_19 = arith.constant 0.000000e+00 : bf16
    %93 = vector.broadcast %cst_19 : bf16 to vector<1x8x8xbf16>
    %94 = tpu.concatenate %93, %89, %93 in 0 : vector<1x8x8xbf16>, vector<8x8x8xbf16>, vector<1x8x8xbf16> -> vector<10x8x8xbf16>
    %cst_20 = arith.constant 0.000000e+00 : bf16
    %95 = vector.broadcast %cst_20 : bf16 to vector<10x1x8xbf16>
    %96 = tpu.concatenate %95, %94, %95 in 1 : vector<10x1x8xbf16>, vector<10x8x8xbf16>, vector<10x1x8xbf16> -> vector<10x10x8xbf16>
    %97 = vector.extract_strided_slice %96 {offsets = [0, 0, 0], sizes = [8, 8, 8], strides = [1, 1, 1]} : vector<10x10x8xbf16> to vector<8x8x8xbf16>
    %98 = vector.shape_cast %97 : vector<8x8x8xbf16> to vector<64x8xbf16>
    %99 = vector.extract_strided_slice %96 {offsets = [0, 1, 0], sizes = [8, 8, 8], strides = [1, 1, 1]} : vector<10x10x8xbf16> to vector<8x8x8xbf16>
    %100 = vector.shape_cast %99 : vector<8x8x8xbf16> to vector<64x8xbf16>
    %101 = vector.extract_strided_slice %96 {offsets = [0, 2, 0], sizes = [8, 8, 8], strides = [1, 1, 1]} : vector<10x10x8xbf16> to vector<8x8x8xbf16>
    %102 = vector.shape_cast %101 : vector<8x8x8xbf16> to vector<64x8xbf16>
    %103 = vector.extract_strided_slice %96 {offsets = [1, 0, 0], sizes = [8, 8, 8], strides = [1, 1, 1]} : vector<10x10x8xbf16> to vector<8x8x8xbf16>
    %104 = vector.shape_cast %103 : vector<8x8x8xbf16> to vector<64x8xbf16>
    %105 = vector.extract_strided_slice %96 {offsets = [1, 1, 0], sizes = [8, 8, 8], strides = [1, 1, 1]} : vector<10x10x8xbf16> to vector<8x8x8xbf16>
    %106 = vector.shape_cast %105 : vector<8x8x8xbf16> to vector<64x8xbf16>
    %107 = vector.extract_strided_slice %96 {offsets = [1, 2, 0], sizes = [8, 8, 8], strides = [1, 1, 1]} : vector<10x10x8xbf16> to vector<8x8x8xbf16>
    %108 = vector.shape_cast %107 : vector<8x8x8xbf16> to vector<64x8xbf16>
    %109 = vector.extract_strided_slice %96 {offsets = [2, 0, 0], sizes = [8, 8, 8], strides = [1, 1, 1]} : vector<10x10x8xbf16> to vector<8x8x8xbf16>
    %110 = vector.shape_cast %109 : vector<8x8x8xbf16> to vector<64x8xbf16>
    %111 = vector.extract_strided_slice %96 {offsets = [2, 1, 0], sizes = [8, 8, 8], strides = [1, 1, 1]} : vector<10x10x8xbf16> to vector<8x8x8xbf16>
    %112 = vector.shape_cast %111 : vector<8x8x8xbf16> to vector<64x8xbf16>
    %113 = vector.extract_strided_slice %96 {offsets = [2, 2, 0], sizes = [8, 8, 8], strides = [1, 1, 1]} : vector<10x10x8xbf16> to vector<8x8x8xbf16>
    %114 = vector.shape_cast %113 : vector<8x8x8xbf16> to vector<64x8xbf16>
    %115 = tpu.concatenate %98, %100, %102, %104, %106, %108, %110, %112, %114 in 1 : vector<64x8xbf16>, vector<64x8xbf16>, vector<64x8xbf16>, vector<64x8xbf16>, vector<64x8xbf16>, vector<64x8xbf16>, vector<64x8xbf16>, vector<64x8xbf16>, vector<64x8xbf16> -> vector<64x72xbf16>
    %cst_21 = arith.constant dense<0.000000e+00> : vector<64x16xf32>
    %116 = tpu.matmul %115, %90, %cst_21 {dimension_numbers = #tpu.dot_dimension_numbers<[1], [0], [0], [1], [0, 0, 1, 1], [], []>} : vector<64x72xbf16>, vector<72x16xbf16>, vector<64x16xf32> -> vector<64x16xf32>
    %117 = vector.broadcast %91 : vector<1x16xf32> to vector<64x16xf32>
    %118 = arith.mulf %116, %117 : vector<64x16xf32>
    %119 = vector.broadcast %92 : vector<1x16xf32> to vector<64x16xf32>
    %120 = arith.addf %118, %119 : vector<64x16xf32>
    %cst_22 = arith.constant 0.000000e+00 : f32
    %121 = vector.broadcast %cst_22 : f32 to vector<64x16xf32>
    %122 = arith.cmpf oge, %120, %121 : vector<64x16xf32>
    %cst_23 = arith.constant 0.00999999977 : f32
    %123 = vector.broadcast %cst_23 : f32 to vector<64x16xf32>
    %124 = arith.mulf %123, %120 : vector<64x16xf32>
    %125 = arith.select %122, %120, %124 : vector<64x16xi1>, vector<64x16xf32>
    %126 = vector.shape_cast %125 : vector<64x16xf32> to vector<8x8x16xf32>
    %127 = arith.truncf %126 : vector<8x8x16xf32> to vector<8x8x16xbf16>
    %128 = vector.extract_strided_slice %127 {offsets = [0, 0, 0], sizes = [1, 8, 16], strides = [1, 1, 1]} : vector<8x8x16xbf16> to vector<1x8x16xbf16>
    %129 = vector.extract_strided_slice %127 {offsets = [1, 0, 0], sizes = [1, 8, 16], strides = [1, 1, 1]} : vector<8x8x16xbf16> to vector<1x8x16xbf16>
    %130 = arith.maximumf %128, %129 : vector<1x8x16xbf16>
    %131 = vector.extract_strided_slice %127 {offsets = [2, 0, 0], sizes = [1, 8, 16], strides = [1, 1, 1]} : vector<8x8x16xbf16> to vector<1x8x16xbf16>
    %132 = vector.extract_strided_slice %127 {offsets = [3, 0, 0], sizes = [1, 8, 16], strides = [1, 1, 1]} : vector<8x8x16xbf16> to vector<1x8x16xbf16>
    %133 = arith.maximumf %131, %132 : vector<1x8x16xbf16>
    %134 = vector.extract_strided_slice %127 {offsets = [4, 0, 0], sizes = [1, 8, 16], strides = [1, 1, 1]} : vector<8x8x16xbf16> to vector<1x8x16xbf16>
    %135 = vector.extract_strided_slice %127 {offsets = [5, 0, 0], sizes = [1, 8, 16], strides = [1, 1, 1]} : vector<8x8x16xbf16> to vector<1x8x16xbf16>
    %136 = arith.maximumf %134, %135 : vector<1x8x16xbf16>
    %137 = vector.extract_strided_slice %127 {offsets = [6, 0, 0], sizes = [1, 8, 16], strides = [1, 1, 1]} : vector<8x8x16xbf16> to vector<1x8x16xbf16>
    %138 = vector.extract_strided_slice %127 {offsets = [7, 0, 0], sizes = [1, 8, 16], strides = [1, 1, 1]} : vector<8x8x16xbf16> to vector<1x8x16xbf16>
    %139 = arith.maximumf %137, %138 : vector<1x8x16xbf16>
    %140 = tpu.concatenate %130, %133, %136, %139 in 0 : vector<1x8x16xbf16>, vector<1x8x16xbf16>, vector<1x8x16xbf16>, vector<1x8x16xbf16> -> vector<4x8x16xbf16>
    %141 = vector.extract_strided_slice %140 {offsets = [0, 0, 0], sizes = [4, 1, 16], strides = [1, 1, 1]} : vector<4x8x16xbf16> to vector<4x1x16xbf16>
    %142 = vector.extract_strided_slice %140 {offsets = [0, 1, 0], sizes = [4, 1, 16], strides = [1, 1, 1]} : vector<4x8x16xbf16> to vector<4x1x16xbf16>
    %143 = arith.maximumf %141, %142 : vector<4x1x16xbf16>
    %144 = vector.extract_strided_slice %140 {offsets = [0, 2, 0], sizes = [4, 1, 16], strides = [1, 1, 1]} : vector<4x8x16xbf16> to vector<4x1x16xbf16>
    %145 = vector.extract_strided_slice %140 {offsets = [0, 3, 0], sizes = [4, 1, 16], strides = [1, 1, 1]} : vector<4x8x16xbf16> to vector<4x1x16xbf16>
    %146 = arith.maximumf %144, %145 : vector<4x1x16xbf16>
    %147 = vector.extract_strided_slice %140 {offsets = [0, 4, 0], sizes = [4, 1, 16], strides = [1, 1, 1]} : vector<4x8x16xbf16> to vector<4x1x16xbf16>
    %148 = vector.extract_strided_slice %140 {offsets = [0, 5, 0], sizes = [4, 1, 16], strides = [1, 1, 1]} : vector<4x8x16xbf16> to vector<4x1x16xbf16>
    %149 = arith.maximumf %147, %148 : vector<4x1x16xbf16>
    %150 = vector.extract_strided_slice %140 {offsets = [0, 6, 0], sizes = [4, 1, 16], strides = [1, 1, 1]} : vector<4x8x16xbf16> to vector<4x1x16xbf16>
    %151 = vector.extract_strided_slice %140 {offsets = [0, 7, 0], sizes = [4, 1, 16], strides = [1, 1, 1]} : vector<4x8x16xbf16> to vector<4x1x16xbf16>
    %152 = arith.maximumf %150, %151 : vector<4x1x16xbf16>
    %153 = tpu.concatenate %143, %146, %149, %152 in 1 : vector<4x1x16xbf16>, vector<4x1x16xbf16>, vector<4x1x16xbf16>, vector<4x1x16xbf16> -> vector<4x4x16xbf16>
    %c0_24 = arith.constant 0 : index
    %c0_25 = arith.constant 0 : index
    %154 = vector.load %arg8[%c0_24, %c0_25] : memref<144x32xbf16, #tpu.memory_space<vmem>>, vector<144x32xbf16>
    %c0_26 = arith.constant 0 : index
    %c0_27 = arith.constant 0 : index
    %155 = vector.load %arg9[%c0_26, %c0_27] : memref<1x32xf32, #tpu.memory_space<vmem>>, vector<1x32xf32>
    %c0_28 = arith.constant 0 : index
    %c0_29 = arith.constant 0 : index
    %156 = vector.load %arg10[%c0_28, %c0_29] : memref<1x32xf32, #tpu.memory_space<vmem>>, vector<1x32xf32>
    %cst_30 = arith.constant 0.000000e+00 : bf16
    %157 = vector.broadcast %cst_30 : bf16 to vector<1x4x16xbf16>
    %158 = tpu.concatenate %157, %153, %157 in 0 : vector<1x4x16xbf16>, vector<4x4x16xbf16>, vector<1x4x16xbf16> -> vector<6x4x16xbf16>
    %cst_31 = arith.constant 0.000000e+00 : bf16
    %159 = vector.broadcast %cst_31 : bf16 to vector<6x1x16xbf16>
    %160 = tpu.concatenate %159, %158, %159 in 1 : vector<6x1x16xbf16>, vector<6x4x16xbf16>, vector<6x1x16xbf16> -> vector<6x6x16xbf16>
    %161 = vector.extract_strided_slice %160 {offsets = [0, 0, 0], sizes = [4, 4, 16], strides = [1, 1, 1]} : vector<6x6x16xbf16> to vector<4x4x16xbf16>
    %162 = vector.shape_cast %161 : vector<4x4x16xbf16> to vector<16x16xbf16>
    %163 = vector.extract_strided_slice %160 {offsets = [0, 1, 0], sizes = [4, 4, 16], strides = [1, 1, 1]} : vector<6x6x16xbf16> to vector<4x4x16xbf16>
    %164 = vector.shape_cast %163 : vector<4x4x16xbf16> to vector<16x16xbf16>
    %165 = vector.extract_strided_slice %160 {offsets = [0, 2, 0], sizes = [4, 4, 16], strides = [1, 1, 1]} : vector<6x6x16xbf16> to vector<4x4x16xbf16>
    %166 = vector.shape_cast %165 : vector<4x4x16xbf16> to vector<16x16xbf16>
    %167 = vector.extract_strided_slice %160 {offsets = [1, 0, 0], sizes = [4, 4, 16], strides = [1, 1, 1]} : vector<6x6x16xbf16> to vector<4x4x16xbf16>
    %168 = vector.shape_cast %167 : vector<4x4x16xbf16> to vector<16x16xbf16>
    %169 = vector.extract_strided_slice %160 {offsets = [1, 1, 0], sizes = [4, 4, 16], strides = [1, 1, 1]} : vector<6x6x16xbf16> to vector<4x4x16xbf16>
    %170 = vector.shape_cast %169 : vector<4x4x16xbf16> to vector<16x16xbf16>
    %171 = vector.extract_strided_slice %160 {offsets = [1, 2, 0], sizes = [4, 4, 16], strides = [1, 1, 1]} : vector<6x6x16xbf16> to vector<4x4x16xbf16>
    %172 = vector.shape_cast %171 : vector<4x4x16xbf16> to vector<16x16xbf16>
    %173 = vector.extract_strided_slice %160 {offsets = [2, 0, 0], sizes = [4, 4, 16], strides = [1, 1, 1]} : vector<6x6x16xbf16> to vector<4x4x16xbf16>
    %174 = vector.shape_cast %173 : vector<4x4x16xbf16> to vector<16x16xbf16>
    %175 = vector.extract_strided_slice %160 {offsets = [2, 1, 0], sizes = [4, 4, 16], strides = [1, 1, 1]} : vector<6x6x16xbf16> to vector<4x4x16xbf16>
    %176 = vector.shape_cast %175 : vector<4x4x16xbf16> to vector<16x16xbf16>
    %177 = vector.extract_strided_slice %160 {offsets = [2, 2, 0], sizes = [4, 4, 16], strides = [1, 1, 1]} : vector<6x6x16xbf16> to vector<4x4x16xbf16>
    %178 = vector.shape_cast %177 : vector<4x4x16xbf16> to vector<16x16xbf16>
    %179 = tpu.concatenate %162, %164, %166, %168, %170, %172, %174, %176, %178 in 1 : vector<16x16xbf16>, vector<16x16xbf16>, vector<16x16xbf16>, vector<16x16xbf16>, vector<16x16xbf16>, vector<16x16xbf16>, vector<16x16xbf16>, vector<16x16xbf16>, vector<16x16xbf16> -> vector<16x144xbf16>
    %cst_32 = arith.constant dense<0.000000e+00> : vector<16x32xf32>
    %180 = tpu.matmul %179, %154, %cst_32 {dimension_numbers = #tpu.dot_dimension_numbers<[1], [0], [0], [1], [0, 0, 1, 1], [], []>} : vector<16x144xbf16>, vector<144x32xbf16>, vector<16x32xf32> -> vector<16x32xf32>
    %181 = vector.broadcast %155 : vector<1x32xf32> to vector<16x32xf32>
    %182 = arith.mulf %180, %181 : vector<16x32xf32>
    %183 = vector.broadcast %156 : vector<1x32xf32> to vector<16x32xf32>
    %184 = arith.addf %182, %183 : vector<16x32xf32>
    %cst_33 = arith.constant 0.000000e+00 : f32
    %185 = vector.broadcast %cst_33 : f32 to vector<16x32xf32>
    %186 = arith.cmpf oge, %184, %185 : vector<16x32xf32>
    %cst_34 = arith.constant 0.00999999977 : f32
    %187 = vector.broadcast %cst_34 : f32 to vector<16x32xf32>
    %188 = arith.mulf %187, %184 : vector<16x32xf32>
    %189 = arith.select %186, %184, %188 : vector<16x32xi1>, vector<16x32xf32>
    %190 = vector.shape_cast %189 : vector<16x32xf32> to vector<4x4x32xf32>
    %191 = arith.truncf %190 : vector<4x4x32xf32> to vector<4x4x32xbf16>
    %192 = vector.extract_strided_slice %191 {offsets = [0, 0, 0], sizes = [1, 4, 32], strides = [1, 1, 1]} : vector<4x4x32xbf16> to vector<1x4x32xbf16>
    %193 = vector.extract_strided_slice %191 {offsets = [1, 0, 0], sizes = [1, 4, 32], strides = [1, 1, 1]} : vector<4x4x32xbf16> to vector<1x4x32xbf16>
    %194 = arith.maximumf %192, %193 : vector<1x4x32xbf16>
    %195 = vector.extract_strided_slice %191 {offsets = [2, 0, 0], sizes = [1, 4, 32], strides = [1, 1, 1]} : vector<4x4x32xbf16> to vector<1x4x32xbf16>
    %196 = vector.extract_strided_slice %191 {offsets = [3, 0, 0], sizes = [1, 4, 32], strides = [1, 1, 1]} : vector<4x4x32xbf16> to vector<1x4x32xbf16>
    %197 = arith.maximumf %195, %196 : vector<1x4x32xbf16>
    %198 = tpu.concatenate %194, %197 in 0 : vector<1x4x32xbf16>, vector<1x4x32xbf16> -> vector<2x4x32xbf16>
    %199 = vector.extract_strided_slice %198 {offsets = [0, 0, 0], sizes = [2, 1, 32], strides = [1, 1, 1]} : vector<2x4x32xbf16> to vector<2x1x32xbf16>
    %200 = vector.extract_strided_slice %198 {offsets = [0, 1, 0], sizes = [2, 1, 32], strides = [1, 1, 1]} : vector<2x4x32xbf16> to vector<2x1x32xbf16>
    %201 = arith.maximumf %199, %200 : vector<2x1x32xbf16>
    %202 = vector.extract_strided_slice %198 {offsets = [0, 2, 0], sizes = [2, 1, 32], strides = [1, 1, 1]} : vector<2x4x32xbf16> to vector<2x1x32xbf16>
    %203 = vector.extract_strided_slice %198 {offsets = [0, 3, 0], sizes = [2, 1, 32], strides = [1, 1, 1]} : vector<2x4x32xbf16> to vector<2x1x32xbf16>
    %204 = arith.maximumf %202, %203 : vector<2x1x32xbf16>
    %205 = tpu.concatenate %201, %204 in 1 : vector<2x1x32xbf16>, vector<2x1x32xbf16> -> vector<2x2x32xbf16>
    %c0_35 = arith.constant 0 : index
    %c0_36 = arith.constant 0 : index
    %206 = vector.load %arg11[%c0_35, %c0_36] : memref<288x64xbf16, #tpu.memory_space<vmem>>, vector<288x64xbf16>
    %c0_37 = arith.constant 0 : index
    %c0_38 = arith.constant 0 : index
    %207 = vector.load %arg12[%c0_37, %c0_38] : memref<1x64xf32, #tpu.memory_space<vmem>>, vector<1x64xf32>
    %c0_39 = arith.constant 0 : index
    %c0_40 = arith.constant 0 : index
    %208 = vector.load %arg13[%c0_39, %c0_40] : memref<1x64xf32, #tpu.memory_space<vmem>>, vector<1x64xf32>
    %cst_41 = arith.constant 0.000000e+00 : bf16
    %209 = vector.broadcast %cst_41 : bf16 to vector<1x2x32xbf16>
    %210 = tpu.concatenate %209, %205, %209 in 0 : vector<1x2x32xbf16>, vector<2x2x32xbf16>, vector<1x2x32xbf16> -> vector<4x2x32xbf16>
    %cst_42 = arith.constant 0.000000e+00 : bf16
    %211 = vector.broadcast %cst_42 : bf16 to vector<4x1x32xbf16>
    %212 = tpu.concatenate %211, %210, %211 in 1 : vector<4x1x32xbf16>, vector<4x2x32xbf16>, vector<4x1x32xbf16> -> vector<4x4x32xbf16>
    %213 = vector.extract_strided_slice %212 {offsets = [0, 0, 0], sizes = [2, 2, 32], strides = [1, 1, 1]} : vector<4x4x32xbf16> to vector<2x2x32xbf16>
    %214 = vector.shape_cast %213 : vector<2x2x32xbf16> to vector<4x32xbf16>
    %215 = vector.extract_strided_slice %212 {offsets = [0, 1, 0], sizes = [2, 2, 32], strides = [1, 1, 1]} : vector<4x4x32xbf16> to vector<2x2x32xbf16>
    %216 = vector.shape_cast %215 : vector<2x2x32xbf16> to vector<4x32xbf16>
    %217 = vector.extract_strided_slice %212 {offsets = [0, 2, 0], sizes = [2, 2, 32], strides = [1, 1, 1]} : vector<4x4x32xbf16> to vector<2x2x32xbf16>
    %218 = vector.shape_cast %217 : vector<2x2x32xbf16> to vector<4x32xbf16>
    %219 = vector.extract_strided_slice %212 {offsets = [1, 0, 0], sizes = [2, 2, 32], strides = [1, 1, 1]} : vector<4x4x32xbf16> to vector<2x2x32xbf16>
    %220 = vector.shape_cast %219 : vector<2x2x32xbf16> to vector<4x32xbf16>
    %221 = vector.extract_strided_slice %212 {offsets = [1, 1, 0], sizes = [2, 2, 32], strides = [1, 1, 1]} : vector<4x4x32xbf16> to vector<2x2x32xbf16>
    %222 = vector.shape_cast %221 : vector<2x2x32xbf16> to vector<4x32xbf16>
    %223 = vector.extract_strided_slice %212 {offsets = [1, 2, 0], sizes = [2, 2, 32], strides = [1, 1, 1]} : vector<4x4x32xbf16> to vector<2x2x32xbf16>
    %224 = vector.shape_cast %223 : vector<2x2x32xbf16> to vector<4x32xbf16>
    %225 = vector.extract_strided_slice %212 {offsets = [2, 0, 0], sizes = [2, 2, 32], strides = [1, 1, 1]} : vector<4x4x32xbf16> to vector<2x2x32xbf16>
    %226 = vector.shape_cast %225 : vector<2x2x32xbf16> to vector<4x32xbf16>
    %227 = vector.extract_strided_slice %212 {offsets = [2, 1, 0], sizes = [2, 2, 32], strides = [1, 1, 1]} : vector<4x4x32xbf16> to vector<2x2x32xbf16>
    %228 = vector.shape_cast %227 : vector<2x2x32xbf16> to vector<4x32xbf16>
    %229 = vector.extract_strided_slice %212 {offsets = [2, 2, 0], sizes = [2, 2, 32], strides = [1, 1, 1]} : vector<4x4x32xbf16> to vector<2x2x32xbf16>
    %230 = vector.shape_cast %229 : vector<2x2x32xbf16> to vector<4x32xbf16>
    %231 = tpu.concatenate %214, %216, %218, %220, %222, %224, %226, %228, %230 in 1 : vector<4x32xbf16>, vector<4x32xbf16>, vector<4x32xbf16>, vector<4x32xbf16>, vector<4x32xbf16>, vector<4x32xbf16>, vector<4x32xbf16>, vector<4x32xbf16>, vector<4x32xbf16> -> vector<4x288xbf16>
    %cst_43 = arith.constant dense<0.000000e+00> : vector<4x64xf32>
    %232 = tpu.matmul %231, %206, %cst_43 {dimension_numbers = #tpu.dot_dimension_numbers<[1], [0], [0], [1], [0, 0, 1, 1], [], []>} : vector<4x288xbf16>, vector<288x64xbf16>, vector<4x64xf32> -> vector<4x64xf32>
    %233 = vector.broadcast %207 : vector<1x64xf32> to vector<4x64xf32>
    %234 = arith.mulf %232, %233 : vector<4x64xf32>
    %235 = vector.broadcast %208 : vector<1x64xf32> to vector<4x64xf32>
    %236 = arith.addf %234, %235 : vector<4x64xf32>
    %cst_44 = arith.constant 0.000000e+00 : f32
    %237 = vector.broadcast %cst_44 : f32 to vector<4x64xf32>
    %238 = arith.cmpf oge, %236, %237 : vector<4x64xf32>
    %cst_45 = arith.constant 0.00999999977 : f32
    %239 = vector.broadcast %cst_45 : f32 to vector<4x64xf32>
    %240 = arith.mulf %239, %236 : vector<4x64xf32>
    %241 = arith.select %238, %236, %240 : vector<4x64xi1>, vector<4x64xf32>
    %242 = vector.shape_cast %241 : vector<4x64xf32> to vector<2x2x64xf32>
    %243 = arith.truncf %242 : vector<2x2x64xf32> to vector<2x2x64xbf16>
    %244 = vector.extract_strided_slice %243 {offsets = [0, 0, 0], sizes = [1, 2, 64], strides = [1, 1, 1]} : vector<2x2x64xbf16> to vector<1x2x64xbf16>
    %245 = vector.extract_strided_slice %243 {offsets = [1, 0, 0], sizes = [1, 2, 64], strides = [1, 1, 1]} : vector<2x2x64xbf16> to vector<1x2x64xbf16>
    %246 = arith.maximumf %244, %245 : vector<1x2x64xbf16>
    %247 = vector.extract_strided_slice %246 {offsets = [0, 0, 0], sizes = [1, 1, 64], strides = [1, 1, 1]} : vector<1x2x64xbf16> to vector<1x1x64xbf16>
    %248 = vector.extract_strided_slice %246 {offsets = [0, 1, 0], sizes = [1, 1, 64], strides = [1, 1, 1]} : vector<1x2x64xbf16> to vector<1x1x64xbf16>
    %249 = arith.maximumf %247, %248 : vector<1x1x64xbf16>
    %c0_46 = arith.constant 0 : index
    %c0_47 = arith.constant 0 : index
    %250 = vector.load %arg14[%c0_46, %c0_47] : memref<576x128xbf16, #tpu.memory_space<vmem>>, vector<576x128xbf16>
    %c0_48 = arith.constant 0 : index
    %c0_49 = arith.constant 0 : index
    %251 = vector.load %arg15[%c0_48, %c0_49] : memref<1x128xf32, #tpu.memory_space<vmem>>, vector<1x128xf32>
    %c0_50 = arith.constant 0 : index
    %c0_51 = arith.constant 0 : index
    %252 = vector.load %arg16[%c0_50, %c0_51] : memref<1x128xf32, #tpu.memory_space<vmem>>, vector<1x128xf32>
    %cst_52 = arith.constant 0.000000e+00 : bf16
    %253 = vector.broadcast %cst_52 : bf16 to vector<1x1x64xbf16>
    %254 = tpu.concatenate %253, %249, %253 in 0 : vector<1x1x64xbf16>, vector<1x1x64xbf16>, vector<1x1x64xbf16> -> vector<3x1x64xbf16>
    %cst_53 = arith.constant 0.000000e+00 : bf16
    %255 = vector.broadcast %cst_53 : bf16 to vector<3x1x64xbf16>
    %256 = tpu.concatenate %255, %254, %255 in 1 : vector<3x1x64xbf16>, vector<3x1x64xbf16>, vector<3x1x64xbf16> -> vector<3x3x64xbf16>
    %257 = vector.extract_strided_slice %256 {offsets = [0, 0, 0], sizes = [1, 1, 64], strides = [1, 1, 1]} : vector<3x3x64xbf16> to vector<1x1x64xbf16>
    %258 = vector.shape_cast %257 : vector<1x1x64xbf16> to vector<1x64xbf16>
    %259 = vector.extract_strided_slice %256 {offsets = [0, 1, 0], sizes = [1, 1, 64], strides = [1, 1, 1]} : vector<3x3x64xbf16> to vector<1x1x64xbf16>
    %260 = vector.shape_cast %259 : vector<1x1x64xbf16> to vector<1x64xbf16>
    %261 = vector.extract_strided_slice %256 {offsets = [0, 2, 0], sizes = [1, 1, 64], strides = [1, 1, 1]} : vector<3x3x64xbf16> to vector<1x1x64xbf16>
    %262 = vector.shape_cast %261 : vector<1x1x64xbf16> to vector<1x64xbf16>
    %263 = vector.extract_strided_slice %256 {offsets = [1, 0, 0], sizes = [1, 1, 64], strides = [1, 1, 1]} : vector<3x3x64xbf16> to vector<1x1x64xbf16>
    %264 = vector.shape_cast %263 : vector<1x1x64xbf16> to vector<1x64xbf16>
    %265 = vector.extract_strided_slice %256 {offsets = [1, 1, 0], sizes = [1, 1, 64], strides = [1, 1, 1]} : vector<3x3x64xbf16> to vector<1x1x64xbf16>
    %266 = vector.shape_cast %265 : vector<1x1x64xbf16> to vector<1x64xbf16>
    %267 = vector.extract_strided_slice %256 {offsets = [1, 2, 0], sizes = [1, 1, 64], strides = [1, 1, 1]} : vector<3x3x64xbf16> to vector<1x1x64xbf16>
    %268 = vector.shape_cast %267 : vector<1x1x64xbf16> to vector<1x64xbf16>
    %269 = vector.extract_strided_slice %256 {offsets = [2, 0, 0], sizes = [1, 1, 64], strides = [1, 1, 1]} : vector<3x3x64xbf16> to vector<1x1x64xbf16>
    %270 = vector.shape_cast %269 : vector<1x1x64xbf16> to vector<1x64xbf16>
    %271 = vector.extract_strided_slice %256 {offsets = [2, 1, 0], sizes = [1, 1, 64], strides = [1, 1, 1]} : vector<3x3x64xbf16> to vector<1x1x64xbf16>
    %272 = vector.shape_cast %271 : vector<1x1x64xbf16> to vector<1x64xbf16>
    %273 = vector.extract_strided_slice %256 {offsets = [2, 2, 0], sizes = [1, 1, 64], strides = [1, 1, 1]} : vector<3x3x64xbf16> to vector<1x1x64xbf16>
    %274 = vector.shape_cast %273 : vector<1x1x64xbf16> to vector<1x64xbf16>
    %275 = tpu.concatenate %258, %260, %262, %264, %266, %268, %270, %272, %274 in 1 : vector<1x64xbf16>, vector<1x64xbf16>, vector<1x64xbf16>, vector<1x64xbf16>, vector<1x64xbf16>, vector<1x64xbf16>, vector<1x64xbf16>, vector<1x64xbf16>, vector<1x64xbf16> -> vector<1x576xbf16>
    %cst_54 = arith.constant dense<0.000000e+00> : vector<1x128xf32>
    %276 = tpu.matmul %275, %250, %cst_54 {dimension_numbers = #tpu.dot_dimension_numbers<[1], [0], [0], [1], [0, 0, 1, 1], [], []>} : vector<1x576xbf16>, vector<576x128xbf16>, vector<1x128xf32> -> vector<1x128xf32>
    %277 = arith.mulf %276, %251 : vector<1x128xf32>
    %278 = arith.addf %277, %252 : vector<1x128xf32>
    %cst_55 = arith.constant 0.000000e+00 : f32
    %279 = vector.broadcast %cst_55 : f32 to vector<1x128xf32>
    %280 = arith.maximumf %278, %279 : vector<1x128xf32>
    %281 = vector.shape_cast %280 : vector<1x128xf32> to vector<1x1x128xf32>
    %282 = arith.truncf %281 : vector<1x1x128xf32> to vector<1x1x128xbf16>
    %c0_56 = arith.constant 0 : index
    %c0_57 = arith.constant 0 : index
    %283 = vector.load %arg17[%c0_56, %c0_57] : memref<1152x64xbf16, #tpu.memory_space<vmem>>, vector<1152x64xbf16>
    %c0_58 = arith.constant 0 : index
    %c0_59 = arith.constant 0 : index
    %284 = vector.load %arg18[%c0_58, %c0_59] : memref<1x64xf32, #tpu.memory_space<vmem>>, vector<1x64xf32>
    %c0_60 = arith.constant 0 : index
    %c0_61 = arith.constant 0 : index
    %285 = vector.load %arg19[%c0_60, %c0_61] : memref<1x64xf32, #tpu.memory_space<vmem>>, vector<1x64xf32>
    %cst_62 = arith.constant 0.000000e+00 : bf16
    %286 = vector.broadcast %cst_62 : bf16 to vector<1x1x128xbf16>
    %287 = tpu.concatenate %286, %282, %286 in 0 : vector<1x1x128xbf16>, vector<1x1x128xbf16>, vector<1x1x128xbf16> -> vector<3x1x128xbf16>
    %cst_63 = arith.constant 0.000000e+00 : bf16
    %288 = vector.broadcast %cst_63 : bf16 to vector<3x1x128xbf16>
    %289 = tpu.concatenate %288, %287, %288 in 1 : vector<3x1x128xbf16>, vector<3x1x128xbf16>, vector<3x1x128xbf16> -> vector<3x3x128xbf16>
    %290 = vector.extract_strided_slice %289 {offsets = [0, 0, 0], sizes = [1, 1, 128], strides = [1, 1, 1]} : vector<3x3x128xbf16> to vector<1x1x128xbf16>
    %291 = vector.shape_cast %290 : vector<1x1x128xbf16> to vector<1x128xbf16>
    %292 = vector.extract_strided_slice %289 {offsets = [0, 1, 0], sizes = [1, 1, 128], strides = [1, 1, 1]} : vector<3x3x128xbf16> to vector<1x1x128xbf16>
    %293 = vector.shape_cast %292 : vector<1x1x128xbf16> to vector<1x128xbf16>
    %294 = vector.extract_strided_slice %289 {offsets = [0, 2, 0], sizes = [1, 1, 128], strides = [1, 1, 1]} : vector<3x3x128xbf16> to vector<1x1x128xbf16>
    %295 = vector.shape_cast %294 : vector<1x1x128xbf16> to vector<1x128xbf16>
    %296 = vector.extract_strided_slice %289 {offsets = [1, 0, 0], sizes = [1, 1, 128], strides = [1, 1, 1]} : vector<3x3x128xbf16> to vector<1x1x128xbf16>
    %297 = vector.shape_cast %296 : vector<1x1x128xbf16> to vector<1x128xbf16>
    %298 = vector.extract_strided_slice %289 {offsets = [1, 1, 0], sizes = [1, 1, 128], strides = [1, 1, 1]} : vector<3x3x128xbf16> to vector<1x1x128xbf16>
    %299 = vector.shape_cast %298 : vector<1x1x128xbf16> to vector<1x128xbf16>
    %300 = vector.extract_strided_slice %289 {offsets = [1, 2, 0], sizes = [1, 1, 128], strides = [1, 1, 1]} : vector<3x3x128xbf16> to vector<1x1x128xbf16>
    %301 = vector.shape_cast %300 : vector<1x1x128xbf16> to vector<1x128xbf16>
    %302 = vector.extract_strided_slice %289 {offsets = [2, 0, 0], sizes = [1, 1, 128], strides = [1, 1, 1]} : vector<3x3x128xbf16> to vector<1x1x128xbf16>
    %303 = vector.shape_cast %302 : vector<1x1x128xbf16> to vector<1x128xbf16>
    %304 = vector.extract_strided_slice %289 {offsets = [2, 1, 0], sizes = [1, 1, 128], strides = [1, 1, 1]} : vector<3x3x128xbf16> to vector<1x1x128xbf16>
    %305 = vector.shape_cast %304 : vector<1x1x128xbf16> to vector<1x128xbf16>
    %306 = vector.extract_strided_slice %289 {offsets = [2, 2, 0], sizes = [1, 1, 128], strides = [1, 1, 1]} : vector<3x3x128xbf16> to vector<1x1x128xbf16>
    %307 = vector.shape_cast %306 : vector<1x1x128xbf16> to vector<1x128xbf16>
    %308 = tpu.concatenate %291, %293, %295, %297, %299, %301, %303, %305, %307 in 1 : vector<1x128xbf16>, vector<1x128xbf16>, vector<1x128xbf16>, vector<1x128xbf16>, vector<1x128xbf16>, vector<1x128xbf16>, vector<1x128xbf16>, vector<1x128xbf16>, vector<1x128xbf16> -> vector<1x1152xbf16>
    %cst_64 = arith.constant dense<0.000000e+00> : vector<1x64xf32>
    %309 = tpu.matmul %308, %283, %cst_64 {dimension_numbers = #tpu.dot_dimension_numbers<[1], [0], [0], [1], [0, 0, 1, 1], [], []>} : vector<1x1152xbf16>, vector<1152x64xbf16>, vector<1x64xf32> -> vector<1x64xf32>
    %310 = arith.mulf %309, %284 : vector<1x64xf32>
    %311 = arith.addf %310, %285 : vector<1x64xf32>
    %cst_65 = arith.constant 0.000000e+00 : f32
    %312 = vector.broadcast %cst_65 : f32 to vector<1x64xf32>
    %313 = arith.maximumf %311, %312 : vector<1x64xf32>
    %314 = vector.shape_cast %313 : vector<1x64xf32> to vector<1x1x64xf32>
    %315 = arith.truncf %314 : vector<1x1x64xf32> to vector<1x1x64xbf16>
    %316 = tpu.concatenate %315, %315 in 1 : vector<1x1x64xbf16>, vector<1x1x64xbf16> -> vector<1x2x64xbf16>
    %317 = tpu.concatenate %316, %316 in 0 : vector<1x2x64xbf16>, vector<1x2x64xbf16> -> vector<2x2x64xbf16>
    %c0_66 = arith.constant 0 : index
    %c0_67 = arith.constant 0 : index
    %318 = vector.load %arg20[%c0_66, %c0_67] : memref<576x32xbf16, #tpu.memory_space<vmem>>, vector<576x32xbf16>
    %c0_68 = arith.constant 0 : index
    %c0_69 = arith.constant 0 : index
    %319 = vector.load %arg21[%c0_68, %c0_69] : memref<1x32xf32, #tpu.memory_space<vmem>>, vector<1x32xf32>
    %c0_70 = arith.constant 0 : index
    %c0_71 = arith.constant 0 : index
    %320 = vector.load %arg22[%c0_70, %c0_71] : memref<1x32xf32, #tpu.memory_space<vmem>>, vector<1x32xf32>
    %cst_72 = arith.constant 0.000000e+00 : bf16
    %321 = vector.broadcast %cst_72 : bf16 to vector<1x2x64xbf16>
    %322 = tpu.concatenate %321, %317, %321 in 0 : vector<1x2x64xbf16>, vector<2x2x64xbf16>, vector<1x2x64xbf16> -> vector<4x2x64xbf16>
    %cst_73 = arith.constant 0.000000e+00 : bf16
    %323 = vector.broadcast %cst_73 : bf16 to vector<4x1x64xbf16>
    %324 = tpu.concatenate %323, %322, %323 in 1 : vector<4x1x64xbf16>, vector<4x2x64xbf16>, vector<4x1x64xbf16> -> vector<4x4x64xbf16>
    %325 = vector.extract_strided_slice %324 {offsets = [0, 0, 0], sizes = [2, 2, 64], strides = [1, 1, 1]} : vector<4x4x64xbf16> to vector<2x2x64xbf16>
    %326 = vector.shape_cast %325 : vector<2x2x64xbf16> to vector<4x64xbf16>
    %327 = vector.extract_strided_slice %324 {offsets = [0, 1, 0], sizes = [2, 2, 64], strides = [1, 1, 1]} : vector<4x4x64xbf16> to vector<2x2x64xbf16>
    %328 = vector.shape_cast %327 : vector<2x2x64xbf16> to vector<4x64xbf16>
    %329 = vector.extract_strided_slice %324 {offsets = [0, 2, 0], sizes = [2, 2, 64], strides = [1, 1, 1]} : vector<4x4x64xbf16> to vector<2x2x64xbf16>
    %330 = vector.shape_cast %329 : vector<2x2x64xbf16> to vector<4x64xbf16>
    %331 = vector.extract_strided_slice %324 {offsets = [1, 0, 0], sizes = [2, 2, 64], strides = [1, 1, 1]} : vector<4x4x64xbf16> to vector<2x2x64xbf16>
    %332 = vector.shape_cast %331 : vector<2x2x64xbf16> to vector<4x64xbf16>
    %333 = vector.extract_strided_slice %324 {offsets = [1, 1, 0], sizes = [2, 2, 64], strides = [1, 1, 1]} : vector<4x4x64xbf16> to vector<2x2x64xbf16>
    %334 = vector.shape_cast %333 : vector<2x2x64xbf16> to vector<4x64xbf16>
    %335 = vector.extract_strided_slice %324 {offsets = [1, 2, 0], sizes = [2, 2, 64], strides = [1, 1, 1]} : vector<4x4x64xbf16> to vector<2x2x64xbf16>
    %336 = vector.shape_cast %335 : vector<2x2x64xbf16> to vector<4x64xbf16>
    %337 = vector.extract_strided_slice %324 {offsets = [2, 0, 0], sizes = [2, 2, 64], strides = [1, 1, 1]} : vector<4x4x64xbf16> to vector<2x2x64xbf16>
    %338 = vector.shape_cast %337 : vector<2x2x64xbf16> to vector<4x64xbf16>
    %339 = vector.extract_strided_slice %324 {offsets = [2, 1, 0], sizes = [2, 2, 64], strides = [1, 1, 1]} : vector<4x4x64xbf16> to vector<2x2x64xbf16>
    %340 = vector.shape_cast %339 : vector<2x2x64xbf16> to vector<4x64xbf16>
    %341 = vector.extract_strided_slice %324 {offsets = [2, 2, 0], sizes = [2, 2, 64], strides = [1, 1, 1]} : vector<4x4x64xbf16> to vector<2x2x64xbf16>
    %342 = vector.shape_cast %341 : vector<2x2x64xbf16> to vector<4x64xbf16>
    %343 = tpu.concatenate %326, %328, %330, %332, %334, %336, %338, %340, %342 in 1 : vector<4x64xbf16>, vector<4x64xbf16>, vector<4x64xbf16>, vector<4x64xbf16>, vector<4x64xbf16>, vector<4x64xbf16>, vector<4x64xbf16>, vector<4x64xbf16>, vector<4x64xbf16> -> vector<4x576xbf16>
    %cst_74 = arith.constant dense<0.000000e+00> : vector<4x32xf32>
    %344 = tpu.matmul %343, %318, %cst_74 {dimension_numbers = #tpu.dot_dimension_numbers<[1], [0], [0], [1], [0, 0, 1, 1], [], []>} : vector<4x576xbf16>, vector<576x32xbf16>, vector<4x32xf32> -> vector<4x32xf32>
    %345 = vector.broadcast %319 : vector<1x32xf32> to vector<4x32xf32>
    %346 = arith.mulf %344, %345 : vector<4x32xf32>
    %347 = vector.broadcast %320 : vector<1x32xf32> to vector<4x32xf32>
    %348 = arith.addf %346, %347 : vector<4x32xf32>
    %cst_75 = arith.constant 0.000000e+00 : f32
    %349 = vector.broadcast %cst_75 : f32 to vector<4x32xf32>
    %350 = arith.maximumf %348, %349 : vector<4x32xf32>
    %351 = vector.shape_cast %350 : vector<4x32xf32> to vector<2x2x32xf32>
    %352 = arith.truncf %351 : vector<2x2x32xf32> to vector<2x2x32xbf16>
    %353 = vector.extract_strided_slice %352 {offsets = [0, 0, 0], sizes = [2, 1, 32], strides = [1, 1, 1]} : vector<2x2x32xbf16> to vector<2x1x32xbf16>
    %354 = vector.extract_strided_slice %352 {offsets = [0, 1, 0], sizes = [2, 1, 32], strides = [1, 1, 1]} : vector<2x2x32xbf16> to vector<2x1x32xbf16>
    %355 = tpu.concatenate %353, %353, %354, %354 in 1 : vector<2x1x32xbf16>, vector<2x1x32xbf16>, vector<2x1x32xbf16>, vector<2x1x32xbf16> -> vector<2x4x32xbf16>
    %356 = vector.extract_strided_slice %355 {offsets = [0, 0, 0], sizes = [1, 4, 32], strides = [1, 1, 1]} : vector<2x4x32xbf16> to vector<1x4x32xbf16>
    %357 = vector.extract_strided_slice %355 {offsets = [1, 0, 0], sizes = [1, 4, 32], strides = [1, 1, 1]} : vector<2x4x32xbf16> to vector<1x4x32xbf16>
    %358 = tpu.concatenate %356, %356, %357, %357 in 0 : vector<1x4x32xbf16>, vector<1x4x32xbf16>, vector<1x4x32xbf16>, vector<1x4x32xbf16> -> vector<4x4x32xbf16>
    %c0_76 = arith.constant 0 : index
    %c0_77 = arith.constant 0 : index
    %359 = vector.load %arg23[%c0_76, %c0_77] : memref<288x16xbf16, #tpu.memory_space<vmem>>, vector<288x16xbf16>
    %c0_78 = arith.constant 0 : index
    %c0_79 = arith.constant 0 : index
    %360 = vector.load %arg24[%c0_78, %c0_79] : memref<1x16xf32, #tpu.memory_space<vmem>>, vector<1x16xf32>
    %c0_80 = arith.constant 0 : index
    %c0_81 = arith.constant 0 : index
    %361 = vector.load %arg25[%c0_80, %c0_81] : memref<1x16xf32, #tpu.memory_space<vmem>>, vector<1x16xf32>
    %cst_82 = arith.constant 0.000000e+00 : bf16
    %362 = vector.broadcast %cst_82 : bf16 to vector<1x4x32xbf16>
    %363 = tpu.concatenate %362, %358, %362 in 0 : vector<1x4x32xbf16>, vector<4x4x32xbf16>, vector<1x4x32xbf16> -> vector<6x4x32xbf16>
    %cst_83 = arith.constant 0.000000e+00 : bf16
    %364 = vector.broadcast %cst_83 : bf16 to vector<6x1x32xbf16>
    %365 = tpu.concatenate %364, %363, %364 in 1 : vector<6x1x32xbf16>, vector<6x4x32xbf16>, vector<6x1x32xbf16> -> vector<6x6x32xbf16>
    %366 = vector.extract_strided_slice %365 {offsets = [0, 0, 0], sizes = [4, 4, 32], strides = [1, 1, 1]} : vector<6x6x32xbf16> to vector<4x4x32xbf16>
    %367 = vector.shape_cast %366 : vector<4x4x32xbf16> to vector<16x32xbf16>
    %368 = vector.extract_strided_slice %365 {offsets = [0, 1, 0], sizes = [4, 4, 32], strides = [1, 1, 1]} : vector<6x6x32xbf16> to vector<4x4x32xbf16>
    %369 = vector.shape_cast %368 : vector<4x4x32xbf16> to vector<16x32xbf16>
    %370 = vector.extract_strided_slice %365 {offsets = [0, 2, 0], sizes = [4, 4, 32], strides = [1, 1, 1]} : vector<6x6x32xbf16> to vector<4x4x32xbf16>
    %371 = vector.shape_cast %370 : vector<4x4x32xbf16> to vector<16x32xbf16>
    %372 = vector.extract_strided_slice %365 {offsets = [1, 0, 0], sizes = [4, 4, 32], strides = [1, 1, 1]} : vector<6x6x32xbf16> to vector<4x4x32xbf16>
    %373 = vector.shape_cast %372 : vector<4x4x32xbf16> to vector<16x32xbf16>
    %374 = vector.extract_strided_slice %365 {offsets = [1, 1, 0], sizes = [4, 4, 32], strides = [1, 1, 1]} : vector<6x6x32xbf16> to vector<4x4x32xbf16>
    %375 = vector.shape_cast %374 : vector<4x4x32xbf16> to vector<16x32xbf16>
    %376 = vector.extract_strided_slice %365 {offsets = [1, 2, 0], sizes = [4, 4, 32], strides = [1, 1, 1]} : vector<6x6x32xbf16> to vector<4x4x32xbf16>
    %377 = vector.shape_cast %376 : vector<4x4x32xbf16> to vector<16x32xbf16>
    %378 = vector.extract_strided_slice %365 {offsets = [2, 0, 0], sizes = [4, 4, 32], strides = [1, 1, 1]} : vector<6x6x32xbf16> to vector<4x4x32xbf16>
    %379 = vector.shape_cast %378 : vector<4x4x32xbf16> to vector<16x32xbf16>
    %380 = vector.extract_strided_slice %365 {offsets = [2, 1, 0], sizes = [4, 4, 32], strides = [1, 1, 1]} : vector<6x6x32xbf16> to vector<4x4x32xbf16>
    %381 = vector.shape_cast %380 : vector<4x4x32xbf16> to vector<16x32xbf16>
    %382 = vector.extract_strided_slice %365 {offsets = [2, 2, 0], sizes = [4, 4, 32], strides = [1, 1, 1]} : vector<6x6x32xbf16> to vector<4x4x32xbf16>
    %383 = vector.shape_cast %382 : vector<4x4x32xbf16> to vector<16x32xbf16>
    %384 = tpu.concatenate %367, %369, %371, %373, %375, %377, %379, %381, %383 in 1 : vector<16x32xbf16>, vector<16x32xbf16>, vector<16x32xbf16>, vector<16x32xbf16>, vector<16x32xbf16>, vector<16x32xbf16>, vector<16x32xbf16>, vector<16x32xbf16>, vector<16x32xbf16> -> vector<16x288xbf16>
    %cst_84 = arith.constant dense<0.000000e+00> : vector<16x16xf32>
    %385 = tpu.matmul %384, %359, %cst_84 {dimension_numbers = #tpu.dot_dimension_numbers<[1], [0], [0], [1], [0, 0, 1, 1], [], []>} : vector<16x288xbf16>, vector<288x16xbf16>, vector<16x16xf32> -> vector<16x16xf32>
    %386 = vector.broadcast %360 : vector<1x16xf32> to vector<16x16xf32>
    %387 = arith.mulf %385, %386 : vector<16x16xf32>
    %388 = vector.broadcast %361 : vector<1x16xf32> to vector<16x16xf32>
    %389 = arith.addf %387, %388 : vector<16x16xf32>
    %cst_85 = arith.constant 0.000000e+00 : f32
    %390 = vector.broadcast %cst_85 : f32 to vector<16x16xf32>
    %391 = arith.maximumf %389, %390 : vector<16x16xf32>
    %392 = vector.shape_cast %391 : vector<16x16xf32> to vector<4x4x16xf32>
    %393 = arith.truncf %392 : vector<4x4x16xf32> to vector<4x4x16xbf16>
    %394 = vector.extract_strided_slice %393 {offsets = [0, 0, 0], sizes = [4, 1, 16], strides = [1, 1, 1]} : vector<4x4x16xbf16> to vector<4x1x16xbf16>
    %395 = vector.extract_strided_slice %393 {offsets = [0, 1, 0], sizes = [4, 1, 16], strides = [1, 1, 1]} : vector<4x4x16xbf16> to vector<4x1x16xbf16>
    %396 = vector.extract_strided_slice %393 {offsets = [0, 2, 0], sizes = [4, 1, 16], strides = [1, 1, 1]} : vector<4x4x16xbf16> to vector<4x1x16xbf16>
    %397 = vector.extract_strided_slice %393 {offsets = [0, 3, 0], sizes = [4, 1, 16], strides = [1, 1, 1]} : vector<4x4x16xbf16> to vector<4x1x16xbf16>
    %398 = tpu.concatenate %394, %394, %395, %395, %396, %396, %397, %397 in 1 : vector<4x1x16xbf16>, vector<4x1x16xbf16>, vector<4x1x16xbf16>, vector<4x1x16xbf16>, vector<4x1x16xbf16>, vector<4x1x16xbf16>, vector<4x1x16xbf16>, vector<4x1x16xbf16> -> vector<4x8x16xbf16>
    %399 = vector.extract_strided_slice %398 {offsets = [0, 0, 0], sizes = [1, 8, 16], strides = [1, 1, 1]} : vector<4x8x16xbf16> to vector<1x8x16xbf16>
    %400 = vector.extract_strided_slice %398 {offsets = [1, 0, 0], sizes = [1, 8, 16], strides = [1, 1, 1]} : vector<4x8x16xbf16> to vector<1x8x16xbf16>
    %401 = vector.extract_strided_slice %398 {offsets = [2, 0, 0], sizes = [1, 8, 16], strides = [1, 1, 1]} : vector<4x8x16xbf16> to vector<1x8x16xbf16>
    %402 = vector.extract_strided_slice %398 {offsets = [3, 0, 0], sizes = [1, 8, 16], strides = [1, 1, 1]} : vector<4x8x16xbf16> to vector<1x8x16xbf16>
    %403 = tpu.concatenate %399, %399, %400, %400, %401, %401, %402, %402 in 0 : vector<1x8x16xbf16>, vector<1x8x16xbf16>, vector<1x8x16xbf16>, vector<1x8x16xbf16>, vector<1x8x16xbf16>, vector<1x8x16xbf16>, vector<1x8x16xbf16>, vector<1x8x16xbf16> -> vector<8x8x16xbf16>
    %c0_86 = arith.constant 0 : index
    %c0_87 = arith.constant 0 : index
    %404 = vector.load %arg26[%c0_86, %c0_87] : memref<144x8xbf16, #tpu.memory_space<vmem>>, vector<144x8xbf16>
    %c0_88 = arith.constant 0 : index
    %c0_89 = arith.constant 0 : index
    %405 = vector.load %arg27[%c0_88, %c0_89] : memref<1x8xf32, #tpu.memory_space<vmem>>, vector<1x8xf32>
    %c0_90 = arith.constant 0 : index
    %c0_91 = arith.constant 0 : index
    %406 = vector.load %arg28[%c0_90, %c0_91] : memref<1x8xf32, #tpu.memory_space<vmem>>, vector<1x8xf32>
    %cst_92 = arith.constant 0.000000e+00 : bf16
    %407 = vector.broadcast %cst_92 : bf16 to vector<1x8x16xbf16>
    %408 = tpu.concatenate %407, %403, %407 in 0 : vector<1x8x16xbf16>, vector<8x8x16xbf16>, vector<1x8x16xbf16> -> vector<10x8x16xbf16>
    %cst_93 = arith.constant 0.000000e+00 : bf16
    %409 = vector.broadcast %cst_93 : bf16 to vector<10x1x16xbf16>
    %410 = tpu.concatenate %409, %408, %409 in 1 : vector<10x1x16xbf16>, vector<10x8x16xbf16>, vector<10x1x16xbf16> -> vector<10x10x16xbf16>
    %411 = vector.extract_strided_slice %410 {offsets = [0, 0, 0], sizes = [8, 8, 16], strides = [1, 1, 1]} : vector<10x10x16xbf16> to vector<8x8x16xbf16>
    %412 = vector.shape_cast %411 : vector<8x8x16xbf16> to vector<64x16xbf16>
    %413 = vector.extract_strided_slice %410 {offsets = [0, 1, 0], sizes = [8, 8, 16], strides = [1, 1, 1]} : vector<10x10x16xbf16> to vector<8x8x16xbf16>
    %414 = vector.shape_cast %413 : vector<8x8x16xbf16> to vector<64x16xbf16>
    %415 = vector.extract_strided_slice %410 {offsets = [0, 2, 0], sizes = [8, 8, 16], strides = [1, 1, 1]} : vector<10x10x16xbf16> to vector<8x8x16xbf16>
    %416 = vector.shape_cast %415 : vector<8x8x16xbf16> to vector<64x16xbf16>
    %417 = vector.extract_strided_slice %410 {offsets = [1, 0, 0], sizes = [8, 8, 16], strides = [1, 1, 1]} : vector<10x10x16xbf16> to vector<8x8x16xbf16>
    %418 = vector.shape_cast %417 : vector<8x8x16xbf16> to vector<64x16xbf16>
    %419 = vector.extract_strided_slice %410 {offsets = [1, 1, 0], sizes = [8, 8, 16], strides = [1, 1, 1]} : vector<10x10x16xbf16> to vector<8x8x16xbf16>
    %420 = vector.shape_cast %419 : vector<8x8x16xbf16> to vector<64x16xbf16>
    %421 = vector.extract_strided_slice %410 {offsets = [1, 2, 0], sizes = [8, 8, 16], strides = [1, 1, 1]} : vector<10x10x16xbf16> to vector<8x8x16xbf16>
    %422 = vector.shape_cast %421 : vector<8x8x16xbf16> to vector<64x16xbf16>
    %423 = vector.extract_strided_slice %410 {offsets = [2, 0, 0], sizes = [8, 8, 16], strides = [1, 1, 1]} : vector<10x10x16xbf16> to vector<8x8x16xbf16>
    %424 = vector.shape_cast %423 : vector<8x8x16xbf16> to vector<64x16xbf16>
    %425 = vector.extract_strided_slice %410 {offsets = [2, 1, 0], sizes = [8, 8, 16], strides = [1, 1, 1]} : vector<10x10x16xbf16> to vector<8x8x16xbf16>
    %426 = vector.shape_cast %425 : vector<8x8x16xbf16> to vector<64x16xbf16>
    %427 = vector.extract_strided_slice %410 {offsets = [2, 2, 0], sizes = [8, 8, 16], strides = [1, 1, 1]} : vector<10x10x16xbf16> to vector<8x8x16xbf16>
    %428 = vector.shape_cast %427 : vector<8x8x16xbf16> to vector<64x16xbf16>
    %429 = tpu.concatenate %412, %414, %416, %418, %420, %422, %424, %426, %428 in 1 : vector<64x16xbf16>, vector<64x16xbf16>, vector<64x16xbf16>, vector<64x16xbf16>, vector<64x16xbf16>, vector<64x16xbf16>, vector<64x16xbf16>, vector<64x16xbf16>, vector<64x16xbf16> -> vector<64x144xbf16>
    %cst_94 = arith.constant dense<0.000000e+00> : vector<64x8xf32>
    %430 = tpu.matmul %429, %404, %cst_94 {dimension_numbers = #tpu.dot_dimension_numbers<[1], [0], [0], [1], [0, 0, 1, 1], [], []>} : vector<64x144xbf16>, vector<144x8xbf16>, vector<64x8xf32> -> vector<64x8xf32>
    %431 = vector.broadcast %405 : vector<1x8xf32> to vector<64x8xf32>
    %432 = arith.mulf %430, %431 : vector<64x8xf32>
    %433 = vector.broadcast %406 : vector<1x8xf32> to vector<64x8xf32>
    %434 = arith.addf %432, %433 : vector<64x8xf32>
    %cst_95 = arith.constant 0.000000e+00 : f32
    %435 = vector.broadcast %cst_95 : f32 to vector<64x8xf32>
    %436 = arith.maximumf %434, %435 : vector<64x8xf32>
    %437 = vector.shape_cast %436 : vector<64x8xf32> to vector<8x8x8xf32>
    %438 = arith.truncf %437 : vector<8x8x8xf32> to vector<8x8x8xbf16>
    %439 = vector.extract_strided_slice %438 {offsets = [0, 0, 0], sizes = [8, 1, 8], strides = [1, 1, 1]} : vector<8x8x8xbf16> to vector<8x1x8xbf16>
    %440 = vector.extract_strided_slice %438 {offsets = [0, 1, 0], sizes = [8, 1, 8], strides = [1, 1, 1]} : vector<8x8x8xbf16> to vector<8x1x8xbf16>
    %441 = vector.extract_strided_slice %438 {offsets = [0, 2, 0], sizes = [8, 1, 8], strides = [1, 1, 1]} : vector<8x8x8xbf16> to vector<8x1x8xbf16>
    %442 = vector.extract_strided_slice %438 {offsets = [0, 3, 0], sizes = [8, 1, 8], strides = [1, 1, 1]} : vector<8x8x8xbf16> to vector<8x1x8xbf16>
    %443 = vector.extract_strided_slice %438 {offsets = [0, 4, 0], sizes = [8, 1, 8], strides = [1, 1, 1]} : vector<8x8x8xbf16> to vector<8x1x8xbf16>
    %444 = vector.extract_strided_slice %438 {offsets = [0, 5, 0], sizes = [8, 1, 8], strides = [1, 1, 1]} : vector<8x8x8xbf16> to vector<8x1x8xbf16>
    %445 = vector.extract_strided_slice %438 {offsets = [0, 6, 0], sizes = [8, 1, 8], strides = [1, 1, 1]} : vector<8x8x8xbf16> to vector<8x1x8xbf16>
    %446 = vector.extract_strided_slice %438 {offsets = [0, 7, 0], sizes = [8, 1, 8], strides = [1, 1, 1]} : vector<8x8x8xbf16> to vector<8x1x8xbf16>
    %447 = tpu.concatenate %439, %439, %440, %440, %441, %441, %442, %442, %443, %443, %444, %444, %445, %445, %446, %446 in 1 : vector<8x1x8xbf16>, vector<8x1x8xbf16>, vector<8x1x8xbf16>, vector<8x1x8xbf16>, vector<8x1x8xbf16>, vector<8x1x8xbf16>, vector<8x1x8xbf16>, vector<8x1x8xbf16>, vector<8x1x8xbf16>, vector<8x1x8xbf16>, vector<8x1x8xbf16>, vector<8x1x8xbf16>, vector<8x1x8xbf16>, vector<8x1x8xbf16>, vector<8x1x8xbf16>, vector<8x1x8xbf16> -> vector<8x16x8xbf16>
    %448 = vector.extract_strided_slice %447 {offsets = [0, 0, 0], sizes = [1, 16, 8], strides = [1, 1, 1]} : vector<8x16x8xbf16> to vector<1x16x8xbf16>
    %449 = vector.extract_strided_slice %447 {offsets = [1, 0, 0], sizes = [1, 16, 8], strides = [1, 1, 1]} : vector<8x16x8xbf16> to vector<1x16x8xbf16>
    %450 = vector.extract_strided_slice %447 {offsets = [2, 0, 0], sizes = [1, 16, 8], strides = [1, 1, 1]} : vector<8x16x8xbf16> to vector<1x16x8xbf16>
    %451 = vector.extract_strided_slice %447 {offsets = [3, 0, 0], sizes = [1, 16, 8], strides = [1, 1, 1]} : vector<8x16x8xbf16> to vector<1x16x8xbf16>
    %452 = vector.extract_strided_slice %447 {offsets = [4, 0, 0], sizes = [1, 16, 8], strides = [1, 1, 1]} : vector<8x16x8xbf16> to vector<1x16x8xbf16>
    %453 = vector.extract_strided_slice %447 {offsets = [5, 0, 0], sizes = [1, 16, 8], strides = [1, 1, 1]} : vector<8x16x8xbf16> to vector<1x16x8xbf16>
    %454 = vector.extract_strided_slice %447 {offsets = [6, 0, 0], sizes = [1, 16, 8], strides = [1, 1, 1]} : vector<8x16x8xbf16> to vector<1x16x8xbf16>
    %455 = vector.extract_strided_slice %447 {offsets = [7, 0, 0], sizes = [1, 16, 8], strides = [1, 1, 1]} : vector<8x16x8xbf16> to vector<1x16x8xbf16>
    %456 = tpu.concatenate %448, %448, %449, %449, %450, %450, %451, %451, %452, %452, %453, %453, %454, %454, %455, %455 in 0 : vector<1x16x8xbf16>, vector<1x16x8xbf16>, vector<1x16x8xbf16>, vector<1x16x8xbf16>, vector<1x16x8xbf16>, vector<1x16x8xbf16>, vector<1x16x8xbf16>, vector<1x16x8xbf16>, vector<1x16x8xbf16>, vector<1x16x8xbf16>, vector<1x16x8xbf16>, vector<1x16x8xbf16>, vector<1x16x8xbf16>, vector<1x16x8xbf16>, vector<1x16x8xbf16>, vector<1x16x8xbf16> -> vector<16x16x8xbf16>
    %c0_96 = arith.constant 0 : index
    %c0_97 = arith.constant 0 : index
    %457 = vector.load %arg29[%c0_96, %c0_97] : memref<72x3xbf16, #tpu.memory_space<vmem>>, vector<72x3xbf16>
    %c0_98 = arith.constant 0 : index
    %c0_99 = arith.constant 0 : index
    %458 = vector.load %arg30[%c0_98, %c0_99] : memref<1x3xf32, #tpu.memory_space<vmem>>, vector<1x3xf32>
    %c0_100 = arith.constant 0 : index
    %c0_101 = arith.constant 0 : index
    %459 = vector.load %arg31[%c0_100, %c0_101] : memref<1x3xf32, #tpu.memory_space<vmem>>, vector<1x3xf32>
    %cst_102 = arith.constant 0.000000e+00 : bf16
    %460 = vector.broadcast %cst_102 : bf16 to vector<1x16x8xbf16>
    %461 = tpu.concatenate %460, %456, %460 in 0 : vector<1x16x8xbf16>, vector<16x16x8xbf16>, vector<1x16x8xbf16> -> vector<18x16x8xbf16>
    %cst_103 = arith.constant 0.000000e+00 : bf16
    %462 = vector.broadcast %cst_103 : bf16 to vector<18x1x8xbf16>
    %463 = tpu.concatenate %462, %461, %462 in 1 : vector<18x1x8xbf16>, vector<18x16x8xbf16>, vector<18x1x8xbf16> -> vector<18x18x8xbf16>
    %464 = vector.extract_strided_slice %463 {offsets = [0, 0, 0], sizes = [16, 16, 8], strides = [1, 1, 1]} : vector<18x18x8xbf16> to vector<16x16x8xbf16>
    %465 = vector.shape_cast %464 : vector<16x16x8xbf16> to vector<256x8xbf16>
    %466 = vector.extract_strided_slice %463 {offsets = [0, 1, 0], sizes = [16, 16, 8], strides = [1, 1, 1]} : vector<18x18x8xbf16> to vector<16x16x8xbf16>
    %467 = vector.shape_cast %466 : vector<16x16x8xbf16> to vector<256x8xbf16>
    %468 = vector.extract_strided_slice %463 {offsets = [0, 2, 0], sizes = [16, 16, 8], strides = [1, 1, 1]} : vector<18x18x8xbf16> to vector<16x16x8xbf16>
    %469 = vector.shape_cast %468 : vector<16x16x8xbf16> to vector<256x8xbf16>
    %470 = vector.extract_strided_slice %463 {offsets = [1, 0, 0], sizes = [16, 16, 8], strides = [1, 1, 1]} : vector<18x18x8xbf16> to vector<16x16x8xbf16>
    %471 = vector.shape_cast %470 : vector<16x16x8xbf16> to vector<256x8xbf16>
    %472 = vector.extract_strided_slice %463 {offsets = [1, 1, 0], sizes = [16, 16, 8], strides = [1, 1, 1]} : vector<18x18x8xbf16> to vector<16x16x8xbf16>
    %473 = vector.shape_cast %472 : vector<16x16x8xbf16> to vector<256x8xbf16>
    %474 = vector.extract_strided_slice %463 {offsets = [1, 2, 0], sizes = [16, 16, 8], strides = [1, 1, 1]} : vector<18x18x8xbf16> to vector<16x16x8xbf16>
    %475 = vector.shape_cast %474 : vector<16x16x8xbf16> to vector<256x8xbf16>
    %476 = vector.extract_strided_slice %463 {offsets = [2, 0, 0], sizes = [16, 16, 8], strides = [1, 1, 1]} : vector<18x18x8xbf16> to vector<16x16x8xbf16>
    %477 = vector.shape_cast %476 : vector<16x16x8xbf16> to vector<256x8xbf16>
    %478 = vector.extract_strided_slice %463 {offsets = [2, 1, 0], sizes = [16, 16, 8], strides = [1, 1, 1]} : vector<18x18x8xbf16> to vector<16x16x8xbf16>
    %479 = vector.shape_cast %478 : vector<16x16x8xbf16> to vector<256x8xbf16>
    %480 = vector.extract_strided_slice %463 {offsets = [2, 2, 0], sizes = [16, 16, 8], strides = [1, 1, 1]} : vector<18x18x8xbf16> to vector<16x16x8xbf16>
    %481 = vector.shape_cast %480 : vector<16x16x8xbf16> to vector<256x8xbf16>
    %482 = tpu.concatenate %465, %467, %469, %471, %473, %475, %477, %479, %481 in 1 : vector<256x8xbf16>, vector<256x8xbf16>, vector<256x8xbf16>, vector<256x8xbf16>, vector<256x8xbf16>, vector<256x8xbf16>, vector<256x8xbf16>, vector<256x8xbf16>, vector<256x8xbf16> -> vector<256x72xbf16>
    %cst_104 = arith.constant dense<0.000000e+00> : vector<256x3xf32>
    %483 = tpu.matmul %482, %457, %cst_104 {dimension_numbers = #tpu.dot_dimension_numbers<[1], [0], [0], [1], [0, 0, 1, 1], [], []>} : vector<256x72xbf16>, vector<72x3xbf16>, vector<256x3xf32> -> vector<256x3xf32>
    %484 = vector.broadcast %458 : vector<1x3xf32> to vector<256x3xf32>
    %485 = arith.mulf %483, %484 : vector<256x3xf32>
    %486 = vector.broadcast %459 : vector<1x3xf32> to vector<256x3xf32>
    %487 = arith.addf %485, %486 : vector<256x3xf32>
    %488 = arith.negf %487 : vector<256x3xf32>
    %489 = math.exp %488 : vector<256x3xf32>
    %cst_105 = arith.constant 1.000000e+00 : f32
    %490 = vector.broadcast %cst_105 : f32 to vector<256x3xf32>
    %491 = arith.addf %490, %489 : vector<256x3xf32>
    %492 = arith.divf %490, %491 : vector<256x3xf32>
    %493 = vector.shape_cast %492 : vector<256x3xf32> to vector<16x16x3xf32>
    %c0_106 = arith.constant 0 : index
    %c0_107 = arith.constant 0 : index
    %c0_108 = arith.constant 0 : index
    %c0_109 = arith.constant 0 : index
    %494 = vector.load %arg32[%c0_106, %c0_107, %c0_108, %c0_109] : memref<1x16x16x3xf32, #tpu.memory_space<vmem>>, vector<1x16x16x3xf32>
    %495 = vector.shape_cast %494 : vector<1x16x16x3xf32> to vector<16x16x3xf32>
    %496 = vector.shape_cast %493 : vector<16x16x3xf32> to vector<1x16x16x3xf32>
    tpu.vector_store %arg32[%c0_106, %c0_107, %c0_108, %c0_109], %496 {strides = array<i32>} : memref<1x16x16x3xf32, #tpu.memory_space<vmem>>, vector<1x16x16x3xf32>,
    return
  }
  func.func @transform_0(%arg0: i32) -> (i32, i32, i32, i32) {
    %c0_i32 = arith.constant 0 : i32
    %c0_i32_0 = arith.constant 0 : i32
    %c0_i32_1 = arith.constant 0 : i32
    %c0_i32_2 = arith.constant 0 : i32
    return %arg0, %c0_i32, %c0_i32_0, %c0_i32_1 : i32, i32, i32, i32
  }
  func.func @transform_1(%arg0: i32) -> (i32, i32) {
    %c0_i32 = arith.constant 0 : i32
    %c0_i32_0 = arith.constant 0 : i32
    %c0_i32_1 = arith.constant 0 : i32
    return %c0_i32, %c0_i32_0 : i32, i32
  }
  func.func @transform_2(%arg0: i32) -> (i32, i32) {
    %c0_i32 = arith.constant 0 : i32
    %c0_i32_0 = arith.constant 0 : i32
    %c0_i32_1 = arith.constant 0 : i32
    return %c0_i32, %c0_i32_0 : i32, i32
  }
  func.func @transform_3(%arg0: i32) -> (i32, i32) {
    %c0_i32 = arith.constant 0 : i32
    %c0_i32_0 = arith.constant 0 : i32
    %c0_i32_1 = arith.constant 0 : i32
    return %c0_i32, %c0_i32_0 : i32, i32
  }
  func.func @transform_4(%arg0: i32) -> (i32, i32) {
    %c0_i32 = arith.constant 0 : i32
    %c0_i32_0 = arith.constant 0 : i32
    %c0_i32_1 = arith.constant 0 : i32
    return %c0_i32, %c0_i32_0 : i32, i32
  }
  func.func @transform_5(%arg0: i32) -> (i32, i32) {
    %c0_i32 = arith.constant 0 : i32
    %c0_i32_0 = arith.constant 0 : i32
    %c0_i32_1 = arith.constant 0 : i32
    return %c0_i32, %c0_i32_0 : i32, i32
  }
  func.func @transform_6(%arg0: i32) -> (i32, i32) {
    %c0_i32 = arith.constant 0 : i32
    %c0_i32_0 = arith.constant 0 : i32
    %c0_i32_1 = arith.constant 0 : i32
    return %c0_i32, %c0_i32_0 : i32, i32
  }
  func.func @transform_7(%arg0: i32) -> (i32, i32) {
    %c0_i32 = arith.constant 0 : i32
    %c0_i32_0 = arith.constant 0 : i32
    %c0_i32_1 = arith.constant 0 : i32
    return %c0_i32, %c0_i32_0 : i32, i32
  }
  func.func @transform_8(%arg0: i32) -> (i32, i32) {
    %c0_i32 = arith.constant 0 : i32
    %c0_i32_0 = arith.constant 0 : i32
    %c0_i32_1 = arith.constant 0 : i32
    return %c0_i32, %c0_i32_0 : i32, i32
  }
  func.func @transform_9(%arg0: i32) -> (i32, i32) {
    %c0_i32 = arith.constant 0 : i32
    %c0_i32_0 = arith.constant 0 : i32
    %c0_i32_1 = arith.constant 0 : i32
    return %c0_i32, %c0_i32_0 : i32, i32
  }
  func.func @transform_10(%arg0: i32) -> (i32, i32) {
    %c0_i32 = arith.constant 0 : i32
    %c0_i32_0 = arith.constant 0 : i32
    %c0_i32_1 = arith.constant 0 : i32
    return %c0_i32, %c0_i32_0 : i32, i32
  }
  func.func @transform_11(%arg0: i32) -> (i32, i32) {
    %c0_i32 = arith.constant 0 : i32
    %c0_i32_0 = arith.constant 0 : i32
    %c0_i32_1 = arith.constant 0 : i32
    return %c0_i32, %c0_i32_0 : i32, i32
  }
  func.func @transform_12(%arg0: i32) -> (i32, i32) {
    %c0_i32 = arith.constant 0 : i32
    %c0_i32_0 = arith.constant 0 : i32
    %c0_i32_1 = arith.constant 0 : i32
    return %c0_i32, %c0_i32_0 : i32, i32
  }
  func.func @transform_13(%arg0: i32) -> (i32, i32) {
    %c0_i32 = arith.constant 0 : i32
    %c0_i32_0 = arith.constant 0 : i32
    %c0_i32_1 = arith.constant 0 : i32
    return %c0_i32, %c0_i32_0 : i32, i32
  }
  func.func @transform_14(%arg0: i32) -> (i32, i32) {
    %c0_i32 = arith.constant 0 : i32
    %c0_i32_0 = arith.constant 0 : i32
    %c0_i32_1 = arith.constant 0 : i32
    return %c0_i32, %c0_i32_0 : i32, i32
  }
  func.func @transform_15(%arg0: i32) -> (i32, i32) {
    %c0_i32 = arith.constant 0 : i32
    %c0_i32_0 = arith.constant 0 : i32
    %c0_i32_1 = arith.constant 0 : i32
    return %c0_i32, %c0_i32_0 : i32, i32
  }
  func.func @transform_16(%arg0: i32) -> (i32, i32) {
    %c0_i32 = arith.constant 0 : i32
    %c0_i32_0 = arith.constant 0 : i32
    %c0_i32_1 = arith.constant 0 : i32
    return %c0_i32, %c0_i32_0 : i32, i32
  }
  func.func @transform_17(%arg0: i32) -> (i32, i32) {
    %c0_i32 = arith.constant 0 : i32
    %c0_i32_0 = arith.constant 0 : i32
    %c0_i32_1 = arith.constant 0 : i32
    return %c0_i32, %c0_i32_0 : i32, i32
  }
  func.func @transform_18(%arg0: i32) -> (i32, i32) {
    %c0_i32 = arith.constant 0 : i32
    %c0_i32_0 = arith.constant 0 : i32
    %c0_i32_1 = arith.constant 0 : i32
    return %c0_i32, %c0_i32_0 : i32, i32
  }
  func.func @transform_19(%arg0: i32) -> (i32, i32) {
    %c0_i32 = arith.constant 0 : i32
    %c0_i32_0 = arith.constant 0 : i32
    %c0_i32_1 = arith.constant 0 : i32
    return %c0_i32, %c0_i32_0 : i32, i32
  }
  func.func @transform_20(%arg0: i32) -> (i32, i32) {
    %c0_i32 = arith.constant 0 : i32
    %c0_i32_0 = arith.constant 0 : i32
    %c0_i32_1 = arith.constant 0 : i32
    return %c0_i32, %c0_i32_0 : i32, i32
  }
  func.func @transform_21(%arg0: i32) -> (i32, i32) {
    %c0_i32 = arith.constant 0 : i32
    %c0_i32_0 = arith.constant 0 : i32
    %c0_i32_1 = arith.constant 0 : i32
    return %c0_i32, %c0_i32_0 : i32, i32
  }
  func.func @transform_22(%arg0: i32) -> (i32, i32) {
    %c0_i32 = arith.constant 0 : i32
    %c0_i32_0 = arith.constant 0 : i32
    %c0_i32_1 = arith.constant 0 : i32
    return %c0_i32, %c0_i32_0 : i32, i32
  }
  func.func @transform_23(%arg0: i32) -> (i32, i32) {
    %c0_i32 = arith.constant 0 : i32
    %c0_i32_0 = arith.constant 0 : i32
    %c0_i32_1 = arith.constant 0 : i32
    return %c0_i32, %c0_i32_0 : i32, i32
  }
  func.func @transform_24(%arg0: i32) -> (i32, i32) {
    %c0_i32 = arith.constant 0 : i32
    %c0_i32_0 = arith.constant 0 : i32
    %c0_i32_1 = arith.constant 0 : i32
    return %c0_i32, %c0_i32_0 : i32, i32
  }
  func.func @transform_25(%arg0: i32) -> (i32, i32) {
    %c0_i32 = arith.constant 0 : i32
    %c0_i32_0 = arith.constant 0 : i32
    %c0_i32_1 = arith.constant 0 : i32
    return %c0_i32, %c0_i32_0 : i32, i32
  }
  func.func @transform_26(%arg0: i32) -> (i32, i32) {
    %c0_i32 = arith.constant 0 : i32
    %c0_i32_0 = arith.constant 0 : i32
    %c0_i32_1 = arith.constant 0 : i32
    return %c0_i32, %c0_i32_0 : i32, i32
  }
  func.func @transform_27(%arg0: i32) -> (i32, i32) {
    %c0_i32 = arith.constant 0 : i32
    %c0_i32_0 = arith.constant 0 : i32
    %c0_i32_1 = arith.constant 0 : i32
    return %c0_i32, %c0_i32_0 : i32, i32
  }
  func.func @transform_28(%arg0: i32) -> (i32, i32) {
    %c0_i32 = arith.constant 0 : i32
    %c0_i32_0 = arith.constant 0 : i32
    %c0_i32_1 = arith.constant 0 : i32
    return %c0_i32, %c0_i32_0 : i32, i32
  }
  func.func @transform_29(%arg0: i32) -> (i32, i32) {
    %c0_i32 = arith.constant 0 : i32
    %c0_i32_0 = arith.constant 0 : i32
    %c0_i32_1 = arith.constant 0 : i32
    return %c0_i32, %c0_i32_0 : i32, i32
  }
  func.func @transform_30(%arg0: i32) -> (i32, i32) {
    %c0_i32 = arith.constant 0 : i32
    %c0_i32_0 = arith.constant 0 : i32
    %c0_i32_1 = arith.constant 0 : i32
    return %c0_i32, %c0_i32_0 : i32, i32
  }
  func.func @transform_31(%arg0: i32) -> (i32, i32, i32, i32) {
    %c0_i32 = arith.constant 0 : i32
    %c0_i32_0 = arith.constant 0 : i32
    %c0_i32_1 = arith.constant 0 : i32
    %c0_i32_2 = arith.constant 0 : i32
    return %arg0, %c0_i32, %c0_i32_0, %c0_i32_1 : i32, i32, i32, i32
  }
}

</mosaic_0001>

<llo_original>
// kernel: cloth_autoencoder_forward.1
$region0: #{cloth_autoencoder_forward.1}
  #allocation0 [shape = 'u32[]', space=smem, size = 0x4, offset = 0x4, fixed_abs, tag = 'smem constant byte address 0x4 - core index']
  #allocation1 [shape = 'u32[144,128]{1,0:T(1,128)}', space=vmem, size = 0x12000, scoped, tag = 'internal scratch']
  %s0 = inlined_call_operand.smem [shape: u32[32], index: -1, kind: input, shape index: {}]
  %s1 = sld [smem:[%s0]]
  %s2 = scalar_lea.smem %s0, 1
  %s3 = sld [smem:[%s2]]
  %s4 = scalar_lea.smem %s0, 2
  %s5 = sld [smem:[%s4]]
  %s6 = scalar_lea.smem %s0, 3
  %s7 = sld [smem:[%s6]]
  %s8 = scalar_lea.smem %s0, 4
  %s9 = sld [smem:[%s8]]
  %s10 = scalar_lea.smem %s0, 5
  %s11 = sld [smem:[%s10]]
  %s12 = scalar_lea.smem %s0, 6
  %s13 = sld [smem:[%s12]]
  %s14 = scalar_lea.smem %s0, 7
  %s15 = sld [smem:[%s14]]
  %s16 = scalar_lea.smem %s0, 8
  %s17 = sld [smem:[%s16]]
  %s18 = scalar_lea.smem %s0, 9
  %s19 = sld [smem:[%s18]]
  %s20 = scalar_lea.smem %s0, 10
  %s21 = sld [smem:[%s20]]
  %s22 = scalar_lea.smem %s0, 11
  %s23 = sld [smem:[%s22]]
  %s24 = scalar_lea.smem %s0, 12
  %s25 = sld [smem:[%s24]]
  %s26 = scalar_lea.smem %s0, 13
  %s27 = sld [smem:[%s26]]
  %s28 = scalar_lea.smem %s0, 14
  %s29 = sld [smem:[%s28]]
  %s30 = scalar_lea.smem %s0, 15
  %s31 = sld [smem:[%s30]]
  %s32 = scalar_lea.smem %s0, 16
  %s33 = sld [smem:[%s32]]
  %s34 = scalar_lea.smem %s0, 17
  %s35 = sld [smem:[%s34]]
  %s36 = scalar_lea.smem %s0, 18
  %s37 = sld [smem:[%s36]]
  %s38 = scalar_lea.smem %s0, 19
  %s39 = sld [smem:[%s38]]
  %s40 = scalar_lea.smem %s0, 20
  %s41 = sld [smem:[%s40]]
  %s42 = scalar_lea.smem %s0, 21
  %s43 = sld [smem:[%s42]]
  %s44 = scalar_lea.smem %s0, 22
  %s45 = sld [smem:[%s44]]
  %s46 = scalar_lea.smem %s0, 23
  %s47 = sld [smem:[%s46]]
  %s48 = scalar_lea.smem %s0, 24
  %s49 = sld [smem:[%s48]]
  %s50 = scalar_lea.smem %s0, 25
  %s51 = sld [smem:[%s50]]
  %s52 = scalar_lea.smem %s0, 26
  %s53 = sld [smem:[%s52]]
  %s54 = scalar_lea.smem %s0, 27
  %s55 = sld [smem:[%s54]]
  %s56 = scalar_lea.smem %s0, 28
  %s57 = sld [smem:[%s56]]
  %s58 = scalar_lea.smem %s0, 29
  %s59 = sld [smem:[%s58]]
  %s60 = scalar_lea.smem %s0, 30
  %s61 = sld [smem:[%s60]]
  %s62 = scalar_lea.smem %s0, 31
  %s63 = sld [smem:[%s62]]
  %s64 = sld [smem:[#allocation0]]
  $region157: #{cloth_autoencoder_forward.1} parent=0
    _
  %s66 = ssub.s32 1, %s64
  %s67 = scalar_select 0, %s66, %s64
  loop: start=0, step=1, limit=4
  $region2: #{cloth_autoencoder_forward.1} parent=0 // loop_pre_header
    _
  $region3: #{cloth_autoencoder_forward.1} parent=0 // loop_header
    %s69 = sphi 0, %s73
    %p70 = scmp.ge.s32.totalorder %s69, 4
    %s79 = sphi 0, %s81
    %s82 = sphi 0, %s79
    %s83 = sphi 0, %s82
    %s99 = sphi 0, %s83
    %s103 = sphi 0, %s103
    %s105 = sphi 0, %s103
    %s106 = sphi 0, %s105
    %s120 = sphi 0, %s106
    %s124 = sphi 0, %s124
    %s126 = sphi 0, %s124
    %s127 = sphi 0, %s126
    %s141 = sphi 0, %s127
    %s145 = sphi 0, %s145
    %s147 = sphi 0, %s145
    %s148 = sphi 0, %s147
    %s162 = sphi 0, %s148
    %s166 = sphi 0, %s166
    %s168 = sphi 0, %s166
    %s169 = sphi 0, %s168
    %s183 = sphi 0, %s169
    %s187 = sphi 0, %s187
    %s189 = sphi 0, %s187
    %s190 = sphi 0, %s189
    %s204 = sphi 0, %s190
    %s208 = sphi 0, %s208
    %s210 = sphi 0, %s208
    %s211 = sphi 0, %s210
    %s225 = sphi 0, %s211
    %s229 = sphi 0, %s229
    %s231 = sphi 0, %s229
    %s232 = sphi 0, %s231
    %s246 = sphi 0, %s232
    %s250 = sphi 0, %s250
    %s252 = sphi 0, %s250
    %s253 = sphi 0, %s252
    %s267 = sphi 0, %s253
    %s271 = sphi 0, %s271
    %s273 = sphi 0, %s271
    %s274 = sphi 0, %s273
    %s288 = sphi 0, %s274
    %s292 = sphi 0, %s292
    %s294 = sphi 0, %s292
    %s295 = sphi 0, %s294
    %s309 = sphi 0, %s295
    %s313 = sphi 0, %s313
    %s315 = sphi 0, %s313
    %s316 = sphi 0, %s315
    %s330 = sphi 0, %s316
    %s334 = sphi 0, %s334
    %s336 = sphi 0, %s334
    %s337 = sphi 0, %s336
    %s351 = sphi 0, %s337
    %s355 = sphi 0, %s355
    %s357 = sphi 0, %s355
    %s358 = sphi 0, %s357
    %s372 = sphi 0, %s358
    %s376 = sphi 0, %s376
    %s378 = sphi 0, %s376
    %s379 = sphi 0, %s378
    %s393 = sphi 0, %s379
    %s397 = sphi 0, %s397
    %s399 = sphi 0, %s397
    %s400 = sphi 0, %s399
    %s414 = sphi 0, %s400
    %s418 = sphi 0, %s418
    %s420 = sphi 0, %s418
    %s421 = sphi 0, %s420
    %s435 = sphi 0, %s421
    %s439 = sphi 0, %s439
    %s441 = sphi 0, %s439
    %s442 = sphi 0, %s441
    %s456 = sphi 0, %s442
    %s460 = sphi 0, %s460
    %s462 = sphi 0, %s460
    %s463 = sphi 0, %s462
    %s477 = sphi 0, %s463
    %s481 = sphi 0, %s481
    %s483 = sphi 0, %s481
    %s484 = sphi 0, %s483
    %s498 = sphi 0, %s484
    %s502 = sphi 0, %s502
    %s504 = sphi 0, %s502
    %s505 = sphi 0, %s504
    %s519 = sphi 0, %s505
    %s523 = sphi 0, %s523
    %s525 = sphi 0, %s523
    %s526 = sphi 0, %s525
    %s540 = sphi 0, %s526
    %s544 = sphi 0, %s544
    %s546 = sphi 0, %s544
    %s547 = sphi 0, %s546
    %s561 = sphi 0, %s547
    %s565 = sphi 0, %s565
    %s567 = sphi 0, %s565
    %s568 = sphi 0, %s567
    %s582 = sphi 0, %s568
    %s586 = sphi 0, %s586
    %s588 = sphi 0, %s586
    %s589 = sphi 0, %s588
    %s603 = sphi 0, %s589
    %s607 = sphi 0, %s607
    %s609 = sphi 0, %s607
    %s610 = sphi 0, %s609
    %s624 = sphi 0, %s610
    %s628 = sphi 0, %s628
    %s630 = sphi 0, %s628
    %s631 = sphi 0, %s630
    %s645 = sphi 0, %s631
    %s649 = sphi 0, %s649
    %s651 = sphi 0, %s649
    %s652 = sphi 0, %s651
    %s666 = sphi 0, %s652
    %s670 = sphi 0, %s670
    %s672 = sphi 0, %s670
    %s673 = sphi 0, %s672
    %s687 = sphi 0, %s673
    %s691 = sphi 0, %s691
    %s693 = sphi 0, %s691
    %s694 = sphi 0, %s693
    %s708 = sphi 0, %s694
    %s712 = sphi 0, %s712
    %s714 = sphi 0, %s712
    %s715 = sphi 0, %s714
    %s729 = sphi 0, %s715
    %s735 = sphi 0, %s737
    %s738 = sphi 0, %s735
    %s739 = sphi 0, %s738
    %s755 = sphi 0, %s739
  $region4: #{cloth_autoencoder_forward.1} parent=0 // loop_header_branch
    %72 = sbr.rel (%p70) target = $region8
  $region5: #{cloth_autoencoder_forward.1} parent=0 // loop_body
    %s74 = ssub.s32 %s69, 1
    %s75 = ssub.s32 %s69, 2
    %s76 = sadd.s32 %s69, 1
    %s77 = ssub.s32 %s69, %s76
    %p78 = scmp.eq.s32.totalorder %s77, 0
    %s80 = sadd.s32 %s79, 1
    %s81 = scalar_select %p78, %s79, %s80
    %p84 = pneg %p78
    %p85 = scmp.eq.s32.totalorder %s69, 1
    %p86 = por %p84, %p85
    %p87 = scmp.ne.s32.totalorder %s79, %s82
    %p88 = scmp.eq.s32.totalorder %s69, 0
    %p89 = por %p87, %p88
    %p90 = scmp.ne.s32.totalorder %s79, %s82
    %p91 = scmp.eq.s32.totalorder %s74, 1
    %p92 = por %p90, %p91
    %p93 = scmp.ne.s32.totalorder %s82, %s83
    %p94 = scmp.eq.s32.totalorder %s74, 0
    %p95 = por %p93, %p94
    %p96 = scmp.ne.s32.totalorder %s82, %s83
    %p97 = scmp.eq.s32.totalorder %s75, 1
    %p98 = por %p96, %p97
    %p100 = scmp.ne.s32.totalorder %s83, %s99
    %p101 = scmp.eq.s32.totalorder %s75, 0
    %p102 = por %p100, %p101
    %s104 = sadd.s32 %s103, 1
    %p107 = scmp.eq.s32.totalorder %s69, 1
    %p108 = scmp.ne.s32.totalorder %s103, %s105
    %p109 = scmp.eq.s32.totalorder %s69, 0
    %p110 = por %p108, %p109
    %p111 = scmp.ne.s32.totalorder %s103, %s105
    %p112 = scmp.eq.s32.totalorder %s74, 1
    %p113 = por %p111, %p112
    %p114 = scmp.ne.s32.totalorder %s105, %s106
    %p115 = scmp.eq.s32.totalorder %s74, 0
    %p116 = por %p114, %p115
    %p117 = scmp.ne.s32.totalorder %s105, %s106
    %p118 = scmp.eq.s32.totalorder %s75, 1
    %p119 = por %p117, %p118
    %p121 = scmp.ne.s32.totalorder %s106, %s120
    %p122 = scmp.eq.s32.totalorder %s75, 0
    %p123 = por %p121, %p122
    %s125 = sadd.s32 %s124, 1
    %p128 = scmp.eq.s32.totalorder %s69, 1
    %p129 = scmp.ne.s32.totalorder %s124, %s126
    %p130 = scmp.eq.s32.totalorder %s69, 0
    %p131 = por %p129, %p130
    %p132 = scmp.ne.s32.totalorder %s124, %s126
    %p133 = scmp.eq.s32.totalorder %s74, 1
    %p134 = por %p132, %p133
    %p135 = scmp.ne.s32.totalorder %s126, %s127
    %p136 = scmp.eq.s32.totalorder %s74, 0
    %p137 = por %p135, %p136
    %p138 = scmp.ne.s32.totalorder %s126, %s127
    %p139 = scmp.eq.s32.totalorder %s75, 1
    %p140 = por %p138, %p139
    %p142 = scmp.ne.s32.totalorder %s127, %s141
    %p143 = scmp.eq.s32.totalorder %s75, 0
    %p144 = por %p142, %p143
    %s146 = sadd.s32 %s145, 1
    %p149 = scmp.eq.s32.totalorder %s69, 1
    %p150 = scmp.ne.s32.totalorder %s145, %s147
    %p151 = scmp.eq.s32.totalorder %s69, 0
    %p152 = por %p150, %p151
    %p153 = scmp.ne.s32.totalorder %s145, %s147
    %p154 = scmp.eq.s32.totalorder %s74, 1
    %p155 = por %p153, %p154
    %p156 = scmp.ne.s32.totalorder %s147, %s148
    %p157 = scmp.eq.s32.totalorder %s74, 0
    %p158 = por %p156, %p157
    %p159 = scmp.ne.s32.totalorder %s147, %s148
    %p160 = scmp.eq.s32.totalorder %s75, 1
    %p161 = por %p159, %p160
    %p163 = scmp.ne.s32.totalorder %s148, %s162
    %p164 = scmp.eq.s32.totalorder %s75, 0
    %p165 = por %p163, %p164
    %s167 = sadd.s32 %s166, 1
    %p170 = scmp.eq.s32.totalorder %s69, 1
    %p171 = scmp.ne.s32.totalorder %s166, %s168
    %p172 = scmp.eq.s32.totalorder %s69, 0
    %p173 = por %p171, %p172
    %p174 = scmp.ne.s32.totalorder %s166, %s168
    %p175 = scmp.eq.s32.totalorder %s74, 1
    %p176 = por %p174, %p175
    %p177 = scmp.ne.s32.totalorder %s168, %s169
    %p178 = scmp.eq.s32.totalorder %s74, 0
    %p179 = por %p177, %p178
    %p180 = scmp.ne.s32.totalorder %s168, %s169
    %p181 = scmp.eq.s32.totalorder %s75, 1
    %p182 = por %p180, %p181
    %p184 = scmp.ne.s32.totalorder %s169, %s183
    %p185 = scmp.eq.s32.totalorder %s75, 0
    %p186 = por %p184, %p185
    %s188 = sadd.s32 %s187, 1
    %p191 = scmp.eq.s32.totalorder %s69, 1
    %p192 = scmp.ne.s32.totalorder %s187, %s189
    %p193 = scmp.eq.s32.totalorder %s69, 0
    %p194 = por %p192, %p193
    %p195 = scmp.ne.s32.totalorder %s187, %s189
    %p196 = scmp.eq.s32.totalorder %s74, 1
    %p197 = por %p195, %p196
    %p198 = scmp.ne.s32.totalorder %s189, %s190
    %p199 = scmp.eq.s32.totalorder %s74, 0
    %p200 = por %p198, %p199
    %p201 = scmp.ne.s32.totalorder %s189, %s190
    %p202 = scmp.eq.s32.totalorder %s75, 1
    %p203 = por %p201, %p202
    %p205 = scmp.ne.s32.totalorder %s190, %s204
    %p206 = scmp.eq.s32.totalorder %s75, 0
    %p207 = por %p205, %p206
    %s209 = sadd.s32 %s208, 1
    %p212 = scmp.eq.s32.totalorder %s69, 1
    %p213 = scmp.ne.s32.totalorder %s208, %s210
    %p214 = scmp.eq.s32.totalorder %s69, 0
    %p215 = por %p213, %p214
    %p216 = scmp.ne.s32.totalorder %s208, %s210
    %p217 = scmp.eq.s32.totalorder %s74, 1
    %p218 = por %p216, %p217
    %p219 = scmp.ne.s32.totalorder %s210, %s211
    %p220 = scmp.eq.s32.totalorder %s74, 0
    %p221 = por %p219, %p220
    %p222 = scmp.ne.s32.totalorder %s210, %s211
    %p223 = scmp.eq.s32.totalorder %s75, 1
    %p224 = por %p222, %p223
    %p226 = scmp.ne.s32.totalorder %s211, %s225
    %p227 = scmp.eq.s32.totalorder %s75, 0
    %p228 = por %p226, %p227
    %s230 = sadd.s32 %s229, 1
    %p233 = scmp.eq.s32.totalorder %s69, 1
    %p234 = scmp.ne.s32.totalorder %s229, %s231
    %p235 = scmp.eq.s32.totalorder %s69, 0
    %p236 = por %p234, %p235
    %p237 = scmp.ne.s32.totalorder %s229, %s231
    %p238 = scmp.eq.s32.totalorder %s74, 1
    %p239 = por %p237, %p238
    %p240 = scmp.ne.s32.totalorder %s231, %s232
    %p241 = scmp.eq.s32.totalorder %s74, 0
    %p242 = por %p240, %p241
    %p243 = scmp.ne.s32.totalorder %s231, %s232
    %p244 = scmp.eq.s32.totalorder %s75, 1
    %p245 = por %p243, %p244
    %p247 = scmp.ne.s32.totalorder %s232, %s246
    %p248 = scmp.eq.s32.totalorder %s75, 0
    %p249 = por %p247, %p248
    %s251 = sadd.s32 %s250, 1
    %p254 = scmp.eq.s32.totalorder %s69, 1
    %p255 = scmp.ne.s32.totalorder %s250, %s252
    %p256 = scmp.eq.s32.totalorder %s69, 0
    %p257 = por %p255, %p256
    %p258 = scmp.ne.s32.totalorder %s250, %s252
    %p259 = scmp.eq.s32.totalorder %s74, 1
    %p260 = por %p258, %p259
    %p261 = scmp.ne.s32.totalorder %s252, %s253
    %p262 = scmp.eq.s32.totalorder %s74, 0
    %p263 = por %p261, %p262
    %p264 = scmp.ne.s32.totalorder %s252, %s253
    %p265 = scmp.eq.s32.totalorder %s75, 1
    %p266 = por %p264, %p265
    %p268 = scmp.ne.s32.totalorder %s253, %s267
    %p269 = scmp.eq.s32.totalorder %s75, 0
    %p270 = por %p268, %p269
    %s272 = sadd.s32 %s271, 1
    %p275 = scmp.eq.s32.totalorder %s69, 1
    %p276 = scmp.ne.s32.totalorder %s271, %s273
    %p277 = scmp.eq.s32.totalorder %s69, 0
    %p278 = por %p276, %p277
    %p279 = scmp.ne.s32.totalorder %s271, %s273
    %p280 = scmp.eq.s32.totalorder %s74, 1
    %p281 = por %p279, %p280
    %p282 = scmp.ne.s32.totalorder %s273, %s274
    %p283 = scmp.eq.s32.totalorder %s74, 0
    %p284 = por %p282, %p283
    %p285 = scmp.ne.s32.totalorder %s273, %s274
    %p286 = scmp.eq.s32.totalorder %s75, 1
    %p287 = por %p285, %p286
    %p289 = scmp.ne.s32.totalorder %s274, %s288
    %p290 = scmp.eq.s32.totalorder %s75, 0
    %p291 = por %p289, %p290
    %s293 = sadd.s32 %s292, 1
    %p296 = scmp.eq.s32.totalorder %s69, 1
    %p297 = scmp.ne.s32.totalorder %s292, %s294
    %p298 = scmp.eq.s32.totalorder %s69, 0
    %p299 = por %p297, %p298
    %p300 = scmp.ne.s32.totalorder %s292, %s294
    %p301 = scmp.eq.s32.totalorder %s74, 1
    %p302 = por %p300, %p301
    %p303 = scmp.ne.s32.totalorder %s294, %s295
    %p304 = scmp.eq.s32.totalorder %s74, 0
    %p305 = por %p303, %p304
    %p306 = scmp.ne.s32.totalorder %s294, %s295
    %p307 = scmp.eq.s32.totalorder %s75, 1
    %p308 = por %p306, %p307
    %p310 = scmp.ne.s32.totalorder %s295, %s309
    %p311 = scmp.eq.s32.totalorder %s75, 0
    %p312 = por %p310, %p311
    %s314 = sadd.s32 %s313, 1
    %p317 = scmp.eq.s32.totalorder %s69, 1
    %p318 = scmp.ne.s32.totalorder %s313, %s315
    %p319 = scmp.eq.s32.totalorder %s69, 0
    %p320 = por %p318, %p319
    %p321 = scmp.ne.s32.totalorder %s313, %s315
    %p322 = scmp.eq.s32.totalorder %s74, 1
    %p323 = por %p321, %p322
    %p324 = scmp.ne.s32.totalorder %s315, %s316
    %p325 = scmp.eq.s32.totalorder %s74, 0
    %p326 = por %p324, %p325
    %p327 = scmp.ne.s32.totalorder %s315, %s316
    %p328 = scmp.eq.s32.totalorder %s75, 1
    %p329 = por %p327, %p328
    %p331 = scmp.ne.s32.totalorder %s316, %s330
    %p332 = scmp.eq.s32.totalorder %s75, 0
    %p333 = por %p331, %p332
    %s335 = sadd.s32 %s334, 1
    %p338 = scmp.eq.s32.totalorder %s69, 1
    %p339 = scmp.ne.s32.totalorder %s334, %s336
    %p340 = scmp.eq.s32.totalorder %s69, 0
    %p341 = por %p339, %p340
    %p342 = scmp.ne.s32.totalorder %s334, %s336
    %p343 = scmp.eq.s32.totalorder %s74, 1
    %p344 = por %p342, %p343
    %p345 = scmp.ne.s32.totalorder %s336, %s337
    %p346 = scmp.eq.s32.totalorder %s74, 0
    %p347 = por %p345, %p346
    %p348 = scmp.ne.s32.totalorder %s336, %s337
    %p349 = scmp.eq.s32.totalorder %s75, 1
    %p350 = por %p348, %p349
    %p352 = scmp.ne.s32.totalorder %s337, %s351
    %p353 = scmp.eq.s32.totalorder %s75, 0
    %p354 = por %p352, %p353
    %s356 = sadd.s32 %s355, 1
    %p359 = scmp.eq.s32.totalorder %s69, 1
    %p360 = scmp.ne.s32.totalorder %s355, %s357
    %p361 = scmp.eq.s32.totalorder %s69, 0
    %p362 = por %p360, %p361
    %p363 = scmp.ne.s32.totalorder %s355, %s357
    %p364 = scmp.eq.s32.totalorder %s74, 1
    %p365 = por %p363, %p364
    %p366 = scmp.ne.s32.totalorder %s357, %s358
    %p367 = scmp.eq.s32.totalorder %s74, 0
    %p368 = por %p366, %p367
    %p369 = scmp.ne.s32.totalorder %s357, %s358
    %p370 = scmp.eq.s32.totalorder %s75, 1
    %p371 = por %p369, %p370
    %p373 = scmp.ne.s32.totalorder %s358, %s372
    %p374 = scmp.eq.s32.totalorder %s75, 0
    %p375 = por %p373, %p374
    %s377 = sadd.s32 %s376, 1
    %p380 = scmp.eq.s32.totalorder %s69, 1
    %p381 = scmp.ne.s32.totalorder %s376, %s378
    %p382 = scmp.eq.s32.totalorder %s69, 0
    %p383 = por %p381, %p382
    %p384 = scmp.ne.s32.totalorder %s376, %s378
    %p385 = scmp.eq.s32.totalorder %s74, 1
    %p386 = por %p384, %p385
    %p387 = scmp.ne.s32.totalorder %s378, %s379
    %p388 = scmp.eq.s32.totalorder %s74, 0
    %p389 = por %p387, %p388
    %p390 = scmp.ne.s32.totalorder %s378, %s379
    %p391 = scmp.eq.s32.totalorder %s75, 1
    %p392 = por %p390, %p391
    %p394 = scmp.ne.s32.totalorder %s379, %s393
    %p395 = scmp.eq.s32.totalorder %s75, 0
    %p396 = por %p394, %p395
    %s398 = sadd.s32 %s397, 1
    %p401 = scmp.eq.s32.totalorder %s69, 1
    %p402 = scmp.ne.s32.totalorder %s397, %s399
    %p403 = scmp.eq.s32.totalorder %s69, 0
    %p404 = por %p402, %p403
    %p405 = scmp.ne.s32.totalorder %s397, %s399
    %p406 = scmp.eq.s32.totalorder %s74, 1
    %p407 = por %p405, %p406
    %p408 = scmp.ne.s32.totalorder %s399, %s400
    %p409 = scmp.eq.s32.totalorder %s74, 0
    %p410 = por %p408, %p409
    %p411 = scmp.ne.s32.totalorder %s399, %s400
    %p412 = scmp.eq.s32.totalorder %s75, 1
    %p413 = por %p411, %p412
    %p415 = scmp.ne.s32.totalorder %s400, %s414
    %p416 = scmp.eq.s32.totalorder %s75, 0
    %p417 = por %p415, %p416
    %s419 = sadd.s32 %s418, 1
    %p422 = scmp.eq.s32.totalorder %s69, 1
    %p423 = scmp.ne.s32.totalorder %s418, %s420
    %p424 = scmp.eq.s32.totalorder %s69, 0
    %p425 = por %p423, %p424
    %p426 = scmp.ne.s32.totalorder %s418, %s420
    %p427 = scmp.eq.s32.totalorder %s74, 1
    %p428 = por %p426, %p427
    %p429 = scmp.ne.s32.totalorder %s420, %s421
    %p430 = scmp.eq.s32.totalorder %s74, 0
    %p431 = por %p429, %p430
    %p432 = scmp.ne.s32.totalorder %s420, %s421
    %p433 = scmp.eq.s32.totalorder %s75, 1
    %p434 = por %p432, %p433
    %p436 = scmp.ne.s32.totalorder %s421, %s435
    %p437 = scmp.eq.s32.totalorder %s75, 0
    %p438 = por %p436, %p437
    %s440 = sadd.s32 %s439, 1
    %p443 = scmp.eq.s32.totalorder %s69, 1
    %p444 = scmp.ne.s32.totalorder %s439, %s441
    %p445 = scmp.eq.s32.totalorder %s69, 0
    %p446 = por %p444, %p445
    %p447 = scmp.ne.s32.totalorder %s439, %s441
    %p448 = scmp.eq.s32.totalorder %s74, 1
    %p449 = por %p447, %p448
    %p450 = scmp.ne.s32.totalorder %s441, %s442
    %p451 = scmp.eq.s32.totalorder %s74, 0
    %p452 = por %p450, %p451
    %p453 = scmp.ne.s32.totalorder %s441, %s442
    %p454 = scmp.eq.s32.totalorder %s75, 1
    %p455 = por %p453, %p454
    %p457 = scmp.ne.s32.totalorder %s442, %s456
    %p458 = scmp.eq.s32.totalorder %s75, 0
    %p459 = por %p457, %p458
    %s461 = sadd.s32 %s460, 1
    %p464 = scmp.eq.s32.totalorder %s69, 1
    %p465 = scmp.ne.s32.totalorder %s460, %s462
    %p466 = scmp.eq.s32.totalorder %s69, 0
    %p467 = por %p465, %p466
    %p468 = scmp.ne.s32.totalorder %s460, %s462
    %p469 = scmp.eq.s32.totalorder %s74, 1
    %p470 = por %p468, %p469
    %p471 = scmp.ne.s32.totalorder %s462, %s463
    %p472 = scmp.eq.s32.totalorder %s74, 0
    %p473 = por %p471, %p472
    %p474 = scmp.ne.s32.totalorder %s462, %s463
    %p475 = scmp.eq.s32.totalorder %s75, 1
    %p476 = por %p474, %p475
    %p478 = scmp.ne.s32.totalorder %s463, %s477
    %p479 = scmp.eq.s32.totalorder %s75, 0
    %p480 = por %p478, %p479
    %s482 = sadd.s32 %s481, 1
    %p485 = scmp.eq.s32.totalorder %s69, 1
    %p486 = scmp.ne.s32.totalorder %s481, %s483
    %p487 = scmp.eq.s32.totalorder %s69, 0
    %p488 = por %p486, %p487
    %p489 = scmp.ne.s32.totalorder %s481, %s483
    %p490 = scmp.eq.s32.totalorder %s74, 1
    %p491 = por %p489, %p490
    %p492 = scmp.ne.s32.totalorder %s483, %s484
    %p493 = scmp.eq.s32.totalorder %s74, 0
    %p494 = por %p492, %p493
    %p495 = scmp.ne.s32.totalorder %s483, %s484
    %p496 = scmp.eq.s32.totalorder %s75, 1
    %p497 = por %p495, %p496
    %p499 = scmp.ne.s32.totalorder %s484, %s498
    %p500 = scmp.eq.s32.totalorder %s75, 0
    %p501 = por %p499, %p500
    %s503 = sadd.s32 %s502, 1
    %p506 = scmp.eq.s32.totalorder %s69, 1
    %p507 = scmp.ne.s32.totalorder %s502, %s504
    %p508 = scmp.eq.s32.totalorder %s69, 0
    %p509 = por %p507, %p508
    %p510 = scmp.ne.s32.totalorder %s502, %s504
    %p511 = scmp.eq.s32.totalorder %s74, 1
    %p512 = por %p510, %p511
    %p513 = scmp.ne.s32.totalorder %s504, %s505
    %p514 = scmp.eq.s32.totalorder %s74, 0
    %p515 = por %p513, %p514
    %p516 = scmp.ne.s32.totalorder %s504, %s505
    %p517 = scmp.eq.s32.totalorder %s75, 1
    %p518 = por %p516, %p517
    %p520 = scmp.ne.s32.totalorder %s505, %s519
    %p521 = scmp.eq.s32.totalorder %s75, 0
    %p522 = por %p520, %p521
    %s524 = sadd.s32 %s523, 1
    %p527 = scmp.eq.s32.totalorder %s69, 1
    %p528 = scmp.ne.s32.totalorder %s523, %s525
    %p529 = scmp.eq.s32.totalorder %s69, 0
    %p530 = por %p528, %p529
    %p531 = scmp.ne.s32.totalorder %s523, %s525
    %p532 = scmp.eq.s32.totalorder %s74, 1
    %p533 = por %p531, %p532
    %p534 = scmp.ne.s32.totalorder %s525, %s526
    %p535 = scmp.eq.s32.totalorder %s74, 0
    %p536 = por %p534, %p535
    %p537 = scmp.ne.s32.totalorder %s525, %s526
    %p538 = scmp.eq.s32.totalorder %s75, 1
    %p539 = por %p537, %p538
    %p541 = scmp.ne.s32.totalorder %s526, %s540
    %p542 = scmp.eq.s32.totalorder %s75, 0
    %p543 = por %p541, %p542
    %s545 = sadd.s32 %s544, 1
    %p548 = scmp.eq.s32.totalorder %s69, 1
    %p549 = scmp.ne.s32.totalorder %s544, %s546
    %p550 = scmp.eq.s32.totalorder %s69, 0
    %p551 = por %p549, %p550
    %p552 = scmp.ne.s32.totalorder %s544, %s546
    %p553 = scmp.eq.s32.totalorder %s74, 1
    %p554 = por %p552, %p553
    %p555 = scmp.ne.s32.totalorder %s546, %s547
    %p556 = scmp.eq.s32.totalorder %s74, 0
    %p557 = por %p555, %p556
    %p558 = scmp.ne.s32.totalorder %s546, %s547
    %p559 = scmp.eq.s32.totalorder %s75, 1
    %p560 = por %p558, %p559
    %p562 = scmp.ne.s32.totalorder %s547, %s561
    %p563 = scmp.eq.s32.totalorder %s75, 0
    %p564 = por %p562, %p563
    %s566 = sadd.s32 %s565, 1
    %p569 = scmp.eq.s32.totalorder %s69, 1
    %p570 = scmp.ne.s32.totalorder %s565, %s567
    %p571 = scmp.eq.s32.totalorder %s69, 0
    %p572 = por %p570, %p571
    %p573 = scmp.ne.s32.totalorder %s565, %s567
    %p574 = scmp.eq.s32.totalorder %s74, 1
    %p575 = por %p573, %p574
    %p576 = scmp.ne.s32.totalorder %s567, %s568
    %p577 = scmp.eq.s32.totalorder %s74, 0
    %p578 = por %p576, %p577
    %p579 = scmp.ne.s32.totalorder %s567, %s568
    %p580 = scmp.eq.s32.totalorder %s75, 1
    %p581 = por %p579, %p580
    %p583 = scmp.ne.s32.totalorder %s568, %s582
    %p584 = scmp.eq.s32.totalorder %s75, 0
    %p585 = por %p583, %p584
    %s587 = sadd.s32 %s586, 1
    %p590 = scmp.eq.s32.totalorder %s69, 1
    %p591 = scmp.ne.s32.totalorder %s586, %s588
    %p592 = scmp.eq.s32.totalorder %s69, 0
    %p593 = por %p591, %p592
    %p594 = scmp.ne.s32.totalorder %s586, %s588
    %p595 = scmp.eq.s32.totalorder %s74, 1
    %p596 = por %p594, %p595
    %p597 = scmp.ne.s32.totalorder %s588, %s589
    %p598 = scmp.eq.s32.totalorder %s74, 0
    %p599 = por %p597, %p598
    %p600 = scmp.ne.s32.totalorder %s588, %s589
    %p601 = scmp.eq.s32.totalorder %s75, 1
    %p602 = por %p600, %p601
    %p604 = scmp.ne.s32.totalorder %s589, %s603
    %p605 = scmp.eq.s32.totalorder %s75, 0
    %p606 = por %p604, %p605
    %s608 = sadd.s32 %s607, 1
    %p611 = scmp.eq.s32.totalorder %s69, 1
    %p612 = scmp.ne.s32.totalorder %s607, %s609
    %p613 = scmp.eq.s32.totalorder %s69, 0
    %p614 = por %p612, %p613
    %p615 = scmp.ne.s32.totalorder %s607, %s609
    %p616 = scmp.eq.s32.totalorder %s74, 1
    %p617 = por %p615, %p616
    %p618 = scmp.ne.s32.totalorder %s609, %s610
    %p619 = scmp.eq.s32.totalorder %s74, 0
    %p620 = por %p618, %p619
    %p621 = scmp.ne.s32.totalorder %s609, %s610
    %p622 = scmp.eq.s32.totalorder %s75, 1
    %p623 = por %p621, %p622
    %p625 = scmp.ne.s32.totalorder %s610, %s624
    %p626 = scmp.eq.s32.totalorder %s75, 0
    %p627 = por %p625, %p626
    %s629 = sadd.s32 %s628, 1
    %p632 = scmp.eq.s32.totalorder %s69, 1
    %p633 = scmp.ne.s32.totalorder %s628, %s630
    %p634 = scmp.eq.s32.totalorder %s69, 0
    %p635 = por %p633, %p634
    %p636 = scmp.ne.s32.totalorder %s628, %s630
    %p637 = scmp.eq.s32.totalorder %s74, 1
    %p638 = por %p636, %p637
    %p639 = scmp.ne.s32.totalorder %s630, %s631
    %p640 = scmp.eq.s32.totalorder %s74, 0
    %p641 = por %p639, %p640
    %p642 = scmp.ne.s32.totalorder %s630, %s631
    %p643 = scmp.eq.s32.totalorder %s75, 1
    %p644 = por %p642, %p643
    %p646 = scmp.ne.s32.totalorder %s631, %s645
    %p647 = scmp.eq.s32.totalorder %s75, 0
    %p648 = por %p646, %p647
    %s650 = sadd.s32 %s649, 1
    %p653 = scmp.eq.s32.totalorder %s69, 1
    %p654 = scmp.ne.s32.totalorder %s649, %s651
    %p655 = scmp.eq.s32.totalorder %s69, 0
    %p656 = por %p654, %p655
    %p657 = scmp.ne.s32.totalorder %s649, %s651
    %p658 = scmp.eq.s32.totalorder %s74, 1
    %p659 = por %p657, %p658
    %p660 = scmp.ne.s32.totalorder %s651, %s652
    %p661 = scmp.eq.s32.totalorder %s74, 0
    %p662 = por %p660, %p661
    %p663 = scmp.ne.s32.totalorder %s651, %s652
    %p664 = scmp.eq.s32.totalorder %s75, 1
    %p665 = por %p663, %p664
    %p667 = scmp.ne.s32.totalorder %s652, %s666
    %p668 = scmp.eq.s32.totalorder %s75, 0
    %p669 = por %p667, %p668
    %s671 = sadd.s32 %s670, 1
    %p674 = scmp.eq.s32.totalorder %s69, 1
    %p675 = scmp.ne.s32.totalorder %s670, %s672
    %p676 = scmp.eq.s32.totalorder %s69, 0
    %p677 = por %p675, %p676
    %p678 = scmp.ne.s32.totalorder %s670, %s672
    %p679 = scmp.eq.s32.totalorder %s74, 1
    %p680 = por %p678, %p679
    %p681 = scmp.ne.s32.totalorder %s672, %s673
    %p682 = scmp.eq.s32.totalorder %s74, 0
    %p683 = por %p681, %p682
    %p684 = scmp.ne.s32.totalorder %s672, %s673
    %p685 = scmp.eq.s32.totalorder %s75, 1
    %p686 = por %p684, %p685
    %p688 = scmp.ne.s32.totalorder %s673, %s687
    %p689 = scmp.eq.s32.totalorder %s75, 0
    %p690 = por %p688, %p689
    %s692 = sadd.s32 %s691, 1
    %p695 = scmp.eq.s32.totalorder %s69, 1
    %p696 = scmp.ne.s32.totalorder %s691, %s693
    %p697 = scmp.eq.s32.totalorder %s69, 0
    %p698 = por %p696, %p697
    %p699 = scmp.ne.s32.totalorder %s691, %s693
    %p700 = scmp.eq.s32.totalorder %s74, 1
    %p701 = por %p699, %p700
    %p702 = scmp.ne.s32.totalorder %s693, %s694
    %p703 = scmp.eq.s32.totalorder %s74, 0
    %p704 = por %p702, %p703
    %p705 = scmp.ne.s32.totalorder %s693, %s694
    %p706 = scmp.eq.s32.totalorder %s75, 1
    %p707 = por %p705, %p706
    %p709 = scmp.ne.s32.totalorder %s694, %s708
    %p710 = scmp.eq.s32.totalorder %s75, 0
    %p711 = por %p709, %p710
    %s713 = sadd.s32 %s712, 1
    %p716 = scmp.eq.s32.totalorder %s69, 1
    %p717 = scmp.ne.s32.totalorder %s712, %s714
    %p718 = scmp.eq.s32.totalorder %s69, 0
    %p719 = por %p717, %p718
    %p720 = scmp.ne.s32.totalorder %s712, %s714
    %p721 = scmp.eq.s32.totalorder %s74, 1
    %p722 = por %p720, %p721
    %p723 = scmp.ne.s32.totalorder %s714, %s715
    %p724 = scmp.eq.s32.totalorder %s74, 0
    %p725 = por %p723, %p724
    %p726 = scmp.ne.s32.totalorder %s714, %s715
    %p727 = scmp.eq.s32.totalorder %s75, 1
    %p728 = por %p726, %p727
    %p730 = scmp.ne.s32.totalorder %s715, %s729
    %p731 = scmp.eq.s32.totalorder %s75, 0
    %p732 = por %p730, %p731
    %s733 = ssub.s32 %s69, %s76
    %p734 = scmp.eq.s32.totalorder %s733, 0
    %s736 = sadd.s32 %s735, 1
    %s737 = scalar_select %p734, %s735, %s736
    %p740 = pneg %p734
    %p741 = scmp.eq.s32.totalorder %s69, 1
    %p742 = por %p740, %p741
    %p743 = scmp.ne.s32.totalorder %s735, %s738
    %p744 = scmp.eq.s32.totalorder %s69, 0
    %p745 = por %p743, %p744
    %p746 = scmp.ne.s32.totalorder %s735, %s738
    %p747 = scmp.eq.s32.totalorder %s74, 1
    %p748 = por %p746, %p747
    %p749 = scmp.ne.s32.totalorder %s738, %s739
    %p750 = scmp.eq.s32.totalorder %s74, 0
    %p751 = por %p749, %p750
    %p752 = scmp.ne.s32.totalorder %s738, %s739
    %p753 = scmp.eq.s32.totalorder %s75, 1
    %p754 = por %p752, %p753
    %p756 = scmp.ne.s32.totalorder %s739, %s755
    %p757 = scmp.eq.s32.totalorder %s75, 0
    %p758 = por %p756, %p757
    %p759 = scmp.le.s32.totalorder 1, %s69
    %p760 = scmp.lt.s32.totalorder %s69, 3
    %p761 = pnand %p759, %p760
    %p762 = pneg %p761
    // Predicated region
    $region9: #{cloth_autoencoder_forward.1} parent=5 // pred_check
      _
    $region10: #{cloth_autoencoder_forward.1} parent=5 // pred_check_branch
      %764 = sbr.rel (%p761) target = $region12
    $region11: #{cloth_autoencoder_forward.1} parent=5 // pred_region
      %s765 = ssub.s32 %s69, 1
      // Predicated region
      $region13: #{cloth_autoencoder_forward.1} parent=11 // pred_check
        %p766 = pneg %p116
      $region14: #{cloth_autoencoder_forward.1} parent=11 // pred_check_branch
        %768 = sbr.rel (%p766) target = $region16
      $region15: #{cloth_autoencoder_forward.1} parent=11 // pred_region
        _
      $region16: #{cloth_autoencoder_forward.1} parent=11 // pred_fallthru
        _
      // Predicated region
      $region17: #{cloth_autoencoder_forward.1} parent=11 // pred_check
        %p769 = pneg %p137
      $region18: #{cloth_autoencoder_forward.1} parent=11 // pred_check_branch
        %771 = sbr.rel (%p769) target = $region20
      $region19: #{cloth_autoencoder_forward.1} parent=11 // pred_region
        _
      $region20: #{cloth_autoencoder_forward.1} parent=11 // pred_fallthru
        _
      // Predicated region
      $region21: #{cloth_autoencoder_forward.1} parent=11 // pred_check
        %p772 = pneg %p158
      $region22: #{cloth_autoencoder_forward.1} parent=11 // pred_check_branch
        %774 = sbr.rel (%p772) target = $region24
      $region23: #{cloth_autoencoder_forward.1} parent=11 // pred_region
        _
      $region24: #{cloth_autoencoder_forward.1} parent=11 // pred_fallthru
        _
      // Predicated region
      $region25: #{cloth_autoencoder_forward.1} parent=11 // pred_check
        %p775 = pneg %p179
      $region26: #{cloth_autoencoder_forward.1} parent=11 // pred_check_branch
        %777 = sbr.rel (%p775) target = $region28
      $region27: #{cloth_autoencoder_forward.1} parent=11 // pred_region
        _
      $region28: #{cloth_autoencoder_forward.1} parent=11 // pred_fallthru
        _
      // Predicated region
      $region29: #{cloth_autoencoder_forward.1} parent=11 // pred_check
        %p778 = pneg %p200
      $region30: #{cloth_autoencoder_forward.1} parent=11 // pred_check_branch
        %780 = sbr.rel (%p778) target = $region32
      $region31: #{cloth_autoencoder_forward.1} parent=11 // pred_region
        _
      $region32: #{cloth_autoencoder_forward.1} parent=11 // pred_fallthru
        _
      // Predicated region
      $region33: #{cloth_autoencoder_forward.1} parent=11 // pred_check
        %p781 = pneg %p221
      $region34: #{cloth_autoencoder_forward.1} parent=11 // pred_check_branch
        %783 = sbr.rel (%p781) target = $region36
      $region35: #{cloth_autoencoder_forward.1} parent=11 // pred_region
        _
      $region36: #{cloth_autoencoder_forward.1} parent=11 // pred_fallthru
        _
      // Predicated region
      $region37: #{cloth_autoencoder_forward.1} parent=11 // pred_check
        %p784 = pneg %p242
      $region38: #{cloth_autoencoder_forward.1} parent=11 // pred_check_branch
        %786 = sbr.rel (%p784) target = $region40
      $region39: #{cloth_autoencoder_forward.1} parent=11 // pred_region
        _
      $region40: #{cloth_autoencoder_forward.1} parent=11 // pred_fallthru
        _
      // Predicated region
      $region41: #{cloth_autoencoder_forward.1} parent=11 // pred_check
        %p787 = pneg %p263
      $region42: #{cloth_autoencoder_forward.1} parent=11 // pred_check_branch
        %789 = sbr.rel (%p787) target = $region44
      $region43: #{cloth_autoencoder_forward.1} parent=11 // pred_region
        _
      $region44: #{cloth_autoencoder_forward.1} parent=11 // pred_fallthru
        _
      // Predicated region
      $region45: #{cloth_autoencoder_forward.1} parent=11 // pred_check
        %p790 = pneg %p284
      $region46: #{cloth_autoencoder_forward.1} parent=11 // pred_check_branch
        %792 = sbr.rel (%p790) target = $region48
      $region47: #{cloth_autoencoder_forward.1} parent=11 // pred_region
        _
      $region48: #{cloth_autoencoder_forward.1} parent=11 // pred_fallthru
        _
      // Predicated region
      $region49: #{cloth_autoencoder_forward.1} parent=11 // pred_check
        %p793 = pneg %p305
      $region50: #{cloth_autoencoder_forward.1} parent=11 // pred_check_branch
        %795 = sbr.rel (%p793) target = $region52
      $region51: #{cloth_autoencoder_forward.1} parent=11 // pred_region
        _
      $region52: #{cloth_autoencoder_forward.1} parent=11 // pred_fallthru
        _
      // Predicated region
      $region53: #{cloth_autoencoder_forward.1} parent=11 // pred_check
        %p796 = pneg %p326
      $region54: #{cloth_autoencoder_forward.1} parent=11 // pred_check_branch
        %798 = sbr.rel (%p796) target = $region56
      $region55: #{cloth_autoencoder_forward.1} parent=11 // pred_region
        _
      $region56: #{cloth_autoencoder_forward.1} parent=11 // pred_fallthru
        _
      // Predicated region
      $region57: #{cloth_autoencoder_forward.1} parent=11 // pred_check
        %p799 = pneg %p347
      $region58: #{cloth_autoencoder_forward.1} parent=11 // pred_check_branch
        %801 = sbr.rel (%p799) target = $region60
      $region59: #{cloth_autoencoder_forward.1} parent=11 // pred_region
        _
      $region60: #{cloth_autoencoder_forward.1} parent=11 // pred_fallthru
        _
      // Predicated region
      $region61: #{cloth_autoencoder_forward.1} parent=11 // pred_check
        %p802 = pneg %p368
      $region62: #{cloth_autoencoder_forward.1} parent=11 // pred_check_branch
        %804 = sbr.rel (%p802) target = $region64
      $region63: #{cloth_autoencoder_forward.1} parent=11 // pred_region
        _
      $region64: #{cloth_autoencoder_forward.1} parent=11 // pred_fallthru
        _
      // Predicated region
      $region65: #{cloth_autoencoder_forward.1} parent=11 // pred_check
        %p805 = pneg %p389
      $region66: #{cloth_autoencoder_forward.1} parent=11 // pred_check_branch
        %807 = sbr.rel (%p805) target = $region68
      $region67: #{cloth_autoencoder_forward.1} parent=11 // pred_region
        _
      $region68: #{cloth_autoencoder_forward.1} parent=11 // pred_fallthru
        _
      // Predicated region
      $region69: #{cloth_autoencoder_forward.1} parent=11 // pred_check
        %p808 = pneg %p410
      $region70: #{cloth_autoencoder_forward.1} parent=11 // pred_check_branch
        %810 = sbr.rel (%p808) target = $region72
      $region71: #{cloth_autoencoder_forward.1} parent=11 // pred_region
        _
      $region72: #{cloth_autoencoder_forward.1} parent=11 // pred_fallthru
        _
      // Predicated region
      $region73: #{cloth_autoencoder_forward.1} parent=11 // pred_check
        %p811 = pneg %p431
      $region74: #{cloth_autoencoder_forward.1} parent=11 // pred_check_branch
        %813 = sbr.rel (%p811) target = $region76
      $region75: #{cloth_autoencoder_forward.1} parent=11 // pred_region
        _
      $region76: #{cloth_autoencoder_forward.1} parent=11 // pred_fallthru
        _
      // Predicated region
      $region77: #{cloth_autoencoder_forward.1} parent=11 // pred_check
        %p814 = pneg %p452
      $region78: #{cloth_autoencoder_forward.1} parent=11 // pred_check_branch
        %816 = sbr.rel (%p814) target = $region80
      $region79: #{cloth_autoencoder_forward.1} parent=11 // pred_region
        _
      $region80: #{cloth_autoencoder_forward.1} parent=11 // pred_fallthru
        _
      // Predicated region
      $region81: #{cloth_autoencoder_forward.1} parent=11 // pred_check
        %p817 = pneg %p473
      $region82: #{cloth_autoencoder_forward.1} parent=11 // pred_check_branch
        %819 = sbr.rel (%p817) target = $region84
      $region83: #{cloth_autoencoder_forward.1} parent=11 // pred_region
        _
      $region84: #{cloth_autoencoder_forward.1} parent=11 // pred_fallthru
        _
      // Predicated region
      $region85: #{cloth_autoencoder_forward.1} parent=11 // pred_check
        %p820 = pneg %p494
      $region86: #{cloth_autoencoder_forward.1} parent=11 // pred_check_branch
        %822 = sbr.rel (%p820) target = $region88
      $region87: #{cloth_autoencoder_forward.1} parent=11 // pred_region
        _
      $region88: #{cloth_autoencoder_forward.1} parent=11 // pred_fallthru
        _
      // Predicated region
      $region89: #{cloth_autoencoder_forward.1} parent=11 // pred_check
        %p823 = pneg %p515
      $region90: #{cloth_autoencoder_forward.1} parent=11 // pred_check_branch
        %825 = sbr.rel (%p823) target = $region92
      $region91: #{cloth_autoencoder_forward.1} parent=11 // pred_region
        _
      $region92: #{cloth_autoencoder_forward.1} parent=11 // pred_fallthru
        _
      // Predicated region
      $region93: #{cloth_autoencoder_forward.1} parent=11 // pred_check
        %p826 = pneg %p536
      $region94: #{cloth_autoencoder_forward.1} parent=11 // pred_check_branch
        %828 = sbr.rel (%p826) target = $region96
      $region95: #{cloth_autoencoder_forward.1} parent=11 // pred_region
        _
      $region96: #{cloth_autoencoder_forward.1} parent=11 // pred_fallthru
        _
      // Predicated region
      $region97: #{cloth_autoencoder_forward.1} parent=11 // pred_check
        %p829 = pneg %p557
      $region98: #{cloth_autoencoder_forward.1} parent=11 // pred_check_branch
        %831 = sbr.rel (%p829) target = $region100
      $region99: #{cloth_autoencoder_forward.1} parent=11 // pred_region
        _
      $region100: #{cloth_autoencoder_forward.1} parent=11 // pred_fallthru
        _
      // Predicated region
      $region101: #{cloth_autoencoder_forward.1} parent=11 // pred_check
        %p832 = pneg %p578
      $region102: #{cloth_autoencoder_forward.1} parent=11 // pred_check_branch
        %834 = sbr.rel (%p832) target = $region104
      $region103: #{cloth_autoencoder_forward.1} parent=11 // pred_region
        _
      $region104: #{cloth_autoencoder_forward.1} parent=11 // pred_fallthru
        _
      // Predicated region
      $region105: #{cloth_autoencoder_forward.1} parent=11 // pred_check
        %p835 = pneg %p599
      $region106: #{cloth_autoencoder_forward.1} parent=11 // pred_check_branch
        %837 = sbr.rel (%p835) target = $region108
      $region107: #{cloth_autoencoder_forward.1} parent=11 // pred_region
        _
      $region108: #{cloth_autoencoder_forward.1} parent=11 // pred_fallthru
        _
      // Predicated region
      $region109: #{cloth_autoencoder_forward.1} parent=11 // pred_check
        %p838 = pneg %p620
      $region110: #{cloth_autoencoder_forward.1} parent=11 // pred_check_branch
        %840 = sbr.rel (%p838) target = $region112
      $region111: #{cloth_autoencoder_forward.1} parent=11 // pred_region
        _
      $region112: #{cloth_autoencoder_forward.1} parent=11 // pred_fallthru
        _
      // Predicated region
      $region113: #{cloth_autoencoder_forward.1} parent=11 // pred_check
        %p841 = pneg %p641
      $region114: #{cloth_autoencoder_forward.1} parent=11 // pred_check_branch
        %843 = sbr.rel (%p841) target = $region116
      $region115: #{cloth_autoencoder_forward.1} parent=11 // pred_region
        _
      $region116: #{cloth_autoencoder_forward.1} parent=11 // pred_fallthru
        _
      // Predicated region
      $region117: #{cloth_autoencoder_forward.1} parent=11 // pred_check
        %p844 = pneg %p662
      $region118: #{cloth_autoencoder_forward.1} parent=11 // pred_check_branch
        %846 = sbr.rel (%p844) target = $region120
      $region119: #{cloth_autoencoder_forward.1} parent=11 // pred_region
        _
      $region120: #{cloth_autoencoder_forward.1} parent=11 // pred_fallthru
        _
      // Predicated region
      $region121: #{cloth_autoencoder_forward.1} parent=11 // pred_check
        %p847 = pneg %p683
      $region122: #{cloth_autoencoder_forward.1} parent=11 // pred_check_branch
        %849 = sbr.rel (%p847) target = $region124
      $region123: #{cloth_autoencoder_forward.1} parent=11 // pred_region
        _
      $region124: #{cloth_autoencoder_forward.1} parent=11 // pred_fallthru
        _
      // Predicated region
      $region125: #{cloth_autoencoder_forward.1} parent=11 // pred_check
        %p850 = pneg %p704
      $region126: #{cloth_autoencoder_forward.1} parent=11 // pred_check_branch
        %852 = sbr.rel (%p850) target = $region128
      $region127: #{cloth_autoencoder_forward.1} parent=11 // pred_region
        _
      $region128: #{cloth_autoencoder_forward.1} parent=11 // pred_fallthru
        _
      // Predicated region
      $region129: #{cloth_autoencoder_forward.1} parent=11 // pred_check
        %p853 = pneg %p725
      $region130: #{cloth_autoencoder_forward.1} parent=11 // pred_check_branch
        %855 = sbr.rel (%p853) target = $region132
      $region131: #{cloth_autoencoder_forward.1} parent=11 // pred_region
        _
      $region132: #{cloth_autoencoder_forward.1} parent=11 // pred_fallthru
        _
    $region12: #{cloth_autoencoder_forward.1} parent=5 // pred_fallthru
      _
    %p856 = scmp.lt.s32.totalorder %s69, 2
    // Predicated region
    $region133: #{cloth_autoencoder_forward.1} parent=5 // pred_check
      %p857 = pneg %p856
    $region134: #{cloth_autoencoder_forward.1} parent=5 // pred_check_branch
      %859 = sbr.rel (%p857) target = $region136
    $region135: #{cloth_autoencoder_forward.1} parent=5 // pred_region
      // Predicated region
      $region137: #{cloth_autoencoder_forward.1} parent=135 // pred_check
        %p860 = pneg %p89
      $region138: #{cloth_autoencoder_forward.1} parent=135 // pred_check_branch
        %862 = sbr.rel (%p860) target = $region140
      $region139: #{cloth_autoencoder_forward.1} parent=135 // pred_region
        %p863 = scmp.lt.s32.totalorder %s69, 1
        %s864 = scalar_select %p863, %s69, 1
        %s865 = smul.addr %s864, 32
        %s866 = smul.addr %s865, 4
        %s867 = scalar_lea.vmem %s1, %s866
      $region140: #{cloth_autoencoder_forward.1} parent=135 // pred_fallthru
        _
    $region136: #{cloth_autoencoder_forward.1} parent=5 // pred_fallthru
      _
    %p868 = scmp.le.s32.totalorder 1, %s69
    %p869 = scmp.lt.s32.totalorder %s69, 3
    %p870 = pnand %p868, %p869
    %p871 = pneg %p870
    // Predicated region
    $region141: #{cloth_autoencoder_forward.1} parent=5 // pred_check
      _
    $region142: #{cloth_autoencoder_forward.1} parent=5 // pred_check_branch
      %873 = sbr.rel (%p870) target = $region144
    $region143: #{cloth_autoencoder_forward.1} parent=5 // pred_region
      %s874 = ssub.s32 %s69, 1
      %p875 = scmp.lt.s32.totalorder %s74, 1
      %s876 = scalar_select %p875, %s74, 1
      %s877 = smul.addr %s876, 32
      %s878 = smul.addr %s877, 4
      %s879 = scalar_lea.vmem %s1, %s878
      %p880 = pneg %p95
      %p881 = pneg %p92
      %p882 = pneg %p116
      %p883 = pneg %p113
      %p884 = pneg %p137
      %p885 = pneg %p134
      %p886 = pneg %p158
      %p887 = pneg %p155
      %p888 = pneg %p179
      %p889 = pneg %p176
      %p890 = pneg %p200
      %p891 = pneg %p197
      %p892 = pneg %p221
      %p893 = pneg %p218
      %p894 = pneg %p242
      %p895 = pneg %p239
      %p896 = pneg %p263
      %p897 = pneg %p260
      %p898 = pneg %p284
      %p899 = pneg %p281
      %p900 = pneg %p305
      %p901 = pneg %p302
      %p902 = pneg %p326
      %p903 = pneg %p323
      %p904 = pneg %p347
      %p905 = pneg %p344
      %p906 = pneg %p368
      %p907 = pneg %p365
      %p908 = pneg %p389
      %p909 = pneg %p386
      %p910 = pneg %p410
      %p911 = pneg %p407
      %p912 = pneg %p431
      %p913 = pneg %p428
      %p914 = pneg %p452
      %p915 = pneg %p449
      %p916 = pneg %p473
      %p917 = pneg %p470
      %p918 = pneg %p494
      %p919 = pneg %p491
      %p920 = pneg %p515
      %p921 = pneg %p512
      %p922 = pneg %p536
      %p923 = pneg %p533
      %p924 = pneg %p557
      %p925 = pneg %p554
      %p926 = pneg %p578
      %p927 = pneg %p575
      %p928 = pneg %p599
      %p929 = pneg %p596
      %p930 = pneg %p620
      %p931 = pneg %p617
      %p932 = pneg %p641
      %p933 = pneg %p638
      %p934 = pneg %p662
      %p935 = pneg %p659
      %p936 = pneg %p683
      %p937 = pneg %p680
      %p938 = pneg %p704
      %p939 = pneg %p701
      %p940 = pneg %p725
      %p941 = pneg %p722
      %p942 = pneg %p751
      %p943 = pneg %p748
      %p944 = scmp.lt.s32.totalorder %s74, 1
      %s945 = scalar_select %p944, %s74, 1
      %s946 = smul.addr %s945, 32
      %s947 = smul.addr %s946, 8
      %s948 = scalar_lea.vmem %s63, %s947
      %p949 = scmp.lt.s32.totalorder %s74, 1
      %s950 = scalar_select %p949, %s74, 1
      %s951 = smul.addr %s950, 32
      %s952 = smul.addr %s951, 4
      %s953 = scalar_lea.vmem %s1, %s952
      %p954 = scmp.lt.s32.totalorder %s74, 1
      %s955 = scalar_select %p954, %s74, 1
      %s956 = smul.addr %s955, 32
      %s957 = smul.addr %s956, 8
      %s958 = scalar_lea.vmem %s63, %s957
      %v960 = vld [vmem:[%s953] sm:$0xf]
      %v961 = vld [vmem:[%s953 + $0x4] sm:$0xf]
      %v962 = vld [vmem:[%s953 + $0x8] sm:$0xf]
      %v963 = vld [vmem:[%s953 + $0xc] sm:$0xf]
      %v964 = vld [vmem:[%s953 + $0x10] sm:$0xf]
      %v965 = vld [vmem:[%s953 + $0x14] sm:$0xf]
      %v966 = vld [vmem:[%s953 + $0x18] sm:$0xf]
      %v967 = vld [vmem:[%s953 + $0x1c] sm:$0xf]
      %v968 = vld [vmem:[%s953 + $0x20] sm:$0xf]
      %v969 = vld [vmem:[%s953 + $0x24] sm:$0xf]
      %v970 = vld [vmem:[%s953 + $0x28] sm:$0xf]
      %v971 = vld [vmem:[%s953 + $0x2c] sm:$0xf]
      %v972 = vld [vmem:[%s953 + $0x30] sm:$0xf]
      %v973 = vld [vmem:[%s953 + $0x34] sm:$0xf]
      %v974 = vld [vmem:[%s953 + $0x38] sm:$0xf]
      %v975 = vld [vmem:[%s953 + $0x3c] sm:$0xf]
      %v976 = vld [vmem:[%s953 + $0x40] sm:$0xf]
      %v977 = vld [vmem:[%s953 + $0x44] sm:$0xf]
      %v978 = vld [vmem:[%s953 + $0x48] sm:$0xf]
      %v979 = vld [vmem:[%s953 + $0x4c] sm:$0xf]
      %v980 = vld [vmem:[%s953 + $0x50] sm:$0xf]
      %v981 = vld [vmem:[%s953 + $0x54] sm:$0xf]
      %v982 = vld [vmem:[%s953 + $0x58] sm:$0xf]
      %v983 = vld [vmem:[%s953 + $0x5c] sm:$0xf]
      %v984 = vld [vmem:[%s953 + $0x60] sm:$0xf]
      %v985 = vld [vmem:[%s953 + $0x64] sm:$0xf]
      %v986 = vld [vmem:[%s953 + $0x68] sm:$0xf]
      %v987 = vld [vmem:[%s953 + $0x6c] sm:$0xf]
      %v988 = vld [vmem:[%s953 + $0x70] sm:$0xf]
      %v989 = vld [vmem:[%s953 + $0x74] sm:$0xf]
      %v990 = vld [vmem:[%s953 + $0x78] sm:$0xf]
      %v991 = vld [vmem:[%s953 + $0x7c] sm:$0xf]
      %v992 = vld [vmem:[%s3] sm:$0xf]
      %v993 = vld [vmem:[%s3 + $0x4] sm:$0xf]
      %v994 = vld [vmem:[%s3 + $0x8] sm:$0xf]
      %v995 = vld [vmem:[%s3 + $0xc] sm:$0x3]
      %v996 = vld [vmem:[%s5] sm:$0x1]
      %v997 = vld [vmem:[%s7] sm:$0x1]
      %v1030 = vunpack.c.l.b16 %v960
      %v1031 = vunpack.c.l.b16 %v961
      %v1032 = vunpack.c.l.b16 %v962
      %v1033 = vunpack.c.l.b16 %v963
      %v1034 = vunpack.c.l.b16 %v964
      %v1035 = vunpack.c.l.b16 %v965
      %v1036 = vunpack.c.l.b16 %v966
      %v1037 = vunpack.c.l.b16 %v967
      %v1038 = vunpack.c.l.b16 %v968
      %v1039 = vunpack.c.l.b16 %v969
      %v1040 = vunpack.c.l.b16 %v970
      %v1041 = vunpack.c.l.b16 %v971
      %v1042 = vunpack.c.l.b16 %v972
      %v1043 = vunpack.c.l.b16 %v973
      %v1044 = vunpack.c.l.b16 %v974
      %v1045 = vunpack.c.l.b16 %v975
      %v1046 = vunpack.c.l.b16 %v976
      %v1047 = vunpack.c.l.b16 %v977
      %v1048 = vunpack.c.l.b16 %v978
      %v1049 = vunpack.c.l.b16 %v979
      %v1050 = vunpack.c.l.b16 %v980
      %v1051 = vunpack.c.l.b16 %v981
      %v1052 = vunpack.c.l.b16 %v982
      %v1053 = vunpack.c.l.b16 %v983
      %v1054 = vunpack.c.l.b16 %v984
      %v1055 = vunpack.c.l.b16 %v985
      %v1056 = vunpack.c.l.b16 %v986
      %v1057 = vunpack.c.l.b16 %v987
      %v1058 = vunpack.c.l.b16 %v988
      %v1059 = vunpack.c.l.b16 %v989
      %v1060 = vunpack.c.l.b16 %v990
      %v1061 = vunpack.c.l.b16 %v991
      %v1062 = vpack.c.b16 %v1031, %v1030
      %v1063 = vpack.c.b16 %v1033, %v1032
      %v1064 = vpack.c.b16 %v1035, %v1034
      %v1065 = vpack.c.b16 %v1037, %v1036
      %v1066 = vpack.c.b16 %v1039, %v1038
      %v1067 = vpack.c.b16 %v1041, %v1040
      %v1068 = vpack.c.b16 %v1043, %v1042
      %v1069 = vpack.c.b16 %v1045, %v1044
      %v1070 = vpack.c.b16 %v1047, %v1046
      %v1071 = vpack.c.b16 %v1049, %v1048
      %v1072 = vpack.c.b16 %v1051, %v1050
      %v1073 = vpack.c.b16 %v1053, %v1052
      %v1074 = vpack.c.b16 %v1055, %v1054
      %v1075 = vpack.c.b16 %v1057, %v1056
      %v1076 = vpack.c.b16 %v1059, %v1058
      %v1077 = vpack.c.b16 %v1061, %v1060
      %v1079 = vshrl.u32 0, 16
      %v1081 = vrot.slane %v1079, 7
      %v1082 = vshll.u32 0, 16
      %v1084 = vor.u32 %v1081, %v1082
      %v1086 = vshrl.u32 %v1062, 16
      %v1088 = vrot.slane %v1086, 7
      %v1089 = vshll.u32 %v1062, 16
      %v1091 = vor.u32 %v1088, %v1089
      %v1093 = vshrl.u32 %v1063, 16
      %v1095 = vrot.slane %v1093, 7
      %v1096 = vshll.u32 %v1063, 16
      %v1098 = vor.u32 %v1095, %v1096
      %v1100 = vshrl.u32 %v1064, 16
      %v1102 = vrot.slane %v1100, 7
      %v1103 = vshll.u32 %v1064, 16
      %v1105 = vor.u32 %v1102, %v1103
      %v1107 = vshrl.u32 %v1065, 16
      %v1109 = vrot.slane %v1107, 7
      %v1110 = vshll.u32 %v1065, 16
      %v1112 = vor.u32 %v1109, %v1110
      %v1114 = vshrl.u32 %v1066, 16
      %v1116 = vrot.slane %v1114, 7
      %v1117 = vshll.u32 %v1066, 16
      %v1119 = vor.u32 %v1116, %v1117
      %v1121 = vshrl.u32 %v1067, 16
      %v1123 = vrot.slane %v1121, 7
      %v1124 = vshll.u32 %v1067, 16
      %v1126 = vor.u32 %v1123, %v1124
      %v1128 = vshrl.u32 %v1068, 16
      %v1130 = vrot.slane %v1128, 7
      %v1131 = vshll.u32 %v1068, 16
      %v1133 = vor.u32 %v1130, %v1131
      %v1135 = vshrl.u32 %v1069, 16
      %v1137 = vrot.slane %v1135, 7
      %v1138 = vshll.u32 %v1069, 16
      %v1140 = vor.u32 %v1137, %v1138
      %v1142 = vshrl.u32 %v1070, 16
      %v1144 = vrot.slane %v1142, 7
      %v1145 = vshll.u32 %v1070, 16
      %v1147 = vor.u32 %v1144, %v1145
      %v1149 = vshrl.u32 %v1071, 16
      %v1151 = vrot.slane %v1149, 7
      %v1152 = vshll.u32 %v1071, 16
      %v1154 = vor.u32 %v1151, %v1152
      %v1156 = vshrl.u32 %v1072, 16
      %v1158 = vrot.slane %v1156, 7
      %v1159 = vshll.u32 %v1072, 16
      %v1161 = vor.u32 %v1158, %v1159
      %v1163 = vshrl.u32 %v1073, 16
      %v1165 = vrot.slane %v1163, 7
      %v1166 = vshll.u32 %v1073, 16
      %v1168 = vor.u32 %v1165, %v1166
      %v1170 = vshrl.u32 %v1074, 16
      %v1172 = vrot.slane %v1170, 7
      %v1173 = vshll.u32 %v1074, 16
      %v1175 = vor.u32 %v1172, %v1173
      %v1177 = vshrl.u32 %v1075, 16
      %v1179 = vrot.slane %v1177, 7
      %v1180 = vshll.u32 %v1075, 16
      %v1182 = vor.u32 %v1179, %v1180
      %v1184 = vshrl.u32 %v1076, 16
      %v1186 = vrot.slane %v1184, 7
      %v1187 = vshll.u32 %v1076, 16
      %v1189 = vor.u32 %v1186, %v1187
      %v1191 = vshrl.u32 %v1077, 16
      %v1193 = vrot.slane %v1191, 7
      %v1194 = vshll.u32 %v1077, 16
      %v1196 = vor.u32 %v1193, %v1194
      %vm1231 = vcmask 1040384
      %vm1232 = vsmask.f32 256
      %vm1233 = vmand %vm1231, %vm1232
      %v1234 = vsel %vm1233, 0, %v1084
      %v1235 = vsel %vm1233, 0, %v1091
      %v1236 = vsel %vm1233, 0, %v1098
      %v1237 = vsel %vm1233, 0, %v1105
      %v1238 = vsel %vm1233, 0, %v1112
      %v1239 = vsel %vm1233, 0, %v1119
      %v1240 = vsel %vm1233, 0, %v1126
      %v1241 = vsel %vm1233, 0, %v1133
      %v1242 = vsel %vm1233, 0, %v1140
      %v1243 = vsel %vm1233, 0, %v1147
      %v1244 = vsel %vm1233, 0, %v1154
      %v1245 = vsel %vm1233, 0, %v1161
      %v1246 = vsel %vm1233, 0, %v1168
      %v1247 = vsel %vm1233, 0, %v1175
      %v1248 = vsel %vm1233, 0, %v1182
      %v1249 = vsel %vm1233, 0, %v1189
      %v1250 = vsel %vm1233, 0, %v1196
      %v1251 = vsel %vm1233, %v1081, 0
      %v1252 = vsel %vm1233, %v1088, 0
      %v1253 = vsel %vm1233, %v1095, 0
      %v1254 = vsel %vm1233, %v1102, 0
      %v1255 = vsel %vm1233, %v1109, 0
      %v1256 = vsel %vm1233, %v1116, 0
      %v1257 = vsel %vm1233, %v1123, 0
      %v1258 = vsel %vm1233, %v1130, 0
      %v1259 = vsel %vm1233, %v1137, 0
      %v1260 = vsel %vm1233, %v1144, 0
      %v1261 = vsel %vm1233, %v1151, 0
      %v1262 = vsel %vm1233, %v1158, 0
      %v1263 = vsel %vm1233, %v1165, 0
      %v1264 = vsel %vm1233, %v1172, 0
      %v1265 = vsel %vm1233, %v1179, 0
      %v1266 = vsel %vm1233, %v1186, 0
      %v1267 = vsel %vm1233, %v1193, 0
      %vm1268 = vsmask.f32 7424
      %v1270 = vshrl.u32 %v1234, 16
      %v1272 = vshll.u32 %v1234, 16
      %v1274 = vrot.slane %v1272, 1
      %v1275 = vor.u32 %v1270, %v1274
      %v1277 = vshll.u32 %v1251, 16
      %v1279 = vrot.slane %v1277, 1
      %v1280 = vsel %vm1268, %v1275, %v1279
      %v1282 = vshrl.u32 %v1235, 16
      %v1284 = vshll.u32 %v1235, 16
      %v1286 = vrot.slane %v1284, 1
      %v1287 = vor.u32 %v1282, %v1286
      %v1289 = vshll.u32 %v1252, 16
      %v1291 = vrot.slane %v1289, 1
      %v1292 = vsel %vm1268, %v1287, %v1291
      %v1294 = vshrl.u32 %v1236, 16
      %v1296 = vshll.u32 %v1236, 16
      %v1298 = vrot.slane %v1296, 1
      %v1299 = vor.u32 %v1294, %v1298
      %v1301 = vshll.u32 %v1253, 16
      %v1303 = vrot.slane %v1301, 1
      %v1304 = vsel %vm1268, %v1299, %v1303
      %v1306 = vshrl.u32 %v1237, 16
      %v1308 = vshll.u32 %v1237, 16
      %v1310 = vrot.slane %v1308, 1
      %v1311 = vor.u32 %v1306, %v1310
      %v1313 = vshll.u32 %v1254, 16
      %v1315 = vrot.slane %v1313, 1
      %v1316 = vsel %vm1268, %v1311, %v1315
      %v1318 = vshrl.u32 %v1238, 16
      %v1320 = vshll.u32 %v1238, 16
      %v1322 = vrot.slane %v1320, 1
      %v1323 = vor.u32 %v1318, %v1322
      %v1325 = vshll.u32 %v1255, 16
      %v1327 = vrot.slane %v1325, 1
      %v1328 = vsel %vm1268, %v1323, %v1327
      %v1330 = vshrl.u32 %v1239, 16
      %v1332 = vshll.u32 %v1239, 16
      %v1334 = vrot.slane %v1332, 1
      %v1335 = vor.u32 %v1330, %v1334
      %v1337 = vshll.u32 %v1256, 16
      %v1339 = vrot.slane %v1337, 1
      %v1340 = vsel %vm1268, %v1335, %v1339
      %v1342 = vshrl.u32 %v1240, 16
      %v1344 = vshll.u32 %v1240, 16
      %v1346 = vrot.slane %v1344, 1
      %v1347 = vor.u32 %v1342, %v1346
      %v1349 = vshll.u32 %v1257, 16
      %v1351 = vrot.slane %v1349, 1
      %v1352 = vsel %vm1268, %v1347, %v1351
      %v1354 = vshrl.u32 %v1241, 16
      %v1356 = vshll.u32 %v1241, 16
      %v1358 = vrot.slane %v1356, 1
      %v1359 = vor.u32 %v1354, %v1358
      %v1361 = vshll.u32 %v1258, 16
      %v1363 = vrot.slane %v1361, 1
      %v1364 = vsel %vm1268, %v1359, %v1363
      %v1366 = vshrl.u32 %v1242, 16
      %v1368 = vshll.u32 %v1242, 16
      %v1370 = vrot.slane %v1368, 1
      %v1371 = vor.u32 %v1366, %v1370
      %v1373 = vshll.u32 %v1259, 16
      %v1375 = vrot.slane %v1373, 1
      %v1376 = vsel %vm1268, %v1371, %v1375
      %v1378 = vshrl.u32 %v1243, 16
      %v1380 = vshll.u32 %v1243, 16
      %v1382 = vrot.slane %v1380, 1
      %v1383 = vor.u32 %v1378, %v1382
      %v1385 = vshll.u32 %v1260, 16
      %v1387 = vrot.slane %v1385, 1
      %v1388 = vsel %vm1268, %v1383, %v1387
      %v1390 = vshrl.u32 %v1244, 16
      %v1392 = vshll.u32 %v1244, 16
      %v1394 = vrot.slane %v1392, 1
      %v1395 = vor.u32 %v1390, %v1394
      %v1397 = vshll.u32 %v1261, 16
      %v1399 = vrot.slane %v1397, 1
      %v1400 = vsel %vm1268, %v1395, %v1399
      %v1402 = vshrl.u32 %v1245, 16
      %v1404 = vshll.u32 %v1245, 16
      %v1406 = vrot.slane %v1404, 1
      %v1407 = vor.u32 %v1402, %v1406
      %v1409 = vshll.u32 %v1262, 16
      %v1411 = vrot.slane %v1409, 1
      %v1412 = vsel %vm1268, %v1407, %v1411
      %v1414 = vshrl.u32 %v1246, 16
      %v1416 = vshll.u32 %v1246, 16
      %v1418 = vrot.slane %v1416, 1
      %v1419 = vor.u32 %v1414, %v1418
      %v1421 = vshll.u32 %v1263, 16
      %v1423 = vrot.slane %v1421, 1
      %v1424 = vsel %vm1268, %v1419, %v1423
      %v1426 = vshrl.u32 %v1247, 16
      %v1428 = vshll.u32 %v1247, 16
      %v1430 = vrot.slane %v1428, 1
      %v1431 = vor.u32 %v1426, %v1430
      %v1433 = vshll.u32 %v1264, 16
      %v1435 = vrot.slane %v1433, 1
      %v1436 = vsel %vm1268, %v1431, %v1435
      %v1438 = vshrl.u32 %v1248, 16
      %v1440 = vshll.u32 %v1248, 16
      %v1442 = vrot.slane %v1440, 1
      %v1443 = vor.u32 %v1438, %v1442
      %v1445 = vshll.u32 %v1265, 16
      %v1447 = vrot.slane %v1445, 1
      %v1448 = vsel %vm1268, %v1443, %v1447
      %v1450 = vshrl.u32 %v1249, 16
      %v1452 = vshll.u32 %v1249, 16
      %v1454 = vrot.slane %v1452, 1
      %v1455 = vor.u32 %v1450, %v1454
      %v1457 = vshll.u32 %v1266, 16
      %v1459 = vrot.slane %v1457, 1
      %v1460 = vsel %vm1268, %v1455, %v1459
      %vm1493 = vcmask 1046528
      %v1494 = vrot.slane %v1234, 1
      %v1495 = vrot.slane %v1251, 1
      %v1496 = vsel %vm1493, %v1494, %v1495
      %v1497 = vrot.slane %v1235, 1
      %v1498 = vrot.slane %v1252, 1
      %v1499 = vsel %vm1493, %v1497, %v1498
      %v1500 = vrot.slane %v1236, 1
      %v1501 = vrot.slane %v1253, 1
      %v1502 = vsel %vm1493, %v1500, %v1501
      %v1503 = vrot.slane %v1237, 1
      %v1504 = vrot.slane %v1254, 1
      %v1505 = vsel %vm1493, %v1503, %v1504
      %v1506 = vrot.slane %v1238, 1
      %v1507 = vrot.slane %v1255, 1
      %v1508 = vsel %vm1493, %v1506, %v1507
      %v1509 = vrot.slane %v1239, 1
      %v1510 = vrot.slane %v1256, 1
      %v1511 = vsel %vm1493, %v1509, %v1510
      %v1512 = vrot.slane %v1240, 1
      %v1513 = vrot.slane %v1257, 1
      %v1514 = vsel %vm1493, %v1512, %v1513
      %v1515 = vrot.slane %v1241, 1
      %v1516 = vrot.slane %v1258, 1
      %v1517 = vsel %vm1493, %v1515, %v1516
      %v1518 = vrot.slane %v1242, 1
      %v1519 = vrot.slane %v1259, 1
      %v1520 = vsel %vm1493, %v1518, %v1519
      %v1521 = vrot.slane %v1243, 1
      %v1522 = vrot.slane %v1260, 1
      %v1523 = vsel %vm1493, %v1521, %v1522
      %v1524 = vrot.slane %v1244, 1
      %v1525 = vrot.slane %v1261, 1
      %v1526 = vsel %vm1493, %v1524, %v1525
      %v1527 = vrot.slane %v1245, 1
      %v1528 = vrot.slane %v1262, 1
      %v1529 = vsel %vm1493, %v1527, %v1528
      %v1530 = vrot.slane %v1246, 1
      %v1531 = vrot.slane %v1263, 1
      %v1532 = vsel %vm1493, %v1530, %v1531
      %v1533 = vrot.slane %v1247, 1
      %v1534 = vrot.slane %v1264, 1
      %v1535 = vsel %vm1493, %v1533, %v1534
      %v1536 = vrot.slane %v1248, 1
      %v1537 = vrot.slane %v1265, 1
      %v1538 = vsel %vm1493, %v1536, %v1537
      %v1539 = vrot.slane %v1249, 1
      %v1540 = vrot.slane %v1266, 1
      %v1541 = vsel %vm1493, %v1539, %v1540
      %v1543 = vshrl.u32 %v1250, 16
      %v1545 = vshll.u32 %v1250, 16
      %v1547 = vrot.slane %v1545, 1
      %v1548 = vor.u32 %v1543, %v1547
      %v1550 = vshll.u32 %v1267, 16
      %v1552 = vrot.slane %v1550, 1
      %v1553 = vsel %vm1268, %v1548, %v1552
      %v1556 = vrot.slane %v1250, 1
      %v1557 = vrot.slane %v1267, 1
      %v1558 = vsel %vm1493, %v1556, %v1557
      %1559 = vrot.lane.b32.xlu0 %v1280, 3
      %v1560 = vpop.permute.xlu0 %1559
      %1561 = vrot.lane.b32.xlu0 %v1292, 3
      %v1562 = vpop.permute.xlu0 %1561
      %1563 = vrot.lane.b32.xlu0 %v1304, 3
      %v1564 = vpop.permute.xlu0 %1563
      %1565 = vrot.lane.b32.xlu0 %v1316, 3
      %v1566 = vpop.permute.xlu0 %1565
      %1567 = vrot.lane.b32.xlu0 %v1328, 3
      %v1568 = vpop.permute.xlu0 %1567
      %1569 = vrot.lane.b32.xlu0 %v1340, 3
      %v1570 = vpop.permute.xlu0 %1569
      %1571 = vrot.lane.b32.xlu0 %v1352, 3
      %v1572 = vpop.permute.xlu0 %1571
      %1573 = vrot.lane.b32.xlu0 %v1364, 3
      %v1574 = vpop.permute.xlu0 %1573
      %1575 = vrot.lane.b32.xlu0 %v1376, 3
      %v1576 = vpop.permute.xlu0 %1575
      %1577 = vrot.lane.b32.xlu0 %v1388, 3
      %v1578 = vpop.permute.xlu0 %1577
      %1579 = vrot.lane.b32.xlu0 %v1400, 3
      %v1580 = vpop.permute.xlu0 %1579
      %1581 = vrot.lane.b32.xlu0 %v1412, 3
      %v1582 = vpop.permute.xlu0 %1581
      %1583 = vrot.lane.b32.xlu0 %v1424, 3
      %v1584 = vpop.permute.xlu0 %1583
      %1585 = vrot.lane.b32.xlu0 %v1436, 3
      %v1586 = vpop.permute.xlu0 %1585
      %1587 = vrot.lane.b32.xlu0 %v1448, 3
      %v1588 = vpop.permute.xlu0 %1587
      %1589 = vrot.lane.b32.xlu0 %v1460, 3
      %v1590 = vpop.permute.xlu0 %1589
      %1591 = vrot.lane.b32.xlu0 %v1496, 6
      %v1592 = vpop.permute.xlu0 %1591
      %1593 = vrot.lane.b32.xlu0 %v1499, 6
      %v1594 = vpop.permute.xlu0 %1593
      %1595 = vrot.lane.b32.xlu0 %v1502, 6
      %v1596 = vpop.permute.xlu0 %1595
      %1597 = vrot.lane.b32.xlu0 %v1505, 6
      %v1598 = vpop.permute.xlu0 %1597
      %1599 = vrot.lane.b32.xlu0 %v1508, 6
      %v1600 = vpop.permute.xlu0 %1599
      %1601 = vrot.lane.b32.xlu0 %v1511, 6
      %v1602 = vpop.permute.xlu0 %1601
      %1603 = vrot.lane.b32.xlu0 %v1514, 6
      %v1604 = vpop.permute.xlu0 %1603
      %1605 = vrot.lane.b32.xlu0 %v1517, 6
      %v1606 = vpop.permute.xlu0 %1605
      %1607 = vrot.lane.b32.xlu0 %v1520, 6
      %v1608 = vpop.permute.xlu0 %1607
      %1609 = vrot.lane.b32.xlu0 %v1523, 6
      %v1610 = vpop.permute.xlu0 %1609
      %1611 = vrot.lane.b32.xlu0 %v1526, 6
      %v1612 = vpop.permute.xlu0 %1611
      %1613 = vrot.lane.b32.xlu0 %v1529, 6
      %v1614 = vpop.permute.xlu0 %1613
      %1615 = vrot.lane.b32.xlu0 %v1532, 6
      %v1616 = vpop.permute.xlu0 %1615
      %1617 = vrot.lane.b32.xlu0 %v1535, 6
      %v1618 = vpop.permute.xlu0 %1617
      %1619 = vrot.lane.b32.xlu0 %v1538, 6
      %v1620 = vpop.permute.xlu0 %1619
      %1621 = vrot.lane.b32.xlu0 %v1541, 6
      %v1622 = vpop.permute.xlu0 %1621
      %1623 = vrot.lane.b32.xlu0 %v1235, 9
      %v1624 = vpop.permute.xlu0 %1623
      %1625 = vrot.lane.b32.xlu0 %v1236, 9
      %v1626 = vpop.permute.xlu0 %1625
      %1627 = vrot.lane.b32.xlu0 %v1237, 9
      %v1628 = vpop.permute.xlu0 %1627
      %1629 = vrot.lane.b32.xlu0 %v1238, 9
      %v1630 = vpop.permute.xlu0 %1629
      %1631 = vrot.lane.b32.xlu0 %v1239, 9
      %v1632 = vpop.permute.xlu0 %1631
      %1633 = vrot.lane.b32.xlu0 %v1240, 9
      %v1634 = vpop.permute.xlu0 %1633
      %1635 = vrot.lane.b32.xlu0 %v1241, 9
      %v1636 = vpop.permute.xlu0 %1635
      %1637 = vrot.lane.b32.xlu0 %v1242, 9
      %v1638 = vpop.permute.xlu0 %1637
      %1639 = vrot.lane.b32.xlu0 %v1243, 9
      %v1640 = vpop.permute.xlu0 %1639
      %1641 = vrot.lane.b32.xlu0 %v1244, 9
      %v1642 = vpop.permute.xlu0 %1641
      %1643 = vrot.lane.b32.xlu0 %v1245, 9
      %v1644 = vpop.permute.xlu0 %1643
      %1645 = vrot.lane.b32.xlu0 %v1246, 9
      %v1646 = vpop.permute.xlu0 %1645
      %1647 = vrot.lane.b32.xlu0 %v1247, 9
      %v1648 = vpop.permute.xlu0 %1647
      %1649 = vrot.lane.b32.xlu0 %v1248, 9
      %v1650 = vpop.permute.xlu0 %1649
      %1651 = vrot.lane.b32.xlu0 %v1249, 9
      %v1652 = vpop.permute.xlu0 %1651
      %1653 = vrot.lane.b32.xlu0 %v1250, 9
      %v1654 = vpop.permute.xlu0 %1653
      %1655 = vrot.lane.b32.xlu0 %v1292, 12
      %v1656 = vpop.permute.xlu0 %1655
      %1657 = vrot.lane.b32.xlu0 %v1304, 12
      %v1658 = vpop.permute.xlu0 %1657
      %1659 = vrot.lane.b32.xlu0 %v1316, 12
      %v1660 = vpop.permute.xlu0 %1659
      %1661 = vrot.lane.b32.xlu0 %v1328, 12
      %v1662 = vpop.permute.xlu0 %1661
      %1663 = vrot.lane.b32.xlu0 %v1340, 12
      %v1664 = vpop.permute.xlu0 %1663
      %1665 = vrot.lane.b32.xlu0 %v1352, 12
      %v1666 = vpop.permute.xlu0 %1665
      %1667 = vrot.lane.b32.xlu0 %v1364, 12
      %v1668 = vpop.permute.xlu0 %1667
      %1669 = vrot.lane.b32.xlu0 %v1376, 12
      %v1670 = vpop.permute.xlu0 %1669
      %1671 = vrot.lane.b32.xlu0 %v1388, 12
      %v1672 = vpop.permute.xlu0 %1671
      %1673 = vrot.lane.b32.xlu0 %v1400, 12
      %v1674 = vpop.permute.xlu0 %1673
      %1675 = vrot.lane.b32.xlu0 %v1412, 12
      %v1676 = vpop.permute.xlu0 %1675
      %1677 = vrot.lane.b32.xlu0 %v1424, 12
      %v1678 = vpop.permute.xlu0 %1677
      %1679 = vrot.lane.b32.xlu0 %v1436, 12
      %v1680 = vpop.permute.xlu0 %1679
      %1681 = vrot.lane.b32.xlu0 %v1448, 12
      %v1682 = vpop.permute.xlu0 %1681
      %1683 = vrot.lane.b32.xlu0 %v1460, 12
      %v1684 = vpop.permute.xlu0 %1683
      %1685 = vrot.lane.b32.xlu0 %v1553, 12
      %v1686 = vpop.permute.xlu0 %1685
      %1687 = vrot.lane.b32.xlu0 %v1499, 15
      %v1688 = vpop.permute.xlu0 %1687
      %1689 = vrot.lane.b32.xlu0 %v1502, 15
      %v1690 = vpop.permute.xlu0 %1689
      %1691 = vrot.lane.b32.xlu0 %v1505, 15
      %v1692 = vpop.permute.xlu0 %1691
      %1693 = vrot.lane.b32.xlu0 %v1508, 15
      %v1694 = vpop.permute.xlu0 %1693
      %1695 = vrot.lane.b32.xlu0 %v1511, 15
      %v1696 = vpop.permute.xlu0 %1695
      %1697 = vrot.lane.b32.xlu0 %v1514, 15
      %v1698 = vpop.permute.xlu0 %1697
      %1699 = vrot.lane.b32.xlu0 %v1517, 15
      %v1700 = vpop.permute.xlu0 %1699
      %1701 = vrot.lane.b32.xlu0 %v1520, 15
      %v1702 = vpop.permute.xlu0 %1701
      %1703 = vrot.lane.b32.xlu0 %v1523, 15
      %v1704 = vpop.permute.xlu0 %1703
      %1705 = vrot.lane.b32.xlu0 %v1526, 15
      %v1706 = vpop.permute.xlu0 %1705
      %1707 = vrot.lane.b32.xlu0 %v1529, 15
      %v1708 = vpop.permute.xlu0 %1707
      %1709 = vrot.lane.b32.xlu0 %v1532, 15
      %v1710 = vpop.permute.xlu0 %1709
      %1711 = vrot.lane.b32.xlu0 %v1535, 15
      %v1712 = vpop.permute.xlu0 %1711
      %1713 = vrot.lane.b32.xlu0 %v1538, 15
      %v1714 = vpop.permute.xlu0 %1713
      %1715 = vrot.lane.b32.xlu0 %v1541, 15
      %v1716 = vpop.permute.xlu0 %1715
      %1717 = vrot.lane.b32.xlu0 %v1558, 15
      %v1718 = vpop.permute.xlu0 %1717
      %1719 = vrot.lane.b32.xlu0 %v1236, 18
      %v1720 = vpop.permute.xlu0 %1719
      %1721 = vrot.lane.b32.xlu0 %v1237, 18
      %v1722 = vpop.permute.xlu0 %1721
      %1723 = vrot.lane.b32.xlu0 %v1238, 18
      %v1724 = vpop.permute.xlu0 %1723
      %1725 = vrot.lane.b32.xlu0 %v1239, 18
      %v1726 = vpop.permute.xlu0 %1725
      %1727 = vrot.lane.b32.xlu0 %v1240, 18
      %v1728 = vpop.permute.xlu0 %1727
      %1729 = vrot.lane.b32.xlu0 %v1241, 18
      %v1730 = vpop.permute.xlu0 %1729
      %1731 = vrot.lane.b32.xlu0 %v1242, 18
      %v1732 = vpop.permute.xlu0 %1731
      %1733 = vrot.lane.b32.xlu0 %v1243, 18
      %v1734 = vpop.permute.xlu0 %1733
      %1735 = vrot.lane.b32.xlu0 %v1244, 18
      %v1736 = vpop.permute.xlu0 %1735
      %1737 = vrot.lane.b32.xlu0 %v1245, 18
      %v1738 = vpop.permute.xlu0 %1737
      %1739 = vrot.lane.b32.xlu0 %v1246, 18
      %v1740 = vpop.permute.xlu0 %1739
      %1741 = vrot.lane.b32.xlu0 %v1247, 18
      %v1742 = vpop.permute.xlu0 %1741
      %1743 = vrot.lane.b32.xlu0 %v1248, 18
      %v1744 = vpop.permute.xlu0 %1743
      %1745 = vrot.lane.b32.xlu0 %v1249, 18
      %v1746 = vpop.permute.xlu0 %1745
      %1747 = vrot.lane.b32.xlu0 %v1250, 18
      %v1748 = vpop.permute.xlu0 %1747
      %1749 = vrot.lane.b32.xlu0 %v1234, 18
      %v1750 = vpop.permute.xlu0 %1749
      %1751 = vrot.lane.b32.xlu0 %v1304, 21
      %v1752 = vpop.permute.xlu0 %1751
      %1753 = vrot.lane.b32.xlu0 %v1316, 21
      %v1754 = vpop.permute.xlu0 %1753
      %1755 = vrot.lane.b32.xlu0 %v1328, 21
      %v1756 = vpop.permute.xlu0 %1755
      %1757 = vrot.lane.b32.xlu0 %v1340, 21
      %v1758 = vpop.permute.xlu0 %1757
      %1759 = vrot.lane.b32.xlu0 %v1352, 21
      %v1760 = vpop.permute.xlu0 %1759
      %1761 = vrot.lane.b32.xlu0 %v1364, 21
      %v1762 = vpop.permute.xlu0 %1761
      %1763 = vrot.lane.b32.xlu0 %v1376, 21
      %v1764 = vpop.permute.xlu0 %1763
      %1765 = vrot.lane.b32.xlu0 %v1388, 21
      %v1766 = vpop.permute.xlu0 %1765
      %1767 = vrot.lane.b32.xlu0 %v1400, 21
      %v1768 = vpop.permute.xlu0 %1767
      %1769 = vrot.lane.b32.xlu0 %v1412, 21
      %v1770 = vpop.permute.xlu0 %1769
      %1771 = vrot.lane.b32.xlu0 %v1424, 21
      %v1772 = vpop.permute.xlu0 %1771
      %1773 = vrot.lane.b32.xlu0 %v1436, 21
      %v1774 = vpop.permute.xlu0 %1773
      %1775 = vrot.lane.b32.xlu0 %v1448, 21
      %v1776 = vpop.permute.xlu0 %1775
      %1777 = vrot.lane.b32.xlu0 %v1460, 21
      %v1778 = vpop.permute.xlu0 %1777
      %1779 = vrot.lane.b32.xlu0 %v1553, 21
      %v1780 = vpop.permute.xlu0 %1779
      %1781 = vrot.lane.b32.xlu0 %v1280, 21
      %v1782 = vpop.permute.xlu0 %1781
      %1783 = vrot.lane.b32.xlu0 %v1502, 24
      %v1784 = vpop.permute.xlu0 %1783
      %1785 = vrot.lane.b32.xlu0 %v1505, 24
      %v1786 = vpop.permute.xlu0 %1785
      %1787 = vrot.lane.b32.xlu0 %v1508, 24
      %v1788 = vpop.permute.xlu0 %1787
      %1789 = vrot.lane.b32.xlu0 %v1511, 24
      %v1790 = vpop.permute.xlu0 %1789
      %1791 = vrot.lane.b32.xlu0 %v1514, 24
      %v1792 = vpop.permute.xlu0 %1791
      %1793 = vrot.lane.b32.xlu0 %v1517, 24
      %v1794 = vpop.permute.xlu0 %1793
      %1795 = vrot.lane.b32.xlu0 %v1520, 24
      %v1796 = vpop.permute.xlu0 %1795
      %1797 = vrot.lane.b32.xlu0 %v1523, 24
      %v1798 = vpop.permute.xlu0 %1797
      %1799 = vrot.lane.b32.xlu0 %v1526, 24
      %v1800 = vpop.permute.xlu0 %1799
      %1801 = vrot.lane.b32.xlu0 %v1529, 24
      %v1802 = vpop.permute.xlu0 %1801
      %1803 = vrot.lane.b32.xlu0 %v1532, 24
      %v1804 = vpop.permute.xlu0 %1803
      %1805 = vrot.lane.b32.xlu0 %v1535, 24
      %v1806 = vpop.permute.xlu0 %1805
      %1807 = vrot.lane.b32.xlu0 %v1538, 24
      %v1808 = vpop.permute.xlu0 %1807
      %1809 = vrot.lane.b32.xlu0 %v1541, 24
      %v1810 = vpop.permute.xlu0 %1809
      %1811 = vrot.lane.b32.xlu0 %v1558, 24
      %v1812 = vpop.permute.xlu0 %1811
      %1813 = vrot.lane.b32.xlu0 %v1496, 24
      %v1814 = vpop.permute.xlu0 %1813
      %vm1815 = vcmask 23552
      %v1817 = vsel %vm1815, %v1234, %v1560
      %v1819 = vsel %vm1815, %v1235, %v1562
      %v1821 = vsel %vm1815, %v1236, %v1564
      %v1823 = vsel %vm1815, %v1237, %v1566
      %v1825 = vsel %vm1815, %v1238, %v1568
      %v1827 = vsel %vm1815, %v1239, %v1570
      %v1829 = vsel %vm1815, %v1240, %v1572
      %v1831 = vsel %vm1815, %v1241, %v1574
      %v1833 = vsel %vm1815, %v1242, %v1576
      %v1835 = vsel %vm1815, %v1243, %v1578
      %v1837 = vsel %vm1815, %v1244, %v1580
      %v1839 = vsel %vm1815, %v1245, %v1582
      %v1841 = vsel %vm1815, %v1246, %v1584
      %v1843 = vsel %vm1815, %v1247, %v1586
      %v1845 = vsel %vm1815, %v1248, %v1588
      %v1847 = vsel %vm1815, %v1249, %v1590
      %vm1848 = vcmask 48128
      %v1850 = vsel %vm1848, %v1817, %v1592
      %v1852 = vsel %vm1848, %v1819, %v1594
      %v1854 = vsel %vm1848, %v1821, %v1596
      %v1856 = vsel %vm1848, %v1823, %v1598
      %v1858 = vsel %vm1848, %v1825, %v1600
      %v1860 = vsel %vm1848, %v1827, %v1602
      %v1862 = vsel %vm1848, %v1829, %v1604
      %v1864 = vsel %vm1848, %v1831, %v1606
      %v1866 = vsel %vm1848, %v1833, %v1608
      %v1868 = vsel %vm1848, %v1835, %v1610
      %v1870 = vsel %vm1848, %v1837, %v1612
      %v1872 = vsel %vm1848, %v1839, %v1614
      %v1874 = vsel %vm1848, %v1841, %v1616
      %v1876 = vsel %vm1848, %v1843, %v1618
      %v1878 = vsel %vm1848, %v1845, %v1620
      %v1880 = vsel %vm1848, %v1847, %v1622
      %vm1881 = vcmask 72704
      %v1883 = vsel %vm1881, %v1850, %v1624
      %v1885 = vsel %vm1881, %v1852, %v1626
      %v1887 = vsel %vm1881, %v1854, %v1628
      %v1889 = vsel %vm1881, %v1856, %v1630
      %v1891 = vsel %vm1881, %v1858, %v1632
      %v1893 = vsel %vm1881, %v1860, %v1634
      %v1895 = vsel %vm1881, %v1862, %v1636
      %v1897 = vsel %vm1881, %v1864, %v1638
      %v1899 = vsel %vm1881, %v1866, %v1640
      %v1901 = vsel %vm1881, %v1868, %v1642
      %v1903 = vsel %vm1881, %v1870, %v1644
      %v1905 = vsel %vm1881, %v1872, %v1646
      %v1907 = vsel %vm1881, %v1874, %v1648
      %v1909 = vsel %vm1881, %v1876, %v1650
      %v1911 = vsel %vm1881, %v1878, %v1652
      %v1913 = vsel %vm1881, %v1880, %v1654
      %vm1914 = vcmask 97280
      %v1916 = vsel %vm1914, %v1883, %v1656
      %v1918 = vsel %vm1914, %v1885, %v1658
      %v1920 = vsel %vm1914, %v1887, %v1660
      %v1922 = vsel %vm1914, %v1889, %v1662
      %v1924 = vsel %vm1914, %v1891, %v1664
      %v1926 = vsel %vm1914, %v1893, %v1666
      %v1928 = vsel %vm1914, %v1895, %v1668
      %v1930 = vsel %vm1914, %v1897, %v1670
      %v1932 = vsel %vm1914, %v1899, %v1672
      %v1934 = vsel %vm1914, %v1901, %v1674
      %v1936 = vsel %vm1914, %v1903, %v1676
      %v1938 = vsel %vm1914, %v1905, %v1678
      %v1940 = vsel %vm1914, %v1907, %v1680
      %v1942 = vsel %vm1914, %v1909, %v1682
      %v1944 = vsel %vm1914, %v1911, %v1684
      %v1946 = vsel %vm1914, %v1913, %v1686
      %vm1947 = vcmask 121856
      %v1949 = vsel %vm1947, %v1916, %v1688
      %v1951 = vsel %vm1947, %v1918, %v1690
      %v1953 = vsel %vm1947, %v1920, %v1692
      %v1955 = vsel %vm1947, %v1922, %v1694
      %v1957 = vsel %vm1947, %v1924, %v1696
      %v1959 = vsel %vm1947, %v1926, %v1698
      %v1961 = vsel %vm1947, %v1928, %v1700
      %v1963 = vsel %vm1947, %v1930, %v1702
      %v1965 = vsel %vm1947, %v1932, %v1704
      %v1967 = vsel %vm1947, %v1934, %v1706
      %v1969 = vsel %vm1947, %v1936, %v1708
      %v1971 = vsel %vm1947, %v1938, %v1710
      %v1973 = vsel %vm1947, %v1940, %v1712
      %v1975 = vsel %vm1947, %v1942, %v1714
      %v1977 = vsel %vm1947, %v1944, %v1716
      %v1979 = vsel %vm1947, %v1946, %v1718
      %vm1980 = vcmask 146432
      %v1982 = vsel %vm1980, %v1949, %v1720
      %v1984 = vsel %vm1980, %v1951, %v1722
      %v1986 = vsel %vm1980, %v1953, %v1724
      %v1988 = vsel %vm1980, %v1955, %v1726
      %v1990 = vsel %vm1980, %v1957, %v1728
      %v1992 = vsel %vm1980, %v1959, %v1730
      %v1994 = vsel %vm1980, %v1961, %v1732
      %v1996 = vsel %vm1980, %v1963, %v1734
      %v1998 = vsel %vm1980, %v1965, %v1736
      %v2000 = vsel %vm1980, %v1967, %v1738
      %v2002 = vsel %vm1980, %v1969, %v1740
      %v2004 = vsel %vm1980, %v1971, %v1742
      %v2006 = vsel %vm1980, %v1973, %v1744
      %v2008 = vsel %vm1980, %v1975, %v1746
      %v2010 = vsel %vm1980, %v1977, %v1748
      %v2012 = vsel %vm1980, %v1979, %v1750
      %vm2013 = vcmask 171008
      %v2015 = vsel %vm2013, %v1982, %v1752
      %v2017 = vsel %vm2013, %v1984, %v1754
      %v2019 = vsel %vm2013, %v1986, %v1756
      %v2021 = vsel %vm2013, %v1988, %v1758
      %v2023 = vsel %vm2013, %v1990, %v1760
      %v2025 = vsel %vm2013, %v1992, %v1762
      %v2027 = vsel %vm2013, %v1994, %v1764
      %v2029 = vsel %vm2013, %v1996, %v1766
      %v2031 = vsel %vm2013, %v1998, %v1768
      %v2033 = vsel %vm2013, %v2000, %v1770
      %v2035 = vsel %vm2013, %v2002, %v1772
      %v2037 = vsel %vm2013, %v2004, %v1774
      %v2039 = vsel %vm2013, %v2006, %v1776
      %v2041 = vsel %vm2013, %v2008, %v1778
      %v2043 = vsel %vm2013, %v2010, %v1780
      %v2045 = vsel %vm2013, %v2012, %v1782
      %vm2046 = vcmask 195584
      %v2048 = vsel %vm2046, %v2015, %v1784
      %v2050 = vsel %vm2046, %v2017, %v1786
      %v2052 = vsel %vm2046, %v2019, %v1788
      %v2054 = vsel %vm2046, %v2021, %v1790
      %v2056 = vsel %vm2046, %v2023, %v1792
      %v2058 = vsel %vm2046, %v2025, %v1794
      %v2060 = vsel %vm2046, %v2027, %v1796
      %v2062 = vsel %vm2046, %v2029, %v1798
      %v2064 = vsel %vm2046, %v2031, %v1800
      %v2066 = vsel %vm2046, %v2033, %v1802
      %v2068 = vsel %vm2046, %v2035, %v1804
      %v2070 = vsel %vm2046, %v2037, %v1806
      %v2072 = vsel %vm2046, %v2039, %v1808
      %v2074 = vsel %vm2046, %v2041, %v1810
      %v2076 = vsel %vm2046, %v2043, %v1812
      %v2078 = vsel %vm2046, %v2045, %v1814
      %v2083 = vunpack.c.l.b16 %v992
      %v2084 = vunpack.c.l.b16 %v993
      %v2085 = vunpack.c.l.b16 %v994
      %v2086 = vunpack.c.l.b16 %v995
      %v2087 = vpack.c.b16 %v2084, %v2083
      %v2088 = vpack.c.b16 %v2086, %v2085
      %vm2090 = vcmask 220160
      %v2091 = vsel %vm2090, %v2048, 0
      %v2093 = vsel %vm2090, %v2050, 0
      %v2095 = vsel %vm2090, %v2052, 0
      %v2097 = vsel %vm2090, %v2054, 0
      %v2099 = vsel %vm2090, %v2056, 0
      %v2101 = vsel %vm2090, %v2058, 0
      %v2103 = vsel %vm2090, %v2060, 0
      %v2105 = vsel %vm2090, %v2062, 0
      %v2107 = vsel %vm2090, %v2064, 0
      %v2109 = vsel %vm2090, %v2066, 0
      %v2111 = vsel %vm2090, %v2068, 0
      %v2113 = vsel %vm2090, %v2070, 0
      %v2115 = vsel %vm2090, %v2072, 0
      %v2117 = vsel %vm2090, %v2074, 0
      %v2119 = vsel %vm2090, %v2076, 0
      %v2121 = vsel %vm2090, %v2078, 0
      %vm2123 = vcmask 1044480
      %vm2124 = vcmask 1045504
      %v2125 = vsel %vm2123, 4294967295, 65535
      %v2126 = vsel %vm2124, %v2125, 0
      %v2128 = vand.u32 %v2088, %v2126
      %2130 = vmatprep.subr.bf16.mxu0 0
      %2131 = vmatpush1.bf16.msra.mxu0 %v2087
      %2132 = vmatprep.subr.bf16.mxu0 0
      %2133 = vmatpush1.bf16.msra.mxu0 %v2128
      %2134 = vmatprep.subr.bf16.mxu0 0
      %2135 = vmatpush1.bf16.msra.mxu0 0
      %2136 = vmatprep.subr.bf16.mxu0 0
      %2137 = vmatpush1.bf16.msra.mxu0 0
      %2138 = vmatprep.subr.bf16.mxu0 0
      %2139 = vmatpush1.bf16.msra.mxu0 0
      %2140 = vmatprep.subr.bf16.mxu0 0
      %2141 = vmatpush1.bf16.msra.mxu0 0
      %2142 = vmatprep.subr.bf16.mxu0 0
      %2143 = vmatpush1.bf16.msra.mxu0 0
      %2144 = vmatprep.subr.bf16.mxu0 0
      %2145 = vmatpush1.bf16.msra.mxu0 0
      %2146 = vmatprep.subr.bf16.mxu0 0
      %2147 = vmatpush1.bf16.msra.mxu0 0
      %2148 = vmatprep.subr.bf16.mxu0 0
      %2149 = vmatpush1.bf16.msra.mxu0 0
      %2150 = vmatprep.subr.bf16.mxu0 0
      %2151 = vmatpush1.bf16.msra.mxu0 0
      %2152 = vmatprep.subr.bf16.mxu0 0
      %2153 = vmatpush1.bf16.msra.mxu0 0
      %2154 = vmatprep.subr.bf16.mxu0 0
      %2155 = vmatpush1.bf16.msra.mxu0 0
      %2156 = vmatprep.subr.bf16.mxu0 0
      %2157 = vmatpush1.bf16.msra.mxu0 0
      %2158 = vmatprep.subr.bf16.mxu0 0
      %2159 = vmatpush1.bf16.msra.mxu0 0
      %2160 = vmatprep.subr.bf16.mxu0 0
      %2161 = vmatpush1.bf16.msra.mxu0 0
      %2162 = vmatprep.mubr.bf16.mxu0 0
      %2163 = vmatmul.mubr.bf16.gmra.mrb[0].mxu0 %v2091
      %v2164 = vpop.f32.mrb[0].mxu0
      %v2165 = vadd.f32 0.0, %v2164
      %v2166 = vpop.f32.mrb[0].mxu0
      %v2167 = vpop.f32.mrb[0].mxu0
      %v2168 = vadd.f32 0.0, %v2167
      %v2169 = vpop.f32.mrb[0].mxu0
      %2170 = vmatprep.mubr.bf16.mxu0 0
      %2171 = vmatmul.mubr.bf16.gmra.mrb[0].mxu0 %v2093
      %v2172 = vpop.f32.mrb[0].mxu0
      %v2173 = vadd.f32 0.0, %v2172
      %v2174 = vpop.f32.mrb[0].mxu0
      %v2175 = vpop.f32.mrb[0].mxu0
      %v2176 = vadd.f32 0.0, %v2175
      %v2177 = vpop.f32.mrb[0].mxu0
      %2178 = vmatprep.mubr.bf16.mxu0 0
      %2179 = vmatmul.mubr.bf16.gmra.mrb[0].mxu0 %v2095
      %v2180 = vpop.f32.mrb[0].mxu0
      %v2181 = vadd.f32 0.0, %v2180
      %v2182 = vpop.f32.mrb[0].mxu0
      %v2183 = vpop.f32.mrb[0].mxu0
      %v2184 = vadd.f32 0.0, %v2183
      %v2185 = vpop.f32.mrb[0].mxu0
      %2186 = vmatprep.mubr.bf16.mxu0 0
      %2187 = vmatmul.mubr.bf16.gmra.mrb[0].mxu0 %v2097
      %v2188 = vpop.f32.mrb[0].mxu0
      %v2189 = vadd.f32 0.0, %v2188
      %v2190 = vpop.f32.mrb[0].mxu0
      %v2191 = vpop.f32.mrb[0].mxu0
      %v2192 = vadd.f32 0.0, %v2191
      %v2193 = vpop.f32.mrb[0].mxu0
      %2194 = vmatprep.mubr.bf16.mxu0 0
      %2195 = vmatmul.mubr.bf16.gmra.mrb[0].mxu0 %v2099
      %v2196 = vpop.f32.mrb[0].mxu0
      %v2197 = vadd.f32 0.0, %v2196
      %v2198 = vpop.f32.mrb[0].mxu0
      %v2199 = vpop.f32.mrb[0].mxu0
      %v2200 = vadd.f32 0.0, %v2199
      %v2201 = vpop.f32.mrb[0].mxu0
      %2202 = vmatprep.mubr.bf16.mxu0 0
      %2203 = vmatmul.mubr.bf16.gmra.mrb[0].mxu0 %v2101
      %v2204 = vpop.f32.mrb[0].mxu0
      %v2205 = vadd.f32 0.0, %v2204
      %v2206 = vpop.f32.mrb[0].mxu0
      %v2207 = vpop.f32.mrb[0].mxu0
      %v2208 = vadd.f32 0.0, %v2207
      %v2209 = vpop.f32.mrb[0].mxu0
      %2210 = vmatprep.mubr.bf16.mxu0 0
      %2211 = vmatmul.mubr.bf16.gmra.mrb[0].mxu0 %v2103
      %v2212 = vpop.f32.mrb[0].mxu0
      %v2213 = vadd.f32 0.0, %v2212
      %v2214 = vpop.f32.mrb[0].mxu0
      %v2215 = vpop.f32.mrb[0].mxu0
      %v2216 = vadd.f32 0.0, %v2215
      %v2217 = vpop.f32.mrb[0].mxu0
      %2218 = vmatprep.mubr.bf16.mxu0 0
      %2219 = vmatmul.mubr.bf16.gmra.mrb[0].mxu0 %v2105
      %v2220 = vpop.f32.mrb[0].mxu0
      %v2221 = vadd.f32 0.0, %v2220
      %v2222 = vpop.f32.mrb[0].mxu0
      %v2223 = vpop.f32.mrb[0].mxu0
      %v2224 = vadd.f32 0.0, %v2223
      %v2225 = vpop.f32.mrb[0].mxu0
      %2226 = vmatprep.mubr.bf16.mxu0 0
      %2227 = vmatmul.mubr.bf16.gmra.mrb[0].mxu0 %v2107
      %v2228 = vpop.f32.mrb[0].mxu0
      %v2229 = vadd.f32 0.0, %v2228
      %v2230 = vpop.f32.mrb[0].mxu0
      %v2231 = vpop.f32.mrb[0].mxu0
      %v2232 = vadd.f32 0.0, %v2231
      %v2233 = vpop.f32.mrb[0].mxu0
      %2234 = vmatprep.mubr.bf16.mxu0 0
      %2235 = vmatmul.mubr.bf16.gmra.mrb[0].mxu0 %v2109
      %v2236 = vpop.f32.mrb[0].mxu0
      %v2237 = vadd.f32 0.0, %v2236
      %v2238 = vpop.f32.mrb[0].mxu0
      %v2239 = vpop.f32.mrb[0].mxu0
      %v2240 = vadd.f32 0.0, %v2239
      %v2241 = vpop.f32.mrb[0].mxu0
      %2242 = vmatprep.mubr.bf16.mxu0 0
      %2243 = vmatmul.mubr.bf16.gmra.mrb[0].mxu0 %v2111
      %v2244 = vpop.f32.mrb[0].mxu0
      %v2245 = vadd.f32 0.0, %v2244
      %v2246 = vpop.f32.mrb[0].mxu0
      %v2247 = vpop.f32.mrb[0].mxu0
      %v2248 = vadd.f32 0.0, %v2247
      %v2249 = vpop.f32.mrb[0].mxu0
      %2250 = vmatprep.mubr.bf16.mxu0 0
      %2251 = vmatmul.mubr.bf16.gmra.mrb[0].mxu0 %v2113
      %v2252 = vpop.f32.mrb[0].mxu0
      %v2253 = vadd.f32 0.0, %v2252
      %v2254 = vpop.f32.mrb[0].mxu0
      %v2255 = vpop.f32.mrb[0].mxu0
      %v2256 = vadd.f32 0.0, %v2255
      %v2257 = vpop.f32.mrb[0].mxu0
      %2258 = vmatprep.mubr.bf16.mxu0 0
      %2259 = vmatmul.mubr.bf16.gmra.mrb[0].mxu0 %v2115
      %v2260 = vpop.f32.mrb[0].mxu0
      %v2261 = vadd.f32 0.0, %v2260
      %v2262 = vpop.f32.mrb[0].mxu0
      %v2263 = vpop.f32.mrb[0].mxu0
      %v2264 = vadd.f32 0.0, %v2263
      %v2265 = vpop.f32.mrb[0].mxu0
      %2266 = vmatprep.mubr.bf16.mxu0 0
      %2267 = vmatmul.mubr.bf16.gmra.mrb[0].mxu0 %v2117
      %v2268 = vpop.f32.mrb[0].mxu0
      %v2269 = vadd.f32 0.0, %v2268
      %v2270 = vpop.f32.mrb[0].mxu0
      %v2271 = vpop.f32.mrb[0].mxu0
      %v2272 = vadd.f32 0.0, %v2271
      %v2273 = vpop.f32.mrb[0].mxu0
      %2274 = vmatprep.mubr.bf16.mxu0 0
      %2275 = vmatmul.mubr.bf16.gmra.mrb[0].mxu0 %v2119
      %v2276 = vpop.f32.mrb[0].mxu0
      %v2277 = vadd.f32 0.0, %v2276
      %v2278 = vpop.f32.mrb[0].mxu0
      %v2279 = vpop.f32.mrb[0].mxu0
      %v2280 = vadd.f32 0.0, %v2279
      %v2281 = vpop.f32.mrb[0].mxu0
      %2282 = vmatprep.mubr.bf16.mxu0 0
      %2283 = vmatmul.mubr.bf16.gmra.mrb[0].mxu0 %v2121
      %v2284 = vpop.f32.mrb[0].mxu0
      %v2285 = vadd.f32 0.0, %v2284
      %v2286 = vpop.f32.mrb[0].mxu0
      %v2287 = vpop.f32.mrb[0].mxu0
      %v2288 = vadd.f32 0.0, %v2287
      %v2289 = vpop.f32.mrb[0].mxu0
      %2290 = vdwg.mxu0
      %v2292 = vlaneseq
      %v2293 = vshrl.u32 %v2292, 7
      %v2294 = vsub.s32 0, %v2293
      %v2295 = vrot.slane %v996, %v2294
      %v2297 = vmul.f32 %v2165, %v2295
      %v2298 = vmul.f32 %v2168, %v2295
      %v2299 = vmul.f32 %v2173, %v2295
      %v2300 = vmul.f32 %v2176, %v2295
      %v2301 = vmul.f32 %v2181, %v2295
      %v2302 = vmul.f32 %v2184, %v2295
      %v2303 = vmul.f32 %v2189, %v2295
      %v2304 = vmul.f32 %v2192, %v2295
      %v2305 = vmul.f32 %v2197, %v2295
      %v2306 = vmul.f32 %v2200, %v2295
      %v2307 = vmul.f32 %v2205, %v2295
      %v2308 = vmul.f32 %v2208, %v2295
      %v2309 = vmul.f32 %v2213, %v2295
      %v2310 = vmul.f32 %v2216, %v2295
      %v2311 = vmul.f32 %v2221, %v2295
      %v2312 = vmul.f32 %v2224, %v2295
      %v2313 = vmul.f32 %v2229, %v2295
      %v2314 = vmul.f32 %v2232, %v2295
      %v2315 = vmul.f32 %v2237, %v2295
      %v2316 = vmul.f32 %v2240, %v2295
      %v2317 = vmul.f32 %v2245, %v2295
      %v2318 = vmul.f32 %v2248, %v2295
      %v2319 = vmul.f32 %v2253, %v2295
      %v2320 = vmul.f32 %v2256, %v2295
      %v2321 = vmul.f32 %v2261, %v2295
      %v2322 = vmul.f32 %v2264, %v2295
      %v2323 = vmul.f32 %v2269, %v2295
      %v2324 = vmul.f32 %v2272, %v2295
      %v2325 = vmul.f32 %v2277, %v2295
      %v2326 = vmul.f32 %v2280, %v2295
      %v2327 = vmul.f32 %v2285, %v2295
      %v2328 = vmul.f32 %v2288, %v2295
      %v2330 = vlaneseq
      %v2331 = vshrl.u32 %v2330, 7
      %v2332 = vsub.s32 0, %v2331
      %v2333 = vrot.slane %v997, %v2332
      %v2335 = vadd.f32 %v2297, %v2333
      %v2336 = vadd.f32 %v2298, %v2333
      %v2337 = vadd.f32 %v2299, %v2333
      %v2338 = vadd.f32 %v2300, %v2333
      %v2339 = vadd.f32 %v2301, %v2333
      %v2340 = vadd.f32 %v2302, %v2333
      %v2341 = vadd.f32 %v2303, %v2333
      %v2342 = vadd.f32 %v2304, %v2333
      %v2343 = vadd.f32 %v2305, %v2333
      %v2344 = vadd.f32 %v2306, %v2333
      %v2345 = vadd.f32 %v2307, %v2333
      %v2346 = vadd.f32 %v2308, %v2333
      %v2347 = vadd.f32 %v2309, %v2333
      %v2348 = vadd.f32 %v2310, %v2333
      %v2349 = vadd.f32 %v2311, %v2333
      %v2350 = vadd.f32 %v2312, %v2333
      %v2351 = vadd.f32 %v2313, %v2333
      %v2352 = vadd.f32 %v2314, %v2333
      %v2353 = vadd.f32 %v2315, %v2333
      %v2354 = vadd.f32 %v2316, %v2333
      %v2355 = vadd.f32 %v2317, %v2333
      %v2356 = vadd.f32 %v2318, %v2333
      %v2357 = vadd.f32 %v2319, %v2333
      %v2358 = vadd.f32 %v2320, %v2333
      %v2359 = vadd.f32 %v2321, %v2333
      %v2360 = vadd.f32 %v2322, %v2333
      %v2361 = vadd.f32 %v2323, %v2333
      %v2362 = vadd.f32 %v2324, %v2333
      %v2363 = vadd.f32 %v2325, %v2333
      %v2364 = vadd.f32 %v2326, %v2333
      %v2365 = vadd.f32 %v2327, %v2333
      %v2366 = vadd.f32 %v2328, %v2333
      %vm2367 = vcmp.ge.f32.partialorder %v2335, 0.0
      %vm2368 = vcmp.ge.f32.partialorder %v2336, 0.0
      %vm2369 = vcmp.ge.f32.partialorder %v2337, 0.0
      %vm2370 = vcmp.ge.f32.partialorder %v2338, 0.0
      %vm2371 = vcmp.ge.f32.partialorder %v2339, 0.0
      %vm2372 = vcmp.ge.f32.partialorder %v2340, 0.0
      %vm2373 = vcmp.ge.f32.partialorder %v2341, 0.0
      %vm2374 = vcmp.ge.f32.partialorder %v2342, 0.0
      %vm2375 = vcmp.ge.f32.partialorder %v2343, 0.0
      %vm2376 = vcmp.ge.f32.partialorder %v2344, 0.0
      %vm2377 = vcmp.ge.f32.partialorder %v2345, 0.0
      %vm2378 = vcmp.ge.f32.partialorder %v2346, 0.0
      %vm2379 = vcmp.ge.f32.partialorder %v2347, 0.0
      %vm2380 = vcmp.ge.f32.partialorder %v2348, 0.0
      %vm2381 = vcmp.ge.f32.partialorder %v2349, 0.0
      %vm2382 = vcmp.ge.f32.partialorder %v2350, 0.0
      %vm2383 = vcmp.ge.f32.partialorder %v2351, 0.0
      %vm2384 = vcmp.ge.f32.partialorder %v2352, 0.0
      %vm2385 = vcmp.ge.f32.partialorder %v2353, 0.0
      %vm2386 = vcmp.ge.f32.partialorder %v2354, 0.0
      %vm2387 = vcmp.ge.f32.partialorder %v2355, 0.0
      %vm2388 = vcmp.ge.f32.partialorder %v2356, 0.0
      %vm2389 = vcmp.ge.f32.partialorder %v2357, 0.0
      %vm2390 = vcmp.ge.f32.partialorder %v2358, 0.0
      %vm2391 = vcmp.ge.f32.partialorder %v2359, 0.0
      %vm2392 = vcmp.ge.f32.partialorder %v2360, 0.0
      %vm2393 = vcmp.ge.f32.partialorder %v2361, 0.0
      %vm2394 = vcmp.ge.f32.partialorder %v2362, 0.0
      %vm2395 = vcmp.ge.f32.partialorder %v2363, 0.0
      %vm2396 = vcmp.ge.f32.partialorder %v2364, 0.0
      %vm2397 = vcmp.ge.f32.partialorder %v2365, 0.0
      %vm2398 = vcmp.ge.f32.partialorder %v2366, 0.0
      %v2399 = vmul.f32 %v2335, 0.01
      %v2400 = vmul.f32 %v2336, 0.01
      %v2401 = vmul.f32 %v2337, 0.01
      %v2402 = vmul.f32 %v2338, 0.01
      %v2403 = vmul.f32 %v2339, 0.01
      %v2404 = vmul.f32 %v2340, 0.01
      %v2405 = vmul.f32 %v2341, 0.01
      %v2406 = vmul.f32 %v2342, 0.01
      %v2407 = vmul.f32 %v2343, 0.01
      %v2408 = vmul.f32 %v2344, 0.01
      %v2409 = vmul.f32 %v2345, 0.01
      %v2410 = vmul.f32 %v2346, 0.01
      %v2411 = vmul.f32 %v2347, 0.01
      %v2412 = vmul.f32 %v2348, 0.01
      %v2413 = vmul.f32 %v2349, 0.01
      %v2414 = vmul.f32 %v2350, 0.01
      %v2415 = vmul.f32 %v2351, 0.01
      %v2416 = vmul.f32 %v2352, 0.01
      %v2417 = vmul.f32 %v2353, 0.01
      %v2418 = vmul.f32 %v2354, 0.01
      %v2419 = vmul.f32 %v2355, 0.01
      %v2420 = vmul.f32 %v2356, 0.01
      %v2421 = vmul.f32 %v2357, 0.01
      %v2422 = vmul.f32 %v2358, 0.01
      %v2423 = vmul.f32 %v2359, 0.01
      %v2424 = vmul.f32 %v2360, 0.01
      %v2425 = vmul.f32 %v2361, 0.01
      %v2426 = vmul.f32 %v2362, 0.01
      %v2427 = vmul.f32 %v2363, 0.01
      %v2428 = vmul.f32 %v2364, 0.01
      %v2429 = vmul.f32 %v2365, 0.01
      %v2430 = vmul.f32 %v2366, 0.01
      %v2431 = vsel %vm2367, %v2335, %v2399
      %v2432 = vsel %vm2368, %v2336, %v2400
      %v2433 = vsel %vm2369, %v2337, %v2401
      %v2434 = vsel %vm2370, %v2338, %v2402
      %v2435 = vsel %vm2371, %v2339, %v2403
      %v2436 = vsel %vm2372, %v2340, %v2404
      %v2437 = vsel %vm2373, %v2341, %v2405
      %v2438 = vsel %vm2374, %v2342, %v2406
      %v2439 = vsel %vm2375, %v2343, %v2407
      %v2440 = vsel %vm2376, %v2344, %v2408
      %v2441 = vsel %vm2377, %v2345, %v2409
      %v2442 = vsel %vm2378, %v2346, %v2410
      %v2443 = vsel %vm2379, %v2347, %v2411
      %v2444 = vsel %vm2380, %v2348, %v2412
      %v2445 = vsel %vm2381, %v2349, %v2413
      %v2446 = vsel %vm2382, %v2350, %v2414
      %v2447 = vsel %vm2383, %v2351, %v2415
      %v2448 = vsel %vm2384, %v2352, %v2416
      %v2449 = vsel %vm2385, %v2353, %v2417
      %v2450 = vsel %vm2386, %v2354, %v2418
      %v2451 = vsel %vm2387, %v2355, %v2419
      %v2452 = vsel %vm2388, %v2356, %v2420
      %v2453 = vsel %vm2389, %v2357, %v2421
      %v2454 = vsel %vm2390, %v2358, %v2422
      %v2455 = vsel %vm2391, %v2359, %v2423
      %v2456 = vsel %vm2392, %v2360, %v2424
      %v2457 = vsel %vm2393, %v2361, %v2425
      %v2458 = vsel %vm2394, %v2362, %v2426
      %v2459 = vsel %vm2395, %v2363, %v2427
      %v2460 = vsel %vm2396, %v2364, %v2428
      %v2461 = vsel %vm2397, %v2365, %v2429
      %v2462 = vsel %vm2398, %v2366, %v2430
      %v2463 = vpack.c.bf16 %v2432, %v2431
      %v2464 = vpack.c.bf16 %v2434, %v2433
      %v2465 = vpack.c.bf16 %v2436, %v2435
      %v2466 = vpack.c.bf16 %v2438, %v2437
      %v2467 = vpack.c.bf16 %v2440, %v2439
      %v2468 = vpack.c.bf16 %v2442, %v2441
      %v2469 = vpack.c.bf16 %v2444, %v2443
      %v2470 = vpack.c.bf16 %v2446, %v2445
      %v2471 = vpack.c.bf16 %v2448, %v2447
      %v2472 = vpack.c.bf16 %v2450, %v2449
      %v2473 = vpack.c.bf16 %v2452, %v2451
      %v2474 = vpack.c.bf16 %v2454, %v2453
      %v2475 = vpack.c.bf16 %v2456, %v2455
      %v2476 = vpack.c.bf16 %v2458, %v2457
      %v2477 = vpack.c.bf16 %v2460, %v2459
      %v2478 = vpack.c.bf16 %v2462, %v2461
      %v2479 = vmax.bf16 %v2463, %v2464
      %v2480 = vmax.bf16 %v2465, %v2466
      %v2481 = vmax.bf16 %v2467, %v2468
      %v2482 = vmax.bf16 %v2469, %v2470
      %v2483 = vmax.bf16 %v2471, %v2472
      %v2484 = vmax.bf16 %v2473, %v2474
      %v2485 = vmax.bf16 %v2475, %v2476
      %v2486 = vmax.bf16 %v2477, %v2478
      %v2488 = vshrl.u32 %v2479, 16
      %v2491 = vshrl.u32 %v2480, 16
      %v2494 = vshrl.u32 %v2481, 16
      %v2497 = vshrl.u32 %v2482, 16
      %v2500 = vshrl.u32 %v2483, 16
      %v2503 = vshrl.u32 %v2484, 16
      %v2506 = vshrl.u32 %v2485, 16
      %v2509 = vshrl.u32 %v2486, 16
      %v2519 = vmax.bf16 %v2479, %v2488
      %v2520 = vmax.bf16 %v2480, %v2491
      %v2521 = vmax.bf16 %v2481, %v2494
      %v2522 = vmax.bf16 %v2482, %v2497
      %v2523 = vmax.bf16 %v2483, %v2500
      %v2524 = vmax.bf16 %v2484, %v2503
      %v2525 = vmax.bf16 %v2485, %v2506
      %v2526 = vmax.bf16 %v2486, %v2509
      %v2528 = vshll.u32 %v2519, 16
      %v2530 = vrot.slane %v2528, 1
      %v2532 = vshll.u32 %v2520, 16
      %v2534 = vrot.slane %v2532, 1
      %v2536 = vshll.u32 %v2521, 16
      %v2538 = vrot.slane %v2536, 1
      %v2540 = vshll.u32 %v2522, 16
      %v2542 = vrot.slane %v2540, 1
      %v2544 = vshll.u32 %v2523, 16
      %v2546 = vrot.slane %v2544, 1
      %v2548 = vshll.u32 %v2524, 16
      %v2550 = vrot.slane %v2548, 1
      %v2552 = vshll.u32 %v2525, 16
      %v2554 = vrot.slane %v2552, 1
      %v2556 = vshll.u32 %v2526, 16
      %v2558 = vrot.slane %v2556, 1
      %v2575 = vrot.slane %v2519, 1
      %v2576 = vrot.slane %v2520, 1
      %v2577 = vrot.slane %v2521, 1
      %v2578 = vrot.slane %v2522, 1
      %v2579 = vrot.slane %v2523, 1
      %v2580 = vrot.slane %v2524, 1
      %v2581 = vrot.slane %v2525, 1
      %v2582 = vrot.slane %v2526, 1
      %v2583 = vrot.slane %v2528, 2
      %v2584 = vrot.slane %v2532, 2
      %v2585 = vrot.slane %v2536, 2
      %v2586 = vrot.slane %v2540, 2
      %v2587 = vrot.slane %v2544, 2
      %v2588 = vrot.slane %v2548, 2
      %v2589 = vrot.slane %v2552, 2
      %v2590 = vrot.slane %v2556, 2
      %v2599 = vrot.slane %v2519, 2
      %v2600 = vrot.slane %v2520, 2
      %v2601 = vrot.slane %v2521, 2
      %v2602 = vrot.slane %v2522, 2
      %v2603 = vrot.slane %v2523, 2
      %v2604 = vrot.slane %v2524, 2
      %v2605 = vrot.slane %v2525, 2
      %v2606 = vrot.slane %v2526, 2
      %v2607 = vrot.slane %v2528, 3
      %v2608 = vrot.slane %v2532, 3
      %v2609 = vrot.slane %v2536, 3
      %v2610 = vrot.slane %v2540, 3
      %v2611 = vrot.slane %v2544, 3
      %v2612 = vrot.slane %v2548, 3
      %v2613 = vrot.slane %v2552, 3
      %v2614 = vrot.slane %v2556, 3
      %v2623 = vrot.slane %v2519, 3
      %v2624 = vrot.slane %v2520, 3
      %v2625 = vrot.slane %v2521, 3
      %v2626 = vrot.slane %v2522, 3
      %v2627 = vrot.slane %v2523, 3
      %v2628 = vrot.slane %v2524, 3
      %v2629 = vrot.slane %v2525, 3
      %v2630 = vrot.slane %v2526, 3
      %v2631 = vrot.slane %v2528, 4
      %v2632 = vrot.slane %v2532, 4
      %v2633 = vrot.slane %v2536, 4
      %v2634 = vrot.slane %v2540, 4
      %v2635 = vrot.slane %v2544, 4
      %v2636 = vrot.slane %v2548, 4
      %v2637 = vrot.slane %v2552, 4
      %v2638 = vrot.slane %v2556, 4
      %v2647 = vsel %vm1233, %v2519, %v2530
      %v2648 = vsel %vm1233, %v2520, %v2534
      %v2649 = vsel %vm1233, %v2521, %v2538
      %v2650 = vsel %vm1233, %v2522, %v2542
      %v2651 = vsel %vm1233, %v2523, %v2546
      %v2652 = vsel %vm1233, %v2524, %v2550
      %v2653 = vsel %vm1233, %v2525, %v2554
      %v2654 = vsel %vm1233, %v2526, %v2558
      %vm2655 = vcmask 1040384
      %v2658 = vsel %vm2655, %v2647, %v2575
      %v2662 = vsel %vm2655, %v2648, %v2576
      %v2666 = vsel %vm2655, %v2649, %v2577
      %v2670 = vsel %vm2655, %v2650, %v2578
      %v2674 = vsel %vm2655, %v2651, %v2579
      %v2678 = vsel %vm2655, %v2652, %v2580
      %v2682 = vsel %vm2655, %v2653, %v2581
      %v2686 = vsel %vm2655, %v2654, %v2582
      %vm2688 = vcmask 1041408
      %vm2689 = vsmask.f32 1280
      %vm2690 = vmand %vm2688, %vm2689
      %v2691 = vsel %vm2690, %v2658, %v2583
      %v2692 = vsel %vm2690, %v2662, %v2584
      %v2693 = vsel %vm2690, %v2666, %v2585
      %v2694 = vsel %vm2690, %v2670, %v2586
      %v2695 = vsel %vm2690, %v2674, %v2587
      %v2696 = vsel %vm2690, %v2678, %v2588
      %v2697 = vsel %vm2690, %v2682, %v2589
      %v2698 = vsel %vm2690, %v2686, %v2590
      %vm2699 = vcmask 1041408
      %v2702 = vsel %vm2699, %v2691, %v2599
      %v2706 = vsel %vm2699, %v2692, %v2600
      %v2710 = vsel %vm2699, %v2693, %v2601
      %v2714 = vsel %vm2699, %v2694, %v2602
      %v2718 = vsel %vm2699, %v2695, %v2603
      %v2722 = vsel %vm2699, %v2696, %v2604
      %v2726 = vsel %vm2699, %v2697, %v2605
      %v2730 = vsel %vm2699, %v2698, %v2606
      %vm2732 = vcmask 1042432
      %vm2733 = vsmask.f32 2304
      %vm2734 = vmand %vm2732, %vm2733
      %v2735 = vsel %vm2734, %v2702, %v2607
      %v2736 = vsel %vm2734, %v2706, %v2608
      %v2737 = vsel %vm2734, %v2710, %v2609
      %v2738 = vsel %vm2734, %v2714, %v2610
      %v2739 = vsel %vm2734, %v2718, %v2611
      %v2740 = vsel %vm2734, %v2722, %v2612
      %v2741 = vsel %vm2734, %v2726, %v2613
      %v2742 = vsel %vm2734, %v2730, %v2614
      %vm2743 = vcmask 1042432
      %v2746 = vsel %vm2743, %v2735, %v2623
      %v2750 = vsel %vm2743, %v2736, %v2624
      %v2754 = vsel %vm2743, %v2737, %v2625
      %v2758 = vsel %vm2743, %v2738, %v2626
      %v2762 = vsel %vm2743, %v2739, %v2627
      %v2766 = vsel %vm2743, %v2740, %v2628
      %v2770 = vsel %vm2743, %v2741, %v2629
      %v2774 = vsel %vm2743, %v2742, %v2630
      %vm2776 = vcmask 1043456
      %vm2777 = vsmask.f32 3328
      %vm2778 = vmand %vm2776, %vm2777
      %v2779 = vsel %vm2778, %v2746, %v2631
      %v2780 = vsel %vm2778, %v2750, %v2632
      %v2781 = vsel %vm2778, %v2754, %v2633
      %v2782 = vsel %vm2778, %v2758, %v2634
      %v2783 = vsel %vm2778, %v2762, %v2635
      %v2784 = vsel %vm2778, %v2766, %v2636
      %v2785 = vsel %vm2778, %v2770, %v2637
      %v2786 = vsel %vm2778, %v2774, %v2638
      %v2787 = vld [vmem:[%s9] sm:$0xf]
      %v2788 = vld [vmem:[%s9 + $0x4] sm:$0xf]
      %v2789 = vld [vmem:[%s9 + $0x8] sm:$0xf]
      %v2790 = vld [vmem:[%s9 + $0xc] sm:$0xf]
      %v2791 = vld [vmem:[%s9 + $0x10] sm:$0xf]
      %v2792 = vld [vmem:[%s9 + $0x14] sm:$0xf]
      %v2793 = vld [vmem:[%s9 + $0x18] sm:$0xf]
      %v2794 = vld [vmem:[%s9 + $0x1c] sm:$0xf]
      %v2795 = vld [vmem:[%s9 + $0x20] sm:$0xf]
      %v2796 = vld [vmem:[%s11] sm:$0x1]
      %v2797 = vld [vmem:[%s13] sm:$0x1]
      %v2799 = vshrl.u32 %v2779, 16
      %v2801 = vrot.slane %v2799, 7
      %v2802 = vshll.u32 %v2779, 16
      %v2804 = vor.u32 %v2801, %v2802
      %v2806 = vshrl.u32 %v2780, 16
      %v2808 = vrot.slane %v2806, 7
      %v2809 = vshll.u32 %v2780, 16
      %v2811 = vor.u32 %v2808, %v2809
      %v2813 = vshrl.u32 %v2781, 16
      %v2815 = vrot.slane %v2813, 7
      %v2816 = vshll.u32 %v2781, 16
      %v2818 = vor.u32 %v2815, %v2816
      %v2820 = vshrl.u32 %v2782, 16
      %v2822 = vrot.slane %v2820, 7
      %v2823 = vshll.u32 %v2782, 16
      %v2825 = vor.u32 %v2822, %v2823
      %v2827 = vshrl.u32 %v2783, 16
      %v2829 = vrot.slane %v2827, 7
      %v2830 = vshll.u32 %v2783, 16
      %v2832 = vor.u32 %v2829, %v2830
      %v2834 = vshrl.u32 %v2784, 16
      %v2836 = vrot.slane %v2834, 7
      %v2837 = vshll.u32 %v2784, 16
      %v2839 = vor.u32 %v2836, %v2837
      %v2841 = vshrl.u32 %v2785, 16
      %v2843 = vrot.slane %v2841, 7
      %v2844 = vshll.u32 %v2785, 16
      %v2846 = vor.u32 %v2843, %v2844
      %v2848 = vshrl.u32 %v2786, 16
      %v2850 = vrot.slane %v2848, 7
      %v2851 = vshll.u32 %v2786, 16
      %v2853 = vor.u32 %v2850, %v2851
      %v2862 = vsel %vm1233, 0, %v2804
      %v2863 = vsel %vm1233, 0, %v2811
      %v2864 = vsel %vm1233, 0, %v2818
      %v2865 = vsel %vm1233, 0, %v2825
      %v2866 = vsel %vm1233, 0, %v2832
      %v2867 = vsel %vm1233, 0, %v2839
      %v2868 = vsel %vm1233, 0, %v2846
      %v2869 = vsel %vm1233, 0, %v2853
      %vm2870 = vcmask 1044480
      %vm2871 = vsmask.f32 4352
      %vm2872 = vmand %vm2870, %vm2871
      %v2873 = vsel %vm2872, %v1234, 0
      %v2874 = vsel %vm2872, %v2862, 0
      %v2875 = vsel %vm2872, %v2863, 0
      %v2876 = vsel %vm2872, %v2864, 0
      %v2877 = vsel %vm2872, %v2865, 0
      %v2878 = vsel %vm2872, %v2866, 0
      %v2879 = vsel %vm2872, %v2867, 0
      %v2880 = vsel %vm2872, %v2868, 0
      %v2881 = vsel %vm2872, %v2869, 0
      %v2890 = vunpack.c.l.b16 %v2873
      %v2891 = vunpack.c.h.b16 %v2873
      %v2892 = vunpack.c.l.b16 %v2874
      %v2893 = vunpack.c.h.b16 %v2874
      %v2894 = vunpack.c.l.b16 %v2875
      %v2895 = vunpack.c.h.b16 %v2875
      %v2896 = vunpack.c.l.b16 %v2876
      %v2897 = vunpack.c.h.b16 %v2876
      %v2898 = vunpack.c.l.b16 %v2877
      %v2899 = vunpack.c.h.b16 %v2877
      %v2900 = vunpack.c.l.b16 %v2878
      %v2901 = vunpack.c.h.b16 %v2878
      %v2902 = vunpack.c.l.b16 %v2879
      %v2903 = vunpack.c.h.b16 %v2879
      %v2904 = vunpack.c.l.b16 %v2880
      %v2905 = vunpack.c.h.b16 %v2880
      %v2906 = vpack.c.b16 %v2890, %v2890
      %v2907 = vpack.c.b16 %v2891, %v2891
      %v2908 = vpack.c.b16 %v2892, %v2892
      %v2909 = vpack.c.b16 %v2893, %v2893
      %v2910 = vpack.c.b16 %v2894, %v2894
      %v2911 = vpack.c.b16 %v2895, %v2895
      %v2912 = vpack.c.b16 %v2896, %v2896
      %v2913 = vpack.c.b16 %v2897, %v2897
      %v2914 = vpack.c.b16 %v2898, %v2898
      %v2915 = vpack.c.b16 %v2899, %v2899
      %v2916 = vpack.c.b16 %v2900, %v2900
      %v2917 = vpack.c.b16 %v2901, %v2901
      %v2918 = vpack.c.b16 %v2902, %v2902
      %v2919 = vpack.c.b16 %v2903, %v2903
      %v2920 = vpack.c.b16 %v2904, %v2904
      %v2921 = vpack.c.b16 %v2905, %v2905
      %vm2922 = vsmask.f32 7440
      %vm2923 = vmor %vm2777, %vm2922
      %v2925 = vshrl.u32 %v2906, 16
      %v2927 = vrot.slane %v2925, 4
      %v2928 = vshll.u32 %v2906, 16
      %v2930 = vrot.slane %v2928, 5
      %v2931 = vor.u32 %v2927, %v2930
      %v2932 = vrot.slane %v2931, 4
      %v2934 = vshll.u32 %v2907, 16
      %v2936 = vrot.slane %v2934, 5
      %v2937 = vsel %vm2923, %v2932, %v2936
      %v2939 = vshrl.u32 %v2908, 16
      %v2941 = vrot.slane %v2939, 4
      %v2942 = vshll.u32 %v2908, 16
      %v2944 = vrot.slane %v2942, 5
      %v2945 = vor.u32 %v2941, %v2944
      %v2946 = vrot.slane %v2945, 4
      %v2948 = vshll.u32 %v2909, 16
      %v2950 = vrot.slane %v2948, 5
      %v2951 = vsel %vm2923, %v2946, %v2950
      %v2953 = vshrl.u32 %v2910, 16
      %v2955 = vrot.slane %v2953, 4
      %v2956 = vshll.u32 %v2910, 16
      %v2958 = vrot.slane %v2956, 5
      %v2959 = vor.u32 %v2955, %v2958
      %v2960 = vrot.slane %v2959, 4
      %v2962 = vshll.u32 %v2911, 16
      %v2964 = vrot.slane %v2962, 5
      %v2965 = vsel %vm2923, %v2960, %v2964
      %v2967 = vshrl.u32 %v2912, 16
      %v2969 = vrot.slane %v2967, 4
      %v2970 = vshll.u32 %v2912, 16
      %v2972 = vrot.slane %v2970, 5
      %v2973 = vor.u32 %v2969, %v2972
      %v2974 = vrot.slane %v2973, 4
      %v2976 = vshll.u32 %v2913, 16
      %v2978 = vrot.slane %v2976, 5
      %v2979 = vsel %vm2923, %v2974, %v2978
      %v2981 = vshrl.u32 %v2914, 16
      %v2983 = vrot.slane %v2981, 4
      %v2984 = vshll.u32 %v2914, 16
      %v2986 = vrot.slane %v2984, 5
      %v2987 = vor.u32 %v2983, %v2986
      %v2988 = vrot.slane %v2987, 4
      %v2990 = vshll.u32 %v2915, 16
      %v2992 = vrot.slane %v2990, 5
      %v2993 = vsel %vm2923, %v2988, %v2992
      %v2995 = vshrl.u32 %v2916, 16
      %v2997 = vrot.slane %v2995, 4
      %v2998 = vshll.u32 %v2916, 16
      %v3000 = vrot.slane %v2998, 5
      %v3001 = vor.u32 %v2997, %v3000
      %v3002 = vrot.slane %v3001, 4
      %v3004 = vshll.u32 %v2917, 16
      %v3006 = vrot.slane %v3004, 5
      %v3007 = vsel %vm2923, %v3002, %v3006
      %v3009 = vshrl.u32 %v2918, 16
      %v3011 = vrot.slane %v3009, 4
      %v3012 = vshll.u32 %v2918, 16
      %v3014 = vrot.slane %v3012, 5
      %v3015 = vor.u32 %v3011, %v3014
      %v3016 = vrot.slane %v3015, 4
      %v3018 = vshll.u32 %v2919, 16
      %v3020 = vrot.slane %v3018, 5
      %v3021 = vsel %vm2923, %v3016, %v3020
      %v3023 = vshrl.u32 %v2920, 16
      %v3025 = vrot.slane %v3023, 4
      %v3026 = vshll.u32 %v2920, 16
      %v3028 = vrot.slane %v3026, 5
      %v3029 = vor.u32 %v3025, %v3028
      %v3030 = vrot.slane %v3029, 4
      %v3032 = vshll.u32 %v2921, 16
      %v3034 = vrot.slane %v3032, 5
      %v3035 = vsel %vm2923, %v3030, %v3034
      %vm3036 = vcmask 1046532
      %vm3037 = vmor %vm2732, %vm3036
      %v3038 = vrot.slane %v2906, 5
      %v3039 = vrot.slane %v3038, 4
      %v3040 = vrot.slane %v2907, 5
      %v3041 = vsel %vm3037, %v3039, %v3040
      %v3042 = vrot.slane %v2908, 5
      %v3043 = vrot.slane %v3042, 4
      %v3044 = vrot.slane %v2909, 5
      %v3045 = vsel %vm3037, %v3043, %v3044
      %v3046 = vrot.slane %v2910, 5
      %v3047 = vrot.slane %v3046, 4
      %v3048 = vrot.slane %v2911, 5
      %v3049 = vsel %vm3037, %v3047, %v3048
      %v3050 = vrot.slane %v2912, 5
      %v3051 = vrot.slane %v3050, 4
      %v3052 = vrot.slane %v2913, 5
      %v3053 = vsel %vm3037, %v3051, %v3052
      %v3054 = vrot.slane %v2914, 5
      %v3055 = vrot.slane %v3054, 4
      %v3056 = vrot.slane %v2915, 5
      %v3057 = vsel %vm3037, %v3055, %v3056
      %v3058 = vrot.slane %v2916, 5
      %v3059 = vrot.slane %v3058, 4
      %v3060 = vrot.slane %v2917, 5
      %v3061 = vsel %vm3037, %v3059, %v3060
      %v3062 = vrot.slane %v2918, 5
      %v3063 = vrot.slane %v3062, 4
      %v3064 = vrot.slane %v2919, 5
      %v3065 = vsel %vm3037, %v3063, %v3064
      %v3066 = vrot.slane %v2920, 5
      %v3067 = vrot.slane %v3066, 4
      %v3068 = vrot.slane %v2921, 5
      %v3069 = vsel %vm3037, %v3067, %v3068
      %v3071 = vunpack.c.l.b16 %v2881
      %v3072 = vunpack.c.h.b16 %v2881
      %v3073 = vpack.c.b16 %v3071, %v3071
      %v3074 = vpack.c.b16 %v3072, %v3072
      %v3076 = vshrl.u32 %v3073, 16
      %v3078 = vrot.slane %v3076, 4
      %v3079 = vshll.u32 %v3073, 16
      %v3081 = vrot.slane %v3079, 5
      %v3082 = vor.u32 %v3078, %v3081
      %v3083 = vrot.slane %v3082, 4
      %v3085 = vshll.u32 %v3074, 16
      %v3087 = vrot.slane %v3085, 5
      %v3088 = vsel %vm2923, %v3083, %v3087
      %v3089 = vrot.slane %v3073, 5
      %v3090 = vrot.slane %v3089, 4
      %v3091 = vrot.slane %v3074, 5
      %v3092 = vsel %vm3037, %v3090, %v3091
      %v3093 = vpack.c.b16 %v2892, %v2890
      %v3094 = vpack.c.b16 %v2896, %v2894
      %v3095 = vpack.c.b16 %v2900, %v2898
      %v3096 = vpack.c.b16 %v2904, %v2902
      %v3097 = vunpack.c.l.b16 %v2937
      %v3098 = vunpack.c.l.b16 %v2951
      %v3099 = vunpack.c.l.b16 %v2965
      %v3100 = vunpack.c.l.b16 %v2979
      %v3101 = vunpack.c.l.b16 %v2993
      %v3102 = vunpack.c.l.b16 %v3007
      %v3103 = vunpack.c.l.b16 %v3021
      %v3104 = vunpack.c.l.b16 %v3035
      %v3105 = vpack.c.b16 %v3098, %v3097
      %v3106 = vpack.c.b16 %v3100, %v3099
      %v3107 = vpack.c.b16 %v3102, %v3101
      %v3108 = vpack.c.b16 %v3104, %v3103
      %3109 = vrot.lane.b32.xlu0 %v3105, 8
      %v3110 = vpop.permute.xlu0 %3109
      %3111 = vrot.lane.b32.xlu0 %v3106, 8
      %v3112 = vpop.permute.xlu0 %3111
      %3113 = vrot.lane.b32.xlu0 %v3107, 8
      %v3114 = vpop.permute.xlu0 %3113
      %3115 = vrot.lane.b32.xlu0 %v3108, 8
      %v3116 = vpop.permute.xlu0 %3115
      %v3117 = vunpack.c.l.b16 %v3041
      %v3118 = vunpack.c.l.b16 %v3045
      %v3119 = vunpack.c.l.b16 %v3049
      %v3120 = vunpack.c.l.b16 %v3053
      %v3121 = vunpack.c.l.b16 %v3057
      %v3122 = vunpack.c.l.b16 %v3061
      %v3123 = vunpack.c.l.b16 %v3065
      %v3124 = vunpack.c.l.b16 %v3069
      %v3125 = vpack.c.b16 %v3118, %v3117
      %v3126 = vpack.c.b16 %v3120, %v3119
      %v3127 = vpack.c.b16 %v3122, %v3121
      %v3128 = vpack.c.b16 %v3124, %v3123
      %3129 = vrot.lane.b32.xlu0 %v3125, 16
      %v3130 = vpop.permute.xlu0 %3129
      %3131 = vrot.lane.b32.xlu0 %v3126, 16
      %v3132 = vpop.permute.xlu0 %3131
      %3133 = vrot.lane.b32.xlu0 %v3127, 16
      %v3134 = vpop.permute.xlu0 %3133
      %3135 = vrot.lane.b32.xlu0 %v3128, 16
      %v3136 = vpop.permute.xlu0 %3135
      %v3137 = vpack.c.b16 %v2894, %v2892
      %v3138 = vpack.c.b16 %v2898, %v2896
      %v3139 = vpack.c.b16 %v2902, %v2900
      %v3140 = vpack.c.b16 %v3071, %v2904
      %3141 = vrot.lane.b32.xlu0 %v3137, 24
      %v3142 = vpop.permute.xlu0 %3141
      %3143 = vrot.lane.b32.xlu0 %v3138, 24
      %v3144 = vpop.permute.xlu0 %3143
      %3145 = vrot.lane.b32.xlu0 %v3139, 24
      %v3146 = vpop.permute.xlu0 %3145
      %3147 = vrot.lane.b32.xlu0 %v3140, 24
      %v3148 = vpop.permute.xlu0 %3147
      %v3149 = vunpack.c.l.b16 %v3088
      %v3150 = vpack.c.b16 %v3099, %v3098
      %v3151 = vpack.c.b16 %v3101, %v3100
      %v3152 = vpack.c.b16 %v3103, %v3102
      %v3153 = vpack.c.b16 %v3149, %v3104
      %3154 = vrot.lane.b32.xlu0 %v3150, 32
      %v3155 = vpop.permute.xlu0 %3154
      %3156 = vrot.lane.b32.xlu0 %v3151, 32
      %v3157 = vpop.permute.xlu0 %3156
      %3158 = vrot.lane.b32.xlu0 %v3152, 32
      %v3159 = vpop.permute.xlu0 %3158
      %3160 = vrot.lane.b32.xlu0 %v3153, 32
      %v3161 = vpop.permute.xlu0 %3160
      %v3162 = vunpack.c.l.b16 %v3092
      %v3163 = vpack.c.b16 %v3119, %v3118
      %v3164 = vpack.c.b16 %v3121, %v3120
      %v3165 = vpack.c.b16 %v3123, %v3122
      %v3166 = vpack.c.b16 %v3162, %v3124
      %3167 = vrot.lane.b32.xlu0 %v3163, 40
      %v3168 = vpop.permute.xlu0 %3167
      %3169 = vrot.lane.b32.xlu0 %v3164, 40
      %v3170 = vpop.permute.xlu0 %3169
      %3171 = vrot.lane.b32.xlu0 %v3165, 40
      %v3172 = vpop.permute.xlu0 %3171
      %3173 = vrot.lane.b32.xlu0 %v3166, 40
      %v3174 = vpop.permute.xlu0 %3173
      %v3175 = vpack.c.b16 %v2890, %v3071
      %3176 = vrot.lane.b32.xlu0 %v3094, 48
      %v3177 = vpop.permute.xlu0 %3176
      %3178 = vrot.lane.b32.xlu0 %v3095, 48
      %v3179 = vpop.permute.xlu0 %3178
      %3180 = vrot.lane.b32.xlu0 %v3096, 48
      %v3181 = vpop.permute.xlu0 %3180
      %3182 = vrot.lane.b32.xlu0 %v3175, 48
      %v3183 = vpop.permute.xlu0 %3182
      %v3184 = vpack.c.b16 %v3097, %v3149
      %3185 = vrot.lane.b32.xlu0 %v3106, 56
      %v3186 = vpop.permute.xlu0 %3185
      %3187 = vrot.lane.b32.xlu0 %v3107, 56
      %v3188 = vpop.permute.xlu0 %3187
      %3189 = vrot.lane.b32.xlu0 %v3108, 56
      %v3190 = vpop.permute.xlu0 %3189
      %3191 = vrot.lane.b32.xlu0 %v3184, 56
      %v3192 = vpop.permute.xlu0 %3191
      %v3193 = vpack.c.b16 %v3117, %v3162
      %3194 = vrot.lane.b32.xlu0 %v3126, 64
      %v3195 = vpop.permute.xlu0 %3194
      %3196 = vrot.lane.b32.xlu0 %v3127, 64
      %v3197 = vpop.permute.xlu0 %3196
      %3198 = vrot.lane.b32.xlu0 %v3128, 64
      %v3199 = vpop.permute.xlu0 %3198
      %3200 = vrot.lane.b32.xlu0 %v3193, 64
      %v3201 = vpop.permute.xlu0 %3200
      %vm3202 = vcmask 64512
      %v3205 = vsel %vm3202, %v3093, %v3110
      %v3208 = vsel %vm3202, %v3094, %v3112
      %v3211 = vsel %vm3202, %v3095, %v3114
      %v3214 = vsel %vm3202, %v3096, %v3116
      %vm3215 = vcmask 130048
      %v3217 = vsel %vm3215, %v3205, %v3130
      %v3219 = vsel %vm3215, %v3208, %v3132
      %v3221 = vsel %vm3215, %v3211, %v3134
      %v3223 = vsel %vm3215, %v3214, %v3136
      %v3225 = vsel %vm2046, %v3217, %v3142
      %v3227 = vsel %vm2046, %v3219, %v3144
      %v3229 = vsel %vm2046, %v3221, %v3146
      %v3231 = vsel %vm2046, %v3223, %v3148
      %vm3232 = vcmask 261120
      %v3234 = vsel %vm3232, %v3225, %v3155
      %v3236 = vsel %vm3232, %v3227, %v3157
      %v3238 = vsel %vm3232, %v3229, %v3159
      %v3240 = vsel %vm3232, %v3231, %v3161
      %vm3241 = vcmask 326656
      %v3243 = vsel %vm3241, %v3234, %v3168
      %v3245 = vsel %vm3241, %v3236, %v3170
      %v3247 = vsel %vm3241, %v3238, %v3172
      %v3249 = vsel %vm3241, %v3240, %v3174
      %vm3250 = vcmask 392192
      %v3252 = vsel %vm3250, %v3243, %v3177
      %v3254 = vsel %vm3250, %v3245, %v3179
      %v3256 = vsel %vm3250, %v3247, %v3181
      %v3258 = vsel %vm3250, %v3249, %v3183
      %vm3259 = vcmask 457728
      %v3261 = vsel %vm3259, %v3252, %v3186
      %v3263 = vsel %vm3259, %v3254, %v3188
      %v3265 = vsel %vm3259, %v3256, %v3190
      %v3267 = vsel %vm3259, %v3258, %v3192
      %vm3268 = vcmask 523264
      %v3270 = vsel %vm3268, %v3261, %v3195
      %v3272 = vsel %vm3268, %v3263, %v3197
      %v3274 = vsel %vm3268, %v3265, %v3199
      %v3276 = vsel %vm3268, %v3267, %v3201
      %v3286 = vunpack.c.l.b16 %v2787
      %v3287 = vunpack.c.l.b16 %v2788
      %v3288 = vunpack.c.l.b16 %v2789
      %v3289 = vunpack.c.l.b16 %v2790
      %v3290 = vunpack.c.l.b16 %v2791
      %v3291 = vunpack.c.l.b16 %v2792
      %v3292 = vunpack.c.l.b16 %v2793
      %v3293 = vunpack.c.l.b16 %v2794
      %v3294 = vunpack.c.l.b16 %v2795
      %v3295 = vpack.c.b16 %v3287, %v3286
      %v3296 = vpack.c.b16 %v3289, %v3288
      %v3297 = vpack.c.b16 %v3291, %v3290
      %v3298 = vpack.c.b16 %v3293, %v3292
      %v3299 = vpack.c.b16 %v3294, %v3294
      %vm3304 = vcmask 588800
      %v3305 = vsel %vm3304, %v3270, 0
      %v3307 = vsel %vm3304, %v3272, 0
      %v3309 = vsel %vm3304, %v3274, 0
      %v3311 = vsel %vm3304, %v3276, 0
      %vm3313 = vcmask 1043456
      %v3315 = vsel %vm3313, %v3299, 0
      %3317 = vmatprep.subr.bf16.mxu0 0
      %3318 = vmatpush1.bf16.msra.mxu0 %v3295
      %3319 = vmatprep.subr.bf16.mxu0 0
      %3320 = vmatpush1.bf16.msra.mxu0 %v3296
      %3321 = vmatprep.subr.bf16.mxu0 0
      %3322 = vmatpush1.bf16.msra.mxu0 %v3297
      %3323 = vmatprep.subr.bf16.mxu0 0
      %3324 = vmatpush1.bf16.msra.mxu0 %v3298
      %3325 = vmatprep.subr.bf16.mxu0 0
      %3326 = vmatpush1.bf16.msra.mxu0 %v3315
      %3327 = vmatprep.subr.bf16.mxu0 0
      %3328 = vmatpush1.bf16.msra.mxu0 0
      %3329 = vmatprep.subr.bf16.mxu0 0
      %3330 = vmatpush1.bf16.msra.mxu0 0
      %3331 = vmatprep.subr.bf16.mxu0 0
      %3332 = vmatpush1.bf16.msra.mxu0 0
      %3333 = vmatprep.subr.bf16.mxu0 0
      %3334 = vmatpush1.bf16.msra.mxu0 0
      %3335 = vmatprep.subr.bf16.mxu0 0
      %3336 = vmatpush1.bf16.msra.mxu0 0
      %3337 = vmatprep.subr.bf16.mxu0 0
      %3338 = vmatpush1.bf16.msra.mxu0 0
      %3339 = vmatprep.subr.bf16.mxu0 0
      %3340 = vmatpush1.bf16.msra.mxu0 0
      %3341 = vmatprep.subr.bf16.mxu0 0
      %3342 = vmatpush1.bf16.msra.mxu0 0
      %3343 = vmatprep.subr.bf16.mxu0 0
      %3344 = vmatpush1.bf16.msra.mxu0 0
      %3345 = vmatprep.subr.bf16.mxu0 0
      %3346 = vmatpush1.bf16.msra.mxu0 0
      %3347 = vmatprep.subr.bf16.mxu0 0
      %3348 = vmatpush1.bf16.msra.mxu0 0
      %3349 = vmatprep.mubr.bf16.mxu0 0
      %3350 = vmatmul.mubr.bf16.gmra.mrb[0].mxu0 %v3305
      %v3351 = vpop.f32.mrb[0].mxu0
      %v3352 = vadd.f32 0.0, %v3351
      %v3353 = vpop.f32.mrb[0].mxu0
      %v3354 = vpop.f32.mrb[0].mxu0
      %v3355 = vadd.f32 0.0, %v3354
      %v3356 = vpop.f32.mrb[0].mxu0
      %3357 = vmatprep.mubr.bf16.mxu0 0
      %3358 = vmatmul.mubr.bf16.gmra.mrb[0].mxu0 %v3307
      %v3359 = vpop.f32.mrb[0].mxu0
      %v3360 = vadd.f32 0.0, %v3359
      %v3361 = vpop.f32.mrb[0].mxu0
      %v3362 = vpop.f32.mrb[0].mxu0
      %v3363 = vadd.f32 0.0, %v3362
      %v3364 = vpop.f32.mrb[0].mxu0
      %3365 = vmatprep.mubr.bf16.mxu0 0
      %3366 = vmatmul.mubr.bf16.gmra.mrb[0].mxu0 %v3309
      %v3367 = vpop.f32.mrb[0].mxu0
      %v3368 = vadd.f32 0.0, %v3367
      %v3369 = vpop.f32.mrb[0].mxu0
      %v3370 = vpop.f32.mrb[0].mxu0
      %v3371 = vadd.f32 0.0, %v3370
      %v3372 = vpop.f32.mrb[0].mxu0
      %3373 = vmatprep.mubr.bf16.mxu0 0
      %3374 = vmatmul.mubr.bf16.gmra.mrb[0].mxu0 %v3311
      %v3375 = vpop.f32.mrb[0].mxu0
      %v3376 = vadd.f32 0.0, %v3375
      %v3377 = vpop.f32.mrb[0].mxu0
      %v3378 = vpop.f32.mrb[0].mxu0
      %v3379 = vadd.f32 0.0, %v3378
      %v3380 = vpop.f32.mrb[0].mxu0
      %3381 = vdwg.mxu0
      %v3383 = vlaneseq
      %v3384 = vshrl.u32 %v3383, 7
      %v3385 = vsub.s32 0, %v3384
      %v3386 = vrot.slane %v2796, %v3385
      %v3388 = vmul.f32 %v3352, %v3386
      %v3389 = vmul.f32 %v3355, %v3386
      %v3390 = vmul.f32 %v3360, %v3386
      %v3391 = vmul.f32 %v3363, %v3386
      %v3392 = vmul.f32 %v3368, %v3386
      %v3393 = vmul.f32 %v3371, %v3386
      %v3394 = vmul.f32 %v3376, %v3386
      %v3395 = vmul.f32 %v3379, %v3386
      %v3397 = vlaneseq
      %v3398 = vshrl.u32 %v3397, 7
      %v3399 = vsub.s32 0, %v3398
      %v3400 = vrot.slane %v2797, %v3399
      %v3402 = vadd.f32 %v3388, %v3400
      %v3403 = vadd.f32 %v3389, %v3400
      %v3404 = vadd.f32 %v3390, %v3400
      %v3405 = vadd.f32 %v3391, %v3400
      %v3406 = vadd.f32 %v3392, %v3400
      %v3407 = vadd.f32 %v3393, %v3400
      %v3408 = vadd.f32 %v3394, %v3400
      %v3409 = vadd.f32 %v3395, %v3400
      %vm3410 = vcmp.ge.f32.partialorder %v3402, 0.0
      %vm3411 = vcmp.ge.f32.partialorder %v3403, 0.0
      %vm3412 = vcmp.ge.f32.partialorder %v3404, 0.0
      %vm3413 = vcmp.ge.f32.partialorder %v3405, 0.0
      %vm3414 = vcmp.ge.f32.partialorder %v3406, 0.0
      %vm3415 = vcmp.ge.f32.partialorder %v3407, 0.0
      %vm3416 = vcmp.ge.f32.partialorder %v3408, 0.0
      %vm3417 = vcmp.ge.f32.partialorder %v3409, 0.0
      %v3418 = vmul.f32 %v3402, 0.01
      %v3419 = vmul.f32 %v3403, 0.01
      %v3420 = vmul.f32 %v3404, 0.01
      %v3421 = vmul.f32 %v3405, 0.01
      %v3422 = vmul.f32 %v3406, 0.01
      %v3423 = vmul.f32 %v3407, 0.01
      %v3424 = vmul.f32 %v3408, 0.01
      %v3425 = vmul.f32 %v3409, 0.01
      %v3426 = vsel %vm3410, %v3402, %v3418
      %v3427 = vsel %vm3411, %v3403, %v3419
      %v3428 = vsel %vm3412, %v3404, %v3420
      %v3429 = vsel %vm3413, %v3405, %v3421
      %v3430 = vsel %vm3414, %v3406, %v3422
      %v3431 = vsel %vm3415, %v3407, %v3423
      %v3432 = vsel %vm3416, %v3408, %v3424
      %v3433 = vsel %vm3417, %v3409, %v3425
      %v3434 = vpack.c.bf16 %v3426, %v3426
      %v3435 = vpack.c.bf16 %v3427, %v3427
      %v3436 = vpack.c.bf16 %v3428, %v3428
      %v3437 = vpack.c.bf16 %v3429, %v3429
      %v3438 = vpack.c.bf16 %v3430, %v3430
      %v3439 = vpack.c.bf16 %v3431, %v3431
      %v3440 = vpack.c.bf16 %v3432, %v3432
      %v3441 = vpack.c.bf16 %v3433, %v3433
      %v3442 = vmax.bf16 %v3434, %v3435
      %v3443 = vmax.bf16 %v3436, %v3437
      %v3444 = vmax.bf16 %v3438, %v3439
      %v3445 = vmax.bf16 %v3440, %v3441
      %v3447 = vshrl.u32 %v3442, 16
      %v3450 = vshrl.u32 %v3443, 16
      %v3453 = vshrl.u32 %v3444, 16
      %v3456 = vshrl.u32 %v3445, 16
      %v3462 = vmax.bf16 %v3442, %v3447
      %v3463 = vmax.bf16 %v3443, %v3450
      %v3464 = vmax.bf16 %v3444, %v3453
      %v3465 = vmax.bf16 %v3445, %v3456
      %v3467 = vshll.u32 %v3462, 16
      %v3469 = vrot.slane %v3467, 1
      %v3471 = vshll.u32 %v3463, 16
      %v3473 = vrot.slane %v3471, 1
      %v3475 = vshll.u32 %v3464, 16
      %v3477 = vrot.slane %v3475, 1
      %v3479 = vshll.u32 %v3465, 16
      %v3481 = vrot.slane %v3479, 1
      %v3490 = vrot.slane %v3462, 1
      %v3491 = vrot.slane %v3463, 1
      %v3492 = vrot.slane %v3464, 1
      %v3493 = vrot.slane %v3465, 1
      %v3494 = vrot.slane %v3467, 2
      %v3495 = vrot.slane %v3471, 2
      %v3496 = vrot.slane %v3475, 2
      %v3497 = vrot.slane %v3479, 2
      %v3502 = vsel %vm1233, %v3462, %v3469
      %v3503 = vsel %vm1233, %v3463, %v3473
      %v3504 = vsel %vm1233, %v3464, %v3477
      %v3505 = vsel %vm1233, %v3465, %v3481
      %v3508 = vsel %vm2655, %v3502, %v3490
      %v3512 = vsel %vm2655, %v3503, %v3491
      %v3516 = vsel %vm2655, %v3504, %v3492
      %v3520 = vsel %vm2655, %v3505, %v3493
      %v3522 = vsel %vm2690, %v3508, %v3494
      %v3523 = vsel %vm2690, %v3512, %v3495
      %v3524 = vsel %vm2690, %v3516, %v3496
      %v3525 = vsel %vm2690, %v3520, %v3497
      %v3526 = vld [vmem:[%s15] sm:$0xf]
      %v3527 = vld [vmem:[%s15 + $0x4] sm:$0xf]
      %v3528 = vld [vmem:[%s15 + $0x8] sm:$0xf]
      %v3529 = vld [vmem:[%s15 + $0xc] sm:$0xf]
      %v3530 = vld [vmem:[%s15 + $0x10] sm:$0xf]
      %v3531 = vld [vmem:[%s15 + $0x14] sm:$0xf]
      %v3532 = vld [vmem:[%s15 + $0x18] sm:$0xf]
      %v3533 = vld [vmem:[%s15 + $0x1c] sm:$0xf]
      %v3534 = vld [vmem:[%s15 + $0x20] sm:$0xf]
      %v3535 = vld [vmem:[%s15 + $0x24] sm:$0xf]
      %v3536 = vld [vmem:[%s15 + $0x28] sm:$0xf]
      %v3537 = vld [vmem:[%s15 + $0x2c] sm:$0xf]
      %v3538 = vld [vmem:[%s15 + $0x30] sm:$0xf]
      %v3539 = vld [vmem:[%s15 + $0x34] sm:$0xf]
      %v3540 = vld [vmem:[%s15 + $0x38] sm:$0xf]
      %v3541 = vld [vmem:[%s15 + $0x3c] sm:$0xf]
      %v3542 = vld [vmem:[%s15 + $0x40] sm:$0xf]
      %v3543 = vld [vmem:[%s15 + $0x44] sm:$0xf]
      %v3544 = vld [vmem:[%s17] sm:$0x1]
      %v3545 = vld [vmem:[%s19] sm:$0x1]
      %v3547 = vshrl.u32 %v3522, 16
      %v3549 = vrot.slane %v3547, 7
      %v3550 = vshll.u32 %v3522, 16
      %v3552 = vor.u32 %v3549, %v3550
      %v3554 = vshrl.u32 %v3523, 16
      %v3556 = vrot.slane %v3554, 7
      %v3557 = vshll.u32 %v3523, 16
      %v3559 = vor.u32 %v3556, %v3557
      %v3561 = vshrl.u32 %v3524, 16
      %v3563 = vrot.slane %v3561, 7
      %v3564 = vshll.u32 %v3524, 16
      %v3566 = vor.u32 %v3563, %v3564
      %v3568 = vshrl.u32 %v3525, 16
      %v3570 = vrot.slane %v3568, 7
      %v3571 = vshll.u32 %v3525, 16
      %v3573 = vor.u32 %v3570, %v3571
      %v3578 = vsel %vm1233, 0, %v3552
      %v3579 = vsel %vm1233, 0, %v3559
      %v3580 = vsel %vm1233, 0, %v3566
      %v3581 = vsel %vm1233, 0, %v3573
      %v3582 = vsel %vm2734, %v1234, 0
      %v3583 = vsel %vm2734, %v3578, 0
      %v3584 = vsel %vm2734, %v3579, 0
      %v3585 = vsel %vm2734, %v3580, 0
      %v3586 = vsel %vm2734, %v3581, 0
      %v3592 = vunpack.c.l.s4 1983009808
      %v3593 = vunpack.c.0.s8 %v3592
      %v3594 = vlaneseq
      %v3595 = vshrl.u32 %v3594, 7
      %v3596 = vsub.s32 %v3593, %v3595
      %v3597 = vrot.slane %v3582, %v3596
      %v3598 = vcombine.high %v3597, %v3597
      %v3600 = vunpack.c.l.s4 1983009808
      %v3601 = vunpack.c.0.s8 %v3600
      %v3602 = vlaneseq
      %v3603 = vshrl.u32 %v3602, 7
      %v3604 = vsub.s32 %v3601, %v3603
      %v3605 = vrot.slane %v3583, %v3604
      %v3606 = vcombine.high %v3605, %v3605
      %v3608 = vunpack.c.l.s4 1983009808
      %v3609 = vunpack.c.0.s8 %v3608
      %v3610 = vlaneseq
      %v3611 = vshrl.u32 %v3610, 7
      %v3612 = vsub.s32 %v3609, %v3611
      %v3613 = vrot.slane %v3584, %v3612
      %v3614 = vcombine.high %v3613, %v3613
      %v3616 = vunpack.c.l.s4 1983009808
      %v3617 = vunpack.c.0.s8 %v3616
      %v3618 = vlaneseq
      %v3619 = vshrl.u32 %v3618, 7
      %v3620 = vsub.s32 %v3617, %v3619
      %v3621 = vrot.slane %v3585, %v3620
      %v3622 = vcombine.high %v3621, %v3621
      %vm3623 = vsmask.f32 3336
      %vm3624 = vmor %vm2689, %vm3623
      %vm3625 = vsmask.f32 5392
      %vm3626 = vmor %vm3624, %vm3625
      %vm3627 = vsmask.f32 7448
      %vm3628 = vmor %vm3626, %vm3627
      %v3630 = vshrl.u32 %v3597, 16
      %v3632 = vrot.slane %v3630, 6
      %v3633 = vshll.u32 %v3597, 16
      %v3635 = vrot.slane %v3633, 7
      %v3636 = vor.u32 %v3632, %v3635
      %v3637 = vrot.slane %v3636, 2
      %v3639 = vshll.u32 %v3598, 16
      %v3641 = vrot.slane %v3639, 7
      %v3642 = vsel %vm3628, %v3637, %v3641
      %v3644 = vshrl.u32 %v3605, 16
      %v3646 = vrot.slane %v3644, 6
      %v3647 = vshll.u32 %v3605, 16
      %v3649 = vrot.slane %v3647, 7
      %v3650 = vor.u32 %v3646, %v3649
      %v3651 = vrot.slane %v3650, 2
      %v3653 = vshll.u32 %v3606, 16
      %v3655 = vrot.slane %v3653, 7
      %v3656 = vsel %vm3628, %v3651, %v3655
      %v3658 = vshrl.u32 %v3613, 16
      %v3660 = vrot.slane %v3658, 6
      %v3661 = vshll.u32 %v3613, 16
      %v3663 = vrot.slane %v3661, 7
      %v3664 = vor.u32 %v3660, %v3663
      %v3665 = vrot.slane %v3664, 2
      %v3667 = vshll.u32 %v3614, 16
      %v3669 = vrot.slane %v3667, 7
      %v3670 = vsel %vm3628, %v3665, %v3669
      %v3672 = vshrl.u32 %v3621, 16
      %v3674 = vrot.slane %v3672, 6
      %v3675 = vshll.u32 %v3621, 16
      %v3677 = vrot.slane %v3675, 7
      %v3678 = vor.u32 %v3674, %v3677
      %v3679 = vrot.slane %v3678, 2
      %v3681 = vshll.u32 %v3622, 16
      %v3683 = vrot.slane %v3681, 7
      %v3684 = vsel %vm3628, %v3679, %v3683
      %vm3685 = vcmask 1042434
      %vm3686 = vmor %vm1231, %vm3685
      %vm3687 = vcmask 1044484
      %vm3688 = vmor %vm3686, %vm3687
      %vm3689 = vcmask 1046534
      %vm3690 = vmor %vm3688, %vm3689
      %v3691 = vrot.slane %v3597, 7
      %v3692 = vrot.slane %v3691, 2
      %v3693 = vrot.slane %v3598, 7
      %v3694 = vsel %vm3690, %v3692, %v3693
      %v3695 = vrot.slane %v3605, 7
      %v3696 = vrot.slane %v3695, 2
      %v3697 = vrot.slane %v3606, 7
      %v3698 = vsel %vm3690, %v3696, %v3697
      %v3699 = vrot.slane %v3613, 7
      %v3700 = vrot.slane %v3699, 2
      %v3701 = vrot.slane %v3614, 7
      %v3702 = vsel %vm3690, %v3700, %v3701
      %v3703 = vrot.slane %v3621, 7
      %v3704 = vrot.slane %v3703, 2
      %v3705 = vrot.slane %v3622, 7
      %v3706 = vsel %vm3690, %v3704, %v3705
      %v3709 = vunpack.c.l.s4 1983009808
      %v3710 = vunpack.c.0.s8 %v3709
      %v3711 = vlaneseq
      %v3712 = vshrl.u32 %v3711, 7
      %v3713 = vsub.s32 %v3710, %v3712
      %v3714 = vrot.slane %v3586, %v3713
      %v3715 = vcombine.high %v3714, %v3714
      %v3717 = vshrl.u32 %v3714, 16
      %v3719 = vrot.slane %v3717, 6
      %v3720 = vshll.u32 %v3714, 16
      %v3722 = vrot.slane %v3720, 7
      %v3723 = vor.u32 %v3719, %v3722
      %v3724 = vrot.slane %v3723, 2
      %v3726 = vshll.u32 %v3715, 16
      %v3728 = vrot.slane %v3726, 7
      %v3729 = vsel %vm3628, %v3724, %v3728
      %v3730 = vrot.slane %v3714, 7
      %v3731 = vrot.slane %v3730, 2
      %v3732 = vrot.slane %v3715, 7
      %v3733 = vsel %vm3690, %v3731, %v3732
      %v3734 = vcombine.low %v3582, %v3583
      %v3735 = vcombine.low %v3584, %v3585
      %v3737 = vunpack.c.l.s4 1983009808
      %v3738 = vunpack.c.0.s8 %v3737
      %v3739 = vlaneseq
      %v3740 = vshrl.u32 %v3739, 7
      %v3741 = vsub.s32 %v3738, %v3740
      %v3742 = vrot.slane %v3734, %v3741
      %v3744 = vunpack.c.l.s4 1983009808
      %v3745 = vunpack.c.0.s8 %v3744
      %v3746 = vlaneseq
      %v3747 = vshrl.u32 %v3746, 7
      %v3748 = vsub.s32 %v3745, %v3747
      %v3749 = vrot.slane %v3735, %v3748
      %v3750 = vcombine.low %v3742, %v3749
      %v3751 = vcombine.low %v3642, %v3656
      %v3752 = vcombine.low %v3670, %v3684
      %v3754 = vunpack.c.l.s4 1983009808
      %v3755 = vunpack.c.0.s8 %v3754
      %v3756 = vlaneseq
      %v3757 = vshrl.u32 %v3756, 7
      %v3758 = vsub.s32 %v3755, %v3757
      %v3759 = vrot.slane %v3751, %v3758
      %v3761 = vunpack.c.l.s4 1983009808
      %v3762 = vunpack.c.0.s8 %v3761
      %v3763 = vlaneseq
      %v3764 = vshrl.u32 %v3763, 7
      %v3765 = vsub.s32 %v3762, %v3764
      %v3766 = vrot.slane %v3752, %v3765
      %v3767 = vcombine.low %v3759, %v3766
      %3768 = vrot.lane.b32.xlu0 %v3767, 16
      %v3769 = vpop.permute.xlu0 %3768
      %v3770 = vcombine.low %v3694, %v3698
      %v3771 = vcombine.low %v3702, %v3706
      %v3773 = vunpack.c.l.s4 1983009808
      %v3774 = vunpack.c.0.s8 %v3773
      %v3775 = vlaneseq
      %v3776 = vshrl.u32 %v3775, 7
      %v3777 = vsub.s32 %v3774, %v3776
      %v3778 = vrot.slane %v3770, %v3777
      %v3780 = vunpack.c.l.s4 1983009808
      %v3781 = vunpack.c.0.s8 %v3780
      %v3782 = vlaneseq
      %v3783 = vshrl.u32 %v3782, 7
      %v3784 = vsub.s32 %v3781, %v3783
      %v3785 = vrot.slane %v3771, %v3784
      %v3786 = vcombine.low %v3778, %v3785
      %3787 = vrot.lane.b32.xlu0 %v3786, 32
      %v3788 = vpop.permute.xlu0 %3787
      %v3789 = vcombine.low %v3583, %v3584
      %v3790 = vcombine.low %v3585, %v3586
      %v3792 = vunpack.c.l.s4 1983009808
      %v3793 = vunpack.c.0.s8 %v3792
      %v3794 = vlaneseq
      %v3795 = vshrl.u32 %v3794, 7
      %v3796 = vsub.s32 %v3793, %v3795
      %v3797 = vrot.slane %v3789, %v3796
      %v3799 = vunpack.c.l.s4 1983009808
      %v3800 = vunpack.c.0.s8 %v3799
      %v3801 = vlaneseq
      %v3802 = vshrl.u32 %v3801, 7
      %v3803 = vsub.s32 %v3800, %v3802
      %v3804 = vrot.slane %v3790, %v3803
      %v3805 = vcombine.low %v3797, %v3804
      %3806 = vrot.lane.b32.xlu0 %v3805, 48
      %v3807 = vpop.permute.xlu0 %3806
      %v3808 = vcombine.low %v3656, %v3670
      %v3809 = vcombine.low %v3684, %v3729
      %v3811 = vunpack.c.l.s4 1983009808
      %v3812 = vunpack.c.0.s8 %v3811
      %v3813 = vlaneseq
      %v3814 = vshrl.u32 %v3813, 7
      %v3815 = vsub.s32 %v3812, %v3814
      %v3816 = vrot.slane %v3808, %v3815
      %v3818 = vunpack.c.l.s4 1983009808
      %v3819 = vunpack.c.0.s8 %v3818
      %v3820 = vlaneseq
      %v3821 = vshrl.u32 %v3820, 7
      %v3822 = vsub.s32 %v3819, %v3821
      %v3823 = vrot.slane %v3809, %v3822
      %v3824 = vcombine.low %v3816, %v3823
      %3825 = vrot.lane.b32.xlu0 %v3824, 64
      %v3826 = vpop.permute.xlu0 %3825
      %v3827 = vcombine.low %v3698, %v3702
      %v3828 = vcombine.low %v3706, %v3733
      %v3830 = vunpack.c.l.s4 1983009808
      %v3831 = vunpack.c.0.s8 %v3830
      %v3832 = vlaneseq
      %v3833 = vshrl.u32 %v3832, 7
      %v3834 = vsub.s32 %v3831, %v3833
      %v3835 = vrot.slane %v3827, %v3834
      %v3837 = vunpack.c.l.s4 1983009808
      %v3838 = vunpack.c.0.s8 %v3837
      %v3839 = vlaneseq
      %v3840 = vshrl.u32 %v3839, 7
      %v3841 = vsub.s32 %v3838, %v3840
      %v3842 = vrot.slane %v3828, %v3841
      %v3843 = vcombine.low %v3835, %v3842
      %3844 = vrot.lane.b32.xlu0 %v3843, 80
      %v3845 = vpop.permute.xlu0 %3844
      %v3846 = vcombine.low %v3586, %v3582
      %v3848 = vunpack.c.l.s4 1983009808
      %v3849 = vunpack.c.0.s8 %v3848
      %v3850 = vlaneseq
      %v3851 = vshrl.u32 %v3850, 7
      %v3852 = vsub.s32 %v3849, %v3851
      %v3853 = vrot.slane %v3846, %v3852
      %v3854 = vcombine.low %v3749, %v3853
      %3855 = vrot.lane.b32.xlu0 %v3854, 96
      %v3856 = vpop.permute.xlu0 %3855
      %v3857 = vcombine.low %v3729, %v3642
      %v3859 = vunpack.c.l.s4 1983009808
      %v3860 = vunpack.c.0.s8 %v3859
      %v3861 = vlaneseq
      %v3862 = vshrl.u32 %v3861, 7
      %v3863 = vsub.s32 %v3860, %v3862
      %v3864 = vrot.slane %v3857, %v3863
      %v3865 = vcombine.low %v3766, %v3864
      %3866 = vrot.lane.b32.xlu0 %v3865, 112
      %v3867 = vpop.permute.xlu0 %3866
      %v3868 = vcombine.low %v3733, %v3694
      %v3870 = vunpack.c.l.s4 1983009808
      %v3871 = vunpack.c.0.s8 %v3870
      %v3872 = vlaneseq
      %v3873 = vshrl.u32 %v3872, 7
      %v3874 = vsub.s32 %v3871, %v3873
      %v3875 = vrot.slane %v3868, %v3874
      %v3876 = vcombine.low %v3785, %v3875
      %v3879 = vsel %vm3215, %v3750, %v3769
      %v3881 = vsel %vm3232, %v3879, %v3788
      %v3883 = vsel %vm3250, %v3881, %v3807
      %v3885 = vsel %vm3268, %v3883, %v3826
      %vm3886 = vcmask 654336
      %v3888 = vsel %vm3886, %v3885, %v3845
      %vm3889 = vcmask 785408
      %v3891 = vsel %vm3889, %v3888, %v3856
      %vm3892 = vcmask 916480
      %v3894 = vsel %vm3892, %v3891, %v3867
      %v3914 = vunpack.c.l.b16 %v3526
      %v3915 = vunpack.c.l.b16 %v3527
      %v3916 = vunpack.c.l.b16 %v3528
      %v3917 = vunpack.c.l.b16 %v3529
      %v3918 = vunpack.c.l.b16 %v3530
      %v3919 = vunpack.c.l.b16 %v3531
      %v3920 = vunpack.c.l.b16 %v3532
      %v3921 = vunpack.c.l.b16 %v3533
      %v3922 = vunpack.c.l.b16 %v3534
      %v3923 = vunpack.c.l.b16 %v3535
      %v3924 = vunpack.c.l.b16 %v3536
      %v3925 = vunpack.c.l.b16 %v3537
      %v3926 = vunpack.c.l.b16 %v3538
      %v3927 = vunpack.c.l.b16 %v3539
      %v3928 = vunpack.c.l.b16 %v3540
      %v3929 = vunpack.c.l.b16 %v3541
      %v3930 = vunpack.c.l.b16 %v3542
      %v3931 = vunpack.c.l.b16 %v3543
      %v3932 = vpack.c.b16 %v3915, %v3914
      %v3933 = vpack.c.b16 %v3917, %v3916
      %v3934 = vpack.c.b16 %v3919, %v3918
      %v3935 = vpack.c.b16 %v3921, %v3920
      %v3936 = vpack.c.b16 %v3923, %v3922
      %v3937 = vpack.c.b16 %v3925, %v3924
      %v3938 = vpack.c.b16 %v3927, %v3926
      %v3939 = vpack.c.b16 %v3929, %v3928
      %v3940 = vpack.c.b16 %v3931, %v3930
      %v3951 = vsel %vm3215, %v3876, 0
      %3953 = vmatprep.subr.bf16.mxu0 0
      %3954 = vmatpush1.bf16.msra.mxu0 %v3932
      %3955 = vmatprep.subr.bf16.mxu0 0
      %3956 = vmatpush1.bf16.msra.mxu0 %v3933
      %3957 = vmatprep.subr.bf16.mxu0 0
      %3958 = vmatpush1.bf16.msra.mxu0 %v3934
      %3959 = vmatprep.subr.bf16.mxu0 0
      %3960 = vmatpush1.bf16.msra.mxu0 %v3935
      %3961 = vmatprep.subr.bf16.mxu0 0
      %3962 = vmatpush1.bf16.msra.mxu0 %v3936
      %3963 = vmatprep.subr.bf16.mxu0 0
      %3964 = vmatpush1.bf16.msra.mxu0 %v3937
      %3965 = vmatprep.subr.bf16.mxu0 0
      %3966 = vmatpush1.bf16.msra.mxu0 %v3938
      %3967 = vmatprep.subr.bf16.mxu0 0
      %3968 = vmatpush1.bf16.msra.mxu0 %v3939
      %3969 = vmatprep.subr.bf16.mxu0 0
      %3970 = vmatpush1.bf16.msra.mxu0 %v3940
      %3971 = vmatprep.subr.bf16.mxu0 0
      %3972 = vmatpush1.bf16.msra.mxu0 0
      %3973 = vmatprep.subr.bf16.mxu0 0
      %3974 = vmatpush1.bf16.msra.mxu0 0
      %3975 = vmatprep.subr.bf16.mxu0 0
      %3976 = vmatpush1.bf16.msra.mxu0 0
      %3977 = vmatprep.subr.bf16.mxu0 0
      %3978 = vmatpush1.bf16.msra.mxu0 0
      %3979 = vmatprep.subr.bf16.mxu0 0
      %3980 = vmatpush1.bf16.msra.mxu0 0
      %3981 = vmatprep.subr.bf16.mxu0 0
      %3982 = vmatpush1.bf16.msra.mxu0 0
      %3983 = vmatprep.subr.bf16.mxu0 0
      %3984 = vmatpush1.bf16.msra.mxu0 0
      %3985 = vmatprep.mubr.bf16.mxu0 %v3951
      %3986 = vmatmul.mubr.bf16.gmra.mrb[0].mxu0 %v3894
      %v3987 = vpop.f32.mrb[0].mxu0
      %v3988 = vadd.f32 0.0, %v3987
      %v3989 = vpop.f32.mrb[0].mxu0
      %v3990 = vpop.f32.mrb[0].mxu0
      %v3991 = vadd.f32 0.0, %v3990
      %v3992 = vpop.f32.mrb[0].mxu0
      %3993 = vdwg.mxu0
      %v3995 = vlaneseq
      %v3996 = vshrl.u32 %v3995, 7
      %v3997 = vsub.s32 0, %v3996
      %v3998 = vrot.slane %v3544, %v3997
      %v4000 = vmul.f32 %v3988, %v3998
      %v4001 = vmul.f32 %v3991, %v3998
      %v4003 = vlaneseq
      %v4004 = vshrl.u32 %v4003, 7
      %v4005 = vsub.s32 0, %v4004
      %v4006 = vrot.slane %v3545, %v4005
      %v4008 = vadd.f32 %v4000, %v4006
      %v4009 = vadd.f32 %v4001, %v4006
      %vm4010 = vcmp.ge.f32.partialorder %v4008, 0.0
      %vm4011 = vcmp.ge.f32.partialorder %v4009, 0.0
      %v4012 = vmul.f32 %v4008, 0.01
      %v4013 = vmul.f32 %v4009, 0.01
      %v4014 = vsel %vm4010, %v4008, %v4012
      %v4015 = vsel %vm4011, %v4009, %v4013
      %v4018 = vcombine.high %v4014, %v4014
      %v4019 = vcombine.high %v4015, %v4015
      %v4022 = vpack.c.bf16 %v4014, %v4014
      %v4023 = vpack.c.bf16 %v4018, %v4018
      %v4024 = vpack.c.bf16 %v4015, %v4015
      %v4025 = vpack.c.bf16 %v4019, %v4019
      %v4026 = vmax.bf16 %v4022, %v4023
      %v4027 = vmax.bf16 %v4024, %v4025
      %v4029 = vshrl.u32 %v4026, 16
      %v4032 = vshrl.u32 %v4027, 16
      %v4036 = vmax.bf16 %v4026, %v4029
      %v4037 = vmax.bf16 %v4027, %v4032
      %v4039 = vshll.u32 %v4036, 16
      %v4041 = vrot.slane %v4039, 1
      %v4043 = vshll.u32 %v4037, 16
      %v4045 = vrot.slane %v4043, 1
      %v4048 = vsel %vm1233, %v4036, %v4041
      %v4049 = vsel %vm1233, %v4037, %v4045
      %v4050 = vld [vmem:[%s21] sm:$0xf]
      %v4051 = vld [vmem:[%s21 + $0x4] sm:$0xf]
      %v4052 = vld [vmem:[%s21 + $0x8] sm:$0xf]
      %v4053 = vld [vmem:[%s21 + $0xc] sm:$0xf]
      %v4054 = vld [vmem:[%s21 + $0x10] sm:$0xf]
      %v4055 = vld [vmem:[%s21 + $0x14] sm:$0xf]
      %v4056 = vld [vmem:[%s21 + $0x18] sm:$0xf]
      %v4057 = vld [vmem:[%s21 + $0x1c] sm:$0xf]
      %v4058 = vld [vmem:[%s21 + $0x20] sm:$0xf]
      %v4059 = vld [vmem:[%s21 + $0x24] sm:$0xf]
      %v4060 = vld [vmem:[%s21 + $0x28] sm:$0xf]
      %v4061 = vld [vmem:[%s21 + $0x2c] sm:$0xf]
      %v4062 = vld [vmem:[%s21 + $0x30] sm:$0xf]
      %v4063 = vld [vmem:[%s21 + $0x34] sm:$0xf]
      %v4064 = vld [vmem:[%s21 + $0x38] sm:$0xf]
      %v4065 = vld [vmem:[%s21 + $0x3c] sm:$0xf]
      %v4066 = vld [vmem:[%s21 + $0x40] sm:$0xf]
      %v4067 = vld [vmem:[%s21 + $0x44] sm:$0xf]
      %v4068 = vld [vmem:[%s21 + $0x48] sm:$0xf]
      %v4069 = vld [vmem:[%s21 + $0x4c] sm:$0xf]
      %v4070 = vld [vmem:[%s21 + $0x50] sm:$0xf]
      %v4071 = vld [vmem:[%s21 + $0x54] sm:$0xf]
      %v4072 = vld [vmem:[%s21 + $0x58] sm:$0xf]
      %v4073 = vld [vmem:[%s21 + $0x5c] sm:$0xf]
      %v4074 = vld [vmem:[%s21 + $0x60] sm:$0xf]
      %v4075 = vld [vmem:[%s21 + $0x64] sm:$0xf]
      %v4076 = vld [vmem:[%s21 + $0x68] sm:$0xf]
      %v4077 = vld [vmem:[%s21 + $0x6c] sm:$0xf]
      %v4078 = vld [vmem:[%s21 + $0x70] sm:$0xf]
      %v4079 = vld [vmem:[%s21 + $0x74] sm:$0xf]
      %v4080 = vld [vmem:[%s21 + $0x78] sm:$0xf]
      %v4081 = vld [vmem:[%s21 + $0x7c] sm:$0xf]
      %v4082 = vld [vmem:[%s21 + $0x80] sm:$0xf]
      %v4083 = vld [vmem:[%s21 + $0x84] sm:$0xf]
      %v4084 = vld [vmem:[%s21 + $0x88] sm:$0xf]
      %v4085 = vld [vmem:[%s21 + $0x8c] sm:$0xf]
      %v4086 = vld [vmem:[%s23] sm:$0x1]
      %v4087 = vld [vmem:[%s25] sm:$0x1]
      %v4089 = vshrl.u32 %v4048, 16
      %v4091 = vrot.slane %v4089, 7
      %v4092 = vshll.u32 %v4048, 16
      %v4094 = vor.u32 %v4091, %v4092
      %v4096 = vshrl.u32 %v4049, 16
      %v4098 = vrot.slane %v4096, 7
      %v4099 = vshll.u32 %v4049, 16
      %v4101 = vor.u32 %v4098, %v4099
      %v4104 = vsel %vm1233, 0, %v4094
      %v4105 = vsel %vm1233, 0, %v4101
      %v4106 = vsel %vm2690, %v1234, 0
      %v4107 = vsel %vm2690, %v4104, 0
      %v4108 = vsel %vm2690, %v4105, 0
      %v4112 = vunpack.c.l.s4 1966171168
      %v4113 = vunpack.c.0.s8 %v4112
      %v4114 = vlaneseq
      %v4115 = vshrl.u32 %v4114, 7
      %v4116 = vsub.s32 %v4113, %v4115
      %v4117 = vrot.slane %v4106, %v4116
      %v4118 = vcombine.high %v4117, %v4117
      %v4120 = vunpack.c.l.s4 1966171168
      %v4121 = vunpack.c.0.s8 %v4120
      %v4122 = vlaneseq
      %v4123 = vshrl.u32 %v4122, 7
      %v4124 = vsub.s32 %v4121, %v4123
      %v4125 = vrot.slane %v4117, %v4124
      %v4127 = vunpack.c.l.s4 1966171168
      %v4128 = vunpack.c.0.s8 %v4127
      %v4129 = vlaneseq
      %v4130 = vshrl.u32 %v4129, 7
      %v4131 = vsub.s32 %v4128, %v4130
      %v4132 = vrot.slane %v4118, %v4131
      %v4134 = vunpack.c.l.s4 1966171168
      %v4135 = vunpack.c.0.s8 %v4134
      %v4136 = vlaneseq
      %v4137 = vshrl.u32 %v4136, 7
      %v4138 = vsub.s32 %v4135, %v4137
      %v4139 = vrot.slane %v4107, %v4138
      %v4140 = vcombine.high %v4139, %v4139
      %v4142 = vunpack.c.l.s4 1966171168
      %v4143 = vunpack.c.0.s8 %v4142
      %v4144 = vlaneseq
      %v4145 = vshrl.u32 %v4144, 7
      %v4146 = vsub.s32 %v4143, %v4145
      %v4147 = vrot.slane %v4139, %v4146
      %v4149 = vunpack.c.l.s4 1966171168
      %v4150 = vunpack.c.0.s8 %v4149
      %v4151 = vlaneseq
      %v4152 = vshrl.u32 %v4151, 7
      %v4153 = vsub.s32 %v4150, %v4152
      %v4154 = vrot.slane %v4140, %v4153
      %vm4155 = vsmask.f32 1284
      %vm4156 = vmor %vm1232, %vm4155
      %vm4157 = vsmask.f32 2312
      %vm4158 = vmor %vm4156, %vm4157
      %vm4159 = vsmask.f32 3340
      %vm4160 = vmor %vm4158, %vm4159
      %vm4161 = vsmask.f32 4368
      %vm4162 = vmor %vm4160, %vm4161
      %vm4163 = vsmask.f32 5396
      %vm4164 = vmor %vm4162, %vm4163
      %vm4165 = vsmask.f32 6424
      %vm4166 = vmor %vm4164, %vm4165
      %vm4167 = vsmask.f32 7452
      %vm4168 = vmor %vm4166, %vm4167
      %v4170 = vshrl.u32 %v4125, 16
      %v4172 = vrot.slane %v4170, 7
      %v4173 = vrot.slane %v4172, 1
      %v4175 = vshll.u32 %v4132, 16
      %v4177 = vsel %vm4168, %v4173, %v4175
      %v4179 = vshrl.u32 %v4147, 16
      %v4181 = vrot.slane %v4179, 7
      %v4182 = vrot.slane %v4181, 1
      %v4184 = vshll.u32 %v4154, 16
      %v4186 = vsel %vm4168, %v4182, %v4184
      %v4189 = vunpack.c.l.s4 1966171168
      %v4190 = vunpack.c.0.s8 %v4189
      %v4191 = vlaneseq
      %v4192 = vshrl.u32 %v4191, 7
      %v4193 = vsub.s32 %v4190, %v4192
      %v4194 = vrot.slane %v4108, %v4193
      %v4195 = vcombine.high %v4194, %v4194
      %v4197 = vunpack.c.l.s4 1966171168
      %v4198 = vunpack.c.0.s8 %v4197
      %v4199 = vlaneseq
      %v4200 = vshrl.u32 %v4199, 7
      %v4201 = vsub.s32 %v4198, %v4200
      %v4202 = vrot.slane %v4194, %v4201
      %v4204 = vunpack.c.l.s4 1966171168
      %v4205 = vunpack.c.0.s8 %v4204
      %v4206 = vlaneseq
      %v4207 = vshrl.u32 %v4206, 7
      %v4208 = vsub.s32 %v4205, %v4207
      %v4209 = vrot.slane %v4195, %v4208
      %v4211 = vshrl.u32 %v4202, 16
      %v4213 = vrot.slane %v4211, 7
      %v4214 = vrot.slane %v4213, 1
      %v4216 = vshll.u32 %v4209, 16
      %v4218 = vsel %vm4168, %v4214, %v4216
      %v4219 = vcombine.low %v4106, %v4107
      %v4221 = vunpack.c.l.s4 1966171168
      %v4222 = vunpack.c.0.s8 %v4221
      %v4223 = vlaneseq
      %v4224 = vshrl.u32 %v4223, 7
      %v4225 = vsub.s32 %v4222, %v4224
      %v4226 = vrot.slane %v4219, %v4225
      %v4228 = vunpack.c.l.s4 1966171168
      %v4229 = vunpack.c.0.s8 %v4228
      %v4230 = vlaneseq
      %v4231 = vshrl.u32 %v4230, 7
      %v4232 = vsub.s32 %v4229, %v4231
      %v4233 = vrot.slane %v4226, %v4232
      %v4234 = vcombine.low %v4177, %v4186
      %v4236 = vunpack.c.l.s4 1966171168
      %v4237 = vunpack.c.0.s8 %v4236
      %v4238 = vlaneseq
      %v4239 = vshrl.u32 %v4238, 7
      %v4240 = vsub.s32 %v4237, %v4239
      %v4241 = vrot.slane %v4234, %v4240
      %v4243 = vunpack.c.l.s4 1966171168
      %v4244 = vunpack.c.0.s8 %v4243
      %v4245 = vlaneseq
      %v4246 = vshrl.u32 %v4245, 7
      %v4247 = vsub.s32 %v4244, %v4246
      %v4248 = vrot.slane %v4241, %v4247
      %4249 = vrot.lane.b32.xlu0 %v4248, 32
      %v4250 = vpop.permute.xlu0 %4249
      %v4251 = vcombine.low %v4132, %v4154
      %v4253 = vunpack.c.l.s4 1966171168
      %v4254 = vunpack.c.0.s8 %v4253
      %v4255 = vlaneseq
      %v4256 = vshrl.u32 %v4255, 7
      %v4257 = vsub.s32 %v4254, %v4256
      %v4258 = vrot.slane %v4251, %v4257
      %v4260 = vunpack.c.l.s4 1966171168
      %v4261 = vunpack.c.0.s8 %v4260
      %v4262 = vlaneseq
      %v4263 = vshrl.u32 %v4262, 7
      %v4264 = vsub.s32 %v4261, %v4263
      %v4265 = vrot.slane %v4258, %v4264
      %4266 = vrot.lane.b32.xlu0 %v4265, 64
      %v4267 = vpop.permute.xlu0 %4266
      %v4268 = vcombine.low %v4107, %v4108
      %v4270 = vunpack.c.l.s4 1966171168
      %v4271 = vunpack.c.0.s8 %v4270
      %v4272 = vlaneseq
      %v4273 = vshrl.u32 %v4272, 7
      %v4274 = vsub.s32 %v4271, %v4273
      %v4275 = vrot.slane %v4268, %v4274
      %v4277 = vunpack.c.l.s4 1966171168
      %v4278 = vunpack.c.0.s8 %v4277
      %v4279 = vlaneseq
      %v4280 = vshrl.u32 %v4279, 7
      %v4281 = vsub.s32 %v4278, %v4280
      %v4282 = vrot.slane %v4275, %v4281
      %4283 = vrot.lane.b32.xlu0 %v4282, 96
      %v4284 = vpop.permute.xlu0 %4283
      %v4285 = vcombine.low %v4186, %v4218
      %v4287 = vunpack.c.l.s4 1966171168
      %v4288 = vunpack.c.0.s8 %v4287
      %v4289 = vlaneseq
      %v4290 = vshrl.u32 %v4289, 7
      %v4291 = vsub.s32 %v4288, %v4290
      %v4292 = vrot.slane %v4285, %v4291
      %v4294 = vunpack.c.l.s4 1966171168
      %v4295 = vunpack.c.0.s8 %v4294
      %v4296 = vlaneseq
      %v4297 = vshrl.u32 %v4296, 7
      %v4298 = vsub.s32 %v4295, %v4297
      %v4299 = vrot.slane %v4292, %v4298
      %v4300 = vcombine.low %v4154, %v4209
      %v4302 = vunpack.c.l.s4 1966171168
      %v4303 = vunpack.c.0.s8 %v4302
      %v4304 = vlaneseq
      %v4305 = vshrl.u32 %v4304, 7
      %v4306 = vsub.s32 %v4303, %v4305
      %v4307 = vrot.slane %v4300, %v4306
      %v4309 = vunpack.c.l.s4 1966171168
      %v4310 = vunpack.c.0.s8 %v4309
      %v4311 = vlaneseq
      %v4312 = vshrl.u32 %v4311, 7
      %v4313 = vsub.s32 %v4310, %v4312
      %v4314 = vrot.slane %v4307, %v4313
      %4315 = vrot.lane.b32.xlu0 %v4314, 32
      %v4316 = vpop.permute.xlu0 %4315
      %v4317 = vcombine.low %v4108, %v4106
      %v4319 = vunpack.c.l.s4 1966171168
      %v4320 = vunpack.c.0.s8 %v4319
      %v4321 = vlaneseq
      %v4322 = vshrl.u32 %v4321, 7
      %v4323 = vsub.s32 %v4320, %v4322
      %v4324 = vrot.slane %v4317, %v4323
      %v4326 = vunpack.c.l.s4 1966171168
      %v4327 = vunpack.c.0.s8 %v4326
      %v4328 = vlaneseq
      %v4329 = vshrl.u32 %v4328, 7
      %v4330 = vsub.s32 %v4327, %v4329
      %v4331 = vrot.slane %v4324, %v4330
      %4332 = vrot.lane.b32.xlu0 %v4331, 64
      %v4333 = vpop.permute.xlu0 %4332
      %v4334 = vcombine.low %v4218, %v4177
      %v4336 = vunpack.c.l.s4 1966171168
      %v4337 = vunpack.c.0.s8 %v4336
      %v4338 = vlaneseq
      %v4339 = vshrl.u32 %v4338, 7
      %v4340 = vsub.s32 %v4337, %v4339
      %v4341 = vrot.slane %v4334, %v4340
      %v4343 = vunpack.c.l.s4 1966171168
      %v4344 = vunpack.c.0.s8 %v4343
      %v4345 = vlaneseq
      %v4346 = vshrl.u32 %v4345, 7
      %v4347 = vsub.s32 %v4344, %v4346
      %v4348 = vrot.slane %v4341, %v4347
      %4349 = vrot.lane.b32.xlu0 %v4348, 96
      %v4350 = vpop.permute.xlu0 %4349
      %v4351 = vcombine.low %v4209, %v4132
      %v4353 = vunpack.c.l.s4 1966171168
      %v4354 = vunpack.c.0.s8 %v4353
      %v4355 = vlaneseq
      %v4356 = vshrl.u32 %v4355, 7
      %v4357 = vsub.s32 %v4354, %v4356
      %v4358 = vrot.slane %v4351, %v4357
      %v4360 = vunpack.c.l.s4 1966171168
      %v4361 = vunpack.c.0.s8 %v4360
      %v4362 = vlaneseq
      %v4363 = vshrl.u32 %v4362, 7
      %v4364 = vsub.s32 %v4361, %v4363
      %v4365 = vrot.slane %v4358, %v4364
      %v4368 = vsel %vm3232, %v4233, %v4250
      %v4370 = vsel %vm3268, %v4368, %v4267
      %v4372 = vsel %vm3889, %v4370, %v4284
      %v4376 = vsel %vm3232, %v4299, %v4316
      %v4378 = vsel %vm3268, %v4376, %v4333
      %v4380 = vsel %vm3889, %v4378, %v4350
      %v4418 = vunpack.c.l.b16 %v4050
      %v4419 = vunpack.c.l.b16 %v4051
      %v4420 = vunpack.c.l.b16 %v4052
      %v4421 = vunpack.c.l.b16 %v4053
      %v4422 = vunpack.c.l.b16 %v4054
      %v4423 = vunpack.c.l.b16 %v4055
      %v4424 = vunpack.c.l.b16 %v4056
      %v4425 = vunpack.c.l.b16 %v4057
      %v4426 = vunpack.c.l.b16 %v4058
      %v4427 = vunpack.c.l.b16 %v4059
      %v4428 = vunpack.c.l.b16 %v4060
      %v4429 = vunpack.c.l.b16 %v4061
      %v4430 = vunpack.c.l.b16 %v4062
      %v4431 = vunpack.c.l.b16 %v4063
      %v4432 = vunpack.c.l.b16 %v4064
      %v4433 = vunpack.c.l.b16 %v4065
      %v4434 = vunpack.c.l.b16 %v4066
      %v4435 = vunpack.c.l.b16 %v4067
      %v4436 = vunpack.c.l.b16 %v4068
      %v4437 = vunpack.c.l.b16 %v4069
      %v4438 = vunpack.c.l.b16 %v4070
      %v4439 = vunpack.c.l.b16 %v4071
      %v4440 = vunpack.c.l.b16 %v4072
      %v4441 = vunpack.c.l.b16 %v4073
      %v4442 = vunpack.c.l.b16 %v4074
      %v4443 = vunpack.c.l.b16 %v4075
      %v4444 = vunpack.c.l.b16 %v4076
      %v4445 = vunpack.c.l.b16 %v4077
      %v4446 = vunpack.c.l.b16 %v4078
      %v4447 = vunpack.c.l.b16 %v4079
      %v4448 = vunpack.c.l.b16 %v4080
      %v4449 = vunpack.c.l.b16 %v4081
      %v4450 = vunpack.c.l.b16 %v4082
      %v4451 = vunpack.c.l.b16 %v4083
      %v4452 = vunpack.c.l.b16 %v4084
      %v4453 = vunpack.c.l.b16 %v4085
      %v4454 = vpack.c.b16 %v4419, %v4418
      %v4455 = vpack.c.b16 %v4421, %v4420
      %v4456 = vpack.c.b16 %v4423, %v4422
      %v4457 = vpack.c.b16 %v4425, %v4424
      %v4458 = vpack.c.b16 %v4427, %v4426
      %v4459 = vpack.c.b16 %v4429, %v4428
      %v4460 = vpack.c.b16 %v4431, %v4430
      %v4461 = vpack.c.b16 %v4433, %v4432
      %v4462 = vpack.c.b16 %v4435, %v4434
      %v4463 = vpack.c.b16 %v4437, %v4436
      %v4464 = vpack.c.b16 %v4439, %v4438
      %v4465 = vpack.c.b16 %v4441, %v4440
      %v4466 = vpack.c.b16 %v4443, %v4442
      %v4467 = vpack.c.b16 %v4445, %v4444
      %v4468 = vpack.c.b16 %v4447, %v4446
      %v4469 = vpack.c.b16 %v4449, %v4448
      %v4470 = vpack.c.b16 %v4451, %v4450
      %v4471 = vpack.c.b16 %v4453, %v4452
      %v4491 = vsel %vm3232, %v4365, 0
      %4493 = vmatprep.subr.bf16.mxu0 0
      %4494 = vmatpush1.bf16.msra.mxu0 %v4454
      %4495 = vmatprep.subr.bf16.mxu0 0
      %4496 = vmatpush1.bf16.msra.mxu0 %v4455
      %4497 = vmatprep.subr.bf16.mxu0 0
      %4498 = vmatpush1.bf16.msra.mxu0 %v4456
      %4499 = vmatprep.subr.bf16.mxu0 0
      %4500 = vmatpush1.bf16.msra.mxu0 %v4457
      %4501 = vmatprep.subr.bf16.mxu0 0
      %4502 = vmatpush1.bf16.msra.mxu0 %v4458
      %4503 = vmatprep.subr.bf16.mxu0 0
      %4504 = vmatpush1.bf16.msra.mxu0 %v4459
      %4505 = vmatprep.subr.bf16.mxu0 0
      %4506 = vmatpush1.bf16.msra.mxu0 %v4460
      %4507 = vmatprep.subr.bf16.mxu0 0
      %4508 = vmatpush1.bf16.msra.mxu0 %v4461
      %4509 = vmatprep.subr.bf16.mxu0 0
      %4510 = vmatpush1.bf16.msra.mxu0 %v4462
      %4511 = vmatprep.subr.bf16.mxu0 0
      %4512 = vmatpush1.bf16.msra.mxu0 %v4463
      %4513 = vmatprep.subr.bf16.mxu0 0
      %4514 = vmatpush1.bf16.msra.mxu0 %v4464
      %4515 = vmatprep.subr.bf16.mxu0 0
      %4516 = vmatpush1.bf16.msra.mxu0 %v4465
      %4517 = vmatprep.subr.bf16.mxu0 0
      %4518 = vmatpush1.bf16.msra.mxu0 %v4466
      %4519 = vmatprep.subr.bf16.mxu0 0
      %4520 = vmatpush1.bf16.msra.mxu0 %v4467
      %4521 = vmatprep.subr.bf16.mxu0 0
      %4522 = vmatpush1.bf16.msra.mxu0 %v4468
      %4523 = vmatprep.subr.bf16.mxu0 0
      %4524 = vmatpush1.bf16.msra.mxu0 %v4469
      %4525 = vmatprep.mubr.bf16.mxu0 %v4380
      %4526 = vmatmul.mubr.bf16.gmra.mrb[0].mxu0 %v4372
      %v4527 = vpop.f32.mrb[0].mxu0
      %v4528 = vadd.f32 0.0, %v4527
      %v4529 = vpop.f32.mrb[0].mxu0
      %v4530 = vpop.f32.mrb[0].mxu0
      %v4531 = vpop.f32.mrb[0].mxu0
      %4532 = vdwg.mxu0
      %4533 = vmatprep.subr.bf16.mxu0 0
      %4534 = vmatpush1.bf16.msra.mxu0 %v4470
      %4535 = vmatprep.subr.bf16.mxu0 0
      %4536 = vmatpush1.bf16.msra.mxu0 %v4471
      %4537 = vmatprep.subr.bf16.mxu0 0
      %4538 = vmatpush1.bf16.msra.mxu0 0
      %4539 = vmatprep.subr.bf16.mxu0 0
      %4540 = vmatpush1.bf16.msra.mxu0 0
      %4541 = vmatprep.subr.bf16.mxu0 0
      %4542 = vmatpush1.bf16.msra.mxu0 0
      %4543 = vmatprep.subr.bf16.mxu0 0
      %4544 = vmatpush1.bf16.msra.mxu0 0
      %4545 = vmatprep.subr.bf16.mxu0 0
      %4546 = vmatpush1.bf16.msra.mxu0 0
      %4547 = vmatprep.subr.bf16.mxu0 0
      %4548 = vmatpush1.bf16.msra.mxu0 0
      %4549 = vmatprep.subr.bf16.mxu0 0
      %4550 = vmatpush1.bf16.msra.mxu0 0
      %4551 = vmatprep.subr.bf16.mxu0 0
      %4552 = vmatpush1.bf16.msra.mxu0 0
      %4553 = vmatprep.subr.bf16.mxu0 0
      %4554 = vmatpush1.bf16.msra.mxu0 0
      %4555 = vmatprep.subr.bf16.mxu0 0
      %4556 = vmatpush1.bf16.msra.mxu0 0
      %4557 = vmatprep.subr.bf16.mxu0 0
      %4558 = vmatpush1.bf16.msra.mxu0 0
      %4559 = vmatprep.subr.bf16.mxu0 0
      %4560 = vmatpush1.bf16.msra.mxu0 0
      %4561 = vmatprep.subr.bf16.mxu0 0
      %4562 = vmatpush1.bf16.msra.mxu0 0
      %4563 = vmatprep.subr.bf16.mxu0 0
      %4564 = vmatpush1.bf16.msra.mxu0 0
      %4565 = vmatprep.mubr.bf16.mxu0 0
      %4566 = vmatmul.mubr.bf16.gmra.mrb[0].mxu0 %v4491
      %v4567 = vpop.f32.mrb[0].mxu0
      %v4568 = vadd.f32 %v4528, %v4567
      %v4569 = vpop.f32.mrb[0].mxu0
      %v4570 = vpop.f32.mrb[0].mxu0
      %v4571 = vpop.f32.mrb[0].mxu0
      %4572 = vdwg.mxu0
      %v4574 = vlaneseq
      %v4575 = vshrl.u32 %v4574, 7
      %v4576 = vsub.s32 0, %v4575
      %v4577 = vrot.slane %v4086, %v4576
      %v4579 = vmul.f32 %v4568, %v4577
      %v4581 = vlaneseq
      %v4582 = vshrl.u32 %v4581, 7
      %v4583 = vsub.s32 0, %v4582
      %v4584 = vrot.slane %v4087, %v4583
      %v4586 = vadd.f32 %v4579, %v4584
      %vm4587 = vcmp.ge.f32.partialorder %v4586, 0.0
      %v4588 = vmul.f32 %v4586, 0.01
      %v4589 = vsel %vm4587, %v4586, %v4588
      %v4592 = vunpack.c.l.s4 1983009808
      %v4593 = vunpack.c.0.s8 %v4592
      %v4594 = vlaneseq
      %v4595 = vshrl.u32 %v4594, 7
      %v4596 = vsub.s32 %v4593, %v4595
      %v4597 = vrot.slane %v4589, %v4596
      %v4598 = vcombine.high %v4597, %v4597
      %v4601 = vpack.c.bf16 %v4597, %v4597
      %v4602 = vpack.c.bf16 %v4598, %v4598
      %v4603 = vmax.bf16 %v4601, %v4602
      %v4605 = vshrl.u32 %v4603, 16
      %v4608 = vmax.bf16 %v4603, %v4605
      %v4609 = vld [vmem:[%s27] sm:$0xf]
      %v4610 = vld [vmem:[%s27 + $0x4] sm:$0xf]
      %v4611 = vld [vmem:[%s27 + $0x8] sm:$0xf]
      %v4612 = vld [vmem:[%s27 + $0xc] sm:$0xf]
      %v4613 = vld [vmem:[%s27 + $0x10] sm:$0xf]
      %v4614 = vld [vmem:[%s27 + $0x14] sm:$0xf]
      %v4615 = vld [vmem:[%s27 + $0x18] sm:$0xf]
      %v4616 = vld [vmem:[%s27 + $0x1c] sm:$0xf]
      %v4617 = vld [vmem:[%s27 + $0x20] sm:$0xf]
      %v4618 = vld [vmem:[%s27 + $0x24] sm:$0xf]
      %v4619 = vld [vmem:[%s27 + $0x28] sm:$0xf]
      %v4620 = vld [vmem:[%s27 + $0x2c] sm:$0xf]
      %v4621 = vld [vmem:[%s27 + $0x30] sm:$0xf]
      %v4622 = vld [vmem:[%s27 + $0x34] sm:$0xf]
      %v4623 = vld [vmem:[%s27 + $0x38] sm:$0xf]
      %v4624 = vld [vmem:[%s27 + $0x3c] sm:$0xf]
      %v4625 = vld [vmem:[%s27 + $0x40] sm:$0xf]
      %v4626 = vld [vmem:[%s27 + $0x44] sm:$0xf]
      %v4627 = vld [vmem:[%s27 + $0x48] sm:$0xf]
      %v4628 = vld [vmem:[%s27 + $0x4c] sm:$0xf]
      %v4629 = vld [vmem:[%s27 + $0x50] sm:$0xf]
      %v4630 = vld [vmem:[%s27 + $0x54] sm:$0xf]
      %v4631 = vld [vmem:[%s27 + $0x58] sm:$0xf]
      %v4632 = vld [vmem:[%s27 + $0x5c] sm:$0xf]
      %v4633 = vld [vmem:[%s27 + $0x60] sm:$0xf]
      %v4634 = vld [vmem:[%s27 + $0x64] sm:$0xf]
      %v4635 = vld [vmem:[%s27 + $0x68] sm:$0xf]
      %v4636 = vld [vmem:[%s27 + $0x6c] sm:$0xf]
      %v4637 = vld [vmem:[%s27 + $0x70] sm:$0xf]
      %v4638 = vld [vmem:[%s27 + $0x74] sm:$0xf]
      %v4639 = vld [vmem:[%s27 + $0x78] sm:$0xf]
      %v4640 = vld [vmem:[%s27 + $0x7c] sm:$0xf]
      %v4641 = vld [vmem:[%s27 + $0x80] sm:$0xf]
      %v4642 = vld [vmem:[%s27 + $0x84] sm:$0xf]
      %v4643 = vld [vmem:[%s27 + $0x88] sm:$0xf]
      %v4644 = vld [vmem:[%s27 + $0x8c] sm:$0xf]
      %v4645 = vld [vmem:[%s27 + $0x90] sm:$0xf]
      %v4646 = vld [vmem:[%s27 + $0x94] sm:$0xf]
      %v4647 = vld [vmem:[%s27 + $0x98] sm:$0xf]
      %v4648 = vld [vmem:[%s27 + $0x9c] sm:$0xf]
      %v4649 = vld [vmem:[%s27 + $0xa0] sm:$0xf]
      %v4650 = vld [vmem:[%s27 + $0xa4] sm:$0xf]
      %v4651 = vld [vmem:[%s27 + $0xa8] sm:$0xf]
      %v4652 = vld [vmem:[%s27 + $0xac] sm:$0xf]
      %v4653 = vld [vmem:[%s27 + $0xb0] sm:$0xf]
      %v4654 = vld [vmem:[%s27 + $0xb4] sm:$0xf]
      %v4655 = vld [vmem:[%s27 + $0xb8] sm:$0xf]
      %v4656 = vld [vmem:[%s27 + $0xbc] sm:$0xf]
      %v4657 = vld [vmem:[%s27 + $0xc0] sm:$0xf]
      %v4658 = vld [vmem:[%s27 + $0xc4] sm:$0xf]
      %v4659 = vld [vmem:[%s27 + $0xc8] sm:$0xf]
      %v4660 = vld [vmem:[%s27 + $0xcc] sm:$0xf]
      %v4661 = vld [vmem:[%s27 + $0xd0] sm:$0xf]
      %v4662 = vld [vmem:[%s27 + $0xd4] sm:$0xf]
      %v4663 = vld [vmem:[%s27 + $0xd8] sm:$0xf]
      %v4664 = vld [vmem:[%s27 + $0xdc] sm:$0xf]
      %v4665 = vld [vmem:[%s27 + $0xe0] sm:$0xf]
      %v4666 = vld [vmem:[%s27 + $0xe4] sm:$0xf]
      %v4667 = vld [vmem:[%s27 + $0xe8] sm:$0xf]
      %v4668 = vld [vmem:[%s27 + $0xec] sm:$0xf]
      %v4669 = vld [vmem:[%s27 + $0xf0] sm:$0xf]
      %v4670 = vld [vmem:[%s27 + $0xf4] sm:$0xf]
      %v4671 = vld [vmem:[%s27 + $0xf8] sm:$0xf]
      %v4672 = vld [vmem:[%s27 + $0xfc] sm:$0xf]
      %v4673 = vld [vmem:[%s27 + $0x100] sm:$0xf]
      %v4674 = vld [vmem:[%s27 + $0x104] sm:$0xf]
      %v4675 = vld [vmem:[%s27 + $0x108] sm:$0xf]
      %v4676 = vld [vmem:[%s27 + $0x10c] sm:$0xf]
      %v4677 = vld [vmem:[%s27 + $0x110] sm:$0xf]
      %v4678 = vld [vmem:[%s27 + $0x114] sm:$0xf]
      %v4679 = vld [vmem:[%s27 + $0x118] sm:$0xf]
      %v4680 = vld [vmem:[%s27 + $0x11c] sm:$0xf]
      %v4681 = vld [vmem:[%s29] sm:$0x1]
      %v4682 = vld [vmem:[%s31] sm:$0x1]
      %v4684 = vshll.u32 %v4608, 16
      %v4688 = vsel %vm1233, 0, %v1082
      %v4689 = vsel %vm1233, 0, %v4684
      %v4691 = vsel %vm2655, %v4688, 0
      %v4693 = vsel %vm2655, %v4689, 0
      %v4694 = vshrl.u32 %v4691, 16
      %4696 = vrot.lane.b32.xlu0 %v4694, 64
      %v4697 = vpop.permute.xlu0 %4696
      %v4699 = vrot.slane %v4691, 1
      %4701 = vrot.lane.b32.xlu0 %v4693, 64
      %v4702 = vpop.permute.xlu0 %4701
      %v4703 = vshrl.u32 %v4693, 16
      %v4705 = vrot.slane %v4693, 1
      %4706 = vrot.lane.b32.xlu0 %v4705, 64
      %v4707 = vpop.permute.xlu0 %4706
      %v4709 = vsel %vm3268, %v4691, %v4697
      %v4713 = vsel %vm3268, %v4699, %v4702
      %v4717 = vsel %vm3268, %v4703, %v4707
      %v4791 = vunpack.c.l.b16 %v4609
      %v4792 = vunpack.c.l.b16 %v4610
      %v4793 = vunpack.c.l.b16 %v4611
      %v4794 = vunpack.c.l.b16 %v4612
      %v4795 = vunpack.c.l.b16 %v4613
      %v4796 = vunpack.c.l.b16 %v4614
      %v4797 = vunpack.c.l.b16 %v4615
      %v4798 = vunpack.c.l.b16 %v4616
      %v4799 = vunpack.c.l.b16 %v4617
      %v4800 = vunpack.c.l.b16 %v4618
      %v4801 = vunpack.c.l.b16 %v4619
      %v4802 = vunpack.c.l.b16 %v4620
      %v4803 = vunpack.c.l.b16 %v4621
      %v4804 = vunpack.c.l.b16 %v4622
      %v4805 = vunpack.c.l.b16 %v4623
      %v4806 = vunpack.c.l.b16 %v4624
      %v4807 = vunpack.c.l.b16 %v4625
      %v4808 = vunpack.c.l.b16 %v4626
      %v4809 = vunpack.c.l.b16 %v4627
      %v4810 = vunpack.c.l.b16 %v4628
      %v4811 = vunpack.c.l.b16 %v4629
      %v4812 = vunpack.c.l.b16 %v4630
      %v4813 = vunpack.c.l.b16 %v4631
      %v4814 = vunpack.c.l.b16 %v4632
      %v4815 = vunpack.c.l.b16 %v4633
      %v4816 = vunpack.c.l.b16 %v4634
      %v4817 = vunpack.c.l.b16 %v4635
      %v4818 = vunpack.c.l.b16 %v4636
      %v4819 = vunpack.c.l.b16 %v4637
      %v4820 = vunpack.c.l.b16 %v4638
      %v4821 = vunpack.c.l.b16 %v4639
      %v4822 = vunpack.c.l.b16 %v4640
      %v4823 = vunpack.c.l.b16 %v4641
      %v4824 = vunpack.c.l.b16 %v4642
      %v4825 = vunpack.c.l.b16 %v4643
      %v4826 = vunpack.c.l.b16 %v4644
      %v4827 = vunpack.c.l.b16 %v4645
      %v4828 = vunpack.c.l.b16 %v4646
      %v4829 = vunpack.c.l.b16 %v4647
      %v4830 = vunpack.c.l.b16 %v4648
      %v4831 = vunpack.c.l.b16 %v4649
      %v4832 = vunpack.c.l.b16 %v4650
      %v4833 = vunpack.c.l.b16 %v4651
      %v4834 = vunpack.c.l.b16 %v4652
      %v4835 = vunpack.c.l.b16 %v4653
      %v4836 = vunpack.c.l.b16 %v4654
      %v4837 = vunpack.c.l.b16 %v4655
      %v4838 = vunpack.c.l.b16 %v4656
      %v4839 = vunpack.c.l.b16 %v4657
      %v4840 = vunpack.c.l.b16 %v4658
      %v4841 = vunpack.c.l.b16 %v4659
      %v4842 = vunpack.c.l.b16 %v4660
      %v4843 = vunpack.c.l.b16 %v4661
      %v4844 = vunpack.c.l.b16 %v4662
      %v4845 = vunpack.c.l.b16 %v4663
      %v4846 = vunpack.c.l.b16 %v4664
      %v4847 = vunpack.c.l.b16 %v4665
      %v4848 = vunpack.c.l.b16 %v4666
      %v4849 = vunpack.c.l.b16 %v4667
      %v4850 = vunpack.c.l.b16 %v4668
      %v4851 = vunpack.c.l.b16 %v4669
      %v4852 = vunpack.c.l.b16 %v4670
      %v4853 = vunpack.c.l.b16 %v4671
      %v4854 = vunpack.c.l.b16 %v4672
      %v4855 = vunpack.c.l.b16 %v4673
      %v4856 = vunpack.c.l.b16 %v4674
      %v4857 = vunpack.c.l.b16 %v4675
      %v4858 = vunpack.c.l.b16 %v4676
      %v4859 = vunpack.c.l.b16 %v4677
      %v4860 = vunpack.c.l.b16 %v4678
      %v4861 = vunpack.c.l.b16 %v4679
      %v4862 = vunpack.c.l.b16 %v4680
      %v4863 = vpack.c.b16 %v4792, %v4791
      %v4864 = vpack.c.b16 %v4794, %v4793
      %v4865 = vpack.c.b16 %v4796, %v4795
      %v4866 = vpack.c.b16 %v4798, %v4797
      %v4867 = vpack.c.b16 %v4800, %v4799
      %v4868 = vpack.c.b16 %v4802, %v4801
      %v4869 = vpack.c.b16 %v4804, %v4803
      %v4870 = vpack.c.b16 %v4806, %v4805
      %v4871 = vpack.c.b16 %v4808, %v4807
      %v4872 = vpack.c.b16 %v4810, %v4809
      %v4873 = vpack.c.b16 %v4812, %v4811
      %v4874 = vpack.c.b16 %v4814, %v4813
      %v4875 = vpack.c.b16 %v4816, %v4815
      %v4876 = vpack.c.b16 %v4818, %v4817
      %v4877 = vpack.c.b16 %v4820, %v4819
      %v4878 = vpack.c.b16 %v4822, %v4821
      %v4879 = vpack.c.b16 %v4824, %v4823
      %v4880 = vpack.c.b16 %v4826, %v4825
      %v4881 = vpack.c.b16 %v4828, %v4827
      %v4882 = vpack.c.b16 %v4830, %v4829
      %v4883 = vpack.c.b16 %v4832, %v4831
      %v4884 = vpack.c.b16 %v4834, %v4833
      %v4885 = vpack.c.b16 %v4836, %v4835
      %v4886 = vpack.c.b16 %v4838, %v4837
      %v4887 = vpack.c.b16 %v4840, %v4839
      %v4888 = vpack.c.b16 %v4842, %v4841
      %v4889 = vpack.c.b16 %v4844, %v4843
      %v4890 = vpack.c.b16 %v4846, %v4845
      %v4891 = vpack.c.b16 %v4848, %v4847
      %v4892 = vpack.c.b16 %v4850, %v4849
      %v4893 = vpack.c.b16 %v4852, %v4851
      %v4894 = vpack.c.b16 %v4854, %v4853
      %v4895 = vpack.c.b16 %v4856, %v4855
      %v4896 = vpack.c.b16 %v4858, %v4857
      %v4897 = vpack.c.b16 %v4860, %v4859
      %v4898 = vpack.c.b16 %v4862, %v4861
      %v4935 = vsel %vm3268, %v4699, 0
      %4937 = vmatprep.subr.bf16.mxu0 0
      %4938 = vmatpush1.bf16.msra.mxu0 %v4863
      %4939 = vmatprep.subr.bf16.mxu0 0
      %4940 = vmatpush1.bf16.msra.mxu0 %v4864
      %4941 = vmatprep.subr.bf16.mxu0 0
      %4942 = vmatpush1.bf16.msra.mxu0 %v4865
      %4943 = vmatprep.subr.bf16.mxu0 0
      %4944 = vmatpush1.bf16.msra.mxu0 %v4866
      %4945 = vmatprep.subr.bf16.mxu0 0
      %4946 = vmatpush1.bf16.msra.mxu0 %v4867
      %4947 = vmatprep.subr.bf16.mxu0 0
      %4948 = vmatpush1.bf16.msra.mxu0 %v4868
      %4949 = vmatprep.subr.bf16.mxu0 0
      %4950 = vmatpush1.bf16.msra.mxu0 %v4869
      %4951 = vmatprep.subr.bf16.mxu0 0
      %4952 = vmatpush1.bf16.msra.mxu0 %v4870
      %4953 = vmatprep.subr.bf16.mxu0 0
      %4954 = vmatpush1.bf16.msra.mxu0 %v4871
      %4955 = vmatprep.subr.bf16.mxu0 0
      %4956 = vmatpush1.bf16.msra.mxu0 %v4872
      %4957 = vmatprep.subr.bf16.mxu0 0
      %4958 = vmatpush1.bf16.msra.mxu0 %v4873
      %4959 = vmatprep.subr.bf16.mxu0 0
      %4960 = vmatpush1.bf16.msra.mxu0 %v4874
      %4961 = vmatprep.subr.bf16.mxu0 0
      %4962 = vmatpush1.bf16.msra.mxu0 %v4875
      %4963 = vmatprep.subr.bf16.mxu0 0
      %4964 = vmatpush1.bf16.msra.mxu0 %v4876
      %4965 = vmatprep.subr.bf16.mxu0 0
      %4966 = vmatpush1.bf16.msra.mxu0 %v4877
      %4967 = vmatprep.subr.bf16.mxu0 0
      %4968 = vmatpush1.bf16.msra.mxu0 %v4878
      %4969 = vmatprep.mubr.bf16.mxu0 %v4713
      %4970 = vmatmul.mubr.bf16.gmra.mrb[0].mxu0 %v4709
      %v4971 = vpop.f32.mrb[0].mxu0
      %v4972 = vadd.f32 0.0, %v4971
      %v4973 = vpop.f32.mrb[0].mxu0
      %v4974 = vpop.f32.mrb[0].mxu0
      %v4975 = vpop.f32.mrb[0].mxu0
      %4976 = vdwg.mxu0
      %4977 = vmatprep.subr.bf16.mxu0 0
      %4978 = vmatpush1.bf16.msra.mxu0 %v4879
      %4979 = vmatprep.subr.bf16.mxu0 0
      %4980 = vmatpush1.bf16.msra.mxu0 %v4880
      %4981 = vmatprep.subr.bf16.mxu0 0
      %4982 = vmatpush1.bf16.msra.mxu0 %v4881
      %4983 = vmatprep.subr.bf16.mxu0 0
      %4984 = vmatpush1.bf16.msra.mxu0 %v4882
      %4985 = vmatprep.subr.bf16.mxu0 0
      %4986 = vmatpush1.bf16.msra.mxu0 %v4883
      %4987 = vmatprep.subr.bf16.mxu0 0
      %4988 = vmatpush1.bf16.msra.mxu0 %v4884
      %4989 = vmatprep.subr.bf16.mxu0 0
      %4990 = vmatpush1.bf16.msra.mxu0 %v4885
      %4991 = vmatprep.subr.bf16.mxu0 0
      %4992 = vmatpush1.bf16.msra.mxu0 %v4886
      %4993 = vmatprep.subr.bf16.mxu0 0
      %4994 = vmatpush1.bf16.msra.mxu0 %v4887
      %4995 = vmatprep.subr.bf16.mxu0 0
      %4996 = vmatpush1.bf16.msra.mxu0 %v4888
      %4997 = vmatprep.subr.bf16.mxu0 0
      %4998 = vmatpush1.bf16.msra.mxu0 %v4889
      %4999 = vmatprep.subr.bf16.mxu0 0
      %5000 = vmatpush1.bf16.msra.mxu0 %v4890
      %5001 = vmatprep.subr.bf16.mxu0 0
      %5002 = vmatpush1.bf16.msra.mxu0 %v4891
      %5003 = vmatprep.subr.bf16.mxu0 0
      %5004 = vmatpush1.bf16.msra.mxu0 %v4892
      %5005 = vmatprep.subr.bf16.mxu0 0
      %5006 = vmatpush1.bf16.msra.mxu0 %v4893
      %5007 = vmatprep.subr.bf16.mxu0 0
      %5008 = vmatpush1.bf16.msra.mxu0 %v4894
      %5009 = vmatprep.mubr.bf16.mxu0 %v4709
      %5010 = vmatmul.mubr.bf16.gmra.mrb[0].mxu0 %v4717
      %v5011 = vpop.f32.mrb[0].mxu0
      %v5012 = vadd.f32 %v4972, %v5011
      %v5013 = vpop.f32.mrb[0].mxu0
      %v5014 = vpop.f32.mrb[0].mxu0
      %v5015 = vpop.f32.mrb[0].mxu0
      %5016 = vdwg.mxu0
      %5017 = vmatprep.subr.bf16.mxu0 0
      %5018 = vmatpush1.bf16.msra.mxu0 %v4895
      %5019 = vmatprep.subr.bf16.mxu0 0
      %5020 = vmatpush1.bf16.msra.mxu0 %v4896
      %5021 = vmatprep.subr.bf16.mxu0 0
      %5022 = vmatpush1.bf16.msra.mxu0 %v4897
      %5023 = vmatprep.subr.bf16.mxu0 0
      %5024 = vmatpush1.bf16.msra.mxu0 %v4898
      %5025 = vmatprep.subr.bf16.mxu0 0
      %5026 = vmatpush1.bf16.msra.mxu0 0
      %5027 = vmatprep.subr.bf16.mxu0 0
      %5028 = vmatpush1.bf16.msra.mxu0 0
      %5029 = vmatprep.subr.bf16.mxu0 0
      %5030 = vmatpush1.bf16.msra.mxu0 0
      %5031 = vmatprep.subr.bf16.mxu0 0
      %5032 = vmatpush1.bf16.msra.mxu0 0
      %5033 = vmatprep.subr.bf16.mxu0 0
      %5034 = vmatpush1.bf16.msra.mxu0 0
      %5035 = vmatprep.subr.bf16.mxu0 0
      %5036 = vmatpush1.bf16.msra.mxu0 0
      %5037 = vmatprep.subr.bf16.mxu0 0
      %5038 = vmatpush1.bf16.msra.mxu0 0
      %5039 = vmatprep.subr.bf16.mxu0 0
      %5040 = vmatpush1.bf16.msra.mxu0 0
      %5041 = vmatprep.subr.bf16.mxu0 0
      %5042 = vmatpush1.bf16.msra.mxu0 0
      %5043 = vmatprep.subr.bf16.mxu0 0
      %5044 = vmatpush1.bf16.msra.mxu0 0
      %5045 = vmatprep.subr.bf16.mxu0 0
      %5046 = vmatpush1.bf16.msra.mxu0 0
      %5047 = vmatprep.subr.bf16.mxu0 0
      %5048 = vmatpush1.bf16.msra.mxu0 0
      %5049 = vmatprep.mubr.bf16.mxu0 0
      %5050 = vmatmul.mubr.bf16.gmra.mrb[0].mxu0 %v4935
      %v5051 = vpop.f32.mrb[0].mxu0
      %v5052 = vadd.f32 %v5012, %v5051
      %v5053 = vpop.f32.mrb[0].mxu0
      %v5054 = vpop.f32.mrb[0].mxu0
      %v5055 = vpop.f32.mrb[0].mxu0
      %5056 = vdwg.mxu0
      %v5057 = vmul.f32 %v5052, %v4681
      %v5058 = vadd.f32 %v5057, %v4682
      %v5059 = vmax.f32 %v5058, 0.0
      %v5060 = vpack.c.bf16 %v5059, %v5059
      %v5061 = vld [vmem:[%s33] sm:$0xf]
      %v5062 = vld [vmem:[%s33 + $0x4] sm:$0xf]
      %v5063 = vld [vmem:[%s33 + $0x8] sm:$0xf]
      %v5064 = vld [vmem:[%s33 + $0xc] sm:$0xf]
      %v5065 = vld [vmem:[%s33 + $0x10] sm:$0xf]
      %v5066 = vld [vmem:[%s33 + $0x14] sm:$0xf]
      %v5067 = vld [vmem:[%s33 + $0x18] sm:$0xf]
      %v5068 = vld [vmem:[%s33 + $0x1c] sm:$0xf]
      %v5069 = vld [vmem:[%s33 + $0x20] sm:$0xf]
      %v5070 = vld [vmem:[%s33 + $0x24] sm:$0xf]
      %v5071 = vld [vmem:[%s33 + $0x28] sm:$0xf]
      %v5072 = vld [vmem:[%s33 + $0x2c] sm:$0xf]
      %v5073 = vld [vmem:[%s33 + $0x30] sm:$0xf]
      %v5074 = vld [vmem:[%s33 + $0x34] sm:$0xf]
      %v5075 = vld [vmem:[%s33 + $0x38] sm:$0xf]
      %v5076 = vld [vmem:[%s33 + $0x3c] sm:$0xf]
      %v5077 = vld [vmem:[%s33 + $0x40] sm:$0xf]
      %v5078 = vld [vmem:[%s33 + $0x44] sm:$0xf]
      %v5079 = vld [vmem:[%s33 + $0x48] sm:$0xf]
      %v5080 = vld [vmem:[%s33 + $0x4c] sm:$0xf]
      %v5081 = vld [vmem:[%s33 + $0x50] sm:$0xf]
      %v5082 = vld [vmem:[%s33 + $0x54] sm:$0xf]
      %v5083 = vld [vmem:[%s33 + $0x58] sm:$0xf]
      %v5084 = vld [vmem:[%s33 + $0x5c] sm:$0xf]
      %v5085 = vld [vmem:[%s33 + $0x60] sm:$0xf]
      %v5086 = vld [vmem:[%s33 + $0x64] sm:$0xf]
      %v5087 = vld [vmem:[%s33 + $0x68] sm:$0xf]
      %v5088 = vld [vmem:[%s33 + $0x6c] sm:$0xf]
      %v5089 = vld [vmem:[%s33 + $0x70] sm:$0xf]
      %v5090 = vld [vmem:[%s33 + $0x74] sm:$0xf]
      %v5091 = vld [vmem:[%s33 + $0x78] sm:$0xf]
      %v5092 = vld [vmem:[%s33 + $0x7c] sm:$0xf]
      %v5093 = vld [vmem:[%s33 + $0x80] sm:$0xf]
      %v5094 = vld [vmem:[%s33 + $0x84] sm:$0xf]
      %v5095 = vld [vmem:[%s33 + $0x88] sm:$0xf]
      %v5096 = vld [vmem:[%s33 + $0x8c] sm:$0xf]
      %v5097 = vld [vmem:[%s33 + $0x90] sm:$0xf]
      %v5098 = vld [vmem:[%s33 + $0x94] sm:$0xf]
      %v5099 = vld [vmem:[%s33 + $0x98] sm:$0xf]
      %v5100 = vld [vmem:[%s33 + $0x9c] sm:$0xf]
      %v5101 = vld [vmem:[%s33 + $0xa0] sm:$0xf]
      %v5102 = vld [vmem:[%s33 + $0xa4] sm:$0xf]
      %v5103 = vld [vmem:[%s33 + $0xa8] sm:$0xf]
      %v5104 = vld [vmem:[%s33 + $0xac] sm:$0xf]
      %v5105 = vld [vmem:[%s33 + $0xb0] sm:$0xf]
      %v5106 = vld [vmem:[%s33 + $0xb4] sm:$0xf]
      %v5107 = vld [vmem:[%s33 + $0xb8] sm:$0xf]
      %v5108 = vld [vmem:[%s33 + $0xbc] sm:$0xf]
      %v5109 = vld [vmem:[%s33 + $0xc0] sm:$0xf]
      %v5110 = vld [vmem:[%s33 + $0xc4] sm:$0xf]
      %v5111 = vld [vmem:[%s33 + $0xc8] sm:$0xf]
      %v5112 = vld [vmem:[%s33 + $0xcc] sm:$0xf]
      %v5113 = vld [vmem:[%s33 + $0xd0] sm:$0xf]
      %v5114 = vld [vmem:[%s33 + $0xd4] sm:$0xf]
      %v5115 = vld [vmem:[%s33 + $0xd8] sm:$0xf]
      %v5116 = vld [vmem:[%s33 + $0xdc] sm:$0xf]
      %v5117 = vld [vmem:[%s33 + $0xe0] sm:$0xf]
      %v5118 = vld [vmem:[%s33 + $0xe4] sm:$0xf]
      %v5119 = vld [vmem:[%s33 + $0xe8] sm:$0xf]
      %v5120 = vld [vmem:[%s33 + $0xec] sm:$0xf]
      %v5121 = vld [vmem:[%s33 + $0xf0] sm:$0xf]
      %v5122 = vld [vmem:[%s33 + $0xf4] sm:$0xf]
      %v5123 = vld [vmem:[%s33 + $0xf8] sm:$0xf]
      %v5124 = vld [vmem:[%s33 + $0xfc] sm:$0xf]
      %v5125 = vld [vmem:[%s33 + $0x100] sm:$0xf]
      %v5126 = vld [vmem:[%s33 + $0x104] sm:$0xf]
      %v5127 = vld [vmem:[%s33 + $0x108] sm:$0xf]
      %v5128 = vld [vmem:[%s33 + $0x10c] sm:$0xf]
      %v5129 = vld [vmem:[%s33 + $0x110] sm:$0xf]
      %v5130 = vld [vmem:[%s33 + $0x114] sm:$0xf]
      %v5131 = vld [vmem:[%s33 + $0x118] sm:$0xf]
      %v5132 = vld [vmem:[%s33 + $0x11c] sm:$0xf]
      %v5133 = vld [vmem:[%s33 + $0x120] sm:$0xf]
      %v5134 = vld [vmem:[%s33 + $0x124] sm:$0xf]
      %v5135 = vld [vmem:[%s33 + $0x128] sm:$0xf]
      %v5136 = vld [vmem:[%s33 + $0x12c] sm:$0xf]
      %v5137 = vld [vmem:[%s33 + $0x130] sm:$0xf]
      %v5138 = vld [vmem:[%s33 + $0x134] sm:$0xf]
      %v5139 = vld [vmem:[%s33 + $0x138] sm:$0xf]
      %v5140 = vld [vmem:[%s33 + $0x13c] sm:$0xf]
      %v5141 = vld [vmem:[%s33 + $0x140] sm:$0xf]
      %v5142 = vld [vmem:[%s33 + $0x144] sm:$0xf]
      %v5143 = vld [vmem:[%s33 + $0x148] sm:$0xf]
      %v5144 = vld [vmem:[%s33 + $0x14c] sm:$0xf]
      %v5145 = vld [vmem:[%s33 + $0x150] sm:$0xf]
      %v5146 = vld [vmem:[%s33 + $0x154] sm:$0xf]
      %v5147 = vld [vmem:[%s33 + $0x158] sm:$0xf]
      %v5148 = vld [vmem:[%s33 + $0x15c] sm:$0xf]
      %v5149 = vld [vmem:[%s33 + $0x160] sm:$0xf]
      %v5150 = vld [vmem:[%s33 + $0x164] sm:$0xf]
      %v5151 = vld [vmem:[%s33 + $0x168] sm:$0xf]
      %v5152 = vld [vmem:[%s33 + $0x16c] sm:$0xf]
      %v5153 = vld [vmem:[%s33 + $0x170] sm:$0xf]
      %v5154 = vld [vmem:[%s33 + $0x174] sm:$0xf]
      %v5155 = vld [vmem:[%s33 + $0x178] sm:$0xf]
      %v5156 = vld [vmem:[%s33 + $0x17c] sm:$0xf]
      %v5157 = vld [vmem:[%s33 + $0x180] sm:$0xf]
      %v5158 = vld [vmem:[%s33 + $0x184] sm:$0xf]
      %v5159 = vld [vmem:[%s33 + $0x188] sm:$0xf]
      %v5160 = vld [vmem:[%s33 + $0x18c] sm:$0xf]
      %v5161 = vld [vmem:[%s33 + $0x190] sm:$0xf]
      %v5162 = vld [vmem:[%s33 + $0x194] sm:$0xf]
      %v5163 = vld [vmem:[%s33 + $0x198] sm:$0xf]
      %v5164 = vld [vmem:[%s33 + $0x19c] sm:$0xf]
      %v5165 = vld [vmem:[%s33 + $0x1a0] sm:$0xf]
      %v5166 = vld [vmem:[%s33 + $0x1a4] sm:$0xf]
      %v5167 = vld [vmem:[%s33 + $0x1a8] sm:$0xf]
      %v5168 = vld [vmem:[%s33 + $0x1ac] sm:$0xf]
      %v5169 = vld [vmem:[%s33 + $0x1b0] sm:$0xf]
      %v5170 = vld [vmem:[%s33 + $0x1b4] sm:$0xf]
      %v5171 = vld [vmem:[%s33 + $0x1b8] sm:$0xf]
      %v5172 = vld [vmem:[%s33 + $0x1bc] sm:$0xf]
      %v5173 = vld [vmem:[%s33 + $0x1c0] sm:$0xf]
      %v5174 = vld [vmem:[%s33 + $0x1c4] sm:$0xf]
      %v5175 = vld [vmem:[%s33 + $0x1c8] sm:$0xf]
      %v5176 = vld [vmem:[%s33 + $0x1cc] sm:$0xf]
      %v5177 = vld [vmem:[%s33 + $0x1d0] sm:$0xf]
      %v5178 = vld [vmem:[%s33 + $0x1d4] sm:$0xf]
      %v5179 = vld [vmem:[%s33 + $0x1d8] sm:$0xf]
      %v5180 = vld [vmem:[%s33 + $0x1dc] sm:$0xf]
      %v5181 = vld [vmem:[%s33 + $0x1e0] sm:$0xf]
      %v5182 = vld [vmem:[%s33 + $0x1e4] sm:$0xf]
      %v5183 = vld [vmem:[%s33 + $0x1e8] sm:$0xf]
      %v5184 = vld [vmem:[%s33 + $0x1ec] sm:$0xf]
      %v5185 = vld [vmem:[%s33 + $0x1f0] sm:$0xf]
      %v5186 = vld [vmem:[%s33 + $0x1f4] sm:$0xf]
      %v5187 = vld [vmem:[%s33 + $0x1f8] sm:$0xf]
      %v5188 = vld [vmem:[%s33 + $0x1fc] sm:$0xf]
      %v5189 = vld [vmem:[%s33 + $0x200] sm:$0xf]
      %v5190 = vld [vmem:[%s33 + $0x204] sm:$0xf]
      %v5191 = vld [vmem:[%s33 + $0x208] sm:$0xf]
      %v5192 = vld [vmem:[%s33 + $0x20c] sm:$0xf]
      %v5193 = vld [vmem:[%s33 + $0x210] sm:$0xf]
      %v5194 = vld [vmem:[%s33 + $0x214] sm:$0xf]
      %v5195 = vld [vmem:[%s33 + $0x218] sm:$0xf]
      %v5196 = vld [vmem:[%s33 + $0x21c] sm:$0xf]
      %v5197 = vld [vmem:[%s33 + $0x220] sm:$0xf]
      %v5198 = vld [vmem:[%s33 + $0x224] sm:$0xf]
      %v5199 = vld [vmem:[%s33 + $0x228] sm:$0xf]
      %v5200 = vld [vmem:[%s33 + $0x22c] sm:$0xf]
      %v5201 = vld [vmem:[%s33 + $0x230] sm:$0xf]
      %v5202 = vld [vmem:[%s33 + $0x234] sm:$0xf]
      %v5203 = vld [vmem:[%s33 + $0x238] sm:$0xf]
      %v5204 = vld [vmem:[%s33 + $0x23c] sm:$0xf]
      %v5205 = vld [vmem:[%s35] sm:$0x1]
      %v5206 = vld [vmem:[%s37] sm:$0x1]
      %v5208 = vshll.u32 %v5060, 16
      %v5211 = vsel %vm1233, 0, %v5208
      %v5214 = vsel %vm2655, %v5211, 0
      %v5218 = vshrl.u32 %v5214, 16
      %v5222 = vrot.slane %v5214, 1
      %v5368 = vunpack.c.l.b16 %v5061
      %v5369 = vunpack.c.l.b16 %v5062
      %v5370 = vunpack.c.l.b16 %v5063
      %v5371 = vunpack.c.l.b16 %v5064
      %v5372 = vunpack.c.l.b16 %v5065
      %v5373 = vunpack.c.l.b16 %v5066
      %v5374 = vunpack.c.l.b16 %v5067
      %v5375 = vunpack.c.l.b16 %v5068
      %v5376 = vunpack.c.l.b16 %v5069
      %v5377 = vunpack.c.l.b16 %v5070
      %v5378 = vunpack.c.l.b16 %v5071
      %v5379 = vunpack.c.l.b16 %v5072
      %v5380 = vunpack.c.l.b16 %v5073
      %v5381 = vunpack.c.l.b16 %v5074
      %v5382 = vunpack.c.l.b16 %v5075
      %v5383 = vunpack.c.l.b16 %v5076
      %v5384 = vunpack.c.l.b16 %v5077
      %v5385 = vunpack.c.l.b16 %v5078
      %v5386 = vunpack.c.l.b16 %v5079
      %v5387 = vunpack.c.l.b16 %v5080
      %v5388 = vunpack.c.l.b16 %v5081
      %v5389 = vunpack.c.l.b16 %v5082
      %v5390 = vunpack.c.l.b16 %v5083
      %v5391 = vunpack.c.l.b16 %v5084
      %v5392 = vunpack.c.l.b16 %v5085
      %v5393 = vunpack.c.l.b16 %v5086
      %v5394 = vunpack.c.l.b16 %v5087
      %v5395 = vunpack.c.l.b16 %v5088
      %v5396 = vunpack.c.l.b16 %v5089
      %v5397 = vunpack.c.l.b16 %v5090
      %v5398 = vunpack.c.l.b16 %v5091
      %v5399 = vunpack.c.l.b16 %v5092
      %v5400 = vunpack.c.l.b16 %v5093
      %v5401 = vunpack.c.l.b16 %v5094
      %v5402 = vunpack.c.l.b16 %v5095
      %v5403 = vunpack.c.l.b16 %v5096
      %v5404 = vunpack.c.l.b16 %v5097
      %v5405 = vunpack.c.l.b16 %v5098
      %v5406 = vunpack.c.l.b16 %v5099
      %v5407 = vunpack.c.l.b16 %v5100
      %v5408 = vunpack.c.l.b16 %v5101
      %v5409 = vunpack.c.l.b16 %v5102
      %v5410 = vunpack.c.l.b16 %v5103
      %v5411 = vunpack.c.l.b16 %v5104
      %v5412 = vunpack.c.l.b16 %v5105
      %v5413 = vunpack.c.l.b16 %v5106
      %v5414 = vunpack.c.l.b16 %v5107
      %v5415 = vunpack.c.l.b16 %v5108
      %v5416 = vunpack.c.l.b16 %v5109
      %v5417 = vunpack.c.l.b16 %v5110
      %v5418 = vunpack.c.l.b16 %v5111
      %v5419 = vunpack.c.l.b16 %v5112
      %v5420 = vunpack.c.l.b16 %v5113
      %v5421 = vunpack.c.l.b16 %v5114
      %v5422 = vunpack.c.l.b16 %v5115
      %v5423 = vunpack.c.l.b16 %v5116
      %v5424 = vunpack.c.l.b16 %v5117
      %v5425 = vunpack.c.l.b16 %v5118
      %v5426 = vunpack.c.l.b16 %v5119
      %v5427 = vunpack.c.l.b16 %v5120
      %v5428 = vunpack.c.l.b16 %v5121
      %v5429 = vunpack.c.l.b16 %v5122
      %v5430 = vunpack.c.l.b16 %v5123
      %v5431 = vunpack.c.l.b16 %v5124
      %v5432 = vunpack.c.l.b16 %v5125
      %v5433 = vunpack.c.l.b16 %v5126
      %v5434 = vunpack.c.l.b16 %v5127
      %v5435 = vunpack.c.l.b16 %v5128
      %v5436 = vunpack.c.l.b16 %v5129
      %v5437 = vunpack.c.l.b16 %v5130
      %v5438 = vunpack.c.l.b16 %v5131
      %v5439 = vunpack.c.l.b16 %v5132
      %v5440 = vunpack.c.l.b16 %v5133
      %v5441 = vunpack.c.l.b16 %v5134
      %v5442 = vunpack.c.l.b16 %v5135
      %v5443 = vunpack.c.l.b16 %v5136
      %v5444 = vunpack.c.l.b16 %v5137
      %v5445 = vunpack.c.l.b16 %v5138
      %v5446 = vunpack.c.l.b16 %v5139
      %v5447 = vunpack.c.l.b16 %v5140
      %v5448 = vunpack.c.l.b16 %v5141
      %v5449 = vunpack.c.l.b16 %v5142
      %v5450 = vunpack.c.l.b16 %v5143
      %v5451 = vunpack.c.l.b16 %v5144
      %v5452 = vunpack.c.l.b16 %v5145
      %v5453 = vunpack.c.l.b16 %v5146
      %v5454 = vunpack.c.l.b16 %v5147
      %v5455 = vunpack.c.l.b16 %v5148
      %v5456 = vunpack.c.l.b16 %v5149
      %v5457 = vunpack.c.l.b16 %v5150
      %v5458 = vunpack.c.l.b16 %v5151
      %v5459 = vunpack.c.l.b16 %v5152
      %v5460 = vunpack.c.l.b16 %v5153
      %v5461 = vunpack.c.l.b16 %v5154
      %v5462 = vunpack.c.l.b16 %v5155
      %v5463 = vunpack.c.l.b16 %v5156
      %v5464 = vunpack.c.l.b16 %v5157
      %v5465 = vunpack.c.l.b16 %v5158
      %v5466 = vunpack.c.l.b16 %v5159
      %v5467 = vunpack.c.l.b16 %v5160
      %v5468 = vunpack.c.l.b16 %v5161
      %v5469 = vunpack.c.l.b16 %v5162
      %v5470 = vunpack.c.l.b16 %v5163
      %v5471 = vunpack.c.l.b16 %v5164
      %v5472 = vunpack.c.l.b16 %v5165
      %v5473 = vunpack.c.l.b16 %v5166
      %v5474 = vunpack.c.l.b16 %v5167
      %v5475 = vunpack.c.l.b16 %v5168
      %v5476 = vunpack.c.l.b16 %v5169
      %v5477 = vunpack.c.l.b16 %v5170
      %v5478 = vunpack.c.l.b16 %v5171
      %v5479 = vunpack.c.l.b16 %v5172
      %v5480 = vunpack.c.l.b16 %v5173
      %v5481 = vunpack.c.l.b16 %v5174
      %v5482 = vunpack.c.l.b16 %v5175
      %v5483 = vunpack.c.l.b16 %v5176
      %v5484 = vunpack.c.l.b16 %v5177
      %v5485 = vunpack.c.l.b16 %v5178
      %v5486 = vunpack.c.l.b16 %v5179
      %v5487 = vunpack.c.l.b16 %v5180
      %v5488 = vunpack.c.l.b16 %v5181
      %v5489 = vunpack.c.l.b16 %v5182
      %v5490 = vunpack.c.l.b16 %v5183
      %v5491 = vunpack.c.l.b16 %v5184
      %v5492 = vunpack.c.l.b16 %v5185
      %v5493 = vunpack.c.l.b16 %v5186
      %v5494 = vunpack.c.l.b16 %v5187
      %v5495 = vunpack.c.l.b16 %v5188
      %v5496 = vunpack.c.l.b16 %v5189
      %v5497 = vunpack.c.l.b16 %v5190
      %v5498 = vunpack.c.l.b16 %v5191
      %v5499 = vunpack.c.l.b16 %v5192
      %v5500 = vunpack.c.l.b16 %v5193
      %v5501 = vunpack.c.l.b16 %v5194
      %v5502 = vunpack.c.l.b16 %v5195
      %v5503 = vunpack.c.l.b16 %v5196
      %v5504 = vunpack.c.l.b16 %v5197
      %v5505 = vunpack.c.l.b16 %v5198
      %v5506 = vunpack.c.l.b16 %v5199
      %v5507 = vunpack.c.l.b16 %v5200
      %v5508 = vunpack.c.l.b16 %v5201
      %v5509 = vunpack.c.l.b16 %v5202
      %v5510 = vunpack.c.l.b16 %v5203
      %v5511 = vunpack.c.l.b16 %v5204
      %v5512 = vpack.c.b16 %v5369, %v5368
      %v5513 = vpack.c.b16 %v5371, %v5370
      %v5514 = vpack.c.b16 %v5373, %v5372
      %v5515 = vpack.c.b16 %v5375, %v5374
      %v5516 = vpack.c.b16 %v5377, %v5376
      %v5517 = vpack.c.b16 %v5379, %v5378
      %v5518 = vpack.c.b16 %v5381, %v5380
      %v5519 = vpack.c.b16 %v5383, %v5382
      %v5520 = vpack.c.b16 %v5385, %v5384
      %v5521 = vpack.c.b16 %v5387, %v5386
      %v5522 = vpack.c.b16 %v5389, %v5388
      %v5523 = vpack.c.b16 %v5391, %v5390
      %v5524 = vpack.c.b16 %v5393, %v5392
      %v5525 = vpack.c.b16 %v5395, %v5394
      %v5526 = vpack.c.b16 %v5397, %v5396
      %v5527 = vpack.c.b16 %v5399, %v5398
      %v5528 = vpack.c.b16 %v5401, %v5400
      %v5529 = vpack.c.b16 %v5403, %v5402
      %v5530 = vpack.c.b16 %v5405, %v5404
      %v5531 = vpack.c.b16 %v5407, %v5406
      %v5532 = vpack.c.b16 %v5409, %v5408
      %v5533 = vpack.c.b16 %v5411, %v5410
      %v5534 = vpack.c.b16 %v5413, %v5412
      %v5535 = vpack.c.b16 %v5415, %v5414
      %v5536 = vpack.c.b16 %v5417, %v5416
      %v5537 = vpack.c.b16 %v5419, %v5418
      %v5538 = vpack.c.b16 %v5421, %v5420
      %v5539 = vpack.c.b16 %v5423, %v5422
      %v5540 = vpack.c.b16 %v5425, %v5424
      %v5541 = vpack.c.b16 %v5427, %v5426
      %v5542 = vpack.c.b16 %v5429, %v5428
      %v5543 = vpack.c.b16 %v5431, %v5430
      %v5544 = vpack.c.b16 %v5433, %v5432
      %v5545 = vpack.c.b16 %v5435, %v5434
      %v5546 = vpack.c.b16 %v5437, %v5436
      %v5547 = vpack.c.b16 %v5439, %v5438
      %v5548 = vpack.c.b16 %v5441, %v5440
      %v5549 = vpack.c.b16 %v5443, %v5442
      %v5550 = vpack.c.b16 %v5445, %v5444
      %v5551 = vpack.c.b16 %v5447, %v5446
      %v5552 = vpack.c.b16 %v5449, %v5448
      %v5553 = vpack.c.b16 %v5451, %v5450
      %v5554 = vpack.c.b16 %v5453, %v5452
      %v5555 = vpack.c.b16 %v5455, %v5454
      %v5556 = vpack.c.b16 %v5457, %v5456
      %v5557 = vpack.c.b16 %v5459, %v5458
      %v5558 = vpack.c.b16 %v5461, %v5460
      %v5559 = vpack.c.b16 %v5463, %v5462
      %v5560 = vpack.c.b16 %v5465, %v5464
      %v5561 = vpack.c.b16 %v5467, %v5466
      %v5562 = vpack.c.b16 %v5469, %v5468
      %v5563 = vpack.c.b16 %v5471, %v5470
      %v5564 = vpack.c.b16 %v5473, %v5472
      %v5565 = vpack.c.b16 %v5475, %v5474
      %v5566 = vpack.c.b16 %v5477, %v5476
      %v5567 = vpack.c.b16 %v5479, %v5478
      %v5568 = vpack.c.b16 %v5481, %v5480
      %v5569 = vpack.c.b16 %v5483, %v5482
      %v5570 = vpack.c.b16 %v5485, %v5484
      %v5571 = vpack.c.b16 %v5487, %v5486
      %v5572 = vpack.c.b16 %v5489, %v5488
      %v5573 = vpack.c.b16 %v5491, %v5490
      %v5574 = vpack.c.b16 %v5493, %v5492
      %v5575 = vpack.c.b16 %v5495, %v5494
      %v5576 = vpack.c.b16 %v5497, %v5496
      %v5577 = vpack.c.b16 %v5499, %v5498
      %v5578 = vpack.c.b16 %v5501, %v5500
      %v5579 = vpack.c.b16 %v5503, %v5502
      %v5580 = vpack.c.b16 %v5505, %v5504
      %v5581 = vpack.c.b16 %v5507, %v5506
      %v5582 = vpack.c.b16 %v5509, %v5508
      %v5583 = vpack.c.b16 %v5511, %v5510
      %5656 = vmatprep.subr.bf16.mxu0 0
      %5657 = vmatpush1.bf16.msra.mxu0 %v5512
      %5658 = vmatprep.subr.bf16.mxu0 0
      %5659 = vmatpush1.bf16.msra.mxu0 %v5513
      %5660 = vmatprep.subr.bf16.mxu0 0
      %5661 = vmatpush1.bf16.msra.mxu0 %v5514
      %5662 = vmatprep.subr.bf16.mxu0 0
      %5663 = vmatpush1.bf16.msra.mxu0 %v5515
      %5664 = vmatprep.subr.bf16.mxu0 0
      %5665 = vmatpush1.bf16.msra.mxu0 %v5516
      %5666 = vmatprep.subr.bf16.mxu0 0
      %5667 = vmatpush1.bf16.msra.mxu0 %v5517
      %5668 = vmatprep.subr.bf16.mxu0 0
      %5669 = vmatpush1.bf16.msra.mxu0 %v5518
      %5670 = vmatprep.subr.bf16.mxu0 0
      %5671 = vmatpush1.bf16.msra.mxu0 %v5519
      %5672 = vmatprep.subr.bf16.mxu0 0
      %5673 = vmatpush1.bf16.msra.mxu0 %v5520
      %5674 = vmatprep.subr.bf16.mxu0 0
      %5675 = vmatpush1.bf16.msra.mxu0 %v5521
      %5676 = vmatprep.subr.bf16.mxu0 0
      %5677 = vmatpush1.bf16.msra.mxu0 %v5522
      %5678 = vmatprep.subr.bf16.mxu0 0
      %5679 = vmatpush1.bf16.msra.mxu0 %v5523
      %5680 = vmatprep.subr.bf16.mxu0 0
      %5681 = vmatpush1.bf16.msra.mxu0 %v5524
      %5682 = vmatprep.subr.bf16.mxu0 0
      %5683 = vmatpush1.bf16.msra.mxu0 %v5525
      %5684 = vmatprep.subr.bf16.mxu0 0
      %5685 = vmatpush1.bf16.msra.mxu0 %v5526
      %5686 = vmatprep.subr.bf16.mxu0 0
      %5687 = vmatpush1.bf16.msra.mxu0 %v5527
      %5688 = vmatprep.mubr.bf16.mxu0 %v4694
      %5689 = vmatmul.mubr.bf16.gmra.mrb[0].mxu0 %v4691
      %v5690 = vpop.f32.mrb[0].mxu0
      %v5691 = vadd.f32 0.0, %v5690
      %v5692 = vpop.f32.mrb[0].mxu0
      %v5693 = vpop.f32.mrb[0].mxu0
      %v5694 = vpop.f32.mrb[0].mxu0
      %5695 = vdwg.mxu0
      %5696 = vmatprep.subr.bf16.mxu0 0
      %5697 = vmatpush1.bf16.msra.mxu0 %v5528
      %5698 = vmatprep.subr.bf16.mxu0 0
      %5699 = vmatpush1.bf16.msra.mxu0 %v5529
      %5700 = vmatprep.subr.bf16.mxu0 0
      %5701 = vmatpush1.bf16.msra.mxu0 %v5530
      %5702 = vmatprep.subr.bf16.mxu0 0
      %5703 = vmatpush1.bf16.msra.mxu0 %v5531
      %5704 = vmatprep.subr.bf16.mxu0 0
      %5705 = vmatpush1.bf16.msra.mxu0 %v5532
      %5706 = vmatprep.subr.bf16.mxu0 0
      %5707 = vmatpush1.bf16.msra.mxu0 %v5533
      %5708 = vmatprep.subr.bf16.mxu0 0
      %5709 = vmatpush1.bf16.msra.mxu0 %v5534
      %5710 = vmatprep.subr.bf16.mxu0 0
      %5711 = vmatpush1.bf16.msra.mxu0 %v5535
      %5712 = vmatprep.subr.bf16.mxu0 0
      %5713 = vmatpush1.bf16.msra.mxu0 %v5536
      %5714 = vmatprep.subr.bf16.mxu0 0
      %5715 = vmatpush1.bf16.msra.mxu0 %v5537
      %5716 = vmatprep.subr.bf16.mxu0 0
      %5717 = vmatpush1.bf16.msra.mxu0 %v5538
      %5718 = vmatprep.subr.bf16.mxu0 0
      %5719 = vmatpush1.bf16.msra.mxu0 %v5539
      %5720 = vmatprep.subr.bf16.mxu0 0
      %5721 = vmatpush1.bf16.msra.mxu0 %v5540
      %5722 = vmatprep.subr.bf16.mxu0 0
      %5723 = vmatpush1.bf16.msra.mxu0 %v5541
      %5724 = vmatprep.subr.bf16.mxu0 0
      %5725 = vmatpush1.bf16.msra.mxu0 %v5542
      %5726 = vmatprep.subr.bf16.mxu0 0
      %5727 = vmatpush1.bf16.msra.mxu0 %v5543
      %5728 = vmatprep.mubr.bf16.mxu0 %v5214
      %5729 = vmatmul.mubr.bf16.gmra.mrb[0].mxu0 %v4699
      %v5730 = vpop.f32.mrb[0].mxu0
      %v5731 = vadd.f32 %v5691, %v5730
      %v5732 = vpop.f32.mrb[0].mxu0
      %v5733 = vpop.f32.mrb[0].mxu0
      %v5734 = vpop.f32.mrb[0].mxu0
      %5735 = vdwg.mxu0
      %5736 = vmatprep.subr.bf16.mxu0 0
      %5737 = vmatpush1.bf16.msra.mxu0 %v5544
      %5738 = vmatprep.subr.bf16.mxu0 0
      %5739 = vmatpush1.bf16.msra.mxu0 %v5545
      %5740 = vmatprep.subr.bf16.mxu0 0
      %5741 = vmatpush1.bf16.msra.mxu0 %v5546
      %5742 = vmatprep.subr.bf16.mxu0 0
      %5743 = vmatpush1.bf16.msra.mxu0 %v5547
      %5744 = vmatprep.subr.bf16.mxu0 0
      %5745 = vmatpush1.bf16.msra.mxu0 %v5548
      %5746 = vmatprep.subr.bf16.mxu0 0
      %5747 = vmatpush1.bf16.msra.mxu0 %v5549
      %5748 = vmatprep.subr.bf16.mxu0 0
      %5749 = vmatpush1.bf16.msra.mxu0 %v5550
      %5750 = vmatprep.subr.bf16.mxu0 0
      %5751 = vmatpush1.bf16.msra.mxu0 %v5551
      %5752 = vmatprep.subr.bf16.mxu0 0
      %5753 = vmatpush1.bf16.msra.mxu0 %v5552
      %5754 = vmatprep.subr.bf16.mxu0 0
      %5755 = vmatpush1.bf16.msra.mxu0 %v5553
      %5756 = vmatprep.subr.bf16.mxu0 0
      %5757 = vmatpush1.bf16.msra.mxu0 %v5554
      %5758 = vmatprep.subr.bf16.mxu0 0
      %5759 = vmatpush1.bf16.msra.mxu0 %v5555
      %5760 = vmatprep.subr.bf16.mxu0 0
      %5761 = vmatpush1.bf16.msra.mxu0 %v5556
      %5762 = vmatprep.subr.bf16.mxu0 0
      %5763 = vmatpush1.bf16.msra.mxu0 %v5557
      %5764 = vmatprep.subr.bf16.mxu0 0
      %5765 = vmatpush1.bf16.msra.mxu0 %v5558
      %5766 = vmatprep.subr.bf16.mxu0 0
      %5767 = vmatpush1.bf16.msra.mxu0 %v5559
      %5768 = vmatprep.mubr.bf16.mxu0 %v5222
      %5769 = vmatmul.mubr.bf16.gmra.mrb[0].mxu0 %v5218
      %v5770 = vpop.f32.mrb[0].mxu0
      %v5771 = vadd.f32 %v5731, %v5770
      %v5772 = vpop.f32.mrb[0].mxu0
      %v5773 = vpop.f32.mrb[0].mxu0
      %v5774 = vpop.f32.mrb[0].mxu0
      %5775 = vdwg.mxu0
      %5776 = vmatprep.subr.bf16.mxu0 0
      %5777 = vmatpush1.bf16.msra.mxu0 %v5560
      %5778 = vmatprep.subr.bf16.mxu0 0
      %5779 = vmatpush1.bf16.msra.mxu0 %v5561
      %5780 = vmatprep.subr.bf16.mxu0 0
      %5781 = vmatpush1.bf16.msra.mxu0 %v5562
      %5782 = vmatprep.subr.bf16.mxu0 0
      %5783 = vmatpush1.bf16.msra.mxu0 %v5563
      %5784 = vmatprep.subr.bf16.mxu0 0
      %5785 = vmatpush1.bf16.msra.mxu0 %v5564
      %5786 = vmatprep.subr.bf16.mxu0 0
      %5787 = vmatpush1.bf16.msra.mxu0 %v5565
      %5788 = vmatprep.subr.bf16.mxu0 0
      %5789 = vmatpush1.bf16.msra.mxu0 %v5566
      %5790 = vmatprep.subr.bf16.mxu0 0
      %5791 = vmatpush1.bf16.msra.mxu0 %v5567
      %5792 = vmatprep.subr.bf16.mxu0 0
      %5793 = vmatpush1.bf16.msra.mxu0 %v5568
      %5794 = vmatprep.subr.bf16.mxu0 0
      %5795 = vmatpush1.bf16.msra.mxu0 %v5569
      %5796 = vmatprep.subr.bf16.mxu0 0
      %5797 = vmatpush1.bf16.msra.mxu0 %v5570
      %5798 = vmatprep.subr.bf16.mxu0 0
      %5799 = vmatpush1.bf16.msra.mxu0 %v5571
      %5800 = vmatprep.subr.bf16.mxu0 0
      %5801 = vmatpush1.bf16.msra.mxu0 %v5572
      %5802 = vmatprep.subr.bf16.mxu0 0
      %5803 = vmatpush1.bf16.msra.mxu0 %v5573
      %5804 = vmatprep.subr.bf16.mxu0 0
      %5805 = vmatpush1.bf16.msra.mxu0 %v5574
      %5806 = vmatprep.subr.bf16.mxu0 0
      %5807 = vmatpush1.bf16.msra.mxu0 %v5575
      %5808 = vmatprep.mubr.bf16.mxu0 %v4694
      %5809 = vmatmul.mubr.bf16.gmra.mrb[0].mxu0 %v4691
      %v5810 = vpop.f32.mrb[0].mxu0
      %v5811 = vadd.f32 %v5771, %v5810
      %v5812 = vpop.f32.mrb[0].mxu0
      %v5813 = vpop.f32.mrb[0].mxu0
      %v5814 = vpop.f32.mrb[0].mxu0
      %5815 = vdwg.mxu0
      %5816 = vmatprep.subr.bf16.mxu0 0
      %5817 = vmatpush1.bf16.msra.mxu0 %v5576
      %5818 = vmatprep.subr.bf16.mxu0 0
      %5819 = vmatpush1.bf16.msra.mxu0 %v5577
      %5820 = vmatprep.subr.bf16.mxu0 0
      %5821 = vmatpush1.bf16.msra.mxu0 %v5578
      %5822 = vmatprep.subr.bf16.mxu0 0
      %5823 = vmatpush1.bf16.msra.mxu0 %v5579
      %5824 = vmatprep.subr.bf16.mxu0 0
      %5825 = vmatpush1.bf16.msra.mxu0 %v5580
      %5826 = vmatprep.subr.bf16.mxu0 0
      %5827 = vmatpush1.bf16.msra.mxu0 %v5581
      %5828 = vmatprep.subr.bf16.mxu0 0
      %5829 = vmatpush1.bf16.msra.mxu0 %v5582
      %5830 = vmatprep.subr.bf16.mxu0 0
      %5831 = vmatpush1.bf16.msra.mxu0 %v5583
      %5832 = vmatprep.subr.bf16.mxu0 0
      %5833 = vmatpush1.bf16.msra.mxu0 0
      %5834 = vmatprep.subr.bf16.mxu0 0
      %5835 = vmatpush1.bf16.msra.mxu0 0
      %5836 = vmatprep.subr.bf16.mxu0 0
      %5837 = vmatpush1.bf16.msra.mxu0 0
      %5838 = vmatprep.subr.bf16.mxu0 0
      %5839 = vmatpush1.bf16.msra.mxu0 0
      %5840 = vmatprep.subr.bf16.mxu0 0
      %5841 = vmatpush1.bf16.msra.mxu0 0
      %5842 = vmatprep.subr.bf16.mxu0 0
      %5843 = vmatpush1.bf16.msra.mxu0 0
      %5844 = vmatprep.subr.bf16.mxu0 0
      %5845 = vmatpush1.bf16.msra.mxu0 0
      %5846 = vmatprep.subr.bf16.mxu0 0
      %5847 = vmatpush1.bf16.msra.mxu0 0
      %5848 = vmatprep.mubr.bf16.mxu0 0
      %5849 = vmatmul.mubr.bf16.gmra.mrb[0].mxu0 %v4699
      %v5850 = vpop.f32.mrb[0].mxu0
      %v5851 = vadd.f32 %v5811, %v5850
      %v5852 = vpop.f32.mrb[0].mxu0
      %v5853 = vpop.f32.mrb[0].mxu0
      %v5854 = vpop.f32.mrb[0].mxu0
      %5855 = vdwg.mxu0
      %v5856 = vmul.f32 %v5851, %v5205
      %v5857 = vadd.f32 %v5856, %v5206
      %v5858 = vmax.f32 %v5857, 0.0
      %v5859 = vpack.c.bf16 %v5858, %v5858
      %v5861 = vshll.u32 %v5859, 16
      %v5864 = vsel %vm1233, %v5859, %v5861
      %v5865 = vld [vmem:[%s39] sm:$0xf]
      %v5866 = vld [vmem:[%s39 + $0x4] sm:$0xf]
      %v5867 = vld [vmem:[%s39 + $0x8] sm:$0xf]
      %v5868 = vld [vmem:[%s39 + $0xc] sm:$0xf]
      %v5869 = vld [vmem:[%s39 + $0x10] sm:$0xf]
      %v5870 = vld [vmem:[%s39 + $0x14] sm:$0xf]
      %v5871 = vld [vmem:[%s39 + $0x18] sm:$0xf]
      %v5872 = vld [vmem:[%s39 + $0x1c] sm:$0xf]
      %v5873 = vld [vmem:[%s39 + $0x20] sm:$0xf]
      %v5874 = vld [vmem:[%s39 + $0x24] sm:$0xf]
      %v5875 = vld [vmem:[%s39 + $0x28] sm:$0xf]
      %v5876 = vld [vmem:[%s39 + $0x2c] sm:$0xf]
      %v5877 = vld [vmem:[%s39 + $0x30] sm:$0xf]
      %v5878 = vld [vmem:[%s39 + $0x34] sm:$0xf]
      %v5879 = vld [vmem:[%s39 + $0x38] sm:$0xf]
      %v5880 = vld [vmem:[%s39 + $0x3c] sm:$0xf]
      %v5881 = vld [vmem:[%s39 + $0x40] sm:$0xf]
      %v5882 = vld [vmem:[%s39 + $0x44] sm:$0xf]
      %v5883 = vld [vmem:[%s39 + $0x48] sm:$0xf]
      %v5884 = vld [vmem:[%s39 + $0x4c] sm:$0xf]
      %v5885 = vld [vmem:[%s39 + $0x50] sm:$0xf]
      %v5886 = vld [vmem:[%s39 + $0x54] sm:$0xf]
      %v5887 = vld [vmem:[%s39 + $0x58] sm:$0xf]
      %v5888 = vld [vmem:[%s39 + $0x5c] sm:$0xf]
      %v5889 = vld [vmem:[%s39 + $0x60] sm:$0xf]
      %v5890 = vld [vmem:[%s39 + $0x64] sm:$0xf]
      %v5891 = vld [vmem:[%s39 + $0x68] sm:$0xf]
      %v5892 = vld [vmem:[%s39 + $0x6c] sm:$0xf]
      %v5893 = vld [vmem:[%s39 + $0x70] sm:$0xf]
      %v5894 = vld [vmem:[%s39 + $0x74] sm:$0xf]
      %v5895 = vld [vmem:[%s39 + $0x78] sm:$0xf]
      %v5896 = vld [vmem:[%s39 + $0x7c] sm:$0xf]
      %v5897 = vld [vmem:[%s39 + $0x80] sm:$0xf]
      %v5898 = vld [vmem:[%s39 + $0x84] sm:$0xf]
      %v5899 = vld [vmem:[%s39 + $0x88] sm:$0xf]
      %v5900 = vld [vmem:[%s39 + $0x8c] sm:$0xf]
      %v5901 = vld [vmem:[%s39 + $0x90] sm:$0xf]
      %v5902 = vld [vmem:[%s39 + $0x94] sm:$0xf]
      %v5903 = vld [vmem:[%s39 + $0x98] sm:$0xf]
      %v5904 = vld [vmem:[%s39 + $0x9c] sm:$0xf]
      %v5905 = vld [vmem:[%s39 + $0xa0] sm:$0xf]
      %v5906 = vld [vmem:[%s39 + $0xa4] sm:$0xf]
      %v5907 = vld [vmem:[%s39 + $0xa8] sm:$0xf]
      %v5908 = vld [vmem:[%s39 + $0xac] sm:$0xf]
      %v5909 = vld [vmem:[%s39 + $0xb0] sm:$0xf]
      %v5910 = vld [vmem:[%s39 + $0xb4] sm:$0xf]
      %v5911 = vld [vmem:[%s39 + $0xb8] sm:$0xf]
      %v5912 = vld [vmem:[%s39 + $0xbc] sm:$0xf]
      %v5913 = vld [vmem:[%s39 + $0xc0] sm:$0xf]
      %v5914 = vld [vmem:[%s39 + $0xc4] sm:$0xf]
      %v5915 = vld [vmem:[%s39 + $0xc8] sm:$0xf]
      %v5916 = vld [vmem:[%s39 + $0xcc] sm:$0xf]
      %v5917 = vld [vmem:[%s39 + $0xd0] sm:$0xf]
      %v5918 = vld [vmem:[%s39 + $0xd4] sm:$0xf]
      %v5919 = vld [vmem:[%s39 + $0xd8] sm:$0xf]
      %v5920 = vld [vmem:[%s39 + $0xdc] sm:$0xf]
      %v5921 = vld [vmem:[%s39 + $0xe0] sm:$0xf]
      %v5922 = vld [vmem:[%s39 + $0xe4] sm:$0xf]
      %v5923 = vld [vmem:[%s39 + $0xe8] sm:$0xf]
      %v5924 = vld [vmem:[%s39 + $0xec] sm:$0xf]
      %v5925 = vld [vmem:[%s39 + $0xf0] sm:$0xf]
      %v5926 = vld [vmem:[%s39 + $0xf4] sm:$0xf]
      %v5927 = vld [vmem:[%s39 + $0xf8] sm:$0xf]
      %v5928 = vld [vmem:[%s39 + $0xfc] sm:$0xf]
      %v5929 = vld [vmem:[%s39 + $0x100] sm:$0xf]
      %v5930 = vld [vmem:[%s39 + $0x104] sm:$0xf]
      %v5931 = vld [vmem:[%s39 + $0x108] sm:$0xf]
      %v5932 = vld [vmem:[%s39 + $0x10c] sm:$0xf]
      %v5933 = vld [vmem:[%s39 + $0x110] sm:$0xf]
      %v5934 = vld [vmem:[%s39 + $0x114] sm:$0xf]
      %v5935 = vld [vmem:[%s39 + $0x118] sm:$0xf]
      %v5936 = vld [vmem:[%s39 + $0x11c] sm:$0xf]
      %v5937 = vld [vmem:[%s41] sm:$0x1]
      %v5938 = vld [vmem:[%s43] sm:$0x1]
      %v5940 = vshrl.u32 %v5864, 16
      %v5942 = vrot.slane %v5940, 7
      %v5943 = vshll.u32 %v5864, 16
      %v5945 = vor.u32 %v5942, %v5943
      %v5947 = vsel %vm1233, 0, %v5945
      %v5948 = vsel %vm2690, %v5947, 0
      %v5951 = vunpack.c.l.s4 1966171168
      %v5952 = vunpack.c.0.s8 %v5951
      %v5953 = vlaneseq
      %v5954 = vshrl.u32 %v5953, 7
      %v5955 = vsub.s32 %v5952, %v5954
      %v5956 = vrot.slane %v5948, %v5955
      %v5957 = vcombine.high %v5956, %v5956
      %v5959 = vunpack.c.l.s4 1966171168
      %v5960 = vunpack.c.0.s8 %v5959
      %v5961 = vlaneseq
      %v5962 = vshrl.u32 %v5961, 7
      %v5963 = vsub.s32 %v5960, %v5962
      %v5964 = vrot.slane %v5956, %v5963
      %v5966 = vunpack.c.l.s4 1966171168
      %v5967 = vunpack.c.0.s8 %v5966
      %v5968 = vlaneseq
      %v5969 = vshrl.u32 %v5968, 7
      %v5970 = vsub.s32 %v5967, %v5969
      %v5971 = vrot.slane %v5957, %v5970
      %v5973 = vshrl.u32 %v5964, 16
      %v5975 = vrot.slane %v5973, 7
      %v5976 = vrot.slane %v5975, 1
      %v5978 = vshll.u32 %v5971, 16
      %v5980 = vsel %vm4168, %v5976, %v5978
      %v5981 = vcombine.low %v4106, %v5948
      %v5983 = vunpack.c.l.s4 1966171168
      %v5984 = vunpack.c.0.s8 %v5983
      %v5985 = vlaneseq
      %v5986 = vshrl.u32 %v5985, 7
      %v5987 = vsub.s32 %v5984, %v5986
      %v5988 = vrot.slane %v5981, %v5987
      %v5990 = vunpack.c.l.s4 1966171168
      %v5991 = vunpack.c.0.s8 %v5990
      %v5992 = vlaneseq
      %v5993 = vshrl.u32 %v5992, 7
      %v5994 = vsub.s32 %v5991, %v5993
      %v5995 = vrot.slane %v5988, %v5994
      %v5996 = vcombine.low %v4177, %v5980
      %v5998 = vunpack.c.l.s4 1966171168
      %v5999 = vunpack.c.0.s8 %v5998
      %v6000 = vlaneseq
      %v6001 = vshrl.u32 %v6000, 7
      %v6002 = vsub.s32 %v5999, %v6001
      %v6003 = vrot.slane %v5996, %v6002
      %v6005 = vunpack.c.l.s4 1966171168
      %v6006 = vunpack.c.0.s8 %v6005
      %v6007 = vlaneseq
      %v6008 = vshrl.u32 %v6007, 7
      %v6009 = vsub.s32 %v6006, %v6008
      %v6010 = vrot.slane %v6003, %v6009
      %6011 = vrot.lane.b32.xlu0 %v6010, 64
      %v6012 = vpop.permute.xlu0 %6011
      %v6013 = vcombine.low %v4132, %v5971
      %v6015 = vunpack.c.l.s4 1966171168
      %v6016 = vunpack.c.0.s8 %v6015
      %v6017 = vlaneseq
      %v6018 = vshrl.u32 %v6017, 7
      %v6019 = vsub.s32 %v6016, %v6018
      %v6020 = vrot.slane %v6013, %v6019
      %v6022 = vunpack.c.l.s4 1966171168
      %v6023 = vunpack.c.0.s8 %v6022
      %v6024 = vlaneseq
      %v6025 = vshrl.u32 %v6024, 7
      %v6026 = vsub.s32 %v6023, %v6025
      %v6027 = vrot.slane %v6020, %v6026
      %v6028 = vcombine.low %v5948, %v5948
      %v6030 = vunpack.c.l.s4 1966171168
      %v6031 = vunpack.c.0.s8 %v6030
      %v6032 = vlaneseq
      %v6033 = vshrl.u32 %v6032, 7
      %v6034 = vsub.s32 %v6031, %v6033
      %v6035 = vrot.slane %v6028, %v6034
      %v6037 = vunpack.c.l.s4 1966171168
      %v6038 = vunpack.c.0.s8 %v6037
      %v6039 = vlaneseq
      %v6040 = vshrl.u32 %v6039, 7
      %v6041 = vsub.s32 %v6038, %v6040
      %v6042 = vrot.slane %v6035, %v6041
      %6043 = vrot.lane.b32.xlu0 %v6042, 64
      %v6044 = vpop.permute.xlu0 %6043
      %v6045 = vcombine.low %v5980, %v5980
      %v6047 = vunpack.c.l.s4 1966171168
      %v6048 = vunpack.c.0.s8 %v6047
      %v6049 = vlaneseq
      %v6050 = vshrl.u32 %v6049, 7
      %v6051 = vsub.s32 %v6048, %v6050
      %v6052 = vrot.slane %v6045, %v6051
      %v6054 = vunpack.c.l.s4 1966171168
      %v6055 = vunpack.c.0.s8 %v6054
      %v6056 = vlaneseq
      %v6057 = vshrl.u32 %v6056, 7
      %v6058 = vsub.s32 %v6055, %v6057
      %v6059 = vrot.slane %v6052, %v6058
      %v6060 = vcombine.low %v5971, %v5971
      %v6062 = vunpack.c.l.s4 1966171168
      %v6063 = vunpack.c.0.s8 %v6062
      %v6064 = vlaneseq
      %v6065 = vshrl.u32 %v6064, 7
      %v6066 = vsub.s32 %v6063, %v6065
      %v6067 = vrot.slane %v6060, %v6066
      %v6069 = vunpack.c.l.s4 1966171168
      %v6070 = vunpack.c.0.s8 %v6069
      %v6071 = vlaneseq
      %v6072 = vshrl.u32 %v6071, 7
      %v6073 = vsub.s32 %v6070, %v6072
      %v6074 = vrot.slane %v6067, %v6073
      %6075 = vrot.lane.b32.xlu0 %v6074, 64
      %v6076 = vpop.permute.xlu0 %6075
      %v6077 = vcombine.low %v5948, %v4106
      %v6079 = vunpack.c.l.s4 1966171168
      %v6080 = vunpack.c.0.s8 %v6079
      %v6081 = vlaneseq
      %v6082 = vshrl.u32 %v6081, 7
      %v6083 = vsub.s32 %v6080, %v6082
      %v6084 = vrot.slane %v6077, %v6083
      %v6086 = vunpack.c.l.s4 1966171168
      %v6087 = vunpack.c.0.s8 %v6086
      %v6088 = vlaneseq
      %v6089 = vshrl.u32 %v6088, 7
      %v6090 = vsub.s32 %v6087, %v6089
      %v6091 = vrot.slane %v6084, %v6090
      %v6092 = vcombine.low %v5980, %v4177
      %v6094 = vunpack.c.l.s4 1966171168
      %v6095 = vunpack.c.0.s8 %v6094
      %v6096 = vlaneseq
      %v6097 = vshrl.u32 %v6096, 7
      %v6098 = vsub.s32 %v6095, %v6097
      %v6099 = vrot.slane %v6092, %v6098
      %v6101 = vunpack.c.l.s4 1966171168
      %v6102 = vunpack.c.0.s8 %v6101
      %v6103 = vlaneseq
      %v6104 = vshrl.u32 %v6103, 7
      %v6105 = vsub.s32 %v6102, %v6104
      %v6106 = vrot.slane %v6099, %v6105
      %6107 = vrot.lane.b32.xlu0 %v6106, 64
      %v6108 = vpop.permute.xlu0 %6107
      %v6109 = vcombine.low %v5971, %v4132
      %v6111 = vunpack.c.l.s4 1966171168
      %v6112 = vunpack.c.0.s8 %v6111
      %v6113 = vlaneseq
      %v6114 = vshrl.u32 %v6113, 7
      %v6115 = vsub.s32 %v6112, %v6114
      %v6116 = vrot.slane %v6109, %v6115
      %v6118 = vunpack.c.l.s4 1966171168
      %v6119 = vunpack.c.0.s8 %v6118
      %v6120 = vlaneseq
      %v6121 = vshrl.u32 %v6120, 7
      %v6122 = vsub.s32 %v6119, %v6121
      %v6123 = vrot.slane %v6116, %v6122
      %v6126 = vsel %vm3268, %v5995, %v6012
      %v6130 = vsel %vm3268, %v6027, %v6044
      %v6134 = vsel %vm3268, %v6059, %v6076
      %v6138 = vsel %vm3268, %v6091, %v6108
      %v6212 = vunpack.c.l.b16 %v5865
      %v6213 = vunpack.c.l.b16 %v5866
      %v6214 = vunpack.c.l.b16 %v5867
      %v6215 = vunpack.c.l.b16 %v5868
      %v6216 = vunpack.c.l.b16 %v5869
      %v6217 = vunpack.c.l.b16 %v5870
      %v6218 = vunpack.c.l.b16 %v5871
      %v6219 = vunpack.c.l.b16 %v5872
      %v6220 = vunpack.c.l.b16 %v5873
      %v6221 = vunpack.c.l.b16 %v5874
      %v6222 = vunpack.c.l.b16 %v5875
      %v6223 = vunpack.c.l.b16 %v5876
      %v6224 = vunpack.c.l.b16 %v5877
      %v6225 = vunpack.c.l.b16 %v5878
      %v6226 = vunpack.c.l.b16 %v5879
      %v6227 = vunpack.c.l.b16 %v5880
      %v6228 = vunpack.c.l.b16 %v5881
      %v6229 = vunpack.c.l.b16 %v5882
      %v6230 = vunpack.c.l.b16 %v5883
      %v6231 = vunpack.c.l.b16 %v5884
      %v6232 = vunpack.c.l.b16 %v5885
      %v6233 = vunpack.c.l.b16 %v5886
      %v6234 = vunpack.c.l.b16 %v5887
      %v6235 = vunpack.c.l.b16 %v5888
      %v6236 = vunpack.c.l.b16 %v5889
      %v6237 = vunpack.c.l.b16 %v5890
      %v6238 = vunpack.c.l.b16 %v5891
      %v6239 = vunpack.c.l.b16 %v5892
      %v6240 = vunpack.c.l.b16 %v5893
      %v6241 = vunpack.c.l.b16 %v5894
      %v6242 = vunpack.c.l.b16 %v5895
      %v6243 = vunpack.c.l.b16 %v5896
      %v6244 = vunpack.c.l.b16 %v5897
      %v6245 = vunpack.c.l.b16 %v5898
      %v6246 = vunpack.c.l.b16 %v5899
      %v6247 = vunpack.c.l.b16 %v5900
      %v6248 = vunpack.c.l.b16 %v5901
      %v6249 = vunpack.c.l.b16 %v5902
      %v6250 = vunpack.c.l.b16 %v5903
      %v6251 = vunpack.c.l.b16 %v5904
      %v6252 = vunpack.c.l.b16 %v5905
      %v6253 = vunpack.c.l.b16 %v5906
      %v6254 = vunpack.c.l.b16 %v5907
      %v6255 = vunpack.c.l.b16 %v5908
      %v6256 = vunpack.c.l.b16 %v5909
      %v6257 = vunpack.c.l.b16 %v5910
      %v6258 = vunpack.c.l.b16 %v5911
      %v6259 = vunpack.c.l.b16 %v5912
      %v6260 = vunpack.c.l.b16 %v5913
      %v6261 = vunpack.c.l.b16 %v5914
      %v6262 = vunpack.c.l.b16 %v5915
      %v6263 = vunpack.c.l.b16 %v5916
      %v6264 = vunpack.c.l.b16 %v5917
      %v6265 = vunpack.c.l.b16 %v5918
      %v6266 = vunpack.c.l.b16 %v5919
      %v6267 = vunpack.c.l.b16 %v5920
      %v6268 = vunpack.c.l.b16 %v5921
      %v6269 = vunpack.c.l.b16 %v5922
      %v6270 = vunpack.c.l.b16 %v5923
      %v6271 = vunpack.c.l.b16 %v5924
      %v6272 = vunpack.c.l.b16 %v5925
      %v6273 = vunpack.c.l.b16 %v5926
      %v6274 = vunpack.c.l.b16 %v5927
      %v6275 = vunpack.c.l.b16 %v5928
      %v6276 = vunpack.c.l.b16 %v5929
      %v6277 = vunpack.c.l.b16 %v5930
      %v6278 = vunpack.c.l.b16 %v5931
      %v6279 = vunpack.c.l.b16 %v5932
      %v6280 = vunpack.c.l.b16 %v5933
      %v6281 = vunpack.c.l.b16 %v5934
      %v6282 = vunpack.c.l.b16 %v5935
      %v6283 = vunpack.c.l.b16 %v5936
      %v6284 = vpack.c.b16 %v6213, %v6212
      %v6285 = vpack.c.b16 %v6215, %v6214
      %v6286 = vpack.c.b16 %v6217, %v6216
      %v6287 = vpack.c.b16 %v6219, %v6218
      %v6288 = vpack.c.b16 %v6221, %v6220
      %v6289 = vpack.c.b16 %v6223, %v6222
      %v6290 = vpack.c.b16 %v6225, %v6224
      %v6291 = vpack.c.b16 %v6227, %v6226
      %v6292 = vpack.c.b16 %v6229, %v6228
      %v6293 = vpack.c.b16 %v6231, %v6230
      %v6294 = vpack.c.b16 %v6233, %v6232
      %v6295 = vpack.c.b16 %v6235, %v6234
      %v6296 = vpack.c.b16 %v6237, %v6236
      %v6297 = vpack.c.b16 %v6239, %v6238
      %v6298 = vpack.c.b16 %v6241, %v6240
      %v6299 = vpack.c.b16 %v6243, %v6242
      %v6300 = vpack.c.b16 %v6245, %v6244
      %v6301 = vpack.c.b16 %v6247, %v6246
      %v6302 = vpack.c.b16 %v6249, %v6248
      %v6303 = vpack.c.b16 %v6251, %v6250
      %v6304 = vpack.c.b16 %v6253, %v6252
      %v6305 = vpack.c.b16 %v6255, %v6254
      %v6306 = vpack.c.b16 %v6257, %v6256
      %v6307 = vpack.c.b16 %v6259, %v6258
      %v6308 = vpack.c.b16 %v6261, %v6260
      %v6309 = vpack.c.b16 %v6263, %v6262
      %v6310 = vpack.c.b16 %v6265, %v6264
      %v6311 = vpack.c.b16 %v6267, %v6266
      %v6312 = vpack.c.b16 %v6269, %v6268
      %v6313 = vpack.c.b16 %v6271, %v6270
      %v6314 = vpack.c.b16 %v6273, %v6272
      %v6315 = vpack.c.b16 %v6275, %v6274
      %v6316 = vpack.c.b16 %v6277, %v6276
      %v6317 = vpack.c.b16 %v6279, %v6278
      %v6318 = vpack.c.b16 %v6281, %v6280
      %v6319 = vpack.c.b16 %v6283, %v6282
      %v6357 = vsel %vm3268, %v6123, 0
      %6359 = vmatprep.subr.bf16.mxu0 0
      %6360 = vmatpush1.bf16.msra.mxu0 %v6284
      %6361 = vmatprep.subr.bf16.mxu0 0
      %6362 = vmatpush1.bf16.msra.mxu0 %v6285
      %6363 = vmatprep.subr.bf16.mxu0 0
      %6364 = vmatpush1.bf16.msra.mxu0 %v6286
      %6365 = vmatprep.subr.bf16.mxu0 0
      %6366 = vmatpush1.bf16.msra.mxu0 %v6287
      %6367 = vmatprep.subr.bf16.mxu0 0
      %6368 = vmatpush1.bf16.msra.mxu0 %v6288
      %6369 = vmatprep.subr.bf16.mxu0 0
      %6370 = vmatpush1.bf16.msra.mxu0 %v6289
      %6371 = vmatprep.subr.bf16.mxu0 0
      %6372 = vmatpush1.bf16.msra.mxu0 %v6290
      %6373 = vmatprep.subr.bf16.mxu0 0
      %6374 = vmatpush1.bf16.msra.mxu0 %v6291
      %6375 = vmatprep.subr.bf16.mxu0 0
      %6376 = vmatpush1.bf16.msra.mxu0 %v6292
      %6377 = vmatprep.subr.bf16.mxu0 0
      %6378 = vmatpush1.bf16.msra.mxu0 %v6293
      %6379 = vmatprep.subr.bf16.mxu0 0
      %6380 = vmatpush1.bf16.msra.mxu0 %v6294
      %6381 = vmatprep.subr.bf16.mxu0 0
      %6382 = vmatpush1.bf16.msra.mxu0 %v6295
      %6383 = vmatprep.subr.bf16.mxu0 0
      %6384 = vmatpush1.bf16.msra.mxu0 %v6296
      %6385 = vmatprep.subr.bf16.mxu0 0
      %6386 = vmatpush1.bf16.msra.mxu0 %v6297
      %6387 = vmatprep.subr.bf16.mxu0 0
      %6388 = vmatpush1.bf16.msra.mxu0 %v6298
      %6389 = vmatprep.subr.bf16.mxu0 0
      %6390 = vmatpush1.bf16.msra.mxu0 %v6299
      %6391 = vmatprep.mubr.bf16.mxu0 %v6130
      %6392 = vmatmul.mubr.bf16.gmra.mrb[0].mxu0 %v6126
      %v6393 = vpop.f32.mrb[0].mxu0
      %v6394 = vadd.f32 0.0, %v6393
      %v6395 = vpop.f32.mrb[0].mxu0
      %v6396 = vpop.f32.mrb[0].mxu0
      %v6397 = vpop.f32.mrb[0].mxu0
      %6398 = vdwg.mxu0
      %6399 = vmatprep.subr.bf16.mxu0 0
      %6400 = vmatpush1.bf16.msra.mxu0 %v6300
      %6401 = vmatprep.subr.bf16.mxu0 0
      %6402 = vmatpush1.bf16.msra.mxu0 %v6301
      %6403 = vmatprep.subr.bf16.mxu0 0
      %6404 = vmatpush1.bf16.msra.mxu0 %v6302
      %6405 = vmatprep.subr.bf16.mxu0 0
      %6406 = vmatpush1.bf16.msra.mxu0 %v6303
      %6407 = vmatprep.subr.bf16.mxu0 0
      %6408 = vmatpush1.bf16.msra.mxu0 %v6304
      %6409 = vmatprep.subr.bf16.mxu0 0
      %6410 = vmatpush1.bf16.msra.mxu0 %v6305
      %6411 = vmatprep.subr.bf16.mxu0 0
      %6412 = vmatpush1.bf16.msra.mxu0 %v6306
      %6413 = vmatprep.subr.bf16.mxu0 0
      %6414 = vmatpush1.bf16.msra.mxu0 %v6307
      %6415 = vmatprep.subr.bf16.mxu0 0
      %6416 = vmatpush1.bf16.msra.mxu0 %v6308
      %6417 = vmatprep.subr.bf16.mxu0 0
      %6418 = vmatpush1.bf16.msra.mxu0 %v6309
      %6419 = vmatprep.subr.bf16.mxu0 0
      %6420 = vmatpush1.bf16.msra.mxu0 %v6310
      %6421 = vmatprep.subr.bf16.mxu0 0
      %6422 = vmatpush1.bf16.msra.mxu0 %v6311
      %6423 = vmatprep.subr.bf16.mxu0 0
      %6424 = vmatpush1.bf16.msra.mxu0 %v6312
      %6425 = vmatprep.subr.bf16.mxu0 0
      %6426 = vmatpush1.bf16.msra.mxu0 %v6313
      %6427 = vmatprep.subr.bf16.mxu0 0
      %6428 = vmatpush1.bf16.msra.mxu0 %v6314
      %6429 = vmatprep.subr.bf16.mxu0 0
      %6430 = vmatpush1.bf16.msra.mxu0 %v6315
      %6431 = vmatprep.mubr.bf16.mxu0 %v6138
      %6432 = vmatmul.mubr.bf16.gmra.mrb[0].mxu0 %v6134
      %v6433 = vpop.f32.mrb[0].mxu0
      %v6434 = vadd.f32 %v6394, %v6433
      %v6435 = vpop.f32.mrb[0].mxu0
      %v6436 = vpop.f32.mrb[0].mxu0
      %v6437 = vpop.f32.mrb[0].mxu0
      %6438 = vdwg.mxu0
      %6439 = vmatprep.subr.bf16.mxu0 0
      %6440 = vmatpush1.bf16.msra.mxu0 %v6316
      %6441 = vmatprep.subr.bf16.mxu0 0
      %6442 = vmatpush1.bf16.msra.mxu0 %v6317
      %6443 = vmatprep.subr.bf16.mxu0 0
      %6444 = vmatpush1.bf16.msra.mxu0 %v6318
      %6445 = vmatprep.subr.bf16.mxu0 0
      %6446 = vmatpush1.bf16.msra.mxu0 %v6319
      %6447 = vmatprep.subr.bf16.mxu0 0
      %6448 = vmatpush1.bf16.msra.mxu0 0
      %6449 = vmatprep.subr.bf16.mxu0 0
      %6450 = vmatpush1.bf16.msra.mxu0 0
      %6451 = vmatprep.subr.bf16.mxu0 0
      %6452 = vmatpush1.bf16.msra.mxu0 0
      %6453 = vmatprep.subr.bf16.mxu0 0
      %6454 = vmatpush1.bf16.msra.mxu0 0
      %6455 = vmatprep.subr.bf16.mxu0 0
      %6456 = vmatpush1.bf16.msra.mxu0 0
      %6457 = vmatprep.subr.bf16.mxu0 0
      %6458 = vmatpush1.bf16.msra.mxu0 0
      %6459 = vmatprep.subr.bf16.mxu0 0
      %6460 = vmatpush1.bf16.msra.mxu0 0
      %6461 = vmatprep.subr.bf16.mxu0 0
      %6462 = vmatpush1.bf16.msra.mxu0 0
      %6463 = vmatprep.subr.bf16.mxu0 0
      %6464 = vmatpush1.bf16.msra.mxu0 0
      %6465 = vmatprep.subr.bf16.mxu0 0
      %6466 = vmatpush1.bf16.msra.mxu0 0
      %6467 = vmatprep.subr.bf16.mxu0 0
      %6468 = vmatpush1.bf16.msra.mxu0 0
      %6469 = vmatprep.subr.bf16.mxu0 0
      %6470 = vmatpush1.bf16.msra.mxu0 0
      %6471 = vmatprep.mubr.bf16.mxu0 0
      %6472 = vmatmul.mubr.bf16.gmra.mrb[0].mxu0 %v6357
      %v6473 = vpop.f32.mrb[0].mxu0
      %v6474 = vadd.f32 %v6434, %v6473
      %v6475 = vpop.f32.mrb[0].mxu0
      %v6476 = vpop.f32.mrb[0].mxu0
      %v6477 = vpop.f32.mrb[0].mxu0
      %6478 = vdwg.mxu0
      %v6480 = vlaneseq
      %v6481 = vshrl.u32 %v6480, 7
      %v6482 = vsub.s32 0, %v6481
      %v6483 = vrot.slane %v5937, %v6482
      %v6485 = vmul.f32 %v6474, %v6483
      %v6487 = vlaneseq
      %v6488 = vshrl.u32 %v6487, 7
      %v6489 = vsub.s32 0, %v6488
      %v6490 = vrot.slane %v5938, %v6489
      %v6492 = vadd.f32 %v6485, %v6490
      %v6493 = vmax.f32 %v6492, 0.0
      %v6496 = vunpack.c.l.s4 1983009808
      %v6497 = vunpack.c.0.s8 %v6496
      %v6498 = vlaneseq
      %v6499 = vshrl.u32 %v6498, 7
      %v6500 = vsub.s32 %v6497, %v6499
      %v6501 = vrot.slane %v6493, %v6500
      %v6502 = vcombine.high %v6501, %v6501
      %v6505 = vpack.c.bf16 %v6501, %v6501
      %v6506 = vpack.c.bf16 %v6502, %v6502
      %v6508 = vshll.u32 %v6505, 16
      %v6511 = vshll.u32 %v6506, 16
      %v6515 = vshrl.u32 %v6505, 16
      %v6517 = vrot.slane %v6515, 7
      %v6518 = vshrl.u32 %v6506, 16
      %v6520 = vrot.slane %v6518, 7
      %v6523 = vrot.slane %v6505, 7
      %v6524 = vrot.slane %v6506, 7
      %v6527 = vsel %vm1233, %v6505, %v6508
      %v6528 = vsel %vm1233, %v6506, %v6511
      %v6531 = vsel %vm2655, %v6527, %v6517
      %v6535 = vsel %vm2655, %v6528, %v6520
      %v6537 = vsel %vm2690, %v6531, %v6523
      %v6538 = vsel %vm2690, %v6535, %v6524
      %v6539 = vld [vmem:[%s45] sm:$0xf]
      %v6540 = vld [vmem:[%s45 + $0x4] sm:$0xf]
      %v6541 = vld [vmem:[%s45 + $0x8] sm:$0xf]
      %v6542 = vld [vmem:[%s45 + $0xc] sm:$0xf]
      %v6543 = vld [vmem:[%s45 + $0x10] sm:$0xf]
      %v6544 = vld [vmem:[%s45 + $0x14] sm:$0xf]
      %v6545 = vld [vmem:[%s45 + $0x18] sm:$0xf]
      %v6546 = vld [vmem:[%s45 + $0x1c] sm:$0xf]
      %v6547 = vld [vmem:[%s45 + $0x20] sm:$0xf]
      %v6548 = vld [vmem:[%s45 + $0x24] sm:$0xf]
      %v6549 = vld [vmem:[%s45 + $0x28] sm:$0xf]
      %v6550 = vld [vmem:[%s45 + $0x2c] sm:$0xf]
      %v6551 = vld [vmem:[%s45 + $0x30] sm:$0xf]
      %v6552 = vld [vmem:[%s45 + $0x34] sm:$0xf]
      %v6553 = vld [vmem:[%s45 + $0x38] sm:$0xf]
      %v6554 = vld [vmem:[%s45 + $0x3c] sm:$0xf]
      %v6555 = vld [vmem:[%s45 + $0x40] sm:$0xf]
      %v6556 = vld [vmem:[%s45 + $0x44] sm:$0xf]
      %v6557 = vld [vmem:[%s45 + $0x48] sm:$0xf]
      %v6558 = vld [vmem:[%s45 + $0x4c] sm:$0xf]
      %v6559 = vld [vmem:[%s45 + $0x50] sm:$0xf]
      %v6560 = vld [vmem:[%s45 + $0x54] sm:$0xf]
      %v6561 = vld [vmem:[%s45 + $0x58] sm:$0xf]
      %v6562 = vld [vmem:[%s45 + $0x5c] sm:$0xf]
      %v6563 = vld [vmem:[%s45 + $0x60] sm:$0xf]
      %v6564 = vld [vmem:[%s45 + $0x64] sm:$0xf]
      %v6565 = vld [vmem:[%s45 + $0x68] sm:$0xf]
      %v6566 = vld [vmem:[%s45 + $0x6c] sm:$0xf]
      %v6567 = vld [vmem:[%s45 + $0x70] sm:$0xf]
      %v6568 = vld [vmem:[%s45 + $0x74] sm:$0xf]
      %v6569 = vld [vmem:[%s45 + $0x78] sm:$0xf]
      %v6570 = vld [vmem:[%s45 + $0x7c] sm:$0xf]
      %v6571 = vld [vmem:[%s45 + $0x80] sm:$0xf]
      %v6572 = vld [vmem:[%s45 + $0x84] sm:$0xf]
      %v6573 = vld [vmem:[%s45 + $0x88] sm:$0xf]
      %v6574 = vld [vmem:[%s45 + $0x8c] sm:$0xf]
      %v6575 = vld [vmem:[%s47] sm:$0x1]
      %v6576 = vld [vmem:[%s49] sm:$0x1]
      %v6578 = vshrl.u32 %v6537, 16
      %v6580 = vrot.slane %v6578, 7
      %v6581 = vshll.u32 %v6537, 16
      %v6583 = vor.u32 %v6580, %v6581
      %v6585 = vshrl.u32 %v6538, 16
      %v6587 = vrot.slane %v6585, 7
      %v6588 = vshll.u32 %v6538, 16
      %v6590 = vor.u32 %v6587, %v6588
      %v6593 = vsel %vm1233, 0, %v6583
      %v6594 = vsel %vm1233, 0, %v6590
      %v6595 = vsel %vm2734, %v6593, 0
      %v6596 = vsel %vm2734, %v6594, 0
      %v6600 = vunpack.c.l.s4 1983009808
      %v6601 = vunpack.c.0.s8 %v6600
      %v6602 = vlaneseq
      %v6603 = vshrl.u32 %v6602, 7
      %v6604 = vsub.s32 %v6601, %v6603
      %v6605 = vrot.slane %v6595, %v6604
      %v6606 = vcombine.high %v6605, %v6605
      %v6608 = vunpack.c.l.s4 1983009808
      %v6609 = vunpack.c.0.s8 %v6608
      %v6610 = vlaneseq
      %v6611 = vshrl.u32 %v6610, 7
      %v6612 = vsub.s32 %v6609, %v6611
      %v6613 = vrot.slane %v6596, %v6612
      %v6614 = vcombine.high %v6613, %v6613
      %v6616 = vshrl.u32 %v6605, 16
      %v6618 = vrot.slane %v6616, 6
      %v6619 = vshll.u32 %v6605, 16
      %v6621 = vrot.slane %v6619, 7
      %v6622 = vor.u32 %v6618, %v6621
      %v6623 = vrot.slane %v6622, 2
      %v6625 = vshll.u32 %v6606, 16
      %v6627 = vrot.slane %v6625, 7
      %v6628 = vsel %vm3628, %v6623, %v6627
      %v6630 = vshrl.u32 %v6613, 16
      %v6632 = vrot.slane %v6630, 6
      %v6633 = vshll.u32 %v6613, 16
      %v6635 = vrot.slane %v6633, 7
      %v6636 = vor.u32 %v6632, %v6635
      %v6637 = vrot.slane %v6636, 2
      %v6639 = vshll.u32 %v6614, 16
      %v6641 = vrot.slane %v6639, 7
      %v6642 = vsel %vm3628, %v6637, %v6641
      %v6643 = vrot.slane %v6605, 7
      %v6644 = vrot.slane %v6643, 2
      %v6645 = vrot.slane %v6606, 7
      %v6646 = vsel %vm3690, %v6644, %v6645
      %v6647 = vrot.slane %v6613, 7
      %v6648 = vrot.slane %v6647, 2
      %v6649 = vrot.slane %v6614, 7
      %v6650 = vsel %vm3690, %v6648, %v6649
      %v6651 = vcombine.low %v3582, %v6595
      %v6652 = vcombine.low %v6595, %v6596
      %v6654 = vunpack.c.l.s4 1983009808
      %v6655 = vunpack.c.0.s8 %v6654
      %v6656 = vlaneseq
      %v6657 = vshrl.u32 %v6656, 7
      %v6658 = vsub.s32 %v6655, %v6657
      %v6659 = vrot.slane %v6651, %v6658
      %v6661 = vunpack.c.l.s4 1983009808
      %v6662 = vunpack.c.0.s8 %v6661
      %v6663 = vlaneseq
      %v6664 = vshrl.u32 %v6663, 7
      %v6665 = vsub.s32 %v6662, %v6664
      %v6666 = vrot.slane %v6652, %v6665
      %v6667 = vcombine.low %v6659, %v6666
      %v6668 = vcombine.low %v3642, %v6628
      %v6669 = vcombine.low %v6628, %v6642
      %v6671 = vunpack.c.l.s4 1983009808
      %v6672 = vunpack.c.0.s8 %v6671
      %v6673 = vlaneseq
      %v6674 = vshrl.u32 %v6673, 7
      %v6675 = vsub.s32 %v6672, %v6674
      %v6676 = vrot.slane %v6668, %v6675
      %v6678 = vunpack.c.l.s4 1983009808
      %v6679 = vunpack.c.0.s8 %v6678
      %v6680 = vlaneseq
      %v6681 = vshrl.u32 %v6680, 7
      %v6682 = vsub.s32 %v6679, %v6681
      %v6683 = vrot.slane %v6669, %v6682
      %v6684 = vcombine.low %v6676, %v6683
      %6685 = vrot.lane.b32.xlu0 %v6684, 32
      %v6686 = vpop.permute.xlu0 %6685
      %v6687 = vcombine.low %v3694, %v6646
      %v6688 = vcombine.low %v6646, %v6650
      %v6690 = vunpack.c.l.s4 1983009808
      %v6691 = vunpack.c.0.s8 %v6690
      %v6692 = vlaneseq
      %v6693 = vshrl.u32 %v6692, 7
      %v6694 = vsub.s32 %v6691, %v6693
      %v6695 = vrot.slane %v6687, %v6694
      %v6697 = vunpack.c.l.s4 1983009808
      %v6698 = vunpack.c.0.s8 %v6697
      %v6699 = vlaneseq
      %v6700 = vshrl.u32 %v6699, 7
      %v6701 = vsub.s32 %v6698, %v6700
      %v6702 = vrot.slane %v6688, %v6701
      %v6703 = vcombine.low %v6695, %v6702
      %6704 = vrot.lane.b32.xlu0 %v6703, 64
      %v6705 = vpop.permute.xlu0 %6704
      %v6706 = vcombine.low %v6595, %v6595
      %v6707 = vcombine.low %v6596, %v6596
      %v6709 = vunpack.c.l.s4 1983009808
      %v6710 = vunpack.c.0.s8 %v6709
      %v6711 = vlaneseq
      %v6712 = vshrl.u32 %v6711, 7
      %v6713 = vsub.s32 %v6710, %v6712
      %v6714 = vrot.slane %v6706, %v6713
      %v6716 = vunpack.c.l.s4 1983009808
      %v6717 = vunpack.c.0.s8 %v6716
      %v6718 = vlaneseq
      %v6719 = vshrl.u32 %v6718, 7
      %v6720 = vsub.s32 %v6717, %v6719
      %v6721 = vrot.slane %v6707, %v6720
      %v6722 = vcombine.low %v6714, %v6721
      %6723 = vrot.lane.b32.xlu0 %v6722, 96
      %v6724 = vpop.permute.xlu0 %6723
      %v6725 = vcombine.low %v6628, %v6628
      %v6726 = vcombine.low %v6642, %v6642
      %v6728 = vunpack.c.l.s4 1983009808
      %v6729 = vunpack.c.0.s8 %v6728
      %v6730 = vlaneseq
      %v6731 = vshrl.u32 %v6730, 7
      %v6732 = vsub.s32 %v6729, %v6731
      %v6733 = vrot.slane %v6725, %v6732
      %v6735 = vunpack.c.l.s4 1983009808
      %v6736 = vunpack.c.0.s8 %v6735
      %v6737 = vlaneseq
      %v6738 = vshrl.u32 %v6737, 7
      %v6739 = vsub.s32 %v6736, %v6738
      %v6740 = vrot.slane %v6726, %v6739
      %v6741 = vcombine.low %v6733, %v6740
      %v6742 = vcombine.low %v6646, %v6646
      %v6743 = vcombine.low %v6650, %v6650
      %v6745 = vunpack.c.l.s4 1983009808
      %v6746 = vunpack.c.0.s8 %v6745
      %v6747 = vlaneseq
      %v6748 = vshrl.u32 %v6747, 7
      %v6749 = vsub.s32 %v6746, %v6748
      %v6750 = vrot.slane %v6742, %v6749
      %v6752 = vunpack.c.l.s4 1983009808
      %v6753 = vunpack.c.0.s8 %v6752
      %v6754 = vlaneseq
      %v6755 = vshrl.u32 %v6754, 7
      %v6756 = vsub.s32 %v6753, %v6755
      %v6757 = vrot.slane %v6743, %v6756
      %v6758 = vcombine.low %v6750, %v6757
      %6759 = vrot.lane.b32.xlu0 %v6758, 32
      %v6760 = vpop.permute.xlu0 %6759
      %v6761 = vcombine.low %v6596, %v3582
      %v6763 = vunpack.c.l.s4 1983009808
      %v6764 = vunpack.c.0.s8 %v6763
      %v6765 = vlaneseq
      %v6766 = vshrl.u32 %v6765, 7
      %v6767 = vsub.s32 %v6764, %v6766
      %v6768 = vrot.slane %v6761, %v6767
      %v6769 = vcombine.low %v6666, %v6768
      %6770 = vrot.lane.b32.xlu0 %v6769, 64
      %v6771 = vpop.permute.xlu0 %6770
      %v6772 = vcombine.low %v6642, %v3642
      %v6774 = vunpack.c.l.s4 1983009808
      %v6775 = vunpack.c.0.s8 %v6774
      %v6776 = vlaneseq
      %v6777 = vshrl.u32 %v6776, 7
      %v6778 = vsub.s32 %v6775, %v6777
      %v6779 = vrot.slane %v6772, %v6778
      %v6780 = vcombine.low %v6683, %v6779
      %6781 = vrot.lane.b32.xlu0 %v6780, 96
      %v6782 = vpop.permute.xlu0 %6781
      %v6783 = vcombine.low %v6650, %v3694
      %v6785 = vunpack.c.l.s4 1983009808
      %v6786 = vunpack.c.0.s8 %v6785
      %v6787 = vlaneseq
      %v6788 = vshrl.u32 %v6787, 7
      %v6789 = vsub.s32 %v6786, %v6788
      %v6790 = vrot.slane %v6783, %v6789
      %v6791 = vcombine.low %v6702, %v6790
      %v6794 = vsel %vm3232, %v6667, %v6686
      %v6796 = vsel %vm3268, %v6794, %v6705
      %v6798 = vsel %vm3889, %v6796, %v6724
      %v6802 = vsel %vm3232, %v6741, %v6760
      %v6804 = vsel %vm3268, %v6802, %v6771
      %v6806 = vsel %vm3889, %v6804, %v6782
      %v6844 = vunpack.c.l.b16 %v6539
      %v6845 = vunpack.c.l.b16 %v6540
      %v6846 = vunpack.c.l.b16 %v6541
      %v6847 = vunpack.c.l.b16 %v6542
      %v6848 = vunpack.c.l.b16 %v6543
      %v6849 = vunpack.c.l.b16 %v6544
      %v6850 = vunpack.c.l.b16 %v6545
      %v6851 = vunpack.c.l.b16 %v6546
      %v6852 = vunpack.c.l.b16 %v6547
      %v6853 = vunpack.c.l.b16 %v6548
      %v6854 = vunpack.c.l.b16 %v6549
      %v6855 = vunpack.c.l.b16 %v6550
      %v6856 = vunpack.c.l.b16 %v6551
      %v6857 = vunpack.c.l.b16 %v6552
      %v6858 = vunpack.c.l.b16 %v6553
      %v6859 = vunpack.c.l.b16 %v6554
      %v6860 = vunpack.c.l.b16 %v6555
      %v6861 = vunpack.c.l.b16 %v6556
      %v6862 = vunpack.c.l.b16 %v6557
      %v6863 = vunpack.c.l.b16 %v6558
      %v6864 = vunpack.c.l.b16 %v6559
      %v6865 = vunpack.c.l.b16 %v6560
      %v6866 = vunpack.c.l.b16 %v6561
      %v6867 = vunpack.c.l.b16 %v6562
      %v6868 = vunpack.c.l.b16 %v6563
      %v6869 = vunpack.c.l.b16 %v6564
      %v6870 = vunpack.c.l.b16 %v6565
      %v6871 = vunpack.c.l.b16 %v6566
      %v6872 = vunpack.c.l.b16 %v6567
      %v6873 = vunpack.c.l.b16 %v6568
      %v6874 = vunpack.c.l.b16 %v6569
      %v6875 = vunpack.c.l.b16 %v6570
      %v6876 = vunpack.c.l.b16 %v6571
      %v6877 = vunpack.c.l.b16 %v6572
      %v6878 = vunpack.c.l.b16 %v6573
      %v6879 = vunpack.c.l.b16 %v6574
      %v6880 = vpack.c.b16 %v6845, %v6844
      %v6881 = vpack.c.b16 %v6847, %v6846
      %v6882 = vpack.c.b16 %v6849, %v6848
      %v6883 = vpack.c.b16 %v6851, %v6850
      %v6884 = vpack.c.b16 %v6853, %v6852
      %v6885 = vpack.c.b16 %v6855, %v6854
      %v6886 = vpack.c.b16 %v6857, %v6856
      %v6887 = vpack.c.b16 %v6859, %v6858
      %v6888 = vpack.c.b16 %v6861, %v6860
      %v6889 = vpack.c.b16 %v6863, %v6862
      %v6890 = vpack.c.b16 %v6865, %v6864
      %v6891 = vpack.c.b16 %v6867, %v6866
      %v6892 = vpack.c.b16 %v6869, %v6868
      %v6893 = vpack.c.b16 %v6871, %v6870
      %v6894 = vpack.c.b16 %v6873, %v6872
      %v6895 = vpack.c.b16 %v6875, %v6874
      %v6896 = vpack.c.b16 %v6877, %v6876
      %v6897 = vpack.c.b16 %v6879, %v6878
      %v6917 = vsel %vm3232, %v6791, 0
      %6919 = vmatprep.subr.bf16.mxu0 0
      %6920 = vmatpush1.bf16.msra.mxu0 %v6880
      %6921 = vmatprep.subr.bf16.mxu0 0
      %6922 = vmatpush1.bf16.msra.mxu0 %v6881
      %6923 = vmatprep.subr.bf16.mxu0 0
      %6924 = vmatpush1.bf16.msra.mxu0 %v6882
      %6925 = vmatprep.subr.bf16.mxu0 0
      %6926 = vmatpush1.bf16.msra.mxu0 %v6883
      %6927 = vmatprep.subr.bf16.mxu0 0
      %6928 = vmatpush1.bf16.msra.mxu0 %v6884
      %6929 = vmatprep.subr.bf16.mxu0 0
      %6930 = vmatpush1.bf16.msra.mxu0 %v6885
      %6931 = vmatprep.subr.bf16.mxu0 0
      %6932 = vmatpush1.bf16.msra.mxu0 %v6886
      %6933 = vmatprep.subr.bf16.mxu0 0
      %6934 = vmatpush1.bf16.msra.mxu0 %v6887
      %6935 = vmatprep.subr.bf16.mxu0 0
      %6936 = vmatpush1.bf16.msra.mxu0 %v6888
      %6937 = vmatprep.subr.bf16.mxu0 0
      %6938 = vmatpush1.bf16.msra.mxu0 %v6889
      %6939 = vmatprep.subr.bf16.mxu0 0
      %6940 = vmatpush1.bf16.msra.mxu0 %v6890
      %6941 = vmatprep.subr.bf16.mxu0 0
      %6942 = vmatpush1.bf16.msra.mxu0 %v6891
      %6943 = vmatprep.subr.bf16.mxu0 0
      %6944 = vmatpush1.bf16.msra.mxu0 %v6892
      %6945 = vmatprep.subr.bf16.mxu0 0
      %6946 = vmatpush1.bf16.msra.mxu0 %v6893
      %6947 = vmatprep.subr.bf16.mxu0 0
      %6948 = vmatpush1.bf16.msra.mxu0 %v6894
      %6949 = vmatprep.subr.bf16.mxu0 0
      %6950 = vmatpush1.bf16.msra.mxu0 %v6895
      %6951 = vmatprep.mubr.bf16.mxu0 %v6806
      %6952 = vmatmul.mubr.bf16.gmra.mrb[0].mxu0 %v6798
      %v6953 = vpop.f32.mrb[0].mxu0
      %v6954 = vadd.f32 0.0, %v6953
      %v6955 = vpop.f32.mrb[0].mxu0
      %v6956 = vpop.f32.mrb[0].mxu0
      %v6957 = vadd.f32 0.0, %v6956
      %v6958 = vpop.f32.mrb[0].mxu0
      %6959 = vdwg.mxu0
      %6960 = vmatprep.subr.bf16.mxu0 0
      %6961 = vmatpush1.bf16.msra.mxu0 %v6896
      %6962 = vmatprep.subr.bf16.mxu0 0
      %6963 = vmatpush1.bf16.msra.mxu0 %v6897
      %6964 = vmatprep.subr.bf16.mxu0 0
      %6965 = vmatpush1.bf16.msra.mxu0 0
      %6966 = vmatprep.subr.bf16.mxu0 0
      %6967 = vmatpush1.bf16.msra.mxu0 0
      %6968 = vmatprep.subr.bf16.mxu0 0
      %6969 = vmatpush1.bf16.msra.mxu0 0
      %6970 = vmatprep.subr.bf16.mxu0 0
      %6971 = vmatpush1.bf16.msra.mxu0 0
      %6972 = vmatprep.subr.bf16.mxu0 0
      %6973 = vmatpush1.bf16.msra.mxu0 0
      %6974 = vmatprep.subr.bf16.mxu0 0
      %6975 = vmatpush1.bf16.msra.mxu0 0
      %6976 = vmatprep.subr.bf16.mxu0 0
      %6977 = vmatpush1.bf16.msra.mxu0 0
      %6978 = vmatprep.subr.bf16.mxu0 0
      %6979 = vmatpush1.bf16.msra.mxu0 0
      %6980 = vmatprep.subr.bf16.mxu0 0
      %6981 = vmatpush1.bf16.msra.mxu0 0
      %6982 = vmatprep.subr.bf16.mxu0 0
      %6983 = vmatpush1.bf16.msra.mxu0 0
      %6984 = vmatprep.subr.bf16.mxu0 0
      %6985 = vmatpush1.bf16.msra.mxu0 0
      %6986 = vmatprep.subr.bf16.mxu0 0
      %6987 = vmatpush1.bf16.msra.mxu0 0
      %6988 = vmatprep.subr.bf16.mxu0 0
      %6989 = vmatpush1.bf16.msra.mxu0 0
      %6990 = vmatprep.subr.bf16.mxu0 0
      %6991 = vmatpush1.bf16.msra.mxu0 0
      %6992 = vmatprep.mubr.bf16.mxu0 0
      %6993 = vmatmul.mubr.bf16.gmra.mrb[0].mxu0 %v6917
      %v6994 = vpop.f32.mrb[0].mxu0
      %v6995 = vadd.f32 %v6954, %v6994
      %v6996 = vpop.f32.mrb[0].mxu0
      %v6997 = vpop.f32.mrb[0].mxu0
      %v6998 = vadd.f32 %v6957, %v6997
      %v6999 = vpop.f32.mrb[0].mxu0
      %7000 = vdwg.mxu0
      %v7002 = vlaneseq
      %v7003 = vshrl.u32 %v7002, 7
      %v7004 = vsub.s32 0, %v7003
      %v7005 = vrot.slane %v6575, %v7004
      %v7007 = vmul.f32 %v6995, %v7005
      %v7008 = vmul.f32 %v6998, %v7005
      %v7010 = vlaneseq
      %v7011 = vshrl.u32 %v7010, 7
      %v7012 = vsub.s32 0, %v7011
      %v7013 = vrot.slane %v6576, %v7012
      %v7015 = vadd.f32 %v7007, %v7013
      %v7016 = vadd.f32 %v7008, %v7013
      %v7017 = vmax.f32 %v7015, 0.0
      %v7018 = vmax.f32 %v7016, 0.0
      %v7021 = vcombine.high %v7017, %v7017
      %v7022 = vcombine.high %v7018, %v7018
      %v7025 = vpack.c.bf16 %v7017, %v7017
      %v7026 = vpack.c.bf16 %v7021, %v7021
      %v7027 = vpack.c.bf16 %v7018, %v7018
      %v7028 = vpack.c.bf16 %v7022, %v7022
      %v7030 = vshll.u32 %v7025, 16
      %v7033 = vshll.u32 %v7026, 16
      %v7036 = vshll.u32 %v7027, 16
      %v7039 = vshll.u32 %v7028, 16
      %v7045 = vshrl.u32 %v7025, 16
      %v7047 = vrot.slane %v7045, 7
      %v7048 = vshrl.u32 %v7026, 16
      %v7050 = vrot.slane %v7048, 7
      %v7051 = vshrl.u32 %v7027, 16
      %v7053 = vrot.slane %v7051, 7
      %v7054 = vshrl.u32 %v7028, 16
      %v7056 = vrot.slane %v7054, 7
      %v7061 = vrot.slane %v7025, 7
      %v7062 = vrot.slane %v7026, 7
      %v7063 = vrot.slane %v7027, 7
      %v7064 = vrot.slane %v7028, 7
      %v7069 = vrot.slane %v7030, 7
      %v7070 = vrot.slane %v7033, 7
      %v7071 = vrot.slane %v7036, 7
      %v7072 = vrot.slane %v7039, 7
      %v7077 = vrot.slane %v7045, 6
      %v7078 = vrot.slane %v7048, 6
      %v7079 = vrot.slane %v7051, 6
      %v7080 = vrot.slane %v7054, 6
      %v7081 = vrot.slane %v7025, 6
      %v7082 = vrot.slane %v7026, 6
      %v7083 = vrot.slane %v7027, 6
      %v7084 = vrot.slane %v7028, 6
      %v7089 = vsel %vm1233, %v7025, %v7030
      %v7090 = vsel %vm1233, %v7026, %v7033
      %v7091 = vsel %vm1233, %v7027, %v7036
      %v7092 = vsel %vm1233, %v7028, %v7039
      %v7095 = vsel %vm2655, %v7089, %v7047
      %v7099 = vsel %vm2655, %v7090, %v7050
      %v7103 = vsel %vm2655, %v7091, %v7053
      %v7107 = vsel %vm2655, %v7092, %v7056
      %v7109 = vsel %vm2690, %v7095, %v7061
      %v7110 = vsel %vm2690, %v7099, %v7062
      %v7111 = vsel %vm2690, %v7103, %v7063
      %v7112 = vsel %vm2690, %v7107, %v7064
      %v7115 = vsel %vm2699, %v7109, %v7061
      %v7119 = vsel %vm2699, %v7110, %v7062
      %v7123 = vsel %vm2699, %v7111, %v7063
      %v7127 = vsel %vm2699, %v7112, %v7064
      %v7129 = vsel %vm2734, %v7115, %v7069
      %v7130 = vsel %vm2734, %v7119, %v7070
      %v7131 = vsel %vm2734, %v7123, %v7071
      %v7132 = vsel %vm2734, %v7127, %v7072
      %v7135 = vsel %vm2743, %v7129, %v7077
      %v7139 = vsel %vm2743, %v7130, %v7078
      %v7143 = vsel %vm2743, %v7131, %v7079
      %v7147 = vsel %vm2743, %v7132, %v7080
      %v7149 = vsel %vm2778, %v7135, %v7081
      %v7150 = vsel %vm2778, %v7139, %v7082
      %v7151 = vsel %vm2778, %v7143, %v7083
      %v7152 = vsel %vm2778, %v7147, %v7084
      %v7153 = vld [vmem:[%s51] sm:$0xf]
      %v7154 = vld [vmem:[%s51 + $0x4] sm:$0xf]
      %v7155 = vld [vmem:[%s51 + $0x8] sm:$0xf]
      %v7156 = vld [vmem:[%s51 + $0xc] sm:$0xf]
      %v7157 = vld [vmem:[%s51 + $0x10] sm:$0xf]
      %v7158 = vld [vmem:[%s51 + $0x14] sm:$0xf]
      %v7159 = vld [vmem:[%s51 + $0x18] sm:$0xf]
      %v7160 = vld [vmem:[%s51 + $0x1c] sm:$0xf]
      %v7161 = vld [vmem:[%s51 + $0x20] sm:$0xf]
      %v7162 = vld [vmem:[%s51 + $0x24] sm:$0xf]
      %v7163 = vld [vmem:[%s51 + $0x28] sm:$0xf]
      %v7164 = vld [vmem:[%s51 + $0x2c] sm:$0xf]
      %v7165 = vld [vmem:[%s51 + $0x30] sm:$0xf]
      %v7166 = vld [vmem:[%s51 + $0x34] sm:$0xf]
      %v7167 = vld [vmem:[%s51 + $0x38] sm:$0xf]
      %v7168 = vld [vmem:[%s51 + $0x3c] sm:$0xf]
      %v7169 = vld [vmem:[%s51 + $0x40] sm:$0xf]
      %v7170 = vld [vmem:[%s51 + $0x44] sm:$0xf]
      %v7171 = vld [vmem:[%s53] sm:$0x1]
      %v7172 = vld [vmem:[%s55] sm:$0x1]
      %v7174 = vshrl.u32 %v7149, 16
      %v7176 = vrot.slane %v7174, 7
      %v7177 = vshll.u32 %v7149, 16
      %v7179 = vor.u32 %v7176, %v7177
      %v7181 = vshrl.u32 %v7150, 16
      %v7183 = vrot.slane %v7181, 7
      %v7184 = vshll.u32 %v7150, 16
      %v7186 = vor.u32 %v7183, %v7184
      %v7188 = vshrl.u32 %v7151, 16
      %v7190 = vrot.slane %v7188, 7
      %v7191 = vshll.u32 %v7151, 16
      %v7193 = vor.u32 %v7190, %v7191
      %v7195 = vshrl.u32 %v7152, 16
      %v7197 = vrot.slane %v7195, 7
      %v7198 = vshll.u32 %v7152, 16
      %v7200 = vor.u32 %v7197, %v7198
      %v7205 = vsel %vm1233, 0, %v7179
      %v7206 = vsel %vm1233, 0, %v7186
      %v7207 = vsel %vm1233, 0, %v7193
      %v7208 = vsel %vm1233, 0, %v7200
      %v7209 = vsel %vm2872, %v7205, 0
      %v7210 = vsel %vm2872, %v7206, 0
      %v7211 = vsel %vm2872, %v7207, 0
      %v7212 = vsel %vm2872, %v7208, 0
      %v7217 = vunpack.c.l.b16 %v7209
      %v7218 = vunpack.c.h.b16 %v7209
      %v7219 = vunpack.c.l.b16 %v7210
      %v7220 = vunpack.c.h.b16 %v7210
      %v7221 = vunpack.c.l.b16 %v7211
      %v7222 = vunpack.c.h.b16 %v7211
      %v7223 = vunpack.c.l.b16 %v7212
      %v7224 = vunpack.c.h.b16 %v7212
      %v7225 = vpack.c.b16 %v7217, %v7217
      %v7226 = vpack.c.b16 %v7218, %v7218
      %v7227 = vpack.c.b16 %v7219, %v7219
      %v7228 = vpack.c.b16 %v7220, %v7220
      %v7229 = vpack.c.b16 %v7221, %v7221
      %v7230 = vpack.c.b16 %v7222, %v7222
      %v7231 = vpack.c.b16 %v7223, %v7223
      %v7232 = vpack.c.b16 %v7224, %v7224
      %v7234 = vshrl.u32 %v7225, 16
      %v7236 = vrot.slane %v7234, 4
      %v7237 = vshll.u32 %v7225, 16
      %v7239 = vrot.slane %v7237, 5
      %v7240 = vor.u32 %v7236, %v7239
      %v7241 = vrot.slane %v7240, 4
      %v7243 = vshll.u32 %v7226, 16
      %v7245 = vrot.slane %v7243, 5
      %v7246 = vsel %vm2923, %v7241, %v7245
      %v7248 = vshrl.u32 %v7227, 16
      %v7250 = vrot.slane %v7248, 4
      %v7251 = vshll.u32 %v7227, 16
      %v7253 = vrot.slane %v7251, 5
      %v7254 = vor.u32 %v7250, %v7253
      %v7255 = vrot.slane %v7254, 4
      %v7257 = vshll.u32 %v7228, 16
      %v7259 = vrot.slane %v7257, 5
      %v7260 = vsel %vm2923, %v7255, %v7259
      %v7262 = vshrl.u32 %v7229, 16
      %v7264 = vrot.slane %v7262, 4
      %v7265 = vshll.u32 %v7229, 16
      %v7267 = vrot.slane %v7265, 5
      %v7268 = vor.u32 %v7264, %v7267
      %v7269 = vrot.slane %v7268, 4
      %v7271 = vshll.u32 %v7230, 16
      %v7273 = vrot.slane %v7271, 5
      %v7274 = vsel %vm2923, %v7269, %v7273
      %v7276 = vshrl.u32 %v7231, 16
      %v7278 = vrot.slane %v7276, 4
      %v7279 = vshll.u32 %v7231, 16
      %v7281 = vrot.slane %v7279, 5
      %v7282 = vor.u32 %v7278, %v7281
      %v7283 = vrot.slane %v7282, 4
      %v7285 = vshll.u32 %v7232, 16
      %v7287 = vrot.slane %v7285, 5
      %v7288 = vsel %vm2923, %v7283, %v7287
      %v7289 = vrot.slane %v7225, 5
      %v7290 = vrot.slane %v7289, 4
      %v7291 = vrot.slane %v7226, 5
      %v7292 = vsel %vm3037, %v7290, %v7291
      %v7293 = vrot.slane %v7227, 5
      %v7294 = vrot.slane %v7293, 4
      %v7295 = vrot.slane %v7228, 5
      %v7296 = vsel %vm3037, %v7294, %v7295
      %v7297 = vrot.slane %v7229, 5
      %v7298 = vrot.slane %v7297, 4
      %v7299 = vrot.slane %v7230, 5
      %v7300 = vsel %vm3037, %v7298, %v7299
      %v7301 = vrot.slane %v7231, 5
      %v7302 = vrot.slane %v7301, 4
      %v7303 = vrot.slane %v7232, 5
      %v7304 = vsel %vm3037, %v7302, %v7303
      %v7305 = vpack.c.b16 %v7217, %v2890
      %v7306 = vpack.c.b16 %v7219, %v7217
      %v7307 = vpack.c.b16 %v7221, %v7219
      %v7308 = vpack.c.b16 %v7223, %v7221
      %v7309 = vunpack.c.l.b16 %v7246
      %v7310 = vunpack.c.l.b16 %v7260
      %v7311 = vunpack.c.l.b16 %v7274
      %v7312 = vunpack.c.l.b16 %v7288
      %v7313 = vpack.c.b16 %v7309, %v3097
      %v7314 = vpack.c.b16 %v7310, %v7309
      %v7315 = vpack.c.b16 %v7311, %v7310
      %v7316 = vpack.c.b16 %v7312, %v7311
      %7317 = vrot.lane.b32.xlu0 %v7313, 16
      %v7318 = vpop.permute.xlu0 %7317
      %7319 = vrot.lane.b32.xlu0 %v7314, 16
      %v7320 = vpop.permute.xlu0 %7319
      %7321 = vrot.lane.b32.xlu0 %v7315, 16
      %v7322 = vpop.permute.xlu0 %7321
      %7323 = vrot.lane.b32.xlu0 %v7316, 16
      %v7324 = vpop.permute.xlu0 %7323
      %v7325 = vunpack.c.l.b16 %v7292
      %v7326 = vunpack.c.l.b16 %v7296
      %v7327 = vunpack.c.l.b16 %v7300
      %v7328 = vunpack.c.l.b16 %v7304
      %v7329 = vpack.c.b16 %v7325, %v3117
      %v7330 = vpack.c.b16 %v7326, %v7325
      %v7331 = vpack.c.b16 %v7327, %v7326
      %v7332 = vpack.c.b16 %v7328, %v7327
      %7333 = vrot.lane.b32.xlu0 %v7329, 32
      %v7334 = vpop.permute.xlu0 %7333
      %7335 = vrot.lane.b32.xlu0 %v7330, 32
      %v7336 = vpop.permute.xlu0 %7335
      %7337 = vrot.lane.b32.xlu0 %v7331, 32
      %v7338 = vpop.permute.xlu0 %7337
      %7339 = vrot.lane.b32.xlu0 %v7332, 32
      %v7340 = vpop.permute.xlu0 %7339
      %7341 = vrot.lane.b32.xlu0 %v7225, 48
      %v7342 = vpop.permute.xlu0 %7341
      %7343 = vrot.lane.b32.xlu0 %v7227, 48
      %v7344 = vpop.permute.xlu0 %7343
      %7345 = vrot.lane.b32.xlu0 %v7229, 48
      %v7346 = vpop.permute.xlu0 %7345
      %7347 = vrot.lane.b32.xlu0 %v7231, 48
      %v7348 = vpop.permute.xlu0 %7347
      %v7349 = vpack.c.b16 %v7309, %v7309
      %v7350 = vpack.c.b16 %v7310, %v7310
      %v7351 = vpack.c.b16 %v7311, %v7311
      %v7352 = vpack.c.b16 %v7312, %v7312
      %7353 = vrot.lane.b32.xlu0 %v7349, 64
      %v7354 = vpop.permute.xlu0 %7353
      %7355 = vrot.lane.b32.xlu0 %v7350, 64
      %v7356 = vpop.permute.xlu0 %7355
      %7357 = vrot.lane.b32.xlu0 %v7351, 64
      %v7358 = vpop.permute.xlu0 %7357
      %7359 = vrot.lane.b32.xlu0 %v7352, 64
      %v7360 = vpop.permute.xlu0 %7359
      %v7361 = vpack.c.b16 %v7325, %v7325
      %v7362 = vpack.c.b16 %v7326, %v7326
      %v7363 = vpack.c.b16 %v7327, %v7327
      %v7364 = vpack.c.b16 %v7328, %v7328
      %7365 = vrot.lane.b32.xlu0 %v7361, 80
      %v7366 = vpop.permute.xlu0 %7365
      %7367 = vrot.lane.b32.xlu0 %v7362, 80
      %v7368 = vpop.permute.xlu0 %7367
      %7369 = vrot.lane.b32.xlu0 %v7363, 80
      %v7370 = vpop.permute.xlu0 %7369
      %7371 = vrot.lane.b32.xlu0 %v7364, 80
      %v7372 = vpop.permute.xlu0 %7371
      %v7373 = vpack.c.b16 %v2890, %v7223
      %7374 = vrot.lane.b32.xlu0 %v7306, 96
      %v7375 = vpop.permute.xlu0 %7374
      %7376 = vrot.lane.b32.xlu0 %v7307, 96
      %v7377 = vpop.permute.xlu0 %7376
      %7378 = vrot.lane.b32.xlu0 %v7308, 96
      %v7379 = vpop.permute.xlu0 %7378
      %7380 = vrot.lane.b32.xlu0 %v7373, 96
      %v7381 = vpop.permute.xlu0 %7380
      %v7382 = vpack.c.b16 %v3097, %v7312
      %7383 = vrot.lane.b32.xlu0 %v7314, 112
      %v7384 = vpop.permute.xlu0 %7383
      %7385 = vrot.lane.b32.xlu0 %v7315, 112
      %v7386 = vpop.permute.xlu0 %7385
      %7387 = vrot.lane.b32.xlu0 %v7316, 112
      %v7388 = vpop.permute.xlu0 %7387
      %7389 = vrot.lane.b32.xlu0 %v7382, 112
      %v7390 = vpop.permute.xlu0 %7389
      %v7391 = vpack.c.b16 %v3117, %v7328
      %v7394 = vsel %vm3215, %v7305, %v7318
      %v7397 = vsel %vm3215, %v7306, %v7320
      %v7400 = vsel %vm3215, %v7307, %v7322
      %v7403 = vsel %vm3215, %v7308, %v7324
      %v7405 = vsel %vm3232, %v7394, %v7334
      %v7407 = vsel %vm3232, %v7397, %v7336
      %v7409 = vsel %vm3232, %v7400, %v7338
      %v7411 = vsel %vm3232, %v7403, %v7340
      %v7413 = vsel %vm3250, %v7405, %v7342
      %v7415 = vsel %vm3250, %v7407, %v7344
      %v7417 = vsel %vm3250, %v7409, %v7346
      %v7419 = vsel %vm3250, %v7411, %v7348
      %v7421 = vsel %vm3268, %v7413, %v7354
      %v7423 = vsel %vm3268, %v7415, %v7356
      %v7425 = vsel %vm3268, %v7417, %v7358
      %v7427 = vsel %vm3268, %v7419, %v7360
      %v7429 = vsel %vm3886, %v7421, %v7366
      %v7431 = vsel %vm3886, %v7423, %v7368
      %v7433 = vsel %vm3886, %v7425, %v7370
      %v7435 = vsel %vm3886, %v7427, %v7372
      %v7437 = vsel %vm3889, %v7429, %v7375
      %v7439 = vsel %vm3889, %v7431, %v7377
      %v7441 = vsel %vm3889, %v7433, %v7379
      %v7443 = vsel %vm3889, %v7435, %v7381
      %v7445 = vsel %vm3892, %v7437, %v7384
      %v7448 = vsel %vm3892, %v7439, %v7386
      %v7451 = vsel %vm3892, %v7441, %v7388
      %v7454 = vsel %vm3892, %v7443, %v7390
      %v7474 = vunpack.c.l.b16 %v7153
      %v7475 = vunpack.c.l.b16 %v7154
      %v7476 = vunpack.c.l.b16 %v7155
      %v7477 = vunpack.c.l.b16 %v7156
      %v7478 = vunpack.c.l.b16 %v7157
      %v7479 = vunpack.c.l.b16 %v7158
      %v7480 = vunpack.c.l.b16 %v7159
      %v7481 = vunpack.c.l.b16 %v7160
      %v7482 = vunpack.c.l.b16 %v7161
      %v7483 = vunpack.c.l.b16 %v7162
      %v7484 = vunpack.c.l.b16 %v7163
      %v7485 = vunpack.c.l.b16 %v7164
      %v7486 = vunpack.c.l.b16 %v7165
      %v7487 = vunpack.c.l.b16 %v7166
      %v7488 = vunpack.c.l.b16 %v7167
      %v7489 = vunpack.c.l.b16 %v7168
      %v7490 = vunpack.c.l.b16 %v7169
      %v7491 = vunpack.c.l.b16 %v7170
      %v7492 = vpack.c.b16 %v7475, %v7474
      %v7493 = vpack.c.b16 %v7477, %v7476
      %v7494 = vpack.c.b16 %v7479, %v7478
      %v7495 = vpack.c.b16 %v7481, %v7480
      %v7496 = vpack.c.b16 %v7483, %v7482
      %v7497 = vpack.c.b16 %v7485, %v7484
      %v7498 = vpack.c.b16 %v7487, %v7486
      %v7499 = vpack.c.b16 %v7489, %v7488
      %v7500 = vpack.c.b16 %v7491, %v7490
      %v7511 = vsel %vm3215, %v7330, 0
      %v7514 = vsel %vm3215, %v7331, 0
      %v7517 = vsel %vm3215, %v7332, 0
      %v7520 = vsel %vm3215, %v7391, 0
      %7522 = vmatprep.subr.bf16.mxu0 0
      %7523 = vmatpush1.bf16.msra.mxu0 %v7492
      %7524 = vmatprep.subr.bf16.mxu0 0
      %7525 = vmatpush1.bf16.msra.mxu0 %v7493
      %7526 = vmatprep.subr.bf16.mxu0 0
      %7527 = vmatpush1.bf16.msra.mxu0 %v7494
      %7528 = vmatprep.subr.bf16.mxu0 0
      %7529 = vmatpush1.bf16.msra.mxu0 %v7495
      %7530 = vmatprep.subr.bf16.mxu0 0
      %7531 = vmatpush1.bf16.msra.mxu0 %v7496
      %7532 = vmatprep.subr.bf16.mxu0 0
      %7533 = vmatpush1.bf16.msra.mxu0 %v7497
      %7534 = vmatprep.subr.bf16.mxu0 0
      %7535 = vmatpush1.bf16.msra.mxu0 %v7498
      %7536 = vmatprep.subr.bf16.mxu0 0
      %7537 = vmatpush1.bf16.msra.mxu0 %v7499
      %7538 = vmatprep.subr.bf16.mxu0 0
      %7539 = vmatpush1.bf16.msra.mxu0 %v7500
      %7540 = vmatprep.subr.bf16.mxu0 0
      %7541 = vmatpush1.bf16.msra.mxu0 0
      %7542 = vmatprep.subr.bf16.mxu0 0
      %7543 = vmatpush1.bf16.msra.mxu0 0
      %7544 = vmatprep.subr.bf16.mxu0 0
      %7545 = vmatpush1.bf16.msra.mxu0 0
      %7546 = vmatprep.subr.bf16.mxu0 0
      %7547 = vmatpush1.bf16.msra.mxu0 0
      %7548 = vmatprep.subr.bf16.mxu0 0
      %7549 = vmatpush1.bf16.msra.mxu0 0
      %7550 = vmatprep.subr.bf16.mxu0 0
      %7551 = vmatpush1.bf16.msra.mxu0 0
      %7552 = vmatprep.subr.bf16.mxu0 0
      %7553 = vmatpush1.bf16.msra.mxu0 0
      %7554 = vmatprep.mubr.bf16.mxu0 %v7511
      %7555 = vmatmul.mubr.bf16.gmra.mrb[0].mxu0 %v7445
      %v7556 = vpop.f32.mrb[0].mxu0
      %v7557 = vadd.f32 0.0, %v7556
      %v7558 = vpop.f32.mrb[0].mxu0
      %v7559 = vpop.f32.mrb[0].mxu0
      %v7560 = vadd.f32 0.0, %v7559
      %v7561 = vpop.f32.mrb[0].mxu0
      %7562 = vmatprep.mubr.bf16.mxu0 %v7514
      %7563 = vmatmul.mubr.bf16.gmra.mrb[0].mxu0 %v7448
      %v7564 = vpop.f32.mrb[0].mxu0
      %v7565 = vadd.f32 0.0, %v7564
      %v7566 = vpop.f32.mrb[0].mxu0
      %v7567 = vpop.f32.mrb[0].mxu0
      %v7568 = vadd.f32 0.0, %v7567
      %v7569 = vpop.f32.mrb[0].mxu0
      %7570 = vmatprep.mubr.bf16.mxu0 %v7517
      %7571 = vmatmul.mubr.bf16.gmra.mrb[0].mxu0 %v7451
      %v7572 = vpop.f32.mrb[0].mxu0
      %v7573 = vadd.f32 0.0, %v7572
      %v7574 = vpop.f32.mrb[0].mxu0
      %v7575 = vpop.f32.mrb[0].mxu0
      %v7576 = vadd.f32 0.0, %v7575
      %v7577 = vpop.f32.mrb[0].mxu0
      %7578 = vmatprep.mubr.bf16.mxu0 %v7520
      %7579 = vmatmul.mubr.bf16.gmra.mrb[0].mxu0 %v7454
      %v7580 = vpop.f32.mrb[0].mxu0
      %v7581 = vadd.f32 0.0, %v7580
      %v7582 = vpop.f32.mrb[0].mxu0
      %v7583 = vpop.f32.mrb[0].mxu0
      %v7584 = vadd.f32 0.0, %v7583
      %v7585 = vpop.f32.mrb[0].mxu0
      %7586 = vdwg.mxu0
      %v7588 = vlaneseq
      %v7589 = vshrl.u32 %v7588, 7
      %v7590 = vsub.s32 0, %v7589
      %v7591 = vrot.slane %v7171, %v7590
      %v7593 = vmul.f32 %v7557, %v7591
      %v7594 = vmul.f32 %v7560, %v7591
      %v7595 = vmul.f32 %v7565, %v7591
      %v7596 = vmul.f32 %v7568, %v7591
      %v7597 = vmul.f32 %v7573, %v7591
      %v7598 = vmul.f32 %v7576, %v7591
      %v7599 = vmul.f32 %v7581, %v7591
      %v7600 = vmul.f32 %v7584, %v7591
      %v7602 = vlaneseq
      %v7603 = vshrl.u32 %v7602, 7
      %v7604 = vsub.s32 0, %v7603
      %v7605 = vrot.slane %v7172, %v7604
      %v7607 = vadd.f32 %v7593, %v7605
      %v7608 = vadd.f32 %v7594, %v7605
      %v7609 = vadd.f32 %v7595, %v7605
      %v7610 = vadd.f32 %v7596, %v7605
      %v7611 = vadd.f32 %v7597, %v7605
      %v7612 = vadd.f32 %v7598, %v7605
      %v7613 = vadd.f32 %v7599, %v7605
      %v7614 = vadd.f32 %v7600, %v7605
      %v7615 = vmax.f32 %v7607, 0.0
      %v7616 = vmax.f32 %v7608, 0.0
      %v7617 = vmax.f32 %v7609, 0.0
      %v7618 = vmax.f32 %v7610, 0.0
      %v7619 = vmax.f32 %v7611, 0.0
      %v7620 = vmax.f32 %v7612, 0.0
      %v7621 = vmax.f32 %v7613, 0.0
      %v7622 = vmax.f32 %v7614, 0.0
      %v7623 = vpack.c.bf16 %v7615, %v7615
      %v7624 = vpack.c.bf16 %v7616, %v7616
      %v7625 = vpack.c.bf16 %v7617, %v7617
      %v7626 = vpack.c.bf16 %v7618, %v7618
      %v7627 = vpack.c.bf16 %v7619, %v7619
      %v7628 = vpack.c.bf16 %v7620, %v7620
      %v7629 = vpack.c.bf16 %v7621, %v7621
      %v7630 = vpack.c.bf16 %v7622, %v7622
      %v7632 = vshll.u32 %v7623, 16
      %v7635 = vshll.u32 %v7624, 16
      %v7638 = vshll.u32 %v7625, 16
      %v7641 = vshll.u32 %v7626, 16
      %v7644 = vshll.u32 %v7627, 16
      %v7647 = vshll.u32 %v7628, 16
      %v7650 = vshll.u32 %v7629, 16
      %v7653 = vshll.u32 %v7630, 16
      %v7663 = vshrl.u32 %v7623, 16
      %v7665 = vrot.slane %v7663, 7
      %v7666 = vshrl.u32 %v7624, 16
      %v7668 = vrot.slane %v7666, 7
      %v7669 = vshrl.u32 %v7625, 16
      %v7671 = vrot.slane %v7669, 7
      %v7672 = vshrl.u32 %v7626, 16
      %v7674 = vrot.slane %v7672, 7
      %v7675 = vshrl.u32 %v7627, 16
      %v7677 = vrot.slane %v7675, 7
      %v7678 = vshrl.u32 %v7628, 16
      %v7680 = vrot.slane %v7678, 7
      %v7681 = vshrl.u32 %v7629, 16
      %v7683 = vrot.slane %v7681, 7
      %v7684 = vshrl.u32 %v7630, 16
      %v7686 = vrot.slane %v7684, 7
      %v7695 = vrot.slane %v7623, 7
      %v7696 = vrot.slane %v7624, 7
      %v7697 = vrot.slane %v7625, 7
      %v7698 = vrot.slane %v7626, 7
      %v7699 = vrot.slane %v7627, 7
      %v7700 = vrot.slane %v7628, 7
      %v7701 = vrot.slane %v7629, 7
      %v7702 = vrot.slane %v7630, 7
      %v7711 = vrot.slane %v7632, 7
      %v7712 = vrot.slane %v7635, 7
      %v7713 = vrot.slane %v7638, 7
      %v7714 = vrot.slane %v7641, 7
      %v7715 = vrot.slane %v7644, 7
      %v7716 = vrot.slane %v7647, 7
      %v7717 = vrot.slane %v7650, 7
      %v7718 = vrot.slane %v7653, 7
      %v7727 = vrot.slane %v7663, 6
      %v7728 = vrot.slane %v7666, 6
      %v7729 = vrot.slane %v7669, 6
      %v7730 = vrot.slane %v7672, 6
      %v7731 = vrot.slane %v7675, 6
      %v7732 = vrot.slane %v7678, 6
      %v7733 = vrot.slane %v7681, 6
      %v7734 = vrot.slane %v7684, 6
      %v7735 = vrot.slane %v7623, 6
      %v7736 = vrot.slane %v7624, 6
      %v7737 = vrot.slane %v7625, 6
      %v7738 = vrot.slane %v7626, 6
      %v7739 = vrot.slane %v7627, 6
      %v7740 = vrot.slane %v7628, 6
      %v7741 = vrot.slane %v7629, 6
      %v7742 = vrot.slane %v7630, 6
      %v7751 = vrot.slane %v7632, 6
      %v7752 = vrot.slane %v7635, 6
      %v7753 = vrot.slane %v7638, 6
      %v7754 = vrot.slane %v7641, 6
      %v7755 = vrot.slane %v7644, 6
      %v7756 = vrot.slane %v7647, 6
      %v7757 = vrot.slane %v7650, 6
      %v7758 = vrot.slane %v7653, 6
      %v7767 = vrot.slane %v7663, 5
      %v7768 = vrot.slane %v7666, 5
      %v7769 = vrot.slane %v7669, 5
      %v7770 = vrot.slane %v7672, 5
      %v7771 = vrot.slane %v7675, 5
      %v7772 = vrot.slane %v7678, 5
      %v7773 = vrot.slane %v7681, 5
      %v7774 = vrot.slane %v7684, 5
      %v7775 = vrot.slane %v7623, 5
      %v7776 = vrot.slane %v7624, 5
      %v7777 = vrot.slane %v7625, 5
      %v7778 = vrot.slane %v7626, 5
      %v7779 = vrot.slane %v7627, 5
      %v7780 = vrot.slane %v7628, 5
      %v7781 = vrot.slane %v7629, 5
      %v7782 = vrot.slane %v7630, 5
      %v7791 = vrot.slane %v7632, 5
      %v7792 = vrot.slane %v7635, 5
      %v7793 = vrot.slane %v7638, 5
      %v7794 = vrot.slane %v7641, 5
      %v7795 = vrot.slane %v7644, 5
      %v7796 = vrot.slane %v7647, 5
      %v7797 = vrot.slane %v7650, 5
      %v7798 = vrot.slane %v7653, 5
      %v7807 = vrot.slane %v7663, 4
      %v7808 = vrot.slane %v7666, 4
      %v7809 = vrot.slane %v7669, 4
      %v7810 = vrot.slane %v7672, 4
      %v7811 = vrot.slane %v7675, 4
      %v7812 = vrot.slane %v7678, 4
      %v7813 = vrot.slane %v7681, 4
      %v7814 = vrot.slane %v7684, 4
      %v7815 = vrot.slane %v7623, 4
      %v7816 = vrot.slane %v7624, 4
      %v7817 = vrot.slane %v7625, 4
      %v7818 = vrot.slane %v7626, 4
      %v7819 = vrot.slane %v7627, 4
      %v7820 = vrot.slane %v7628, 4
      %v7821 = vrot.slane %v7629, 4
      %v7822 = vrot.slane %v7630, 4
      %v7831 = vsel %vm1233, %v7623, %v7632
      %v7832 = vsel %vm1233, %v7624, %v7635
      %v7833 = vsel %vm1233, %v7625, %v7638
      %v7834 = vsel %vm1233, %v7626, %v7641
      %v7835 = vsel %vm1233, %v7627, %v7644
      %v7836 = vsel %vm1233, %v7628, %v7647
      %v7837 = vsel %vm1233, %v7629, %v7650
      %v7838 = vsel %vm1233, %v7630, %v7653
      %v7841 = vsel %vm2655, %v7831, %v7665
      %v7845 = vsel %vm2655, %v7832, %v7668
      %v7849 = vsel %vm2655, %v7833, %v7671
      %v7853 = vsel %vm2655, %v7834, %v7674
      %v7857 = vsel %vm2655, %v7835, %v7677
      %v7861 = vsel %vm2655, %v7836, %v7680
      %v7865 = vsel %vm2655, %v7837, %v7683
      %v7869 = vsel %vm2655, %v7838, %v7686
      %v7871 = vsel %vm2690, %v7841, %v7695
      %v7872 = vsel %vm2690, %v7845, %v7696
      %v7873 = vsel %vm2690, %v7849, %v7697
      %v7874 = vsel %vm2690, %v7853, %v7698
      %v7875 = vsel %vm2690, %v7857, %v7699
      %v7876 = vsel %vm2690, %v7861, %v7700
      %v7877 = vsel %vm2690, %v7865, %v7701
      %v7878 = vsel %vm2690, %v7869, %v7702
      %v7881 = vsel %vm2699, %v7871, %v7695
      %v7885 = vsel %vm2699, %v7872, %v7696
      %v7889 = vsel %vm2699, %v7873, %v7697
      %v7893 = vsel %vm2699, %v7874, %v7698
      %v7897 = vsel %vm2699, %v7875, %v7699
      %v7901 = vsel %vm2699, %v7876, %v7700
      %v7905 = vsel %vm2699, %v7877, %v7701
      %v7909 = vsel %vm2699, %v7878, %v7702
      %v7911 = vsel %vm2734, %v7881, %v7711
      %v7912 = vsel %vm2734, %v7885, %v7712
      %v7913 = vsel %vm2734, %v7889, %v7713
      %v7914 = vsel %vm2734, %v7893, %v7714
      %v7915 = vsel %vm2734, %v7897, %v7715
      %v7916 = vsel %vm2734, %v7901, %v7716
      %v7917 = vsel %vm2734, %v7905, %v7717
      %v7918 = vsel %vm2734, %v7909, %v7718
      %v7921 = vsel %vm2743, %v7911, %v7727
      %v7925 = vsel %vm2743, %v7912, %v7728
      %v7929 = vsel %vm2743, %v7913, %v7729
      %v7933 = vsel %vm2743, %v7914, %v7730
      %v7937 = vsel %vm2743, %v7915, %v7731
      %v7941 = vsel %vm2743, %v7916, %v7732
      %v7945 = vsel %vm2743, %v7917, %v7733
      %v7949 = vsel %vm2743, %v7918, %v7734
      %v7951 = vsel %vm2778, %v7921, %v7735
      %v7952 = vsel %vm2778, %v7925, %v7736
      %v7953 = vsel %vm2778, %v7929, %v7737
      %v7954 = vsel %vm2778, %v7933, %v7738
      %v7955 = vsel %vm2778, %v7937, %v7739
      %v7956 = vsel %vm2778, %v7941, %v7740
      %v7957 = vsel %vm2778, %v7945, %v7741
      %v7958 = vsel %vm2778, %v7949, %v7742
      %v7961 = vsel %vm3313, %v7951, %v7735
      %v7965 = vsel %vm3313, %v7952, %v7736
      %v7969 = vsel %vm3313, %v7953, %v7737
      %v7973 = vsel %vm3313, %v7954, %v7738
      %v7977 = vsel %vm3313, %v7955, %v7739
      %v7981 = vsel %vm3313, %v7956, %v7740
      %v7985 = vsel %vm3313, %v7957, %v7741
      %v7989 = vsel %vm3313, %v7958, %v7742
      %v7991 = vsel %vm2872, %v7961, %v7751
      %v7992 = vsel %vm2872, %v7965, %v7752
      %v7993 = vsel %vm2872, %v7969, %v7753
      %v7994 = vsel %vm2872, %v7973, %v7754
      %v7995 = vsel %vm2872, %v7977, %v7755
      %v7996 = vsel %vm2872, %v7981, %v7756
      %v7997 = vsel %vm2872, %v7985, %v7757
      %v7998 = vsel %vm2872, %v7989, %v7758
      %v8001 = vsel %vm2123, %v7991, %v7767
      %v8005 = vsel %vm2123, %v7992, %v7768
      %v8009 = vsel %vm2123, %v7993, %v7769
      %v8013 = vsel %vm2123, %v7994, %v7770
      %v8017 = vsel %vm2123, %v7995, %v7771
      %v8021 = vsel %vm2123, %v7996, %v7772
      %v8025 = vsel %vm2123, %v7997, %v7773
      %v8029 = vsel %vm2123, %v7998, %v7774
      %vm8031 = vcmask 1045504
      %vm8032 = vsmask.f32 5376
      %vm8033 = vmand %vm8031, %vm8032
      %v8034 = vsel %vm8033, %v8001, %v7775
      %v8035 = vsel %vm8033, %v8005, %v7776
      %v8036 = vsel %vm8033, %v8009, %v7777
      %v8037 = vsel %vm8033, %v8013, %v7778
      %v8038 = vsel %vm8033, %v8017, %v7779
      %v8039 = vsel %vm8033, %v8021, %v7780
      %v8040 = vsel %vm8033, %v8025, %v7781
      %v8041 = vsel %vm8033, %v8029, %v7782
      %v8044 = vsel %vm2124, %v8034, %v7775
      %v8048 = vsel %vm2124, %v8035, %v7776
      %v8052 = vsel %vm2124, %v8036, %v7777
      %v8056 = vsel %vm2124, %v8037, %v7778
      %v8060 = vsel %vm2124, %v8038, %v7779
      %v8064 = vsel %vm2124, %v8039, %v7780
      %v8068 = vsel %vm2124, %v8040, %v7781
      %v8072 = vsel %vm2124, %v8041, %v7782
      %vm8074 = vsmask.f32 6400
      %vm8075 = vmand %vm1493, %vm8074
      %v8076 = vsel %vm8075, %v8044, %v7791
      %v8077 = vsel %vm8075, %v8048, %v7792
      %v8078 = vsel %vm8075, %v8052, %v7793
      %v8079 = vsel %vm8075, %v8056, %v7794
      %v8080 = vsel %vm8075, %v8060, %v7795
      %v8081 = vsel %vm8075, %v8064, %v7796
      %v8082 = vsel %vm8075, %v8068, %v7797
      %v8083 = vsel %vm8075, %v8072, %v7798
      %vm8084 = vcmask 1046528
      %v8087 = vsel %vm8084, %v8076, %v7807
      %v8091 = vsel %vm8084, %v8077, %v7808
      %v8095 = vsel %vm8084, %v8078, %v7809
      %v8099 = vsel %vm8084, %v8079, %v7810
      %v8103 = vsel %vm8084, %v8080, %v7811
      %v8107 = vsel %vm8084, %v8081, %v7812
      %v8111 = vsel %vm8084, %v8082, %v7813
      %v8115 = vsel %vm8084, %v8083, %v7814
      %vm8117 = vcmask 1047552
      %vm8118 = vmand %vm8117, %vm1268
      %v8119 = vsel %vm8118, %v8087, %v7815
      %v8120 = vsel %vm8118, %v8091, %v7816
      %v8121 = vsel %vm8118, %v8095, %v7817
      %v8122 = vsel %vm8118, %v8099, %v7818
      %v8123 = vsel %vm8118, %v8103, %v7819
      %v8124 = vsel %vm8118, %v8107, %v7820
      %v8125 = vsel %vm8118, %v8111, %v7821
      %v8126 = vsel %vm8118, %v8115, %v7822
      %v8127 = vld [vmem:[%s57] sm:$0xf]
      %v8128 = vld [vmem:[%s57 + $0x4] sm:$0xf]
      %v8129 = vld [vmem:[%s57 + $0x8] sm:$0xf]
      %v8130 = vld [vmem:[%s57 + $0xc] sm:$0xf]
      %v8131 = vld [vmem:[%s57 + $0x10] sm:$0xf]
      %v8132 = vld [vmem:[%s57 + $0x14] sm:$0xf]
      %v8133 = vld [vmem:[%s57 + $0x18] sm:$0xf]
      %v8134 = vld [vmem:[%s57 + $0x1c] sm:$0xf]
      %v8135 = vld [vmem:[%s57 + $0x20] sm:$0xf]
      %v8136 = vld [vmem:[%s59] sm:$0x1]
      %v8137 = vld [vmem:[%s61] sm:$0x1]
      %v8139 = vshrl.u32 %v8119, 16
      %v8141 = vrot.slane %v8139, 7
      %v8142 = vshll.u32 %v8119, 16
      %v8144 = vor.u32 %v8141, %v8142
      %v8146 = vshrl.u32 %v8120, 16
      %v8148 = vrot.slane %v8146, 7
      %v8149 = vshll.u32 %v8120, 16
      %v8151 = vor.u32 %v8148, %v8149
      %v8153 = vshrl.u32 %v8121, 16
      %v8155 = vrot.slane %v8153, 7
      %v8156 = vshll.u32 %v8121, 16
      %v8158 = vor.u32 %v8155, %v8156
      %v8160 = vshrl.u32 %v8122, 16
      %v8162 = vrot.slane %v8160, 7
      %v8163 = vshll.u32 %v8122, 16
      %v8165 = vor.u32 %v8162, %v8163
      %v8167 = vshrl.u32 %v8123, 16
      %v8169 = vrot.slane %v8167, 7
      %v8170 = vshll.u32 %v8123, 16
      %v8172 = vor.u32 %v8169, %v8170
      %v8174 = vshrl.u32 %v8124, 16
      %v8176 = vrot.slane %v8174, 7
      %v8177 = vshll.u32 %v8124, 16
      %v8179 = vor.u32 %v8176, %v8177
      %v8181 = vshrl.u32 %v8125, 16
      %v8183 = vrot.slane %v8181, 7
      %v8184 = vshll.u32 %v8125, 16
      %v8186 = vor.u32 %v8183, %v8184
      %v8188 = vshrl.u32 %v8126, 16
      %v8190 = vrot.slane %v8188, 7
      %v8191 = vshll.u32 %v8126, 16
      %v8193 = vor.u32 %v8190, %v8191
      %v8210 = vsel %vm1233, 0, %v8144
      %v8211 = vsel %vm1233, 0, %v8151
      %v8212 = vsel %vm1233, 0, %v8158
      %v8213 = vsel %vm1233, 0, %v8165
      %v8214 = vsel %vm1233, 0, %v8172
      %v8215 = vsel %vm1233, 0, %v8179
      %v8216 = vsel %vm1233, 0, %v8186
      %v8217 = vsel %vm1233, 0, %v8193
      %v8218 = vsel %vm1233, %v8141, 0
      %v8219 = vsel %vm1233, %v8148, 0
      %v8220 = vsel %vm1233, %v8155, 0
      %v8221 = vsel %vm1233, %v8162, 0
      %v8222 = vsel %vm1233, %v8169, 0
      %v8223 = vsel %vm1233, %v8176, 0
      %v8224 = vsel %vm1233, %v8183, 0
      %v8225 = vsel %vm1233, %v8190, 0
      %v8227 = vshrl.u32 %v8210, 16
      %v8229 = vshll.u32 %v8210, 16
      %v8231 = vrot.slane %v8229, 1
      %v8232 = vor.u32 %v8227, %v8231
      %v8234 = vshll.u32 %v8218, 16
      %v8236 = vrot.slane %v8234, 1
      %v8237 = vsel %vm1268, %v8232, %v8236
      %v8239 = vshrl.u32 %v8211, 16
      %v8241 = vshll.u32 %v8211, 16
      %v8243 = vrot.slane %v8241, 1
      %v8244 = vor.u32 %v8239, %v8243
      %v8246 = vshll.u32 %v8219, 16
      %v8248 = vrot.slane %v8246, 1
      %v8249 = vsel %vm1268, %v8244, %v8248
      %v8251 = vshrl.u32 %v8212, 16
      %v8253 = vshll.u32 %v8212, 16
      %v8255 = vrot.slane %v8253, 1
      %v8256 = vor.u32 %v8251, %v8255
      %v8258 = vshll.u32 %v8220, 16
      %v8260 = vrot.slane %v8258, 1
      %v8261 = vsel %vm1268, %v8256, %v8260
      %v8263 = vshrl.u32 %v8213, 16
      %v8265 = vshll.u32 %v8213, 16
      %v8267 = vrot.slane %v8265, 1
      %v8268 = vor.u32 %v8263, %v8267
      %v8270 = vshll.u32 %v8221, 16
      %v8272 = vrot.slane %v8270, 1
      %v8273 = vsel %vm1268, %v8268, %v8272
      %v8275 = vshrl.u32 %v8214, 16
      %v8277 = vshll.u32 %v8214, 16
      %v8279 = vrot.slane %v8277, 1
      %v8280 = vor.u32 %v8275, %v8279
      %v8282 = vshll.u32 %v8222, 16
      %v8284 = vrot.slane %v8282, 1
      %v8285 = vsel %vm1268, %v8280, %v8284
      %v8287 = vshrl.u32 %v8215, 16
      %v8289 = vshll.u32 %v8215, 16
      %v8291 = vrot.slane %v8289, 1
      %v8292 = vor.u32 %v8287, %v8291
      %v8294 = vshll.u32 %v8223, 16
      %v8296 = vrot.slane %v8294, 1
      %v8297 = vsel %vm1268, %v8292, %v8296
      %v8299 = vshrl.u32 %v8216, 16
      %v8301 = vshll.u32 %v8216, 16
      %v8303 = vrot.slane %v8301, 1
      %v8304 = vor.u32 %v8299, %v8303
      %v8306 = vshll.u32 %v8224, 16
      %v8308 = vrot.slane %v8306, 1
      %v8309 = vsel %vm1268, %v8304, %v8308
      %v8311 = vshrl.u32 %v8217, 16
      %v8313 = vshll.u32 %v8217, 16
      %v8315 = vrot.slane %v8313, 1
      %v8316 = vor.u32 %v8311, %v8315
      %v8318 = vshll.u32 %v8225, 16
      %v8320 = vrot.slane %v8318, 1
      %v8321 = vsel %vm1268, %v8316, %v8320
      %v8338 = vrot.slane %v8210, 1
      %v8339 = vrot.slane %v8218, 1
      %v8340 = vsel %vm1493, %v8338, %v8339
      %v8341 = vrot.slane %v8211, 1
      %v8342 = vrot.slane %v8219, 1
      %v8343 = vsel %vm1493, %v8341, %v8342
      %v8344 = vrot.slane %v8212, 1
      %v8345 = vrot.slane %v8220, 1
      %v8346 = vsel %vm1493, %v8344, %v8345
      %v8347 = vrot.slane %v8213, 1
      %v8348 = vrot.slane %v8221, 1
      %v8349 = vsel %vm1493, %v8347, %v8348
      %v8350 = vrot.slane %v8214, 1
      %v8351 = vrot.slane %v8222, 1
      %v8352 = vsel %vm1493, %v8350, %v8351
      %v8353 = vrot.slane %v8215, 1
      %v8354 = vrot.slane %v8223, 1
      %v8355 = vsel %vm1493, %v8353, %v8354
      %v8356 = vrot.slane %v8216, 1
      %v8357 = vrot.slane %v8224, 1
      %v8358 = vsel %vm1493, %v8356, %v8357
      %v8359 = vrot.slane %v8217, 1
      %v8360 = vrot.slane %v8225, 1
      %v8361 = vsel %vm1493, %v8359, %v8360
      %8362 = vrot.lane.b32.xlu0 %v1280, 8
      %v8363 = vpop.permute.xlu0 %8362
      %8364 = vrot.lane.b32.xlu0 %v8237, 8
      %v8365 = vpop.permute.xlu0 %8364
      %8366 = vrot.lane.b32.xlu0 %v8249, 8
      %v8367 = vpop.permute.xlu0 %8366
      %8368 = vrot.lane.b32.xlu0 %v8261, 8
      %v8369 = vpop.permute.xlu0 %8368
      %8370 = vrot.lane.b32.xlu0 %v8273, 8
      %v8371 = vpop.permute.xlu0 %8370
      %8372 = vrot.lane.b32.xlu0 %v8285, 8
      %v8373 = vpop.permute.xlu0 %8372
      %8374 = vrot.lane.b32.xlu0 %v8297, 8
      %v8375 = vpop.permute.xlu0 %8374
      %8376 = vrot.lane.b32.xlu0 %v8309, 8
      %v8377 = vpop.permute.xlu0 %8376
      %8378 = vrot.lane.b32.xlu0 %v8321, 8
      %v8379 = vpop.permute.xlu0 %8378
      %8380 = vrot.lane.b32.xlu0 %v1496, 16
      %v8381 = vpop.permute.xlu0 %8380
      %8382 = vrot.lane.b32.xlu0 %v8340, 16
      %v8383 = vpop.permute.xlu0 %8382
      %8384 = vrot.lane.b32.xlu0 %v8343, 16
      %v8385 = vpop.permute.xlu0 %8384
      %8386 = vrot.lane.b32.xlu0 %v8346, 16
      %v8387 = vpop.permute.xlu0 %8386
      %8388 = vrot.lane.b32.xlu0 %v8349, 16
      %v8389 = vpop.permute.xlu0 %8388
      %8390 = vrot.lane.b32.xlu0 %v8352, 16
      %v8391 = vpop.permute.xlu0 %8390
      %8392 = vrot.lane.b32.xlu0 %v8355, 16
      %v8393 = vpop.permute.xlu0 %8392
      %8394 = vrot.lane.b32.xlu0 %v8358, 16
      %v8395 = vpop.permute.xlu0 %8394
      %8396 = vrot.lane.b32.xlu0 %v8361, 16
      %v8397 = vpop.permute.xlu0 %8396
      %8398 = vrot.lane.b32.xlu0 %v8210, 24
      %v8399 = vpop.permute.xlu0 %8398
      %8400 = vrot.lane.b32.xlu0 %v8211, 24
      %v8401 = vpop.permute.xlu0 %8400
      %8402 = vrot.lane.b32.xlu0 %v8212, 24
      %v8403 = vpop.permute.xlu0 %8402
      %8404 = vrot.lane.b32.xlu0 %v8213, 24
      %v8405 = vpop.permute.xlu0 %8404
      %8406 = vrot.lane.b32.xlu0 %v8214, 24
      %v8407 = vpop.permute.xlu0 %8406
      %8408 = vrot.lane.b32.xlu0 %v8215, 24
      %v8409 = vpop.permute.xlu0 %8408
      %8410 = vrot.lane.b32.xlu0 %v8216, 24
      %v8411 = vpop.permute.xlu0 %8410
      %8412 = vrot.lane.b32.xlu0 %v8217, 24
      %v8413 = vpop.permute.xlu0 %8412
      %8414 = vrot.lane.b32.xlu0 %v8237, 32
      %v8415 = vpop.permute.xlu0 %8414
      %8416 = vrot.lane.b32.xlu0 %v8249, 32
      %v8417 = vpop.permute.xlu0 %8416
      %8418 = vrot.lane.b32.xlu0 %v8261, 32
      %v8419 = vpop.permute.xlu0 %8418
      %8420 = vrot.lane.b32.xlu0 %v8273, 32
      %v8421 = vpop.permute.xlu0 %8420
      %8422 = vrot.lane.b32.xlu0 %v8285, 32
      %v8423 = vpop.permute.xlu0 %8422
      %8424 = vrot.lane.b32.xlu0 %v8297, 32
      %v8425 = vpop.permute.xlu0 %8424
      %8426 = vrot.lane.b32.xlu0 %v8309, 32
      %v8427 = vpop.permute.xlu0 %8426
      %8428 = vrot.lane.b32.xlu0 %v8321, 32
      %v8429 = vpop.permute.xlu0 %8428
      %8430 = vrot.lane.b32.xlu0 %v8340, 40
      %v8431 = vpop.permute.xlu0 %8430
      %8432 = vrot.lane.b32.xlu0 %v8343, 40
      %v8433 = vpop.permute.xlu0 %8432
      %8434 = vrot.lane.b32.xlu0 %v8346, 40
      %v8435 = vpop.permute.xlu0 %8434
      %8436 = vrot.lane.b32.xlu0 %v8349, 40
      %v8437 = vpop.permute.xlu0 %8436
      %8438 = vrot.lane.b32.xlu0 %v8352, 40
      %v8439 = vpop.permute.xlu0 %8438
      %8440 = vrot.lane.b32.xlu0 %v8355, 40
      %v8441 = vpop.permute.xlu0 %8440
      %8442 = vrot.lane.b32.xlu0 %v8358, 40
      %v8443 = vpop.permute.xlu0 %8442
      %8444 = vrot.lane.b32.xlu0 %v8361, 40
      %v8445 = vpop.permute.xlu0 %8444
      %8446 = vrot.lane.b32.xlu0 %v8210, 48
      %v8447 = vpop.permute.xlu0 %8446
      %8448 = vrot.lane.b32.xlu0 %v8211, 48
      %v8449 = vpop.permute.xlu0 %8448
      %8450 = vrot.lane.b32.xlu0 %v8212, 48
      %v8451 = vpop.permute.xlu0 %8450
      %8452 = vrot.lane.b32.xlu0 %v8213, 48
      %v8453 = vpop.permute.xlu0 %8452
      %8454 = vrot.lane.b32.xlu0 %v8214, 48
      %v8455 = vpop.permute.xlu0 %8454
      %8456 = vrot.lane.b32.xlu0 %v8215, 48
      %v8457 = vpop.permute.xlu0 %8456
      %8458 = vrot.lane.b32.xlu0 %v8216, 48
      %v8459 = vpop.permute.xlu0 %8458
      %8460 = vrot.lane.b32.xlu0 %v8217, 48
      %v8461 = vpop.permute.xlu0 %8460
      %8462 = vrot.lane.b32.xlu0 %v1234, 48
      %v8463 = vpop.permute.xlu0 %8462
      %8464 = vrot.lane.b32.xlu0 %v8237, 56
      %v8465 = vpop.permute.xlu0 %8464
      %8466 = vrot.lane.b32.xlu0 %v8249, 56
      %v8467 = vpop.permute.xlu0 %8466
      %8468 = vrot.lane.b32.xlu0 %v8261, 56
      %v8469 = vpop.permute.xlu0 %8468
      %8470 = vrot.lane.b32.xlu0 %v8273, 56
      %v8471 = vpop.permute.xlu0 %8470
      %8472 = vrot.lane.b32.xlu0 %v8285, 56
      %v8473 = vpop.permute.xlu0 %8472
      %8474 = vrot.lane.b32.xlu0 %v8297, 56
      %v8475 = vpop.permute.xlu0 %8474
      %8476 = vrot.lane.b32.xlu0 %v8309, 56
      %v8477 = vpop.permute.xlu0 %8476
      %8478 = vrot.lane.b32.xlu0 %v8321, 56
      %v8479 = vpop.permute.xlu0 %8478
      %8480 = vrot.lane.b32.xlu0 %v1280, 56
      %v8481 = vpop.permute.xlu0 %8480
      %8482 = vrot.lane.b32.xlu0 %v8340, 64
      %v8483 = vpop.permute.xlu0 %8482
      %8484 = vrot.lane.b32.xlu0 %v8343, 64
      %v8485 = vpop.permute.xlu0 %8484
      %8486 = vrot.lane.b32.xlu0 %v8346, 64
      %v8487 = vpop.permute.xlu0 %8486
      %8488 = vrot.lane.b32.xlu0 %v8349, 64
      %v8489 = vpop.permute.xlu0 %8488
      %8490 = vrot.lane.b32.xlu0 %v8352, 64
      %v8491 = vpop.permute.xlu0 %8490
      %8492 = vrot.lane.b32.xlu0 %v8355, 64
      %v8493 = vpop.permute.xlu0 %8492
      %8494 = vrot.lane.b32.xlu0 %v8358, 64
      %v8495 = vpop.permute.xlu0 %8494
      %8496 = vrot.lane.b32.xlu0 %v8361, 64
      %v8497 = vpop.permute.xlu0 %8496
      %8498 = vrot.lane.b32.xlu0 %v1496, 64
      %v8499 = vpop.permute.xlu0 %8498
      %v8501 = vsel %vm3202, %v1234, %v8363
      %v8503 = vsel %vm3202, %v8210, %v8365
      %v8505 = vsel %vm3202, %v8211, %v8367
      %v8507 = vsel %vm3202, %v8212, %v8369
      %v8509 = vsel %vm3202, %v8213, %v8371
      %v8511 = vsel %vm3202, %v8214, %v8373
      %v8513 = vsel %vm3202, %v8215, %v8375
      %v8515 = vsel %vm3202, %v8216, %v8377
      %v8517 = vsel %vm3202, %v8217, %v8379
      %v8519 = vsel %vm3215, %v8501, %v8381
      %v8521 = vsel %vm3215, %v8503, %v8383
      %v8523 = vsel %vm3215, %v8505, %v8385
      %v8525 = vsel %vm3215, %v8507, %v8387
      %v8527 = vsel %vm3215, %v8509, %v8389
      %v8529 = vsel %vm3215, %v8511, %v8391
      %v8531 = vsel %vm3215, %v8513, %v8393
      %v8533 = vsel %vm3215, %v8515, %v8395
      %v8535 = vsel %vm3215, %v8517, %v8397
      %v8537 = vsel %vm2046, %v8519, %v8399
      %v8538 = vsel %vm2046, %v8521, %v8399
      %v8540 = vsel %vm2046, %v8521, %v8401
      %v8541 = vsel %vm2046, %v8523, %v8401
      %v8543 = vsel %vm2046, %v8523, %v8403
      %v8544 = vsel %vm2046, %v8525, %v8403
      %v8546 = vsel %vm2046, %v8525, %v8405
      %v8547 = vsel %vm2046, %v8527, %v8405
      %v8549 = vsel %vm2046, %v8527, %v8407
      %v8550 = vsel %vm2046, %v8529, %v8407
      %v8552 = vsel %vm2046, %v8529, %v8409
      %v8553 = vsel %vm2046, %v8531, %v8409
      %v8555 = vsel %vm2046, %v8531, %v8411
      %v8556 = vsel %vm2046, %v8533, %v8411
      %v8558 = vsel %vm2046, %v8533, %v8413
      %v8559 = vsel %vm2046, %v8535, %v8413
      %v8561 = vsel %vm3232, %v8537, %v8415
      %v8562 = vsel %vm3232, %v8538, %v8415
      %v8564 = vsel %vm3232, %v8540, %v8417
      %v8565 = vsel %vm3232, %v8541, %v8417
      %v8567 = vsel %vm3232, %v8543, %v8419
      %v8568 = vsel %vm3232, %v8544, %v8419
      %v8570 = vsel %vm3232, %v8546, %v8421
      %v8571 = vsel %vm3232, %v8547, %v8421
      %v8573 = vsel %vm3232, %v8549, %v8423
      %v8574 = vsel %vm3232, %v8550, %v8423
      %v8576 = vsel %vm3232, %v8552, %v8425
      %v8577 = vsel %vm3232, %v8553, %v8425
      %v8579 = vsel %vm3232, %v8555, %v8427
      %v8580 = vsel %vm3232, %v8556, %v8427
      %v8582 = vsel %vm3232, %v8558, %v8429
      %v8583 = vsel %vm3232, %v8559, %v8429
      %v8585 = vsel %vm3241, %v8561, %v8431
      %v8586 = vsel %vm3241, %v8562, %v8431
      %v8588 = vsel %vm3241, %v8564, %v8433
      %v8589 = vsel %vm3241, %v8565, %v8433
      %v8591 = vsel %vm3241, %v8567, %v8435
      %v8592 = vsel %vm3241, %v8568, %v8435
      %v8594 = vsel %vm3241, %v8570, %v8437
      %v8595 = vsel %vm3241, %v8571, %v8437
      %v8597 = vsel %vm3241, %v8573, %v8439
      %v8598 = vsel %vm3241, %v8574, %v8439
      %v8600 = vsel %vm3241, %v8576, %v8441
      %v8601 = vsel %vm3241, %v8577, %v8441
      %v8603 = vsel %vm3241, %v8579, %v8443
      %v8604 = vsel %vm3241, %v8580, %v8443
      %v8606 = vsel %vm3241, %v8582, %v8445
      %v8607 = vsel %vm3241, %v8583, %v8445
      %v8609 = vsel %vm3250, %v8585, %v8447
      %v8611 = vsel %vm3250, %v8586, %v8449
      %v8612 = vsel %vm3250, %v8588, %v8449
      %v8614 = vsel %vm3250, %v8589, %v8451
      %v8615 = vsel %vm3250, %v8591, %v8451
      %v8617 = vsel %vm3250, %v8592, %v8453
      %v8618 = vsel %vm3250, %v8594, %v8453
      %v8620 = vsel %vm3250, %v8595, %v8455
      %v8621 = vsel %vm3250, %v8597, %v8455
      %v8623 = vsel %vm3250, %v8598, %v8457
      %v8624 = vsel %vm3250, %v8600, %v8457
      %v8626 = vsel %vm3250, %v8601, %v8459
      %v8627 = vsel %vm3250, %v8603, %v8459
      %v8629 = vsel %vm3250, %v8604, %v8461
      %v8630 = vsel %vm3250, %v8606, %v8461
      %v8632 = vsel %vm3250, %v8607, %v8463
      %v8634 = vsel %vm3259, %v8609, %v8465
      %v8636 = vsel %vm3259, %v8611, %v8467
      %v8637 = vsel %vm3259, %v8612, %v8467
      %v8639 = vsel %vm3259, %v8614, %v8469
      %v8640 = vsel %vm3259, %v8615, %v8469
      %v8642 = vsel %vm3259, %v8617, %v8471
      %v8643 = vsel %vm3259, %v8618, %v8471
      %v8645 = vsel %vm3259, %v8620, %v8473
      %v8646 = vsel %vm3259, %v8621, %v8473
      %v8648 = vsel %vm3259, %v8623, %v8475
      %v8649 = vsel %vm3259, %v8624, %v8475
      %v8651 = vsel %vm3259, %v8626, %v8477
      %v8652 = vsel %vm3259, %v8627, %v8477
      %v8654 = vsel %vm3259, %v8629, %v8479
      %v8655 = vsel %vm3259, %v8630, %v8479
      %v8657 = vsel %vm3259, %v8632, %v8481
      %v8659 = vsel %vm3268, %v8634, %v8483
      %v8661 = vsel %vm3268, %v8636, %v8485
      %v8662 = vsel %vm3268, %v8637, %v8485
      %v8664 = vsel %vm3268, %v8639, %v8487
      %v8665 = vsel %vm3268, %v8640, %v8487
      %v8667 = vsel %vm3268, %v8642, %v8489
      %v8668 = vsel %vm3268, %v8643, %v8489
      %v8670 = vsel %vm3268, %v8645, %v8491
      %v8671 = vsel %vm3268, %v8646, %v8491
      %v8673 = vsel %vm3268, %v8648, %v8493
      %v8674 = vsel %vm3268, %v8649, %v8493
      %v8676 = vsel %vm3268, %v8651, %v8495
      %v8677 = vsel %vm3268, %v8652, %v8495
      %v8679 = vsel %vm3268, %v8654, %v8497
      %v8680 = vsel %vm3268, %v8655, %v8497
      %v8682 = vsel %vm3268, %v8657, %v8499
      %v8692 = vunpack.c.l.b16 %v8127
      %v8693 = vunpack.c.l.b16 %v8128
      %v8694 = vunpack.c.l.b16 %v8129
      %v8695 = vunpack.c.l.b16 %v8130
      %v8696 = vunpack.c.l.b16 %v8131
      %v8697 = vunpack.c.l.b16 %v8132
      %v8698 = vunpack.c.l.b16 %v8133
      %v8699 = vunpack.c.l.b16 %v8134
      %v8700 = vunpack.c.l.b16 %v8135
      %v8701 = vpack.c.b16 %v8693, %v8692
      %v8702 = vpack.c.b16 %v8695, %v8694
      %v8703 = vpack.c.b16 %v8697, %v8696
      %v8704 = vpack.c.b16 %v8699, %v8698
      %v8705 = vpack.c.b16 %v8700, %v8700
      %v8710 = vsel %vm3304, %v8659, 0
      %v8712 = vsel %vm3304, %v8661, 0
      %v8714 = vsel %vm3304, %v8662, 0
      %v8716 = vsel %vm3304, %v8664, 0
      %v8718 = vsel %vm3304, %v8665, 0
      %v8720 = vsel %vm3304, %v8667, 0
      %v8722 = vsel %vm3304, %v8668, 0
      %v8724 = vsel %vm3304, %v8670, 0
      %v8726 = vsel %vm3304, %v8671, 0
      %v8728 = vsel %vm3304, %v8673, 0
      %v8730 = vsel %vm3304, %v8674, 0
      %v8732 = vsel %vm3304, %v8676, 0
      %v8734 = vsel %vm3304, %v8677, 0
      %v8736 = vsel %vm3304, %v8679, 0
      %v8738 = vsel %vm3304, %v8680, 0
      %v8740 = vsel %vm3304, %v8682, 0
      %v8743 = vsel %vm3313, %v8705, 0
      %8745 = vmatprep.subr.bf16.mxu0 0
      %8746 = vmatpush1.bf16.msra.mxu0 %v8701
      %8747 = vmatprep.subr.bf16.mxu0 0
      %8748 = vmatpush1.bf16.msra.mxu0 %v8702
      %8749 = vmatprep.subr.bf16.mxu0 0
      %8750 = vmatpush1.bf16.msra.mxu0 %v8703
      %8751 = vmatprep.subr.bf16.mxu0 0
      %8752 = vmatpush1.bf16.msra.mxu0 %v8704
      %8753 = vmatprep.subr.bf16.mxu0 0
      %8754 = vmatpush1.bf16.msra.mxu0 %v8743
      %8755 = vmatprep.subr.bf16.mxu0 0
      %8756 = vmatpush1.bf16.msra.mxu0 0
      %8757 = vmatprep.subr.bf16.mxu0 0
      %8758 = vmatpush1.bf16.msra.mxu0 0
      %8759 = vmatprep.subr.bf16.mxu0 0
      %8760 = vmatpush1.bf16.msra.mxu0 0
      %8761 = vmatprep.subr.bf16.mxu0 0
      %8762 = vmatpush1.bf16.msra.mxu0 0
      %8763 = vmatprep.subr.bf16.mxu0 0
      %8764 = vmatpush1.bf16.msra.mxu0 0
      %8765 = vmatprep.subr.bf16.mxu0 0
      %8766 = vmatpush1.bf16.msra.mxu0 0
      %8767 = vmatprep.subr.bf16.mxu0 0
      %8768 = vmatpush1.bf16.msra.mxu0 0
      %8769 = vmatprep.subr.bf16.mxu0 0
      %8770 = vmatpush1.bf16.msra.mxu0 0
      %8771 = vmatprep.subr.bf16.mxu0 0
      %8772 = vmatpush1.bf16.msra.mxu0 0
      %8773 = vmatprep.subr.bf16.mxu0 0
      %8774 = vmatpush1.bf16.msra.mxu0 0
      %8775 = vmatprep.subr.bf16.mxu0 0
      %8776 = vmatpush1.bf16.msra.mxu0 0
      %8777 = vmatprep.mubr.bf16.mxu0 0
      %8778 = vmatmul.mubr.bf16.gmra.mrb[0].mxu0 %v8710
      %v8779 = vpop.f32.mrb[0].mxu0
      %v8780 = vadd.f32 0.0, %v8779
      %v8781 = vpop.f32.mrb[0].mxu0
      %v8782 = vpop.f32.mrb[0].mxu0
      %v8783 = vadd.f32 0.0, %v8782
      %v8784 = vpop.f32.mrb[0].mxu0
      %8785 = vmatprep.mubr.bf16.mxu0 0
      %8786 = vmatmul.mubr.bf16.gmra.mrb[0].mxu0 %v8712
      %v8787 = vpop.f32.mrb[0].mxu0
      %v8788 = vadd.f32 0.0, %v8787
      %v8789 = vpop.f32.mrb[0].mxu0
      %v8790 = vpop.f32.mrb[0].mxu0
      %v8791 = vadd.f32 0.0, %v8790
      %v8792 = vpop.f32.mrb[0].mxu0
      %8793 = vmatprep.mubr.bf16.mxu0 0
      %8794 = vmatmul.mubr.bf16.gmra.mrb[0].mxu0 %v8714
      %v8795 = vpop.f32.mrb[0].mxu0
      %v8796 = vadd.f32 0.0, %v8795
      %v8797 = vpop.f32.mrb[0].mxu0
      %v8798 = vpop.f32.mrb[0].mxu0
      %v8799 = vadd.f32 0.0, %v8798
      %v8800 = vpop.f32.mrb[0].mxu0
      %8801 = vmatprep.mubr.bf16.mxu0 0
      %8802 = vmatmul.mubr.bf16.gmra.mrb[0].mxu0 %v8716
      %v8803 = vpop.f32.mrb[0].mxu0
      %v8804 = vadd.f32 0.0, %v8803
      %v8805 = vpop.f32.mrb[0].mxu0
      %v8806 = vpop.f32.mrb[0].mxu0
      %v8807 = vadd.f32 0.0, %v8806
      %v8808 = vpop.f32.mrb[0].mxu0
      %8809 = vmatprep.mubr.bf16.mxu0 0
      %8810 = vmatmul.mubr.bf16.gmra.mrb[0].mxu0 %v8718
      %v8811 = vpop.f32.mrb[0].mxu0
      %v8812 = vadd.f32 0.0, %v8811
      %v8813 = vpop.f32.mrb[0].mxu0
      %v8814 = vpop.f32.mrb[0].mxu0
      %v8815 = vadd.f32 0.0, %v8814
      %v8816 = vpop.f32.mrb[0].mxu0
      %8817 = vmatprep.mubr.bf16.mxu0 0
      %8818 = vmatmul.mubr.bf16.gmra.mrb[0].mxu0 %v8720
      %v8819 = vpop.f32.mrb[0].mxu0
      %v8820 = vadd.f32 0.0, %v8819
      %v8821 = vpop.f32.mrb[0].mxu0
      %v8822 = vpop.f32.mrb[0].mxu0
      %v8823 = vadd.f32 0.0, %v8822
      %v8824 = vpop.f32.mrb[0].mxu0
      %8825 = vmatprep.mubr.bf16.mxu0 0
      %8826 = vmatmul.mubr.bf16.gmra.mrb[0].mxu0 %v8722
      %v8827 = vpop.f32.mrb[0].mxu0
      %v8828 = vadd.f32 0.0, %v8827
      %v8829 = vpop.f32.mrb[0].mxu0
      %v8830 = vpop.f32.mrb[0].mxu0
      %v8831 = vadd.f32 0.0, %v8830
      %v8832 = vpop.f32.mrb[0].mxu0
      %8833 = vmatprep.mubr.bf16.mxu0 0
      %8834 = vmatmul.mubr.bf16.gmra.mrb[0].mxu0 %v8724
      %v8835 = vpop.f32.mrb[0].mxu0
      %v8836 = vadd.f32 0.0, %v8835
      %v8837 = vpop.f32.mrb[0].mxu0
      %v8838 = vpop.f32.mrb[0].mxu0
      %v8839 = vadd.f32 0.0, %v8838
      %v8840 = vpop.f32.mrb[0].mxu0
      %8841 = vmatprep.mubr.bf16.mxu0 0
      %8842 = vmatmul.mubr.bf16.gmra.mrb[0].mxu0 %v8726
      %v8843 = vpop.f32.mrb[0].mxu0
      %v8844 = vadd.f32 0.0, %v8843
      %v8845 = vpop.f32.mrb[0].mxu0
      %v8846 = vpop.f32.mrb[0].mxu0
      %v8847 = vadd.f32 0.0, %v8846
      %v8848 = vpop.f32.mrb[0].mxu0
      %8849 = vmatprep.mubr.bf16.mxu0 0
      %8850 = vmatmul.mubr.bf16.gmra.mrb[0].mxu0 %v8728
      %v8851 = vpop.f32.mrb[0].mxu0
      %v8852 = vadd.f32 0.0, %v8851
      %v8853 = vpop.f32.mrb[0].mxu0
      %v8854 = vpop.f32.mrb[0].mxu0
      %v8855 = vadd.f32 0.0, %v8854
      %v8856 = vpop.f32.mrb[0].mxu0
      %8857 = vmatprep.mubr.bf16.mxu0 0
      %8858 = vmatmul.mubr.bf16.gmra.mrb[0].mxu0 %v8730
      %v8859 = vpop.f32.mrb[0].mxu0
      %v8860 = vadd.f32 0.0, %v8859
      %v8861 = vpop.f32.mrb[0].mxu0
      %v8862 = vpop.f32.mrb[0].mxu0
      %v8863 = vadd.f32 0.0, %v8862
      %v8864 = vpop.f32.mrb[0].mxu0
      %8865 = vmatprep.mubr.bf16.mxu0 0
      %8866 = vmatmul.mubr.bf16.gmra.mrb[0].mxu0 %v8732
      %v8867 = vpop.f32.mrb[0].mxu0
      %v8868 = vadd.f32 0.0, %v8867
      %v8869 = vpop.f32.mrb[0].mxu0
      %v8870 = vpop.f32.mrb[0].mxu0
      %v8871 = vadd.f32 0.0, %v8870
      %v8872 = vpop.f32.mrb[0].mxu0
      %8873 = vmatprep.mubr.bf16.mxu0 0
      %8874 = vmatmul.mubr.bf16.gmra.mrb[0].mxu0 %v8734
      %v8875 = vpop.f32.mrb[0].mxu0
      %v8876 = vadd.f32 0.0, %v8875
      %v8877 = vpop.f32.mrb[0].mxu0
      %v8878 = vpop.f32.mrb[0].mxu0
      %v8879 = vadd.f32 0.0, %v8878
      %v8880 = vpop.f32.mrb[0].mxu0
      %8881 = vmatprep.mubr.bf16.mxu0 0
      %8882 = vmatmul.mubr.bf16.gmra.mrb[0].mxu0 %v8736
      %v8883 = vpop.f32.mrb[0].mxu0
      %v8884 = vadd.f32 0.0, %v8883
      %v8885 = vpop.f32.mrb[0].mxu0
      %v8886 = vpop.f32.mrb[0].mxu0
      %v8887 = vadd.f32 0.0, %v8886
      %v8888 = vpop.f32.mrb[0].mxu0
      %8889 = vmatprep.mubr.bf16.mxu0 0
      %8890 = vmatmul.mubr.bf16.gmra.mrb[0].mxu0 %v8738
      %v8891 = vpop.f32.mrb[0].mxu0
      %v8892 = vadd.f32 0.0, %v8891
      %v8893 = vpop.f32.mrb[0].mxu0
      %v8894 = vpop.f32.mrb[0].mxu0
      %v8895 = vadd.f32 0.0, %v8894
      %v8896 = vpop.f32.mrb[0].mxu0
      %8897 = vmatprep.mubr.bf16.mxu0 0
      %8898 = vmatmul.mubr.bf16.gmra.mrb[0].mxu0 %v8740
      %v8899 = vpop.f32.mrb[0].mxu0
      %v8900 = vadd.f32 0.0, %v8899
      %v8901 = vpop.f32.mrb[0].mxu0
      %v8902 = vpop.f32.mrb[0].mxu0
      %v8903 = vadd.f32 0.0, %v8902
      %v8904 = vpop.f32.mrb[0].mxu0
      %8905 = vdwg.mxu0
      %v8907 = vlaneseq
      %v8908 = vshrl.u32 %v8907, 7
      %v8909 = vsub.s32 0, %v8908
      %v8910 = vrot.slane %v8136, %v8909
      %v8912 = vmul.f32 %v8780, %v8910
      %v8913 = vmul.f32 %v8783, %v8910
      %v8914 = vmul.f32 %v8788, %v8910
      %v8915 = vmul.f32 %v8791, %v8910
      %v8916 = vmul.f32 %v8796, %v8910
      %v8917 = vmul.f32 %v8799, %v8910
      %v8918 = vmul.f32 %v8804, %v8910
      %v8919 = vmul.f32 %v8807, %v8910
      %v8920 = vmul.f32 %v8812, %v8910
      %v8921 = vmul.f32 %v8815, %v8910
      %v8922 = vmul.f32 %v8820, %v8910
      %v8923 = vmul.f32 %v8823, %v8910
      %v8924 = vmul.f32 %v8828, %v8910
      %v8925 = vmul.f32 %v8831, %v8910
      %v8926 = vmul.f32 %v8836, %v8910
      %v8927 = vmul.f32 %v8839, %v8910
      %v8928 = vmul.f32 %v8844, %v8910
      %v8929 = vmul.f32 %v8847, %v8910
      %v8930 = vmul.f32 %v8852, %v8910
      %v8931 = vmul.f32 %v8855, %v8910
      %v8932 = vmul.f32 %v8860, %v8910
      %v8933 = vmul.f32 %v8863, %v8910
      %v8934 = vmul.f32 %v8868, %v8910
      %v8935 = vmul.f32 %v8871, %v8910
      %v8936 = vmul.f32 %v8876, %v8910
      %v8937 = vmul.f32 %v8879, %v8910
      %v8938 = vmul.f32 %v8884, %v8910
      %v8939 = vmul.f32 %v8887, %v8910
      %v8940 = vmul.f32 %v8892, %v8910
      %v8941 = vmul.f32 %v8895, %v8910
      %v8942 = vmul.f32 %v8900, %v8910
      %v8943 = vmul.f32 %v8903, %v8910
      %v8945 = vlaneseq
      %v8946 = vshrl.u32 %v8945, 7
      %v8947 = vsub.s32 0, %v8946
      %v8948 = vrot.slane %v8137, %v8947
      %v8950 = vadd.f32 %v8912, %v8948
      %v8951 = vadd.f32 %v8913, %v8948
      %v8952 = vadd.f32 %v8914, %v8948
      %v8953 = vadd.f32 %v8915, %v8948
      %v8954 = vadd.f32 %v8916, %v8948
      %v8955 = vadd.f32 %v8917, %v8948
      %v8956 = vadd.f32 %v8918, %v8948
      %v8957 = vadd.f32 %v8919, %v8948
      %v8958 = vadd.f32 %v8920, %v8948
      %v8959 = vadd.f32 %v8921, %v8948
      %v8960 = vadd.f32 %v8922, %v8948
      %v8961 = vadd.f32 %v8923, %v8948
      %v8962 = vadd.f32 %v8924, %v8948
      %v8963 = vadd.f32 %v8925, %v8948
      %v8964 = vadd.f32 %v8926, %v8948
      %v8965 = vadd.f32 %v8927, %v8948
      %v8966 = vadd.f32 %v8928, %v8948
      %v8967 = vadd.f32 %v8929, %v8948
      %v8968 = vadd.f32 %v8930, %v8948
      %v8969 = vadd.f32 %v8931, %v8948
      %v8970 = vadd.f32 %v8932, %v8948
      %v8971 = vadd.f32 %v8933, %v8948
      %v8972 = vadd.f32 %v8934, %v8948
      %v8973 = vadd.f32 %v8935, %v8948
      %v8974 = vadd.f32 %v8936, %v8948
      %v8975 = vadd.f32 %v8937, %v8948
      %v8976 = vadd.f32 %v8938, %v8948
      %v8977 = vadd.f32 %v8939, %v8948
      %v8978 = vadd.f32 %v8940, %v8948
      %v8979 = vadd.f32 %v8941, %v8948
      %v8980 = vadd.f32 %v8942, %v8948
      %v8981 = vadd.f32 %v8943, %v8948
      %v8982 = vxor.u32 %v8950, 2147483648
      %v8983 = vxor.u32 %v8951, 2147483648
      %v8984 = vxor.u32 %v8952, 2147483648
      %v8985 = vxor.u32 %v8953, 2147483648
      %v8986 = vxor.u32 %v8954, 2147483648
      %v8987 = vxor.u32 %v8955, 2147483648
      %v8988 = vxor.u32 %v8956, 2147483648
      %v8989 = vxor.u32 %v8957, 2147483648
      %v8990 = vxor.u32 %v8958, 2147483648
      %v8991 = vxor.u32 %v8959, 2147483648
      %v8992 = vxor.u32 %v8960, 2147483648
      %v8993 = vxor.u32 %v8961, 2147483648
      %v8994 = vxor.u32 %v8962, 2147483648
      %v8995 = vxor.u32 %v8963, 2147483648
      %v8996 = vxor.u32 %v8964, 2147483648
      %v8997 = vxor.u32 %v8965, 2147483648
      %v8998 = vxor.u32 %v8966, 2147483648
      %v8999 = vxor.u32 %v8967, 2147483648
      %v9000 = vxor.u32 %v8968, 2147483648
      %v9001 = vxor.u32 %v8969, 2147483648
      %v9002 = vxor.u32 %v8970, 2147483648
      %v9003 = vxor.u32 %v8971, 2147483648
      %v9004 = vxor.u32 %v8972, 2147483648
      %v9005 = vxor.u32 %v8973, 2147483648
      %v9006 = vxor.u32 %v8974, 2147483648
      %v9007 = vxor.u32 %v8975, 2147483648
      %v9008 = vxor.u32 %v8976, 2147483648
      %v9009 = vxor.u32 %v8977, 2147483648
      %v9010 = vxor.u32 %v8978, 2147483648
      %v9011 = vxor.u32 %v8979, 2147483648
      %v9012 = vxor.u32 %v8980, 2147483648
      %v9013 = vxor.u32 %v8981, 2147483648
      %v9014 = vmul.f32 %v8982, 1.442695
      %v9015 = vpow.pop %v9014
      %v9016 = vmul.f32 %v8983, 1.442695
      %v9017 = vpow.pop %v9016
      %v9018 = vmul.f32 %v8984, 1.442695
      %v9019 = vpow.pop %v9018
      %v9020 = vmul.f32 %v8985, 1.442695
      %v9021 = vpow.pop %v9020
      %v9022 = vmul.f32 %v8986, 1.442695
      %v9023 = vpow.pop %v9022
      %v9024 = vmul.f32 %v8987, 1.442695
      %v9025 = vpow.pop %v9024
      %v9026 = vmul.f32 %v8988, 1.442695
      %v9027 = vpow.pop %v9026
      %v9028 = vmul.f32 %v8989, 1.442695
      %v9029 = vpow.pop %v9028
      %v9030 = vmul.f32 %v8990, 1.442695
      %v9031 = vpow.pop %v9030
      %v9032 = vmul.f32 %v8991, 1.442695
      %v9033 = vpow.pop %v9032
      %v9034 = vmul.f32 %v8992, 1.442695
      %v9035 = vpow.pop %v9034
      %v9036 = vmul.f32 %v8993, 1.442695
      %v9037 = vpow.pop %v9036
      %v9038 = vmul.f32 %v8994, 1.442695
      %v9039 = vpow.pop %v9038
      %v9040 = vmul.f32 %v8995, 1.442695
      %v9041 = vpow.pop %v9040
      %v9042 = vmul.f32 %v8996, 1.442695
      %v9043 = vpow.pop %v9042
      %v9044 = vmul.f32 %v8997, 1.442695
      %v9045 = vpow.pop %v9044
      %v9046 = vmul.f32 %v8998, 1.442695
      %v9047 = vpow.pop %v9046
      %v9048 = vmul.f32 %v8999, 1.442695
      %v9049 = vpow.pop %v9048
      %v9050 = vmul.f32 %v9000, 1.442695
      %v9051 = vpow.pop %v9050
      %v9052 = vmul.f32 %v9001, 1.442695
      %v9053 = vpow.pop %v9052
      %v9054 = vmul.f32 %v9002, 1.442695
      %v9055 = vpow.pop %v9054
      %v9056 = vmul.f32 %v9003, 1.442695
      %v9057 = vpow.pop %v9056
      %v9058 = vmul.f32 %v9004, 1.442695
      %v9059 = vpow.pop %v9058
      %v9060 = vmul.f32 %v9005, 1.442695
      %v9061 = vpow.pop %v9060
      %v9062 = vmul.f32 %v9006, 1.442695
      %v9063 = vpow.pop %v9062
      %v9064 = vmul.f32 %v9007, 1.442695
      %v9065 = vpow.pop %v9064
      %v9066 = vmul.f32 %v9008, 1.442695
      %v9067 = vpow.pop %v9066
      %v9068 = vmul.f32 %v9009, 1.442695
      %v9069 = vpow.pop %v9068
      %v9070 = vmul.f32 %v9010, 1.442695
      %v9071 = vpow.pop %v9070
      %v9072 = vmul.f32 %v9011, 1.442695
      %v9073 = vpow.pop %v9072
      %v9074 = vmul.f32 %v9012, 1.442695
      %v9075 = vpow.pop %v9074
      %v9076 = vmul.f32 %v9013, 1.442695
      %v9077 = vpow.pop %v9076
      %v9078 = vadd.f32 %v9015, 1.0
      %v9079 = vadd.f32 %v9017, 1.0
      %v9080 = vadd.f32 %v9019, 1.0
      %v9081 = vadd.f32 %v9021, 1.0
      %v9082 = vadd.f32 %v9023, 1.0
      %v9083 = vadd.f32 %v9025, 1.0
      %v9084 = vadd.f32 %v9027, 1.0
      %v9085 = vadd.f32 %v9029, 1.0
      %v9086 = vadd.f32 %v9031, 1.0
      %v9087 = vadd.f32 %v9033, 1.0
      %v9088 = vadd.f32 %v9035, 1.0
      %v9089 = vadd.f32 %v9037, 1.0
      %v9090 = vadd.f32 %v9039, 1.0
      %v9091 = vadd.f32 %v9041, 1.0
      %v9092 = vadd.f32 %v9043, 1.0
      %v9093 = vadd.f32 %v9045, 1.0
      %v9094 = vadd.f32 %v9047, 1.0
      %v9095 = vadd.f32 %v9049, 1.0
      %v9096 = vadd.f32 %v9051, 1.0
      %v9097 = vadd.f32 %v9053, 1.0
      %v9098 = vadd.f32 %v9055, 1.0
      %v9099 = vadd.f32 %v9057, 1.0
      %v9100 = vadd.f32 %v9059, 1.0
      %v9101 = vadd.f32 %v9061, 1.0
      %v9102 = vadd.f32 %v9063, 1.0
      %v9103 = vadd.f32 %v9065, 1.0
      %v9104 = vadd.f32 %v9067, 1.0
      %v9105 = vadd.f32 %v9069, 1.0
      %v9106 = vadd.f32 %v9071, 1.0
      %v9107 = vadd.f32 %v9073, 1.0
      %v9108 = vadd.f32 %v9075, 1.0
      %v9109 = vadd.f32 %v9077, 1.0
      %v9110 = vrcp.pop %v9078
      %v9111 = vmul.f32 1.0, %v9110
      %v9112 = vrcp.pop %v9079
      %v9113 = vmul.f32 1.0, %v9112
      %v9114 = vrcp.pop %v9080
      %v9115 = vmul.f32 1.0, %v9114
      %v9116 = vrcp.pop %v9081
      %v9117 = vmul.f32 1.0, %v9116
      %v9118 = vrcp.pop %v9082
      %v9119 = vmul.f32 1.0, %v9118
      %v9120 = vrcp.pop %v9083
      %v9121 = vmul.f32 1.0, %v9120
      %v9122 = vrcp.pop %v9084
      %v9123 = vmul.f32 1.0, %v9122
      %v9124 = vrcp.pop %v9085
      %v9125 = vmul.f32 1.0, %v9124
      %v9126 = vrcp.pop %v9086
      %v9127 = vmul.f32 1.0, %v9126
      %v9128 = vrcp.pop %v9087
      %v9129 = vmul.f32 1.0, %v9128
      %v9130 = vrcp.pop %v9088
      %v9131 = vmul.f32 1.0, %v9130
      %v9132 = vrcp.pop %v9089
      %v9133 = vmul.f32 1.0, %v9132
      %v9134 = vrcp.pop %v9090
      %v9135 = vmul.f32 1.0, %v9134
      %v9136 = vrcp.pop %v9091
      %v9137 = vmul.f32 1.0, %v9136
      %v9138 = vrcp.pop %v9092
      %v9139 = vmul.f32 1.0, %v9138
      %v9140 = vrcp.pop %v9093
      %v9141 = vmul.f32 1.0, %v9140
      %v9142 = vrcp.pop %v9094
      %v9143 = vmul.f32 1.0, %v9142
      %v9144 = vrcp.pop %v9095
      %v9145 = vmul.f32 1.0, %v9144
      %v9146 = vrcp.pop %v9096
      %v9147 = vmul.f32 1.0, %v9146
      %v9148 = vrcp.pop %v9097
      %v9149 = vmul.f32 1.0, %v9148
      %v9150 = vrcp.pop %v9098
      %v9151 = vmul.f32 1.0, %v9150
      %v9152 = vrcp.pop %v9099
      %v9153 = vmul.f32 1.0, %v9152
      %v9154 = vrcp.pop %v9100
      %v9155 = vmul.f32 1.0, %v9154
      %v9156 = vrcp.pop %v9101
      %v9157 = vmul.f32 1.0, %v9156
      %v9158 = vrcp.pop %v9102
      %v9159 = vmul.f32 1.0, %v9158
      %v9160 = vrcp.pop %v9103
      %v9161 = vmul.f32 1.0, %v9160
      %v9162 = vrcp.pop %v9104
      %v9163 = vmul.f32 1.0, %v9162
      %v9164 = vrcp.pop %v9105
      %v9165 = vmul.f32 1.0, %v9164
      %v9166 = vrcp.pop %v9106
      %v9167 = vmul.f32 1.0, %v9166
      %v9168 = vrcp.pop %v9107
      %v9169 = vmul.f32 1.0, %v9168
      %v9170 = vrcp.pop %v9108
      %v9171 = vmul.f32 1.0, %v9170
      %v9172 = vrcp.pop %v9109
      %v9173 = vmul.f32 1.0, %v9172
      %9174 = vst.msk [vmem:[%s958] sm:$0xff] %vm1815, %v9111
      %9175 = vst.msk [vmem:[%s958 + $0x8] sm:$0xff] %vm1815, %v9113
      %9176 = vst.msk [vmem:[%s958 + $0x10] sm:$0xff] %vm1815, %v9115
      %9177 = vst.msk [vmem:[%s958 + $0x18] sm:$0xff] %vm1815, %v9117
      %9178 = vst.msk [vmem:[%s958 + $0x20] sm:$0xff] %vm1815, %v9119
      %9179 = vst.msk [vmem:[%s958 + $0x28] sm:$0xff] %vm1815, %v9121
      %9180 = vst.msk [vmem:[%s958 + $0x30] sm:$0xff] %vm1815, %v9123
      %9181 = vst.msk [vmem:[%s958 + $0x38] sm:$0xff] %vm1815, %v9125
      %9182 = vst.msk [vmem:[%s958 + $0x40] sm:$0xff] %vm1815, %v9127
      %9183 = vst.msk [vmem:[%s958 + $0x48] sm:$0xff] %vm1815, %v9129
      %9184 = vst.msk [vmem:[%s958 + $0x50] sm:$0xff] %vm1815, %v9131
      %9185 = vst.msk [vmem:[%s958 + $0x58] sm:$0xff] %vm1815, %v9133
      %9186 = vst.msk [vmem:[%s958 + $0x60] sm:$0xff] %vm1815, %v9135
      %9187 = vst.msk [vmem:[%s958 + $0x68] sm:$0xff] %vm1815, %v9137
      %9188 = vst.msk [vmem:[%s958 + $0x70] sm:$0xff] %vm1815, %v9139
      %9189 = vst.msk [vmem:[%s958 + $0x78] sm:$0xff] %vm1815, %v9141
      %9190 = vst.msk [vmem:[%s958 + $0x80] sm:$0xff] %vm1815, %v9143
      %9191 = vst.msk [vmem:[%s958 + $0x88] sm:$0xff] %vm1815, %v9145
      %9192 = vst.msk [vmem:[%s958 + $0x90] sm:$0xff] %vm1815, %v9147
      %9193 = vst.msk [vmem:[%s958 + $0x98] sm:$0xff] %vm1815, %v9149
      %9194 = vst.msk [vmem:[%s958 + $0xa0] sm:$0xff] %vm1815, %v9151
      %9195 = vst.msk [vmem:[%s958 + $0xa8] sm:$0xff] %vm1815, %v9153
      %9196 = vst.msk [vmem:[%s958 + $0xb0] sm:$0xff] %vm1815, %v9155
      %9197 = vst.msk [vmem:[%s958 + $0xb8] sm:$0xff] %vm1815, %v9157
      %9198 = vst.msk [vmem:[%s958 + $0xc0] sm:$0xff] %vm1815, %v9159
      %9199 = vst.msk [vmem:[%s958 + $0xc8] sm:$0xff] %vm1815, %v9161
      %9200 = vst.msk [vmem:[%s958 + $0xd0] sm:$0xff] %vm1815, %v9163
      %9201 = vst.msk [vmem:[%s958 + $0xd8] sm:$0xff] %vm1815, %v9165
      %9202 = vst.msk [vmem:[%s958 + $0xe0] sm:$0xff] %vm1815, %v9167
      %9203 = vst.msk [vmem:[%s958 + $0xe8] sm:$0xff] %vm1815, %v9169
      %9204 = vst.msk [vmem:[%s958 + $0xf0] sm:$0xff] %vm1815, %v9171
      %9205 = vst.msk [vmem:[%s958 + $0xf8] sm:$0xff] %vm1815, %v9173
      %p9206 = scmp.lt.s32.totalorder %s74, 1
      %s9207 = scalar_select %p9206, %s74, 1
      %s9208 = smul.addr %s9207, 32
      %s9209 = smul.addr %s9208, 8
      %s9210 = scalar_lea.vmem %s63, %s9209
      // Predicated region
      $region145: #{cloth_autoencoder_forward.1} parent=143 // pred_check
        %p9211 = pneg %p748
      $region146: #{cloth_autoencoder_forward.1} parent=143 // pred_check_branch
        %9213 = sbr.rel (%p9211) target = $region148
      $region147: #{cloth_autoencoder_forward.1} parent=143 // pred_region
        _
      $region148: #{cloth_autoencoder_forward.1} parent=143 // pred_fallthru
        _
    $region144: #{cloth_autoencoder_forward.1} parent=5 // pred_fallthru
      _
    %p9214 = scmp.le.s32.totalorder 2, %s69
    // Predicated region
    $region149: #{cloth_autoencoder_forward.1} parent=5 // pred_check
      %p9215 = pneg %p9214
    $region150: #{cloth_autoencoder_forward.1} parent=5 // pred_check_branch
      %9217 = sbr.rel (%p9215) target = $region152
    $region151: #{cloth_autoencoder_forward.1} parent=5 // pred_region
      %s9218 = ssub.s32 %s69, 2
      // Predicated region
      $region153: #{cloth_autoencoder_forward.1} parent=151 // pred_check
        %p9219 = pneg %p754
      $region154: #{cloth_autoencoder_forward.1} parent=151 // pred_check_branch
        %9221 = sbr.rel (%p9219) target = $region156
      $region155: #{cloth_autoencoder_forward.1} parent=151 // pred_region
        %p9222 = scmp.lt.s32.totalorder %s75, 1
        %s9223 = scalar_select %p9222, %s75, 1
        %s9224 = smul.addr %s9223, 32
        %s9225 = smul.addr %s9224, 8
        %s9226 = scalar_lea.vmem %s63, %s9225
      $region156: #{cloth_autoencoder_forward.1} parent=151 // pred_fallthru
        _
    $region152: #{cloth_autoencoder_forward.1} parent=5 // pred_fallthru
      _
  $region6: #{cloth_autoencoder_forward.1} parent=0 // loop_footer
    %s73 = sadd.s32 1, %s69
  $region7: #{cloth_autoencoder_forward.1} parent=0 // loop_footer_branch
    %68 = sbr.rel target = $region3
  $region8: #{cloth_autoencoder_forward.1} parent=0 // loop_exit
    _

</llo_original>
